<compile_context>
chip_gen: v7x
topology: tpu7x:2x2x1
jax: 0.10.0
libtpu: 0.0.40
codegen_flags: <defaults>
</compile_context>

<pallas_src>
import functools
import math

import jax
import jax.numpy as jnp
from jax.experimental import pallas as pl
from jax.experimental.pallas import tpu as pltpu


# --------------------------- VMEM budget / tiling helpers ---------------------------
def _detect_vmem_capacity():
    try:
        cap = int(pltpu.get_tpu_info().vmem_capacity_bytes)
        return max(32 * 1024 * 1024, min(cap, 256 * 1024 * 1024))
    except Exception:
        return 64 * 1024 * 1024  # v7x-safe assumption


_VMEM_CAP = _detect_vmem_capacity()
_VMEM_LIMIT = min(int(_VMEM_CAP * 0.75), 100 * 1024 * 1024)   # 96 MiB on v5e/v6e, 48 MiB on v7x
_TILE_BUDGET = int(_VMEM_LIMIT * 0.7)


def _round_up(n, m):
    return -(-n // m) * m


def _interim_channels(cin, cout, k):
    # floor(k^3 * cin * cout / (k^2 * cin + k * cout))  (from block.__init__)
    return int(math.floor(k * k * k * cin * cout / (k * k * cin + k * cout)))


def _largest_divisor_leq(n, cap):
    cap = max(1, min(cap, n))
    for d in range(cap, 0, -1):
        if n % d == 0:
            return d
    return 1


def _largest_divisor_mult8_leq(n, cap):
    # Largest divisor of n that is a multiple of 8 and <= cap; fall back to n (full
    # extent is always a legal second-minor block dim).
    cap = min(cap, n)
    start = cap - cap % 8
    for d in range(start, 7, -8):
        if n % d == 0:
            return d
    return n


def _pick_spatial_frames(ND, H, W, Cin, Cm, k):
    """Frames per grid step for the spatial conv, bounded by the VMEM budget."""
    p = k // 2
    Hp, Wp = H + 2 * p, W + 2 * p
    cin_l, cm_l = _round_up(Cin, 128), _round_up(Cm, 128)
    kcin_l = _round_up(k * Cin, 128)
    hw8, w8, wp8 = _round_up(H * W, 8), _round_up(W, 8), _round_up(Wp, 8)
    per_frame = (2 * H * w8 * cin_l * 2               # input block (double-buffered, bf16)
                 + 2 * hw8 * cm_l * 2                 # output block (double-buffered, bf16)
                 + Hp * wp8 * cin_l * 2               # xpad scratch (bf16)
                 + Hp * w8 * kcin_l * 2               # col scratch (bf16)
                 + hw8 * (kcin_l * 2 + 3 * cm_l * 4))  # dot lhs + f32 accumulator temps
    fixed = 2 * k * _round_up(k * Cin, 8) * cm_l * 2 + (2 << 20)
    cap_vmem = max(1, (_TILE_BUDGET - fixed) // max(per_frame, 1))
    cap_rows = max(1, 2048 // max(H * W, 1))          # keep matmul M around <=2048 rows
    cap_steps = max(1, ND // 4)                       # >=4 grid steps when possible
    return _largest_divisor_leq(ND, min(cap_vmem, cap_rows, cap_steps))


def _pick_temporal_cols(HW, D, Cm, Cout, k, N):
    """Pixel-columns per grid step for the temporal conv (multiple of 8 dividing HW)."""
    p = k // 2
    Dp = D + 2 * p
    cm_l, cout_l = _round_up(Cm, 128), _round_up(Cout, 128)

    def tile_bytes(S):
        s8 = _round_up(S, 8)
        return (2 * D * s8 * cm_l * 2                 # y input block (db, bf16)
                + 2 * D * s8 * cout_l * 2             # z output block (db, bf16)
                + Dp * s8 * cm_l * 2                  # zpad scratch (bf16)
                + D * s8 * (cm_l * 2 + 3 * cout_l * 4))

    fixed = 2 * k * _round_up(Cm, 8) * cout_l * 2 + (2 << 20)
    budget = _TILE_BUDGET - fixed
    cap_rows = max(8, 2048 // max(D, 1))
    want_steps = max(1, -(-4 // max(N, 1)))           # total grid steps >= 4 when possible
    cap_steps = max(8, HW // want_steps)
    S = _largest_divisor_mult8_leq(HW, min(cap_rows, cap_steps, HW))
    while S > 8 and tile_bytes(S) > budget:
        nxt = _largest_divisor_mult8_leq(HW, S - 8)
        if nxt >= S:
            break
        S = nxt
    return S


def _pick_residual_rows(ND, L):
    row_bytes = 2 * L * 2 * 2 + 2 * L * 4             # bf16 inputs (db) + f32 output (db)
    fixed = 4 * 2 * L * 4 + (1 << 20)                 # four f32 param rows (db)
    cap_vmem = max(8, (_TILE_BUDGET - fixed) // max(row_bytes, 1))
    cap_steps = max(8, ND // 4)
    return _largest_divisor_mult8_leq(ND, min(cap_vmem, cap_steps))


# ------------------ spatial (1,k,k) Conv3d, stride 1, pad k//2 ------------------
# Fused prologue: per-channel affine of the *previous* BatchNorm (identity for the
# first block).  Emits per-block partial BN statistics of its own output.
def _spatial_conv_kernel(x_ref, scale_ref, shift_ref, w_ref, b_ref,
                         y_ref, sum_ref, ssq_ref,
                         xpad_ref, col_ref, *, k, H, W, T):
    cin = x_ref.shape[-1]
    cm = w_ref.shape[-1]
    HW = H * W
    p = k // 2
    Hp, Wp = H + 2 * p, W + 2 * p

    # fused producer-BatchNorm affine (f32 on the VPU), bf16 for the MXU path
    x = (x_ref[...].astype(jnp.float32) * scale_ref[...] + shift_ref[...]
         ).astype(jnp.bfloat16)

    # Re-zero only the halo borders every step (interior is fully overwritten below).
    # NOTE: scratch is per-core; a pl.when(program_id==0) guard would leave the second
    # TensorCore's halo uninitialized under megacore grid splitting.
    if p > 0:
        xpad_ref[:, :p, :, :] = jnp.zeros((T, p, Wp, cin), jnp.bfloat16)
        xpad_ref[:, p + H:, :, :] = jnp.zeros((T, p, Wp, cin), jnp.bfloat16)
        xpad_ref[:, p:p + H, :p, :] = jnp.zeros((T, H, p, cin), jnp.bfloat16)
        xpad_ref[:, p:p + H, p + W:, :] = jnp.zeros((T, H, p, cin), jnp.bfloat16)
    xpad_ref[:, p:p + H, p:p + W, :] = x

    # im2col over kw only (k shifted copies instead of k*k); the kh offset becomes a
    # free major-dim address shift on the col reads feeding k accumulated MXU dots.
    for kw in range(k):
        col_ref[:, :, :, kw * cin:(kw + 1) * cin] = xpad_ref[:, :, kw:kw + W, :]

    acc = jnp.dot(col_ref[:, 0:H, :, :].reshape(T * HW, k * cin), w_ref[0],
                  preferred_element_type=jnp.float32)
    for kh in range(1, k):
        acc = acc + jnp.dot(col_ref[:, kh:kh + H, :, :].reshape(T * HW, k * cin),
                            w_ref[kh], preferred_element_type=jnp.float32)
    acc = acc + b_ref[...]

    y_ref[...] = acc.reshape(T, HW, cm).astype(y_ref.dtype)
    # partial BatchNorm stats of this conv's output (from the f32 accumulator)
    sum_ref[...] = jnp.sum(acc, axis=0, keepdims=True).reshape(1, 1, cm)
    ssq_ref[...] = jnp.sum(acc * acc, axis=0, keepdims=True).reshape(1, 1, cm)


def spatial_conv(x, w, b, in_scale, in_shift):
    """x: (N*D, H, W, Cin); w: (k,k,Cin,Cm); b: (Cm,).
    Returns y: (N*D, H*W, Cm) bf16, plus per-channel f32 (sum, sumsq) of y."""
    ND, H, W, Cin = x.shape
    k = w.shape[0]
    Cm = w.shape[-1]
    HW = H * W
    p = k // 2
    Hp, Wp = H + 2 * p, W + 2 * p
    T = _pick_spatial_frames(ND, H, W, Cin, Cm, k)
    G = ND // T

    y, s, q = pl.pallas_call(
        functools.partial(_spatial_conv_kernel, k=k, H=H, W=W, T=T),
        grid=(G,),
        in_specs=[
            pl.BlockSpec((T, H, W, Cin), lambda i: (i, 0, 0, 0)),
            pl.BlockSpec((1, Cin), lambda i: (0, 0)),
            pl.BlockSpec((1, Cin), lambda i: (0, 0)),
            pl.BlockSpec((k, k * Cin, Cm), lambda i: (0, 0, 0)),
            pl.BlockSpec((1, Cm), lambda i: (0, 0)),
        ],
        out_specs=[
            pl.BlockSpec((T, HW, Cm), lambda i: (i, 0, 0)),
            pl.BlockSpec((1, 1, Cm), lambda i: (i, 0, 0)),
            pl.BlockSpec((1, 1, Cm), lambda i: (i, 0, 0)),
        ],
        out_shape=[
            jax.ShapeDtypeStruct((ND, HW, Cm), jnp.bfloat16),
            jax.ShapeDtypeStruct((G, 1, Cm), jnp.float32),
            jax.ShapeDtypeStruct((G, 1, Cm), jnp.float32),
        ],
        scratch_shapes=[
            pltpu.VMEM((T, Hp, Wp, Cin), jnp.bfloat16),
            pltpu.VMEM((T, Hp, W, k * Cin), jnp.bfloat16),
        ],
        compiler_params=pltpu.CompilerParams(
            dimension_semantics=("parallel",),
            vmem_limit_bytes=_VMEM_LIMIT),
    )(
        x.astype(jnp.bfloat16),
        in_scale.reshape(1, Cin).astype(jnp.float32),
        in_shift.reshape(1, Cin).astype(jnp.float32),
        w.reshape(k, k * Cin, Cm).astype(jnp.bfloat16),
        b.reshape(1, Cm).astype(jnp.float32),
    )
    return y, jnp.sum(s, axis=(0, 1)), jnp.sum(q, axis=(0, 1))


# ------------------ temporal (k,1,1) Conv3d, stride 1, pad k//2 ------------------
# Fused prologue: BatchNorm(interim) affine + relu of the spatial conv output.
def _temporal_conv_kernel(y_ref, scale_ref, shift_ref, w_ref, b_ref,
                          z_ref, sum_ref, ssq_ref,
                          zpad_ref, *, k, D, S):
    cm = y_ref.shape[-1]
    cout = w_ref.shape[-1]
    p = k // 2

    # fused BN(interim) + relu of the spatial-conv output (f32 on the VPU)
    y = jnp.maximum(y_ref[0].astype(jnp.float32) * scale_ref[...] + shift_ref[...], 0.0)

    if p > 0:
        zpad_ref[:p, :, :] = jnp.zeros((p, S, cm), jnp.bfloat16)
        zpad_ref[p + D:, :, :] = jnp.zeros((p, S, cm), jnp.bfloat16)
    zpad_ref[p:p + D, :, :] = y.astype(jnp.bfloat16)

    # depth im2col folded into k accumulated MXU dots: the kd offset is a free
    # major-dim address shift on zpad_ref, so no col scratch or copies are needed.
    acc = jnp.dot(zpad_ref[0:D, :, :].reshape(D * S, cm), w_ref[0],
                  preferred_element_type=jnp.float32)
    for kd in range(1, k):
        acc = acc + jnp.dot(zpad_ref[kd:kd + D, :, :].reshape(D * S, cm), w_ref[kd],
                            preferred_element_type=jnp.float32)
    acc = acc + b_ref[...]

    z_ref[0] = acc.reshape(D, S, cout).astype(z_ref.dtype)
    sum_ref[...] = jnp.sum(acc, axis=0, keepdims=True).reshape(1, 1, cout)
    ssq_ref[...] = jnp.sum(acc * acc, axis=0, keepdims=True).reshape(1, 1, cout)


def temporal_conv(y, w, b, in_scale, in_shift, N, D):
    """y: (N*D, H*W, Cm) bf16; w: (k, Cm, Cout); b: (Cout,).
    Returns z: (N*D, H*W, Cout) bf16, plus per-channel f32 (sum, sumsq) of z."""
    ND, HW, Cm = y.shape
    k, _, Cout = w.shape
    p = k // 2
    Dp = D + 2 * p
    S = _pick_temporal_cols(HW, D, Cm, Cout, k, N)
    nS = HW // S
    y4 = y.reshape(N, D, HW, Cm)

    z, s, q = pl.pallas_call(
        functools.partial(_temporal_conv_kernel, k=k, D=D, S=S),
        grid=(N, nS),
        in_specs=[
            pl.BlockSpec((1, D, S, Cm), lambda n, j: (n, 0, j, 0)),
            pl.BlockSpec((1, Cm), lambda n, j: (0, 0)),
            pl.BlockSpec((1, Cm), lambda n, j: (0, 0)),
            pl.BlockSpec((k, Cm, Cout), lambda n, j: (0, 0, 0)),
            pl.BlockSpec((1, Cout), lambda n, j: (0, 0)),
        ],
        out_specs=[
            pl.BlockSpec((1, D, S, Cout), lambda n, j: (n, 0, j, 0)),
            pl.BlockSpec((1, 1, Cout), lambda n, j: (n * nS + j, 0, 0)),
            pl.BlockSpec((1, 1, Cout), lambda n, j: (n * nS + j, 0, 0)),
        ],
        out_shape=[
            jax.ShapeDtypeStruct((N, D, HW, Cout), jnp.bfloat16),
            jax.ShapeDtypeStruct((N * nS, 1, Cout), jnp.float32),
            jax.ShapeDtypeStruct((N * nS, 1, Cout), jnp.float32),
        ],
        scratch_shapes=[
            pltpu.VMEM((Dp, S, Cm), jnp.bfloat16),
        ],
        compiler_params=pltpu.CompilerParams(
            dimension_semantics=("parallel", "parallel"),
            vmem_limit_bytes=_VMEM_LIMIT),
    )(
        y4,
        in_scale.reshape(1, Cm).astype(jnp.float32),
        in_shift.reshape(1, Cm).astype(jnp.float32),
        w.astype(jnp.bfloat16),
        b.reshape(1, Cout).astype(jnp.float32),
    )
    return z.reshape(ND, HW, Cout), jnp.sum(s, axis=(0, 1)), jnp.sum(q, axis=(0, 1))


# ---------- fused final stage: out = relu(BN(z2) + relu(BN(z1))), lane-dense ----------
def _bn_residual_relu_kernel(z1_ref, z2_ref, s1_ref, t1_ref, s2_ref, t2_ref, o_ref):
    z1 = z1_ref[...].astype(jnp.float32)
    z2 = z2_ref[...].astype(jnp.float32)
    r1 = jnp.maximum(z1 * s1_ref[...] + t1_ref[...], 0.0)
    r2 = z2 * s2_ref[...] + t2_ref[...]
    o_ref[...] = jnp.maximum(r2 + r1, 0.0)


def residual_bn_add_relu(z1, z2, a1, b1, a2, b2):
    """z1, z2: (N*D, H*W, C) bf16; a*, b*: (C,) f32.  Flattened to (N*D, H*W*C) so the
    minor (lane) dimension is wide -> unmasked vector stores."""
    ND, HW, C = z1.shape
    L = HW * C
    z1f = z1.reshape(ND, L)
    z2f = z2.reshape(ND, L)
    a1t = jnp.tile(a1.astype(jnp.float32), HW).reshape(1, L)
    b1t = jnp.tile(b1.astype(jnp.float32), HW).reshape(1, L)
    a2t = jnp.tile(a2.astype(jnp.float32), HW).reshape(1, L)
    b2t = jnp.tile(b2.astype(jnp.float32), HW).reshape(1, L)
    RB = _pick_residual_rows(ND, L)
    G = ND // RB
    out = pl.pallas_call(
        _bn_residual_relu_kernel,
        grid=(G,),
        in_specs=[
            pl.BlockSpec((RB, L), lambda i: (i, 0)),
            pl.BlockSpec((RB, L), lambda i: (i, 0)),
            pl.BlockSpec((1, L), lambda i: (0, 0)),
            pl.BlockSpec((1, L), lambda i: (0, 0)),
            pl.BlockSpec((1, L), lambda i: (0, 0)),
            pl.BlockSpec((1, L), lambda i: (0, 0)),
        ],
        out_specs=pl.BlockSpec((RB, L), lambda i: (i, 0)),
        out_shape=jax.ShapeDtypeStruct((ND, L), jnp.float32),
        compiler_params=pltpu.CompilerParams(
            dimension_semantics=("parallel",),
            vmem_limit_bytes=_VMEM_LIMIT),
    )(z1f, z2f, a1t, b1t, a2t, b2t)
    return out.reshape(ND, HW, C)


# --------------------- BatchNorm (train mode) stats -> affine ---------------------
def _bn_affine(sum_, sumsq, count, gamma, beta, eps=1e-5):
    mean = sum_ / count
    var = jnp.maximum(sumsq / count - mean * mean, 0.0)   # biased variance
    inv = jax.lax.rsqrt(var + eps)
    scale = gamma * inv
    shift = beta - mean * scale
    return scale, shift


# --------------------- parameters & forward composition ---------------------
def init_block_params(key, cin, cout, k):
    cm = _interim_channels(cin, cout, k)
    ks = jax.random.split(key, 6)
    ws = jax.random.normal(ks[0], (k, k, cin, cm), jnp.float32) / math.sqrt(cin * k * k)
    bs = 0.01 * jax.random.normal(ks[1], (cm,), jnp.float32)
    gamma = 1.0 + 0.1 * jax.random.normal(ks[2], (cm,), jnp.float32)
    beta = 0.1 * jax.random.normal(ks[3], (cm,), jnp.float32)
    wt = jax.random.normal(ks[4], (k, cm, cout), jnp.float32) / math.sqrt(cm * k)
    bt = 0.01 * jax.random.normal(ks[5], (cout,), jnp.float32)
    return dict(ws=ws, bs=bs, gamma=gamma, beta=beta, wt=wt, bt=bt)


def init_residual_block_params(key, cin, cout, k):
    k1, k2, k3 = jax.random.split(key, 3)
    return dict(
        conv1=init_block_params(k1, cin, cout, k),
        conv2=init_block_params(k2, cout, cout, k),
        bn_gamma=1.0 + 0.1 * jax.random.normal(k3, (cout,), jnp.float32),
        bn_beta=jnp.zeros((cout,), jnp.float32),
    )


def residual_block_forward(x_ncdhw, params):
    """ResidualBlock forward (train-mode BatchNorm). Input/output layout: NCDHW."""
    # TODO(synk): the NCDHW<->NDHWC transposes could be dropped if the surrounding
    #             model consumed channels-last activations directly.
    x = jnp.transpose(x_ncdhw, (0, 2, 3, 4, 1))                       # -> NDHWC
    N, D, H, W, Cin = x.shape
    ND = N * D
    cnt = float(N * D * H * W)
    p1, p2 = params["conv1"], params["conv2"]
    g_r, b_r = params["bn_gamma"], params["bn_beta"]

    x_f = x.reshape(ND, H, W, Cin)

    # ---- block 1: spatialConv -> BN(interim)+relu -> temporalConv ----
    y1, s1, q1 = spatial_conv(x_f, p1["ws"], p1["bs"],
                              jnp.ones((Cin,), jnp.float32),
                              jnp.zeros((Cin,), jnp.float32))
    sc1, sh1 = _bn_affine(s1, q1, cnt, p1["gamma"], p1["beta"])
    z1, sz1, qz1 = temporal_conv(y1, p1["wt"], p1["bt"], sc1, sh1, N, D)
    Cout = z1.shape[-1]

    # shared BatchNorm3d(out_channels): first application (batch stats of z1)
    a1, b1 = _bn_affine(sz1, qz1, cnt, g_r, b_r)

    # ---- block 2: input is BN(z1) (no relu), fused into the spatial conv prologue ----
    y2, s2, q2 = spatial_conv(z1.reshape(ND, H, W, Cout), p2["ws"], p2["bs"], a1, b1)
    sc2, sh2 = _bn_affine(s2, q2, cnt, p2["gamma"], p2["beta"])
    z2, sz2, qz2 = temporal_conv(y2, p2["wt"], p2["bt"], sc2, sh2, N, D)

    # shared BatchNorm3d: second application (batch stats of z2)
    a2, b2 = _bn_affine(sz2, qz2, cnt, g_r, b_r)

    # out = relu(BN(z2) + relu(BN(z1)))
    out = residual_bn_add_relu(z1, z2, a1, b1, a2, b2)
    out = out.reshape(N, D, H, W, Cout)
    return jnp.transpose(out, (0, 4, 1, 2, 3))                        # -> NCDHW


if __name__ == "__main__":
    key = jax.random.PRNGKey(0)
    kx, kp = jax.random.split(key)
    N, Cin, D, H, W = 2, 4, 4, 8, 8
    Cout, kernel = 8, 3
    x = jax.random.normal(kx, (N, Cin, D, H, W), jnp.float32)
    params = init_residual_block_params(kp, Cin, Cout, kernel)
    fwd = jax.jit(residual_block_forward)
    y = fwd(x, params)
    jax.block_until_ready(y)
    assert y.shape == (N, Cout, D, H, W), y.shape
    assert y.dtype == jnp.float32
    print("KERNEL_OK")
</pallas_src>

<mosaic_0001>
module attributes {stable_mosaic.version = 11 : i64} {
  func.func @_spatial_conv_kernel(%arg0: i32, %arg1: memref<2x8x8x4xbf16, #tpu.memory_space<vmem>>, %arg2: memref<1x4xf32, #tpu.memory_space<vmem>>, %arg3: memref<1x4xf32, #tpu.memory_space<vmem>>, %arg4: memref<3x12x14xbf16, #tpu.memory_space<vmem>>, %arg5: memref<1x14xf32, #tpu.memory_space<vmem>>, %arg6: memref<2x64x14xbf16, #tpu.memory_space<vmem>>, %arg7: memref<1x1x14xf32, #tpu.memory_space<vmem>>, %arg8: memref<1x1x14xf32, #tpu.memory_space<vmem>>, %arg9: memref<2x10x10x4xbf16, #tpu.memory_space<vmem>>, %arg10: memref<2x10x8x12xbf16, #tpu.memory_space<vmem>>) attributes {dimension_semantics = [#tpu.dimension_semantics<parallel>], iteration_bounds = array<i64: 4>, scalar_prefetch = 0 : i64, scratch_operands = 2 : i64, tpu.core_type = #tpu.core_type<tc>, window_params = [{transform_indices = @transform_0, window_bounds = array<i64: 2, 8, 8, 4>}, {pipeline_mode = #tpu.pipeline_mode<synchronous>, transform_indices = @transform_1, window_bounds = array<i64: 1, 4>}, {pipeline_mode = #tpu.pipeline_mode<synchronous>, transform_indices = @transform_2, window_bounds = array<i64: 1, 4>}, {pipeline_mode = #tpu.pipeline_mode<synchronous>, transform_indices = @transform_3, window_bounds = array<i64: 3, 12, 14>}, {pipeline_mode = #tpu.pipeline_mode<synchronous>, transform_indices = @transform_4, window_bounds = array<i64: 1, 14>}, {transform_indices = @transform_5, window_bounds = array<i64: 2, 64, 14>}, {transform_indices = @transform_6, window_bounds = array<i64: 1, 1, 14>}, {transform_indices = @transform_7, window_bounds = array<i64: 1, 1, 14>}]} {
    %c0 = arith.constant 0 : index
    %c0_0 = arith.constant 0 : index
    %c0_1 = arith.constant 0 : index
    %c0_2 = arith.constant 0 : index
    %0 = vector.load %arg1[%c0, %c0_0, %c0_1, %c0_2] : memref<2x8x8x4xbf16, #tpu.memory_space<vmem>>, vector<2x8x8x4xbf16>
    %1 = arith.extf %0 : vector<2x8x8x4xbf16> to vector<2x8x8x4xf32>
    %c0_3 = arith.constant 0 : index
    %c0_4 = arith.constant 0 : index
    %2 = vector.load %arg2[%c0_3, %c0_4] : memref<1x4xf32, #tpu.memory_space<vmem>>, vector<1x4xf32>
    %3 = vector.shape_cast %2 : vector<1x4xf32> to vector<1x1x1x4xf32>
    %4 = vector.broadcast %3 : vector<1x1x1x4xf32> to vector<2x8x8x4xf32>
    %5 = arith.mulf %1, %4 : vector<2x8x8x4xf32>
    %c0_5 = arith.constant 0 : index
    %c0_6 = arith.constant 0 : index
    %6 = vector.load %arg3[%c0_5, %c0_6] : memref<1x4xf32, #tpu.memory_space<vmem>>, vector<1x4xf32>
    %7 = vector.shape_cast %6 : vector<1x4xf32> to vector<1x1x1x4xf32>
    %8 = vector.broadcast %7 : vector<1x1x1x4xf32> to vector<2x8x8x4xf32>
    %9 = arith.addf %5, %8 : vector<2x8x8x4xf32>
    %10 = arith.truncf %9 : vector<2x8x8x4xf32> to vector<2x8x8x4xbf16>
    %cst = arith.constant 0.000000e+00 : bf16
    %11 = vector.broadcast %cst : bf16 to vector<2x1x10x4xbf16>
    %c0_7 = arith.constant 0 : index
    %c0_8 = arith.constant 0 : index
    %c0_9 = arith.constant 0 : index
    %c0_10 = arith.constant 0 : index
    %12 = vector.load %arg9[%c0_7, %c0_8, %c0_9, %c0_10] : memref<2x10x10x4xbf16, #tpu.memory_space<vmem>>, vector<2x1x10x4xbf16>
    tpu.vector_store %arg9[%c0_7, %c0_8, %c0_9, %c0_10], %11 {strides = array<i32>} : memref<2x10x10x4xbf16, #tpu.memory_space<vmem>>, vector<2x1x10x4xbf16>,
    %cst_11 = arith.constant 0.000000e+00 : bf16
    %13 = vector.broadcast %cst_11 : bf16 to vector<2x1x10x4xbf16>
    %c0_12 = arith.constant 0 : index
    %c9 = arith.constant 9 : index
    %c0_13 = arith.constant 0 : index
    %c0_14 = arith.constant 0 : index
    %14 = vector.load %arg9[%c0_12, %c9, %c0_13, %c0_14] : memref<2x10x10x4xbf16, #tpu.memory_space<vmem>>, vector<2x1x10x4xbf16>
    tpu.vector_store %arg9[%c0_12, %c9, %c0_13, %c0_14], %13 {strides = array<i32>} : memref<2x10x10x4xbf16, #tpu.memory_space<vmem>>, vector<2x1x10x4xbf16>,
    %cst_15 = arith.constant 0.000000e+00 : bf16
    %15 = vector.broadcast %cst_15 : bf16 to vector<2x8x1x4xbf16>
    %c0_16 = arith.constant 0 : index
    %c1 = arith.constant 1 : index
    %c0_17 = arith.constant 0 : index
    %c0_18 = arith.constant 0 : index
    %16 = vector.load %arg9[%c0_16, %c1, %c0_17, %c0_18] : memref<2x10x10x4xbf16, #tpu.memory_space<vmem>>, vector<2x8x1x4xbf16>
    tpu.vector_store %arg9[%c0_16, %c1, %c0_17, %c0_18], %15 {strides = array<i32>} : memref<2x10x10x4xbf16, #tpu.memory_space<vmem>>, vector<2x8x1x4xbf16>,
    %cst_19 = arith.constant 0.000000e+00 : bf16
    %17 = vector.broadcast %cst_19 : bf16 to vector<2x8x1x4xbf16>
    %c0_20 = arith.constant 0 : index
    %c1_21 = arith.constant 1 : index
    %c9_22 = arith.constant 9 : index
    %c0_23 = arith.constant 0 : index
    %18 = vector.load %arg9[%c0_20, %c1_21, %c9_22, %c0_23] : memref<2x10x10x4xbf16, #tpu.memory_space<vmem>>, vector<2x8x1x4xbf16>
    tpu.vector_store %arg9[%c0_20, %c1_21, %c9_22, %c0_23], %17 {strides = array<i32>} : memref<2x10x10x4xbf16, #tpu.memory_space<vmem>>, vector<2x8x1x4xbf16>,
    %c0_24 = arith.constant 0 : index
    %c1_25 = arith.constant 1 : index
    %c1_26 = arith.constant 1 : index
    %c0_27 = arith.constant 0 : index
    %19 = vector.load %arg9[%c0_24, %c1_25, %c1_26, %c0_27] : memref<2x10x10x4xbf16, #tpu.memory_space<vmem>>, vector<2x8x8x4xbf16>
    tpu.vector_store %arg9[%c0_24, %c1_25, %c1_26, %c0_27], %10 {strides = array<i32>} : memref<2x10x10x4xbf16, #tpu.memory_space<vmem>>, vector<2x8x8x4xbf16>,
    %c0_28 = arith.constant 0 : index
    %c0_29 = arith.constant 0 : index
    %c0_30 = arith.constant 0 : index
    %c0_31 = arith.constant 0 : index
    %20 = vector.load %arg9[%c0_28, %c0_29, %c0_30, %c0_31] : memref<2x10x10x4xbf16, #tpu.memory_space<vmem>>, vector<2x10x8x4xbf16>
    %c0_32 = arith.constant 0 : index
    %c0_33 = arith.constant 0 : index
    %c0_34 = arith.constant 0 : index
    %c0_35 = arith.constant 0 : index
    %21 = vector.load %arg10[%c0_32, %c0_33, %c0_34, %c0_35] : memref<2x10x8x12xbf16, #tpu.memory_space<vmem>>, vector<2x10x8x4xbf16>
    tpu.vector_store %arg10[%c0_32, %c0_33, %c0_34, %c0_35], %20 {strides = array<i32>} : memref<2x10x8x12xbf16, #tpu.memory_space<vmem>>, vector<2x10x8x4xbf16>,
    %c0_36 = arith.constant 0 : index
    %c0_37 = arith.constant 0 : index
    %c1_38 = arith.constant 1 : index
    %c0_39 = arith.constant 0 : index
    %22 = vector.load %arg9[%c0_36, %c0_37, %c1_38, %c0_39] : memref<2x10x10x4xbf16, #tpu.memory_space<vmem>>, vector<2x10x8x4xbf16>
    %c0_40 = arith.constant 0 : index
    %c0_41 = arith.constant 0 : index
    %c0_42 = arith.constant 0 : index
    %c4 = arith.constant 4 : index
    %23 = vector.load %arg10[%c0_40, %c0_41, %c0_42, %c4] : memref<2x10x8x12xbf16, #tpu.memory_space<vmem>>, vector<2x10x8x4xbf16>
    tpu.vector_store %arg10[%c0_40, %c0_41, %c0_42, %c4], %22 {strides = array<i32>} : memref<2x10x8x12xbf16, #tpu.memory_space<vmem>>, vector<2x10x8x4xbf16>,
    %c0_43 = arith.constant 0 : index
    %c0_44 = arith.constant 0 : index
    %c2 = arith.constant 2 : index
    %c0_45 = arith.constant 0 : index
    %24 = vector.load %arg9[%c0_43, %c0_44, %c2, %c0_45] : memref<2x10x10x4xbf16, #tpu.memory_space<vmem>>, vector<2x10x8x4xbf16>
    %c0_46 = arith.constant 0 : index
    %c0_47 = arith.constant 0 : index
    %c0_48 = arith.constant 0 : index
    %c8 = arith.constant 8 : index
    %25 = vector.load %arg10[%c0_46, %c0_47, %c0_48, %c8] : memref<2x10x8x12xbf16, #tpu.memory_space<vmem>>, vector<2x10x8x4xbf16>
    tpu.vector_store %arg10[%c0_46, %c0_47, %c0_48, %c8], %24 {strides = array<i32>} : memref<2x10x8x12xbf16, #tpu.memory_space<vmem>>, vector<2x10x8x4xbf16>,
    %c0_49 = arith.constant 0 : index
    %c0_50 = arith.constant 0 : index
    %c0_51 = arith.constant 0 : index
    %c0_52 = arith.constant 0 : index
    %26 = vector.load %arg10[%c0_49, %c0_50, %c0_51, %c0_52] : memref<2x10x8x12xbf16, #tpu.memory_space<vmem>>, vector<2x8x8x12xbf16>
    %27 = vector.shape_cast %26 : vector<2x8x8x12xbf16> to vector<128x12xbf16>
    %c0_53 = arith.constant 0 : index
    %c0_54 = arith.constant 0 : index
    %c0_55 = arith.constant 0 : index
    %28 = vector.load %arg4[%c0_53, %c0_54, %c0_55] : memref<3x12x14xbf16, #tpu.memory_space<vmem>>, vector<1x12x14xbf16>
    %29 = vector.shape_cast %28 : vector<1x12x14xbf16> to vector<12x14xbf16>
    %cst_56 = arith.constant dense<0.000000e+00> : vector<128x14xf32>
    %30 = tpu.matmul %27, %29, %cst_56 {dimension_numbers = #tpu.dot_dimension_numbers<[1], [0], [0], [1], [0, 0, 1, 1], [], []>} : vector<128x12xbf16>, vector<12x14xbf16>, vector<128x14xf32> -> vector<128x14xf32>
    %c0_57 = arith.constant 0 : index
    %c1_58 = arith.constant 1 : index
    %c0_59 = arith.constant 0 : index
    %c0_60 = arith.constant 0 : index
    %31 = vector.load %arg10[%c0_57, %c1_58, %c0_59, %c0_60] : memref<2x10x8x12xbf16, #tpu.memory_space<vmem>>, vector<2x8x8x12xbf16>
    %32 = vector.shape_cast %31 : vector<2x8x8x12xbf16> to vector<128x12xbf16>
    %c1_61 = arith.constant 1 : index
    %c0_62 = arith.constant 0 : index
    %c0_63 = arith.constant 0 : index
    %33 = vector.load %arg4[%c1_61, %c0_62, %c0_63] : memref<3x12x14xbf16, #tpu.memory_space<vmem>>, vector<1x12x14xbf16>
    %34 = vector.shape_cast %33 : vector<1x12x14xbf16> to vector<12x14xbf16>
    %cst_64 = arith.constant dense<0.000000e+00> : vector<128x14xf32>
    %35 = tpu.matmul %32, %34, %cst_64 {dimension_numbers = #tpu.dot_dimension_numbers<[1], [0], [0], [1], [0, 0, 1, 1], [], []>} : vector<128x12xbf16>, vector<12x14xbf16>, vector<128x14xf32> -> vector<128x14xf32>
    %36 = arith.addf %30, %35 : vector<128x14xf32>
    %c0_65 = arith.constant 0 : index
    %c2_66 = arith.constant 2 : index
    %c0_67 = arith.constant 0 : index
    %c0_68 = arith.constant 0 : index
    %37 = vector.load %arg10[%c0_65, %c2_66, %c0_67, %c0_68] : memref<2x10x8x12xbf16, #tpu.memory_space<vmem>>, vector<2x8x8x12xbf16>
    %38 = vector.shape_cast %37 : vector<2x8x8x12xbf16> to vector<128x12xbf16>
    %c2_69 = arith.constant 2 : index
    %c0_70 = arith.constant 0 : index
    %c0_71 = arith.constant 0 : index
    %39 = vector.load %arg4[%c2_69, %c0_70, %c0_71] : memref<3x12x14xbf16, #tpu.memory_space<vmem>>, vector<1x12x14xbf16>
    %40 = vector.shape_cast %39 : vector<1x12x14xbf16> to vector<12x14xbf16>
    %cst_72 = arith.constant dense<0.000000e+00> : vector<128x14xf32>
    %41 = tpu.matmul %38, %40, %cst_72 {dimension_numbers = #tpu.dot_dimension_numbers<[1], [0], [0], [1], [0, 0, 1, 1], [], []>} : vector<128x12xbf16>, vector<12x14xbf16>, vector<128x14xf32> -> vector<128x14xf32>
    %42 = arith.addf %36, %41 : vector<128x14xf32>
    %c0_73 = arith.constant 0 : index
    %c0_74 = arith.constant 0 : index
    %43 = vector.load %arg5[%c0_73, %c0_74] : memref<1x14xf32, #tpu.memory_space<vmem>>, vector<1x14xf32>
    %44 = vector.broadcast %43 : vector<1x14xf32> to vector<128x14xf32>
    %45 = arith.addf %42, %44 : vector<128x14xf32>
    %46 = vector.shape_cast %45 : vector<128x14xf32> to vector<2x64x14xf32>
    %47 = arith.truncf %46 : vector<2x64x14xf32> to vector<2x64x14xbf16>
    %c0_75 = arith.constant 0 : index
    %c0_76 = arith.constant 0 : index
    %c0_77 = arith.constant 0 : index
    %48 = vector.load %arg6[%c0_75, %c0_76, %c0_77] : memref<2x64x14xbf16, #tpu.memory_space<vmem>>, vector<2x64x14xbf16>
    tpu.vector_store %arg6[%c0_75, %c0_76, %c0_77], %47 {strides = array<i32>} : memref<2x64x14xbf16, #tpu.memory_space<vmem>>, vector<2x64x14xbf16>,
    %cst_78 = arith.constant dense<0.000000e+00> : vector<14xf32>
    %49 = vector.multi_reduction <add>, %45, %cst_78 [0] : vector<128x14xf32> to vector<14xf32>
    %50 = vector.shape_cast %49 : vector<14xf32> to vector<1x14xf32>
    %51 = vector.shape_cast %50 : vector<1x14xf32> to vector<1x1x14xf32>
    %c0_79 = arith.constant 0 : index
    %c0_80 = arith.constant 0 : index
    %c0_81 = arith.constant 0 : index
    %52 = vector.load %arg7[%c0_79, %c0_80, %c0_81] : memref<1x1x14xf32, #tpu.memory_space<vmem>>, vector<1x1x14xf32>
    tpu.vector_store %arg7[%c0_79, %c0_80, %c0_81], %51 {strides = array<i32>} : memref<1x1x14xf32, #tpu.memory_space<vmem>>, vector<1x1x14xf32>,
    %53 = arith.mulf %45, %45 : vector<128x14xf32>
    %cst_82 = arith.constant dense<0.000000e+00> : vector<14xf32>
    %54 = vector.multi_reduction <add>, %53, %cst_82 [0] : vector<128x14xf32> to vector<14xf32>
    %55 = vector.shape_cast %54 : vector<14xf32> to vector<1x14xf32>
    %56 = vector.shape_cast %55 : vector<1x14xf32> to vector<1x1x14xf32>
    %c0_83 = arith.constant 0 : index
    %c0_84 = arith.constant 0 : index
    %c0_85 = arith.constant 0 : index
    %57 = vector.load %arg8[%c0_83, %c0_84, %c0_85] : memref<1x1x14xf32, #tpu.memory_space<vmem>>, vector<1x1x14xf32>
    tpu.vector_store %arg8[%c0_83, %c0_84, %c0_85], %56 {strides = array<i32>} : memref<1x1x14xf32, #tpu.memory_space<vmem>>, vector<1x1x14xf32>,
    return
  }
  func.func @transform_0(%arg0: i32) -> (i32, i32, i32, i32) {
    %c0_i32 = arith.constant 0 : i32
    %c0_i32_0 = arith.constant 0 : i32
    %c0_i32_1 = arith.constant 0 : i32
    %c0_i32_2 = arith.constant 0 : i32
    return %arg0, %c0_i32, %c0_i32_0, %c0_i32_1 : i32, i32, i32, i32
  }
  func.func @transform_1(%arg0: i32) -> (i32, i32) {
    %c0_i32 = arith.constant 0 : i32
    %c0_i32_0 = arith.constant 0 : i32
    %c0_i32_1 = arith.constant 0 : i32
    return %c0_i32, %c0_i32_0 : i32, i32
  }
  func.func @transform_2(%arg0: i32) -> (i32, i32) {
    %c0_i32 = arith.constant 0 : i32
    %c0_i32_0 = arith.constant 0 : i32
    %c0_i32_1 = arith.constant 0 : i32
    return %c0_i32, %c0_i32_0 : i32, i32
  }
  func.func @transform_3(%arg0: i32) -> (i32, i32, i32) {
    %c0_i32 = arith.constant 0 : i32
    %c0_i32_0 = arith.constant 0 : i32
    %c0_i32_1 = arith.constant 0 : i32
    %c0_i32_2 = arith.constant 0 : i32
    return %c0_i32, %c0_i32_0, %c0_i32_1 : i32, i32, i32
  }
  func.func @transform_4(%arg0: i32) -> (i32, i32) {
    %c0_i32 = arith.constant 0 : i32
    %c0_i32_0 = arith.constant 0 : i32
    %c0_i32_1 = arith.constant 0 : i32
    return %c0_i32, %c0_i32_0 : i32, i32
  }
  func.func @transform_5(%arg0: i32) -> (i32, i32, i32) {
    %c0_i32 = arith.constant 0 : i32
    %c0_i32_0 = arith.constant 0 : i32
    %c0_i32_1 = arith.constant 0 : i32
    return %arg0, %c0_i32, %c0_i32_0 : i32, i32, i32
  }
  func.func @transform_6(%arg0: i32) -> (i32, i32, i32) {
    %c0_i32 = arith.constant 0 : i32
    %c0_i32_0 = arith.constant 0 : i32
    %c0_i32_1 = arith.constant 0 : i32
    return %arg0, %c0_i32, %c0_i32_0 : i32, i32, i32
  }
  func.func @transform_7(%arg0: i32) -> (i32, i32, i32) {
    %c0_i32 = arith.constant 0 : i32
    %c0_i32_0 = arith.constant 0 : i32
    %c0_i32_1 = arith.constant 0 : i32
    return %arg0, %c0_i32, %c0_i32_0 : i32, i32, i32
  }
}

module attributes {stable_mosaic.version = 11 : i64} {
  func.func @_temporal_conv_kernel(%arg0: i32, %arg1: i32, %arg2: memref<1x4x32x14xbf16, #tpu.memory_space<vmem>>, %arg3: memref<1x14xf32, #tpu.memory_space<vmem>>, %arg4: memref<1x14xf32, #tpu.memory_space<vmem>>, %arg5: memref<3x14x8xbf16, #tpu.memory_space<vmem>>, %arg6: memref<1x8xf32, #tpu.memory_space<vmem>>, %arg7: memref<1x4x32x8xbf16, #tpu.memory_space<vmem>>, %arg8: memref<1x1x8xf32, #tpu.memory_space<vmem>>, %arg9: memref<1x1x8xf32, #tpu.memory_space<vmem>>, %arg10: memref<6x32x14xbf16, #tpu.memory_space<vmem>>) attributes {dimension_semantics = [#tpu.dimension_semantics<parallel>, #tpu.dimension_semantics<parallel>], iteration_bounds = array<i64: 2, 2>, scalar_prefetch = 0 : i64, scratch_operands = 1 : i64, tpu.core_type = #tpu.core_type<tc>, window_params = [{transform_indices = @transform_0, window_bounds = array<i64: 1, 4, 32, 14>}, {pipeline_mode = #tpu.pipeline_mode<synchronous>, transform_indices = @transform_1, window_bounds = array<i64: 1, 14>}, {pipeline_mode = #tpu.pipeline_mode<synchronous>, transform_indices = @transform_2, window_bounds = array<i64: 1, 14>}, {pipeline_mode = #tpu.pipeline_mode<synchronous>, transform_indices = @transform_3, window_bounds = array<i64: 3, 14, 8>}, {pipeline_mode = #tpu.pipeline_mode<synchronous>, transform_indices = @transform_4, window_bounds = array<i64: 1, 8>}, {transform_indices = @transform_5, window_bounds = array<i64: 1, 4, 32, 8>}, {transform_indices = @transform_6, window_bounds = array<i64: 1, 1, 8>}, {transform_indices = @transform_7, window_bounds = array<i64: 1, 1, 8>}]} {
    %c0 = arith.constant 0 : index
    %c0_0 = arith.constant 0 : index
    %c0_1 = arith.constant 0 : index
    %c0_2 = arith.constant 0 : index
    %0 = vector.load %arg2[%c0, %c0_0, %c0_1, %c0_2] : memref<1x4x32x14xbf16, #tpu.memory_space<vmem>>, vector<1x4x32x14xbf16>
    %1 = vector.shape_cast %0 : vector<1x4x32x14xbf16> to vector<4x32x14xbf16>
    %2 = arith.extf %1 : vector<4x32x14xbf16> to vector<4x32x14xf32>
    %c0_3 = arith.constant 0 : index
    %c0_4 = arith.constant 0 : index
    %3 = vector.load %arg3[%c0_3, %c0_4] : memref<1x14xf32, #tpu.memory_space<vmem>>, vector<1x14xf32>
    %4 = vector.shape_cast %3 : vector<1x14xf32> to vector<1x1x14xf32>
    %5 = vector.broadcast %4 : vector<1x1x14xf32> to vector<4x32x14xf32>
    %6 = arith.mulf %2, %5 : vector<4x32x14xf32>
    %c0_5 = arith.constant 0 : index
    %c0_6 = arith.constant 0 : index
    %7 = vector.load %arg4[%c0_5, %c0_6] : memref<1x14xf32, #tpu.memory_space<vmem>>, vector<1x14xf32>
    %8 = vector.shape_cast %7 : vector<1x14xf32> to vector<1x1x14xf32>
    %9 = vector.broadcast %8 : vector<1x1x14xf32> to vector<4x32x14xf32>
    %10 = arith.addf %6, %9 : vector<4x32x14xf32>
    %cst = arith.constant 0.000000e+00 : f32
    %11 = vector.broadcast %cst : f32 to vector<4x32x14xf32>
    %12 = arith.maximumf %10, %11 : vector<4x32x14xf32>
    %cst_7 = arith.constant 0.000000e+00 : bf16
    %13 = vector.broadcast %cst_7 : bf16 to vector<1x32x14xbf16>
    %c0_8 = arith.constant 0 : index
    %c0_9 = arith.constant 0 : index
    %c0_10 = arith.constant 0 : index
    %14 = vector.load %arg10[%c0_8, %c0_9, %c0_10] : memref<6x32x14xbf16, #tpu.memory_space<vmem>>, vector<1x32x14xbf16>
    tpu.vector_store %arg10[%c0_8, %c0_9, %c0_10], %13 {strides = array<i32>} : memref<6x32x14xbf16, #tpu.memory_space<vmem>>, vector<1x32x14xbf16>,
    %cst_11 = arith.constant 0.000000e+00 : bf16
    %15 = vector.broadcast %cst_11 : bf16 to vector<1x32x14xbf16>
    %c5 = arith.constant 5 : index
    %c0_12 = arith.constant 0 : index
    %c0_13 = arith.constant 0 : index
    %16 = vector.load %arg10[%c5, %c0_12, %c0_13] : memref<6x32x14xbf16, #tpu.memory_space<vmem>>, vector<1x32x14xbf16>
    tpu.vector_store %arg10[%c5, %c0_12, %c0_13], %15 {strides = array<i32>} : memref<6x32x14xbf16, #tpu.memory_space<vmem>>, vector<1x32x14xbf16>,
    %17 = arith.truncf %12 : vector<4x32x14xf32> to vector<4x32x14xbf16>
    %c1 = arith.constant 1 : index
    %c0_14 = arith.constant 0 : index
    %c0_15 = arith.constant 0 : index
    %18 = vector.load %arg10[%c1, %c0_14, %c0_15] : memref<6x32x14xbf16, #tpu.memory_space<vmem>>, vector<4x32x14xbf16>
    tpu.vector_store %arg10[%c1, %c0_14, %c0_15], %17 {strides = array<i32>} : memref<6x32x14xbf16, #tpu.memory_space<vmem>>, vector<4x32x14xbf16>,
    %c0_16 = arith.constant 0 : index
    %c0_17 = arith.constant 0 : index
    %c0_18 = arith.constant 0 : index
    %19 = vector.load %arg10[%c0_16, %c0_17, %c0_18] : memref<6x32x14xbf16, #tpu.memory_space<vmem>>, vector<4x32x14xbf16>
    %20 = vector.shape_cast %19 : vector<4x32x14xbf16> to vector<128x14xbf16>
    %c0_19 = arith.constant 0 : index
    %c0_20 = arith.constant 0 : index
    %c0_21 = arith.constant 0 : index
    %21 = vector.load %arg5[%c0_19, %c0_20, %c0_21] : memref<3x14x8xbf16, #tpu.memory_space<vmem>>, vector<1x14x8xbf16>
    %22 = vector.shape_cast %21 : vector<1x14x8xbf16> to vector<14x8xbf16>
    %cst_22 = arith.constant dense<0.000000e+00> : vector<128x8xf32>
    %23 = tpu.matmul %20, %22, %cst_22 {dimension_numbers = #tpu.dot_dimension_numbers<[1], [0], [0], [1], [0, 0, 1, 1], [], []>} : vector<128x14xbf16>, vector<14x8xbf16>, vector<128x8xf32> -> vector<128x8xf32>
    %c1_23 = arith.constant 1 : index
    %c0_24 = arith.constant 0 : index
    %c0_25 = arith.constant 0 : index
    %24 = vector.load %arg10[%c1_23, %c0_24, %c0_25] : memref<6x32x14xbf16, #tpu.memory_space<vmem>>, vector<4x32x14xbf16>
    %25 = vector.shape_cast %24 : vector<4x32x14xbf16> to vector<128x14xbf16>
    %c1_26 = arith.constant 1 : index
    %c0_27 = arith.constant 0 : index
    %c0_28 = arith.constant 0 : index
    %26 = vector.load %arg5[%c1_26, %c0_27, %c0_28] : memref<3x14x8xbf16, #tpu.memory_space<vmem>>, vector<1x14x8xbf16>
    %27 = vector.shape_cast %26 : vector<1x14x8xbf16> to vector<14x8xbf16>
    %cst_29 = arith.constant dense<0.000000e+00> : vector<128x8xf32>
    %28 = tpu.matmul %25, %27, %cst_29 {dimension_numbers = #tpu.dot_dimension_numbers<[1], [0], [0], [1], [0, 0, 1, 1], [], []>} : vector<128x14xbf16>, vector<14x8xbf16>, vector<128x8xf32> -> vector<128x8xf32>
    %29 = arith.addf %23, %28 : vector<128x8xf32>
    %c2 = arith.constant 2 : index
    %c0_30 = arith.constant 0 : index
    %c0_31 = arith.constant 0 : index
    %30 = vector.load %arg10[%c2, %c0_30, %c0_31] : memref<6x32x14xbf16, #tpu.memory_space<vmem>>, vector<4x32x14xbf16>
    %31 = vector.shape_cast %30 : vector<4x32x14xbf16> to vector<128x14xbf16>
    %c2_32 = arith.constant 2 : index
    %c0_33 = arith.constant 0 : index
    %c0_34 = arith.constant 0 : index
    %32 = vector.load %arg5[%c2_32, %c0_33, %c0_34] : memref<3x14x8xbf16, #tpu.memory_space<vmem>>, vector<1x14x8xbf16>
    %33 = vector.shape_cast %32 : vector<1x14x8xbf16> to vector<14x8xbf16>
    %cst_35 = arith.constant dense<0.000000e+00> : vector<128x8xf32>
    %34 = tpu.matmul %31, %33, %cst_35 {dimension_numbers = #tpu.dot_dimension_numbers<[1], [0], [0], [1], [0, 0, 1, 1], [], []>} : vector<128x14xbf16>, vector<14x8xbf16>, vector<128x8xf32> -> vector<128x8xf32>
    %35 = arith.addf %29, %34 : vector<128x8xf32>
    %c0_36 = arith.constant 0 : index
    %c0_37 = arith.constant 0 : index
    %36 = vector.load %arg6[%c0_36, %c0_37] : memref<1x8xf32, #tpu.memory_space<vmem>>, vector<1x8xf32>
    %37 = vector.broadcast %36 : vector<1x8xf32> to vector<128x8xf32>
    %38 = arith.addf %35, %37 : vector<128x8xf32>
    %39 = vector.shape_cast %38 : vector<128x8xf32> to vector<4x32x8xf32>
    %40 = arith.truncf %39 : vector<4x32x8xf32> to vector<4x32x8xbf16>
    %c0_38 = arith.constant 0 : index
    %c0_39 = arith.constant 0 : index
    %c0_40 = arith.constant 0 : index
    %c0_41 = arith.constant 0 : index
    %41 = vector.load %arg7[%c0_38, %c0_39, %c0_40, %c0_41] : memref<1x4x32x8xbf16, #tpu.memory_space<vmem>>, vector<1x4x32x8xbf16>
    %42 = vector.shape_cast %41 : vector<1x4x32x8xbf16> to vector<4x32x8xbf16>
    %43 = vector.shape_cast %40 : vector<4x32x8xbf16> to vector<1x4x32x8xbf16>
    tpu.vector_store %arg7[%c0_38, %c0_39, %c0_40, %c0_41], %43 {strides = array<i32>} : memref<1x4x32x8xbf16, #tpu.memory_space<vmem>>, vector<1x4x32x8xbf16>,
    %cst_42 = arith.constant dense<0.000000e+00> : vector<8xf32>
    %44 = vector.multi_reduction <add>, %38, %cst_42 [0] : vector<128x8xf32> to vector<8xf32>
    %45 = vector.shape_cast %44 : vector<8xf32> to vector<1x8xf32>
    %46 = vector.shape_cast %45 : vector<1x8xf32> to vector<1x1x8xf32>
    %c0_43 = arith.constant 0 : index
    %c0_44 = arith.constant 0 : index
    %c0_45 = arith.constant 0 : index
    %47 = vector.load %arg8[%c0_43, %c0_44, %c0_45] : memref<1x1x8xf32, #tpu.memory_space<vmem>>, vector<1x1x8xf32>
    tpu.vector_store %arg8[%c0_43, %c0_44, %c0_45], %46 {strides = array<i32>} : memref<1x1x8xf32, #tpu.memory_space<vmem>>, vector<1x1x8xf32>,
    %48 = arith.mulf %38, %38 : vector<128x8xf32>
    %cst_46 = arith.constant dense<0.000000e+00> : vector<8xf32>
    %49 = vector.multi_reduction <add>, %48, %cst_46 [0] : vector<128x8xf32> to vector<8xf32>
    %50 = vector.shape_cast %49 : vector<8xf32> to vector<1x8xf32>
    %51 = vector.shape_cast %50 : vector<1x8xf32> to vector<1x1x8xf32>
    %c0_47 = arith.constant 0 : index
    %c0_48 = arith.constant 0 : index
    %c0_49 = arith.constant 0 : index
    %52 = vector.load %arg9[%c0_47, %c0_48, %c0_49] : memref<1x1x8xf32, #tpu.memory_space<vmem>>, vector<1x1x8xf32>
    tpu.vector_store %arg9[%c0_47, %c0_48, %c0_49], %51 {strides = array<i32>} : memref<1x1x8xf32, #tpu.memory_space<vmem>>, vector<1x1x8xf32>,
    return
  }
  func.func @transform_0(%arg0: i32, %arg1: i32) -> (i32, i32, i32, i32) {
    %c0_i32 = arith.constant 0 : i32
    %c0_i32_0 = arith.constant 0 : i32
    %c0_i32_1 = arith.constant 0 : i32
    return %arg0, %c0_i32, %arg1, %c0_i32_0 : i32, i32, i32, i32
  }
  func.func @transform_1(%arg0: i32, %arg1: i32) -> (i32, i32) {
    %c0_i32 = arith.constant 0 : i32
    %c0_i32_0 = arith.constant 0 : i32
    %c0_i32_1 = arith.constant 0 : i32
    return %c0_i32, %c0_i32_0 : i32, i32
  }
  func.func @transform_2(%arg0: i32, %arg1: i32) -> (i32, i32) {
    %c0_i32 = arith.constant 0 : i32
    %c0_i32_0 = arith.constant 0 : i32
    %c0_i32_1 = arith.constant 0 : i32
    return %c0_i32, %c0_i32_0 : i32, i32
  }
  func.func @transform_3(%arg0: i32, %arg1: i32) -> (i32, i32, i32) {
    %c0_i32 = arith.constant 0 : i32
    %c0_i32_0 = arith.constant 0 : i32
    %c0_i32_1 = arith.constant 0 : i32
    %c0_i32_2 = arith.constant 0 : i32
    return %c0_i32, %c0_i32_0, %c0_i32_1 : i32, i32, i32
  }
  func.func @transform_4(%arg0: i32, %arg1: i32) -> (i32, i32) {
    %c0_i32 = arith.constant 0 : i32
    %c0_i32_0 = arith.constant 0 : i32
    %c0_i32_1 = arith.constant 0 : i32
    return %c0_i32, %c0_i32_0 : i32, i32
  }
  func.func @transform_5(%arg0: i32, %arg1: i32) -> (i32, i32, i32, i32) {
    %c0_i32 = arith.constant 0 : i32
    %c0_i32_0 = arith.constant 0 : i32
    %c0_i32_1 = arith.constant 0 : i32
    return %arg0, %c0_i32, %arg1, %c0_i32_0 : i32, i32, i32, i32
  }
  func.func @transform_6(%arg0: i32, %arg1: i32) -> (i32, i32, i32) {
    %c2_i32 = arith.constant 2 : i32
    %0 = arith.muli %arg0, %c2_i32 : i32
    %1 = arith.addi %0, %arg1 : i32
    %c0_i32 = arith.constant 0 : i32
    %c0_i32_0 = arith.constant 0 : i32
    %c0_i32_1 = arith.constant 0 : i32
    return %1, %c0_i32, %c0_i32_0 : i32, i32, i32
  }
  func.func @transform_7(%arg0: i32, %arg1: i32) -> (i32, i32, i32) {
    %c2_i32 = arith.constant 2 : i32
    %0 = arith.muli %arg0, %c2_i32 : i32
    %1 = arith.addi %0, %arg1 : i32
    %c0_i32 = arith.constant 0 : i32
    %c0_i32_0 = arith.constant 0 : i32
    %c0_i32_1 = arith.constant 0 : i32
    return %1, %c0_i32, %c0_i32_0 : i32, i32, i32
  }
}

module attributes {stable_mosaic.version = 11 : i64} {
  func.func @_spatial_conv_kernel(%arg0: i32, %arg1: memref<2x8x8x8xbf16, #tpu.memory_space<vmem>>, %arg2: memref<1x8xf32, #tpu.memory_space<vmem>>, %arg3: memref<1x8xf32, #tpu.memory_space<vmem>>, %arg4: memref<3x24x18xbf16, #tpu.memory_space<vmem>>, %arg5: memref<1x18xf32, #tpu.memory_space<vmem>>, %arg6: memref<2x64x18xbf16, #tpu.memory_space<vmem>>, %arg7: memref<1x1x18xf32, #tpu.memory_space<vmem>>, %arg8: memref<1x1x18xf32, #tpu.memory_space<vmem>>, %arg9: memref<2x10x10x8xbf16, #tpu.memory_space<vmem>>, %arg10: memref<2x10x8x24xbf16, #tpu.memory_space<vmem>>) attributes {dimension_semantics = [#tpu.dimension_semantics<parallel>], iteration_bounds = array<i64: 4>, scalar_prefetch = 0 : i64, scratch_operands = 2 : i64, tpu.core_type = #tpu.core_type<tc>, window_params = [{transform_indices = @transform_0, window_bounds = array<i64: 2, 8, 8, 8>}, {pipeline_mode = #tpu.pipeline_mode<synchronous>, transform_indices = @transform_1, window_bounds = array<i64: 1, 8>}, {pipeline_mode = #tpu.pipeline_mode<synchronous>, transform_indices = @transform_2, window_bounds = array<i64: 1, 8>}, {pipeline_mode = #tpu.pipeline_mode<synchronous>, transform_indices = @transform_3, window_bounds = array<i64: 3, 24, 18>}, {pipeline_mode = #tpu.pipeline_mode<synchronous>, transform_indices = @transform_4, window_bounds = array<i64: 1, 18>}, {transform_indices = @transform_5, window_bounds = array<i64: 2, 64, 18>}, {transform_indices = @transform_6, window_bounds = array<i64: 1, 1, 18>}, {transform_indices = @transform_7, window_bounds = array<i64: 1, 1, 18>}]} {
    %c0 = arith.constant 0 : index
    %c0_0 = arith.constant 0 : index
    %c0_1 = arith.constant 0 : index
    %c0_2 = arith.constant 0 : index
    %0 = vector.load %arg1[%c0, %c0_0, %c0_1, %c0_2] : memref<2x8x8x8xbf16, #tpu.memory_space<vmem>>, vector<2x8x8x8xbf16>
    %1 = arith.extf %0 : vector<2x8x8x8xbf16> to vector<2x8x8x8xf32>
    %c0_3 = arith.constant 0 : index
    %c0_4 = arith.constant 0 : index
    %2 = vector.load %arg2[%c0_3, %c0_4] : memref<1x8xf32, #tpu.memory_space<vmem>>, vector<1x8xf32>
    %3 = vector.shape_cast %2 : vector<1x8xf32> to vector<1x1x1x8xf32>
    %4 = vector.broadcast %3 : vector<1x1x1x8xf32> to vector<2x8x8x8xf32>
    %5 = arith.mulf %1, %4 : vector<2x8x8x8xf32>
    %c0_5 = arith.constant 0 : index
    %c0_6 = arith.constant 0 : index
    %6 = vector.load %arg3[%c0_5, %c0_6] : memref<1x8xf32, #tpu.memory_space<vmem>>, vector<1x8xf32>
    %7 = vector.shape_cast %6 : vector<1x8xf32> to vector<1x1x1x8xf32>
    %8 = vector.broadcast %7 : vector<1x1x1x8xf32> to vector<2x8x8x8xf32>
    %9 = arith.addf %5, %8 : vector<2x8x8x8xf32>
    %10 = arith.truncf %9 : vector<2x8x8x8xf32> to vector<2x8x8x8xbf16>
    %cst = arith.constant 0.000000e+00 : bf16
    %11 = vector.broadcast %cst : bf16 to vector<2x1x10x8xbf16>
    %c0_7 = arith.constant 0 : index
    %c0_8 = arith.constant 0 : index
    %c0_9 = arith.constant 0 : index
    %c0_10 = arith.constant 0 : index
    %12 = vector.load %arg9[%c0_7, %c0_8, %c0_9, %c0_10] : memref<2x10x10x8xbf16, #tpu.memory_space<vmem>>, vector<2x1x10x8xbf16>
    tpu.vector_store %arg9[%c0_7, %c0_8, %c0_9, %c0_10], %11 {strides = array<i32>} : memref<2x10x10x8xbf16, #tpu.memory_space<vmem>>, vector<2x1x10x8xbf16>,
    %cst_11 = arith.constant 0.000000e+00 : bf16
    %13 = vector.broadcast %cst_11 : bf16 to vector<2x1x10x8xbf16>
    %c0_12 = arith.constant 0 : index
    %c9 = arith.constant 9 : index
    %c0_13 = arith.constant 0 : index
    %c0_14 = arith.constant 0 : index
    %14 = vector.load %arg9[%c0_12, %c9, %c0_13, %c0_14] : memref<2x10x10x8xbf16, #tpu.memory_space<vmem>>, vector<2x1x10x8xbf16>
    tpu.vector_store %arg9[%c0_12, %c9, %c0_13, %c0_14], %13 {strides = array<i32>} : memref<2x10x10x8xbf16, #tpu.memory_space<vmem>>, vector<2x1x10x8xbf16>,
    %cst_15 = arith.constant 0.000000e+00 : bf16
    %15 = vector.broadcast %cst_15 : bf16 to vector<2x8x1x8xbf16>
    %c0_16 = arith.constant 0 : index
    %c1 = arith.constant 1 : index
    %c0_17 = arith.constant 0 : index
    %c0_18 = arith.constant 0 : index
    %16 = vector.load %arg9[%c0_16, %c1, %c0_17, %c0_18] : memref<2x10x10x8xbf16, #tpu.memory_space<vmem>>, vector<2x8x1x8xbf16>
    tpu.vector_store %arg9[%c0_16, %c1, %c0_17, %c0_18], %15 {strides = array<i32>} : memref<2x10x10x8xbf16, #tpu.memory_space<vmem>>, vector<2x8x1x8xbf16>,
    %cst_19 = arith.constant 0.000000e+00 : bf16
    %17 = vector.broadcast %cst_19 : bf16 to vector<2x8x1x8xbf16>
    %c0_20 = arith.constant 0 : index
    %c1_21 = arith.constant 1 : index
    %c9_22 = arith.constant 9 : index
    %c0_23 = arith.constant 0 : index
    %18 = vector.load %arg9[%c0_20, %c1_21, %c9_22, %c0_23] : memref<2x10x10x8xbf16, #tpu.memory_space<vmem>>, vector<2x8x1x8xbf16>
    tpu.vector_store %arg9[%c0_20, %c1_21, %c9_22, %c0_23], %17 {strides = array<i32>} : memref<2x10x10x8xbf16, #tpu.memory_space<vmem>>, vector<2x8x1x8xbf16>,
    %c0_24 = arith.constant 0 : index
    %c1_25 = arith.constant 1 : index
    %c1_26 = arith.constant 1 : index
    %c0_27 = arith.constant 0 : index
    %19 = vector.load %arg9[%c0_24, %c1_25, %c1_26, %c0_27] : memref<2x10x10x8xbf16, #tpu.memory_space<vmem>>, vector<2x8x8x8xbf16>
    tpu.vector_store %arg9[%c0_24, %c1_25, %c1_26, %c0_27], %10 {strides = array<i32>} : memref<2x10x10x8xbf16, #tpu.memory_space<vmem>>, vector<2x8x8x8xbf16>,
    %c0_28 = arith.constant 0 : index
    %c0_29 = arith.constant 0 : index
    %c0_30 = arith.constant 0 : index
    %c0_31 = arith.constant 0 : index
    %20 = vector.load %arg9[%c0_28, %c0_29, %c0_30, %c0_31] : memref<2x10x10x8xbf16, #tpu.memory_space<vmem>>, vector<2x10x8x8xbf16>
    %c0_32 = arith.constant 0 : index
    %c0_33 = arith.constant 0 : index
    %c0_34 = arith.constant 0 : index
    %c0_35 = arith.constant 0 : index
    %21 = vector.load %arg10[%c0_32, %c0_33, %c0_34, %c0_35] : memref<2x10x8x24xbf16, #tpu.memory_space<vmem>>, vector<2x10x8x8xbf16>
    tpu.vector_store %arg10[%c0_32, %c0_33, %c0_34, %c0_35], %20 {strides = array<i32>} : memref<2x10x8x24xbf16, #tpu.memory_space<vmem>>, vector<2x10x8x8xbf16>,
    %c0_36 = arith.constant 0 : index
    %c0_37 = arith.constant 0 : index
    %c1_38 = arith.constant 1 : index
    %c0_39 = arith.constant 0 : index
    %22 = vector.load %arg9[%c0_36, %c0_37, %c1_38, %c0_39] : memref<2x10x10x8xbf16, #tpu.memory_space<vmem>>, vector<2x10x8x8xbf16>
    %c0_40 = arith.constant 0 : index
    %c0_41 = arith.constant 0 : index
    %c0_42 = arith.constant 0 : index
    %c8 = arith.constant 8 : index
    %23 = vector.load %arg10[%c0_40, %c0_41, %c0_42, %c8] : memref<2x10x8x24xbf16, #tpu.memory_space<vmem>>, vector<2x10x8x8xbf16>
    tpu.vector_store %arg10[%c0_40, %c0_41, %c0_42, %c8], %22 {strides = array<i32>} : memref<2x10x8x24xbf16, #tpu.memory_space<vmem>>, vector<2x10x8x8xbf16>,
    %c0_43 = arith.constant 0 : index
    %c0_44 = arith.constant 0 : index
    %c2 = arith.constant 2 : index
    %c0_45 = arith.constant 0 : index
    %24 = vector.load %arg9[%c0_43, %c0_44, %c2, %c0_45] : memref<2x10x10x8xbf16, #tpu.memory_space<vmem>>, vector<2x10x8x8xbf16>
    %c0_46 = arith.constant 0 : index
    %c0_47 = arith.constant 0 : index
    %c0_48 = arith.constant 0 : index
    %c16 = arith.constant 16 : index
    %25 = vector.load %arg10[%c0_46, %c0_47, %c0_48, %c16] : memref<2x10x8x24xbf16, #tpu.memory_space<vmem>>, vector<2x10x8x8xbf16>
    tpu.vector_store %arg10[%c0_46, %c0_47, %c0_48, %c16], %24 {strides = array<i32>} : memref<2x10x8x24xbf16, #tpu.memory_space<vmem>>, vector<2x10x8x8xbf16>,
    %c0_49 = arith.constant 0 : index
    %c0_50 = arith.constant 0 : index
    %c0_51 = arith.constant 0 : index
    %c0_52 = arith.constant 0 : index
    %26 = vector.load %arg10[%c0_49, %c0_50, %c0_51, %c0_52] : memref<2x10x8x24xbf16, #tpu.memory_space<vmem>>, vector<2x8x8x24xbf16>
    %27 = vector.shape_cast %26 : vector<2x8x8x24xbf16> to vector<128x24xbf16>
    %c0_53 = arith.constant 0 : index
    %c0_54 = arith.constant 0 : index
    %c0_55 = arith.constant 0 : index
    %28 = vector.load %arg4[%c0_53, %c0_54, %c0_55] : memref<3x24x18xbf16, #tpu.memory_space<vmem>>, vector<1x24x18xbf16>
    %29 = vector.shape_cast %28 : vector<1x24x18xbf16> to vector<24x18xbf16>
    %cst_56 = arith.constant dense<0.000000e+00> : vector<128x18xf32>
    %30 = tpu.matmul %27, %29, %cst_56 {dimension_numbers = #tpu.dot_dimension_numbers<[1], [0], [0], [1], [0, 0, 1, 1], [], []>} : vector<128x24xbf16>, vector<24x18xbf16>, vector<128x18xf32> -> vector<128x18xf32>
    %c0_57 = arith.constant 0 : index
    %c1_58 = arith.constant 1 : index
    %c0_59 = arith.constant 0 : index
    %c0_60 = arith.constant 0 : index
    %31 = vector.load %arg10[%c0_57, %c1_58, %c0_59, %c0_60] : memref<2x10x8x24xbf16, #tpu.memory_space<vmem>>, vector<2x8x8x24xbf16>
    %32 = vector.shape_cast %31 : vector<2x8x8x24xbf16> to vector<128x24xbf16>
    %c1_61 = arith.constant 1 : index
    %c0_62 = arith.constant 0 : index
    %c0_63 = arith.constant 0 : index
    %33 = vector.load %arg4[%c1_61, %c0_62, %c0_63] : memref<3x24x18xbf16, #tpu.memory_space<vmem>>, vector<1x24x18xbf16>
    %34 = vector.shape_cast %33 : vector<1x24x18xbf16> to vector<24x18xbf16>
    %cst_64 = arith.constant dense<0.000000e+00> : vector<128x18xf32>
    %35 = tpu.matmul %32, %34, %cst_64 {dimension_numbers = #tpu.dot_dimension_numbers<[1], [0], [0], [1], [0, 0, 1, 1], [], []>} : vector<128x24xbf16>, vector<24x18xbf16>, vector<128x18xf32> -> vector<128x18xf32>
    %36 = arith.addf %30, %35 : vector<128x18xf32>
    %c0_65 = arith.constant 0 : index
    %c2_66 = arith.constant 2 : index
    %c0_67 = arith.constant 0 : index
    %c0_68 = arith.constant 0 : index
    %37 = vector.load %arg10[%c0_65, %c2_66, %c0_67, %c0_68] : memref<2x10x8x24xbf16, #tpu.memory_space<vmem>>, vector<2x8x8x24xbf16>
    %38 = vector.shape_cast %37 : vector<2x8x8x24xbf16> to vector<128x24xbf16>
    %c2_69 = arith.constant 2 : index
    %c0_70 = arith.constant 0 : index
    %c0_71 = arith.constant 0 : index
    %39 = vector.load %arg4[%c2_69, %c0_70, %c0_71] : memref<3x24x18xbf16, #tpu.memory_space<vmem>>, vector<1x24x18xbf16>
    %40 = vector.shape_cast %39 : vector<1x24x18xbf16> to vector<24x18xbf16>
    %cst_72 = arith.constant dense<0.000000e+00> : vector<128x18xf32>
    %41 = tpu.matmul %38, %40, %cst_72 {dimension_numbers = #tpu.dot_dimension_numbers<[1], [0], [0], [1], [0, 0, 1, 1], [], []>} : vector<128x24xbf16>, vector<24x18xbf16>, vector<128x18xf32> -> vector<128x18xf32>
    %42 = arith.addf %36, %41 : vector<128x18xf32>
    %c0_73 = arith.constant 0 : index
    %c0_74 = arith.constant 0 : index
    %43 = vector.load %arg5[%c0_73, %c0_74] : memref<1x18xf32, #tpu.memory_space<vmem>>, vector<1x18xf32>
    %44 = vector.broadcast %43 : vector<1x18xf32> to vector<128x18xf32>
    %45 = arith.addf %42, %44 : vector<128x18xf32>
    %46 = vector.shape_cast %45 : vector<128x18xf32> to vector<2x64x18xf32>
    %47 = arith.truncf %46 : vector<2x64x18xf32> to vector<2x64x18xbf16>
    %c0_75 = arith.constant 0 : index
    %c0_76 = arith.constant 0 : index
    %c0_77 = arith.constant 0 : index
    %48 = vector.load %arg6[%c0_75, %c0_76, %c0_77] : memref<2x64x18xbf16, #tpu.memory_space<vmem>>, vector<2x64x18xbf16>
    tpu.vector_store %arg6[%c0_75, %c0_76, %c0_77], %47 {strides = array<i32>} : memref<2x64x18xbf16, #tpu.memory_space<vmem>>, vector<2x64x18xbf16>,
    %cst_78 = arith.constant dense<0.000000e+00> : vector<18xf32>
    %49 = vector.multi_reduction <add>, %45, %cst_78 [0] : vector<128x18xf32> to vector<18xf32>
    %50 = vector.shape_cast %49 : vector<18xf32> to vector<1x18xf32>
    %51 = vector.shape_cast %50 : vector<1x18xf32> to vector<1x1x18xf32>
    %c0_79 = arith.constant 0 : index
    %c0_80 = arith.constant 0 : index
    %c0_81 = arith.constant 0 : index
    %52 = vector.load %arg7[%c0_79, %c0_80, %c0_81] : memref<1x1x18xf32, #tpu.memory_space<vmem>>, vector<1x1x18xf32>
    tpu.vector_store %arg7[%c0_79, %c0_80, %c0_81], %51 {strides = array<i32>} : memref<1x1x18xf32, #tpu.memory_space<vmem>>, vector<1x1x18xf32>,
    %53 = arith.mulf %45, %45 : vector<128x18xf32>
    %cst_82 = arith.constant dense<0.000000e+00> : vector<18xf32>
    %54 = vector.multi_reduction <add>, %53, %cst_82 [0] : vector<128x18xf32> to vector<18xf32>
    %55 = vector.shape_cast %54 : vector<18xf32> to vector<1x18xf32>
    %56 = vector.shape_cast %55 : vector<1x18xf32> to vector<1x1x18xf32>
    %c0_83 = arith.constant 0 : index
    %c0_84 = arith.constant 0 : index
    %c0_85 = arith.constant 0 : index
    %57 = vector.load %arg8[%c0_83, %c0_84, %c0_85] : memref<1x1x18xf32, #tpu.memory_space<vmem>>, vector<1x1x18xf32>
    tpu.vector_store %arg8[%c0_83, %c0_84, %c0_85], %56 {strides = array<i32>} : memref<1x1x18xf32, #tpu.memory_space<vmem>>, vector<1x1x18xf32>,
    return
  }
  func.func @transform_0(%arg0: i32) -> (i32, i32, i32, i32) {
    %c0_i32 = arith.constant 0 : i32
    %c0_i32_0 = arith.constant 0 : i32
    %c0_i32_1 = arith.constant 0 : i32
    %c0_i32_2 = arith.constant 0 : i32
    return %arg0, %c0_i32, %c0_i32_0, %c0_i32_1 : i32, i32, i32, i32
  }
  func.func @transform_1(%arg0: i32) -> (i32, i32) {
    %c0_i32 = arith.constant 0 : i32
    %c0_i32_0 = arith.constant 0 : i32
    %c0_i32_1 = arith.constant 0 : i32
    return %c0_i32, %c0_i32_0 : i32, i32
  }
  func.func @transform_2(%arg0: i32) -> (i32, i32) {
    %c0_i32 = arith.constant 0 : i32
    %c0_i32_0 = arith.constant 0 : i32
    %c0_i32_1 = arith.constant 0 : i32
    return %c0_i32, %c0_i32_0 : i32, i32
  }
  func.func @transform_3(%arg0: i32) -> (i32, i32, i32) {
    %c0_i32 = arith.constant 0 : i32
    %c0_i32_0 = arith.constant 0 : i32
    %c0_i32_1 = arith.constant 0 : i32
    %c0_i32_2 = arith.constant 0 : i32
    return %c0_i32, %c0_i32_0, %c0_i32_1 : i32, i32, i32
  }
  func.func @transform_4(%arg0: i32) -> (i32, i32) {
    %c0_i32 = arith.constant 0 : i32
    %c0_i32_0 = arith.constant 0 : i32
    %c0_i32_1 = arith.constant 0 : i32
    return %c0_i32, %c0_i32_0 : i32, i32
  }
  func.func @transform_5(%arg0: i32) -> (i32, i32, i32) {
    %c0_i32 = arith.constant 0 : i32
    %c0_i32_0 = arith.constant 0 : i32
    %c0_i32_1 = arith.constant 0 : i32
    return %arg0, %c0_i32, %c0_i32_0 : i32, i32, i32
  }
  func.func @transform_6(%arg0: i32) -> (i32, i32, i32) {
    %c0_i32 = arith.constant 0 : i32
    %c0_i32_0 = arith.constant 0 : i32
    %c0_i32_1 = arith.constant 0 : i32
    return %arg0, %c0_i32, %c0_i32_0 : i32, i32, i32
  }
  func.func @transform_7(%arg0: i32) -> (i32, i32, i32) {
    %c0_i32 = arith.constant 0 : i32
    %c0_i32_0 = arith.constant 0 : i32
    %c0_i32_1 = arith.constant 0 : i32
    return %arg0, %c0_i32, %c0_i32_0 : i32, i32, i32
  }
}

module attributes {stable_mosaic.version = 11 : i64} {
  func.func @_bn_residual_relu_kernel(%arg0: i32, %arg1: memref<8x512xbf16, #tpu.memory_space<vmem>>, %arg2: memref<8x512xbf16, #tpu.memory_space<vmem>>, %arg3: memref<1x512xf32, #tpu.memory_space<vmem>>, %arg4: memref<1x512xf32, #tpu.memory_space<vmem>>, %arg5: memref<1x512xf32, #tpu.memory_space<vmem>>, %arg6: memref<1x512xf32, #tpu.memory_space<vmem>>, %arg7: memref<8x512xf32, #tpu.memory_space<vmem>>) attributes {dimension_semantics = [#tpu.dimension_semantics<parallel>], iteration_bounds = array<i64: 1>, scalar_prefetch = 0 : i64, scratch_operands = 0 : i64, tpu.core_type = #tpu.core_type<tc>, window_params = [{transform_indices = @transform_0, window_bounds = array<i64: 8, 512>}, {transform_indices = @transform_1, window_bounds = array<i64: 8, 512>}, {pipeline_mode = #tpu.pipeline_mode<synchronous>, transform_indices = @transform_2, window_bounds = array<i64: 1, 512>}, {pipeline_mode = #tpu.pipeline_mode<synchronous>, transform_indices = @transform_3, window_bounds = array<i64: 1, 512>}, {pipeline_mode = #tpu.pipeline_mode<synchronous>, transform_indices = @transform_4, window_bounds = array<i64: 1, 512>}, {pipeline_mode = #tpu.pipeline_mode<synchronous>, transform_indices = @transform_5, window_bounds = array<i64: 1, 512>}, {transform_indices = @transform_6, window_bounds = array<i64: 8, 512>}]} {
    %c0 = arith.constant 0 : index
    %c0_0 = arith.constant 0 : index
    %0 = vector.load %arg1[%c0, %c0_0] : memref<8x512xbf16, #tpu.memory_space<vmem>>, vector<8x512xbf16>
    %1 = arith.extf %0 : vector<8x512xbf16> to vector<8x512xf32>
    %c0_1 = arith.constant 0 : index
    %c0_2 = arith.constant 0 : index
    %2 = vector.load %arg2[%c0_1, %c0_2] : memref<8x512xbf16, #tpu.memory_space<vmem>>, vector<8x512xbf16>
    %3 = arith.extf %2 : vector<8x512xbf16> to vector<8x512xf32>
    %c0_3 = arith.constant 0 : index
    %c0_4 = arith.constant 0 : index
    %4 = vector.load %arg3[%c0_3, %c0_4] : memref<1x512xf32, #tpu.memory_space<vmem>>, vector<1x512xf32>
    %5 = vector.broadcast %4 : vector<1x512xf32> to vector<8x512xf32>
    %6 = arith.mulf %1, %5 : vector<8x512xf32>
    %c0_5 = arith.constant 0 : index
    %c0_6 = arith.constant 0 : index
    %7 = vector.load %arg4[%c0_5, %c0_6] : memref<1x512xf32, #tpu.memory_space<vmem>>, vector<1x512xf32>
    %8 = vector.broadcast %7 : vector<1x512xf32> to vector<8x512xf32>
    %9 = arith.addf %6, %8 : vector<8x512xf32>
    %cst = arith.constant 0.000000e+00 : f32
    %10 = vector.broadcast %cst : f32 to vector<8x512xf32>
    %11 = arith.maximumf %9, %10 : vector<8x512xf32>
    %c0_7 = arith.constant 0 : index
    %c0_8 = arith.constant 0 : index
    %12 = vector.load %arg5[%c0_7, %c0_8] : memref<1x512xf32, #tpu.memory_space<vmem>>, vector<1x512xf32>
    %13 = vector.broadcast %12 : vector<1x512xf32> to vector<8x512xf32>
    %14 = arith.mulf %3, %13 : vector<8x512xf32>
    %c0_9 = arith.constant 0 : index
    %c0_10 = arith.constant 0 : index
    %15 = vector.load %arg6[%c0_9, %c0_10] : memref<1x512xf32, #tpu.memory_space<vmem>>, vector<1x512xf32>
    %16 = vector.broadcast %15 : vector<1x512xf32> to vector<8x512xf32>
    %17 = arith.addf %14, %16 : vector<8x512xf32>
    %18 = arith.addf %17, %11 : vector<8x512xf32>
    %cst_11 = arith.constant 0.000000e+00 : f32
    %19 = vector.broadcast %cst_11 : f32 to vector<8x512xf32>
    %20 = arith.maximumf %18, %19 : vector<8x512xf32>
    %c0_12 = arith.constant 0 : index
    %c0_13 = arith.constant 0 : index
    %21 = vector.load %arg7[%c0_12, %c0_13] : memref<8x512xf32, #tpu.memory_space<vmem>>, vector<8x512xf32>
    tpu.vector_store %arg7[%c0_12, %c0_13], %20 {strides = array<i32>} : memref<8x512xf32, #tpu.memory_space<vmem>>, vector<8x512xf32>,
    return
  }
  func.func @transform_0(%arg0: i32) -> (i32, i32) {
    %c0_i32 = arith.constant 0 : i32
    %c0_i32_0 = arith.constant 0 : i32
    return %arg0, %c0_i32 : i32, i32
  }
  func.func @transform_1(%arg0: i32) -> (i32, i32) {
    %c0_i32 = arith.constant 0 : i32
    %c0_i32_0 = arith.constant 0 : i32
    return %arg0, %c0_i32 : i32, i32
  }
  func.func @transform_2(%arg0: i32) -> (i32, i32) {
    %c0_i32 = arith.constant 0 : i32
    %c0_i32_0 = arith.constant 0 : i32
    %c0_i32_1 = arith.constant 0 : i32
    return %c0_i32, %c0_i32_0 : i32, i32
  }
  func.func @transform_3(%arg0: i32) -> (i32, i32) {
    %c0_i32 = arith.constant 0 : i32
    %c0_i32_0 = arith.constant 0 : i32
    %c0_i32_1 = arith.constant 0 : i32
    return %c0_i32, %c0_i32_0 : i32, i32
  }
  func.func @transform_4(%arg0: i32) -> (i32, i32) {
    %c0_i32 = arith.constant 0 : i32
    %c0_i32_0 = arith.constant 0 : i32
    %c0_i32_1 = arith.constant 0 : i32
    return %c0_i32, %c0_i32_0 : i32, i32
  }
  func.func @transform_5(%arg0: i32) -> (i32, i32) {
    %c0_i32 = arith.constant 0 : i32
    %c0_i32_0 = arith.constant 0 : i32
    %c0_i32_1 = arith.constant 0 : i32
    return %c0_i32, %c0_i32_0 : i32, i32
  }
  func.func @transform_6(%arg0: i32) -> (i32, i32) {
    %c0_i32 = arith.constant 0 : i32
    %c0_i32_0 = arith.constant 0 : i32
    return %arg0, %c0_i32 : i32, i32
  }
}

module attributes {stable_mosaic.version = 11 : i64} {
  func.func @_temporal_conv_kernel(%arg0: i32, %arg1: i32, %arg2: memref<1x4x32x18xbf16, #tpu.memory_space<vmem>>, %arg3: memref<1x18xf32, #tpu.memory_space<vmem>>, %arg4: memref<1x18xf32, #tpu.memory_space<vmem>>, %arg5: memref<3x18x8xbf16, #tpu.memory_space<vmem>>, %arg6: memref<1x8xf32, #tpu.memory_space<vmem>>, %arg7: memref<1x4x32x8xbf16, #tpu.memory_space<vmem>>, %arg8: memref<1x1x8xf32, #tpu.memory_space<vmem>>, %arg9: memref<1x1x8xf32, #tpu.memory_space<vmem>>, %arg10: memref<6x32x18xbf16, #tpu.memory_space<vmem>>) attributes {dimension_semantics = [#tpu.dimension_semantics<parallel>, #tpu.dimension_semantics<parallel>], iteration_bounds = array<i64: 2, 2>, scalar_prefetch = 0 : i64, scratch_operands = 1 : i64, tpu.core_type = #tpu.core_type<tc>, window_params = [{transform_indices = @transform_0, window_bounds = array<i64: 1, 4, 32, 18>}, {pipeline_mode = #tpu.pipeline_mode<synchronous>, transform_indices = @transform_1, window_bounds = array<i64: 1, 18>}, {pipeline_mode = #tpu.pipeline_mode<synchronous>, transform_indices = @transform_2, window_bounds = array<i64: 1, 18>}, {pipeline_mode = #tpu.pipeline_mode<synchronous>, transform_indices = @transform_3, window_bounds = array<i64: 3, 18, 8>}, {pipeline_mode = #tpu.pipeline_mode<synchronous>, transform_indices = @transform_4, window_bounds = array<i64: 1, 8>}, {transform_indices = @transform_5, window_bounds = array<i64: 1, 4, 32, 8>}, {transform_indices = @transform_6, window_bounds = array<i64: 1, 1, 8>}, {transform_indices = @transform_7, window_bounds = array<i64: 1, 1, 8>}]} {
    %c0 = arith.constant 0 : index
    %c0_0 = arith.constant 0 : index
    %c0_1 = arith.constant 0 : index
    %c0_2 = arith.constant 0 : index
    %0 = vector.load %arg2[%c0, %c0_0, %c0_1, %c0_2] : memref<1x4x32x18xbf16, #tpu.memory_space<vmem>>, vector<1x4x32x18xbf16>
    %1 = vector.shape_cast %0 : vector<1x4x32x18xbf16> to vector<4x32x18xbf16>
    %2 = arith.extf %1 : vector<4x32x18xbf16> to vector<4x32x18xf32>
    %c0_3 = arith.constant 0 : index
    %c0_4 = arith.constant 0 : index
    %3 = vector.load %arg3[%c0_3, %c0_4] : memref<1x18xf32, #tpu.memory_space<vmem>>, vector<1x18xf32>
    %4 = vector.shape_cast %3 : vector<1x18xf32> to vector<1x1x18xf32>
    %5 = vector.broadcast %4 : vector<1x1x18xf32> to vector<4x32x18xf32>
    %6 = arith.mulf %2, %5 : vector<4x32x18xf32>
    %c0_5 = arith.constant 0 : index
    %c0_6 = arith.constant 0 : index
    %7 = vector.load %arg4[%c0_5, %c0_6] : memref<1x18xf32, #tpu.memory_space<vmem>>, vector<1x18xf32>
    %8 = vector.shape_cast %7 : vector<1x18xf32> to vector<1x1x18xf32>
    %9 = vector.broadcast %8 : vector<1x1x18xf32> to vector<4x32x18xf32>
    %10 = arith.addf %6, %9 : vector<4x32x18xf32>
    %cst = arith.constant 0.000000e+00 : f32
    %11 = vector.broadcast %cst : f32 to vector<4x32x18xf32>
    %12 = arith.maximumf %10, %11 : vector<4x32x18xf32>
    %cst_7 = arith.constant 0.000000e+00 : bf16
    %13 = vector.broadcast %cst_7 : bf16 to vector<1x32x18xbf16>
    %c0_8 = arith.constant 0 : index
    %c0_9 = arith.constant 0 : index
    %c0_10 = arith.constant 0 : index
    %14 = vector.load %arg10[%c0_8, %c0_9, %c0_10] : memref<6x32x18xbf16, #tpu.memory_space<vmem>>, vector<1x32x18xbf16>
    tpu.vector_store %arg10[%c0_8, %c0_9, %c0_10], %13 {strides = array<i32>} : memref<6x32x18xbf16, #tpu.memory_space<vmem>>, vector<1x32x18xbf16>,
    %cst_11 = arith.constant 0.000000e+00 : bf16
    %15 = vector.broadcast %cst_11 : bf16 to vector<1x32x18xbf16>
    %c5 = arith.constant 5 : index
    %c0_12 = arith.constant 0 : index
    %c0_13 = arith.constant 0 : index
    %16 = vector.load %arg10[%c5, %c0_12, %c0_13] : memref<6x32x18xbf16, #tpu.memory_space<vmem>>, vector<1x32x18xbf16>
    tpu.vector_store %arg10[%c5, %c0_12, %c0_13], %15 {strides = array<i32>} : memref<6x32x18xbf16, #tpu.memory_space<vmem>>, vector<1x32x18xbf16>,
    %17 = arith.truncf %12 : vector<4x32x18xf32> to vector<4x32x18xbf16>
    %c1 = arith.constant 1 : index
    %c0_14 = arith.constant 0 : index
    %c0_15 = arith.constant 0 : index
    %18 = vector.load %arg10[%c1, %c0_14, %c0_15] : memref<6x32x18xbf16, #tpu.memory_space<vmem>>, vector<4x32x18xbf16>
    tpu.vector_store %arg10[%c1, %c0_14, %c0_15], %17 {strides = array<i32>} : memref<6x32x18xbf16, #tpu.memory_space<vmem>>, vector<4x32x18xbf16>,
    %c0_16 = arith.constant 0 : index
    %c0_17 = arith.constant 0 : index
    %c0_18 = arith.constant 0 : index
    %19 = vector.load %arg10[%c0_16, %c0_17, %c0_18] : memref<6x32x18xbf16, #tpu.memory_space<vmem>>, vector<4x32x18xbf16>
    %20 = vector.shape_cast %19 : vector<4x32x18xbf16> to vector<128x18xbf16>
    %c0_19 = arith.constant 0 : index
    %c0_20 = arith.constant 0 : index
    %c0_21 = arith.constant 0 : index
    %21 = vector.load %arg5[%c0_19, %c0_20, %c0_21] : memref<3x18x8xbf16, #tpu.memory_space<vmem>>, vector<1x18x8xbf16>
    %22 = vector.shape_cast %21 : vector<1x18x8xbf16> to vector<18x8xbf16>
    %cst_22 = arith.constant dense<0.000000e+00> : vector<128x8xf32>
    %23 = tpu.matmul %20, %22, %cst_22 {dimension_numbers = #tpu.dot_dimension_numbers<[1], [0], [0], [1], [0, 0, 1, 1], [], []>} : vector<128x18xbf16>, vector<18x8xbf16>, vector<128x8xf32> -> vector<128x8xf32>
    %c1_23 = arith.constant 1 : index
    %c0_24 = arith.constant 0 : index
    %c0_25 = arith.constant 0 : index
    %24 = vector.load %arg10[%c1_23, %c0_24, %c0_25] : memref<6x32x18xbf16, #tpu.memory_space<vmem>>, vector<4x32x18xbf16>
    %25 = vector.shape_cast %24 : vector<4x32x18xbf16> to vector<128x18xbf16>
    %c1_26 = arith.constant 1 : index
    %c0_27 = arith.constant 0 : index
    %c0_28 = arith.constant 0 : index
    %26 = vector.load %arg5[%c1_26, %c0_27, %c0_28] : memref<3x18x8xbf16, #tpu.memory_space<vmem>>, vector<1x18x8xbf16>
    %27 = vector.shape_cast %26 : vector<1x18x8xbf16> to vector<18x8xbf16>
    %cst_29 = arith.constant dense<0.000000e+00> : vector<128x8xf32>
    %28 = tpu.matmul %25, %27, %cst_29 {dimension_numbers = #tpu.dot_dimension_numbers<[1], [0], [0], [1], [0, 0, 1, 1], [], []>} : vector<128x18xbf16>, vector<18x8xbf16>, vector<128x8xf32> -> vector<128x8xf32>
    %29 = arith.addf %23, %28 : vector<128x8xf32>
    %c2 = arith.constant 2 : index
    %c0_30 = arith.constant 0 : index
    %c0_31 = arith.constant 0 : index
    %30 = vector.load %arg10[%c2, %c0_30, %c0_31] : memref<6x32x18xbf16, #tpu.memory_space<vmem>>, vector<4x32x18xbf16>
    %31 = vector.shape_cast %30 : vector<4x32x18xbf16> to vector<128x18xbf16>
    %c2_32 = arith.constant 2 : index
    %c0_33 = arith.constant 0 : index
    %c0_34 = arith.constant 0 : index
    %32 = vector.load %arg5[%c2_32, %c0_33, %c0_34] : memref<3x18x8xbf16, #tpu.memory_space<vmem>>, vector<1x18x8xbf16>
    %33 = vector.shape_cast %32 : vector<1x18x8xbf16> to vector<18x8xbf16>
    %cst_35 = arith.constant dense<0.000000e+00> : vector<128x8xf32>
    %34 = tpu.matmul %31, %33, %cst_35 {dimension_numbers = #tpu.dot_dimension_numbers<[1], [0], [0], [1], [0, 0, 1, 1], [], []>} : vector<128x18xbf16>, vector<18x8xbf16>, vector<128x8xf32> -> vector<128x8xf32>
    %35 = arith.addf %29, %34 : vector<128x8xf32>
    %c0_36 = arith.constant 0 : index
    %c0_37 = arith.constant 0 : index
    %36 = vector.load %arg6[%c0_36, %c0_37] : memref<1x8xf32, #tpu.memory_space<vmem>>, vector<1x8xf32>
    %37 = vector.broadcast %36 : vector<1x8xf32> to vector<128x8xf32>
    %38 = arith.addf %35, %37 : vector<128x8xf32>
    %39 = vector.shape_cast %38 : vector<128x8xf32> to vector<4x32x8xf32>
    %40 = arith.truncf %39 : vector<4x32x8xf32> to vector<4x32x8xbf16>
    %c0_38 = arith.constant 0 : index
    %c0_39 = arith.constant 0 : index
    %c0_40 = arith.constant 0 : index
    %c0_41 = arith.constant 0 : index
    %41 = vector.load %arg7[%c0_38, %c0_39, %c0_40, %c0_41] : memref<1x4x32x8xbf16, #tpu.memory_space<vmem>>, vector<1x4x32x8xbf16>
    %42 = vector.shape_cast %41 : vector<1x4x32x8xbf16> to vector<4x32x8xbf16>
    %43 = vector.shape_cast %40 : vector<4x32x8xbf16> to vector<1x4x32x8xbf16>
    tpu.vector_store %arg7[%c0_38, %c0_39, %c0_40, %c0_41], %43 {strides = array<i32>} : memref<1x4x32x8xbf16, #tpu.memory_space<vmem>>, vector<1x4x32x8xbf16>,
    %cst_42 = arith.constant dense<0.000000e+00> : vector<8xf32>
    %44 = vector.multi_reduction <add>, %38, %cst_42 [0] : vector<128x8xf32> to vector<8xf32>
    %45 = vector.shape_cast %44 : vector<8xf32> to vector<1x8xf32>
    %46 = vector.shape_cast %45 : vector<1x8xf32> to vector<1x1x8xf32>
    %c0_43 = arith.constant 0 : index
    %c0_44 = arith.constant 0 : index
    %c0_45 = arith.constant 0 : index
    %47 = vector.load %arg8[%c0_43, %c0_44, %c0_45] : memref<1x1x8xf32, #tpu.memory_space<vmem>>, vector<1x1x8xf32>
    tpu.vector_store %arg8[%c0_43, %c0_44, %c0_45], %46 {strides = array<i32>} : memref<1x1x8xf32, #tpu.memory_space<vmem>>, vector<1x1x8xf32>,
    %48 = arith.mulf %38, %38 : vector<128x8xf32>
    %cst_46 = arith.constant dense<0.000000e+00> : vector<8xf32>
    %49 = vector.multi_reduction <add>, %48, %cst_46 [0] : vector<128x8xf32> to vector<8xf32>
    %50 = vector.shape_cast %49 : vector<8xf32> to vector<1x8xf32>
    %51 = vector.shape_cast %50 : vector<1x8xf32> to vector<1x1x8xf32>
    %c0_47 = arith.constant 0 : index
    %c0_48 = arith.constant 0 : index
    %c0_49 = arith.constant 0 : index
    %52 = vector.load %arg9[%c0_47, %c0_48, %c0_49] : memref<1x1x8xf32, #tpu.memory_space<vmem>>, vector<1x1x8xf32>
    tpu.vector_store %arg9[%c0_47, %c0_48, %c0_49], %51 {strides = array<i32>} : memref<1x1x8xf32, #tpu.memory_space<vmem>>, vector<1x1x8xf32>,
    return
  }
  func.func @transform_0(%arg0: i32, %arg1: i32) -> (i32, i32, i32, i32) {
    %c0_i32 = arith.constant 0 : i32
    %c0_i32_0 = arith.constant 0 : i32
    %c0_i32_1 = arith.constant 0 : i32
    return %arg0, %c0_i32, %arg1, %c0_i32_0 : i32, i32, i32, i32
  }
  func.func @transform_1(%arg0: i32, %arg1: i32) -> (i32, i32) {
    %c0_i32 = arith.constant 0 : i32
    %c0_i32_0 = arith.constant 0 : i32
    %c0_i32_1 = arith.constant 0 : i32
    return %c0_i32, %c0_i32_0 : i32, i32
  }
  func.func @transform_2(%arg0: i32, %arg1: i32) -> (i32, i32) {
    %c0_i32 = arith.constant 0 : i32
    %c0_i32_0 = arith.constant 0 : i32
    %c0_i32_1 = arith.constant 0 : i32
    return %c0_i32, %c0_i32_0 : i32, i32
  }
  func.func @transform_3(%arg0: i32, %arg1: i32) -> (i32, i32, i32) {
    %c0_i32 = arith.constant 0 : i32
    %c0_i32_0 = arith.constant 0 : i32
    %c0_i32_1 = arith.constant 0 : i32
    %c0_i32_2 = arith.constant 0 : i32
    return %c0_i32, %c0_i32_0, %c0_i32_1 : i32, i32, i32
  }
  func.func @transform_4(%arg0: i32, %arg1: i32) -> (i32, i32) {
    %c0_i32 = arith.constant 0 : i32
    %c0_i32_0 = arith.constant 0 : i32
    %c0_i32_1 = arith.constant 0 : i32
    return %c0_i32, %c0_i32_0 : i32, i32
  }
  func.func @transform_5(%arg0: i32, %arg1: i32) -> (i32, i32, i32, i32) {
    %c0_i32 = arith.constant 0 : i32
    %c0_i32_0 = arith.constant 0 : i32
    %c0_i32_1 = arith.constant 0 : i32
    return %arg0, %c0_i32, %arg1, %c0_i32_0 : i32, i32, i32, i32
  }
  func.func @transform_6(%arg0: i32, %arg1: i32) -> (i32, i32, i32) {
    %c2_i32 = arith.constant 2 : i32
    %0 = arith.muli %arg0, %c2_i32 : i32
    %1 = arith.addi %0, %arg1 : i32
    %c0_i32 = arith.constant 0 : i32
    %c0_i32_0 = arith.constant 0 : i32
    %c0_i32_1 = arith.constant 0 : i32
    return %1, %c0_i32, %c0_i32_0 : i32, i32, i32
  }
  func.func @transform_7(%arg0: i32, %arg1: i32) -> (i32, i32, i32) {
    %c2_i32 = arith.constant 2 : i32
    %0 = arith.muli %arg0, %c2_i32 : i32
    %1 = arith.addi %0, %arg1 : i32
    %c0_i32 = arith.constant 0 : i32
    %c0_i32_0 = arith.constant 0 : i32
    %c0_i32_1 = arith.constant 0 : i32
    return %1, %c0_i32, %c0_i32_0 : i32, i32, i32
  }
}

</mosaic_0001>

<llo_original>
// kernel: tile.28
$region0: #{tile.28}
  #allocation0 [shape = 's32[1]{0}', space=sflag, size = 0x4, scoped, tag = 'scoped memory for tile.28']
  %s0 = inlined_call_operand.vmem [shape: f32[8], index: 0, kind: input, shape index: {}]
  %s1 = inlined_call_operand.vmem [shape: f32[64,8], index: 1, kind: output, shape index: {}]
  // Predicated region
  $region2: #{tile.28} parent=0 // pred_check
    _
  $region3: #{tile.28} parent=0 // pred_check_branch
    %3 = sbr.rel (0) target = $region5
  $region4: #{tile.28} parent=0 // pred_region
    _
  $region5: #{tile.28} parent=0 // pred_fallthru
    _
  %v4 = vld [vmem:[%s0] ss:$0 sm:$0xff]
  %5 = vst [vmem:[%s1] sm:$0xff] %v4
  %s6 = scalar_lea.vmem %s1, 8
  %7 = vst [vmem:[%s6] sm:$0xff] %v4
  %s8 = scalar_lea.vmem %s1, 16
  %9 = vst [vmem:[%s8] sm:$0xff] %v4
  %s10 = scalar_lea.vmem %s1, 24
  %11 = vst [vmem:[%s10] sm:$0xff] %v4
  %s12 = scalar_lea.vmem %s1, 32
  %13 = vst [vmem:[%s12] sm:$0xff] %v4
  %s14 = scalar_lea.vmem %s1, 40
  %15 = vst [vmem:[%s14] sm:$0xff] %v4
  %s16 = scalar_lea.vmem %s1, 48
  %17 = vst [vmem:[%s16] sm:$0xff] %v4
  %s18 = scalar_lea.vmem %s1, 56
  %19 = vst [vmem:[%s18] sm:$0xff] %v4

// kernel: tile.29
$region0: #{tile.29}
  %s0 = inlined_call_operand.vmem [shape: f32[64,8], index: 0, kind: input, shape index: {}]
  %s1 = inlined_call_operand.vmem [shape: f32[1,512], index: 1, kind: output, shape index: {}]
  $region1: #{tile.29} parent=0
    #allocation0 [shape = 'u8[16384]{0}', space=vmem, size = 0x4000, scoped, tag = 'scoped mem for output reshape']
    %s2 = smov 3
    %v3 = vld [vmem:[%s0] ss:$16 sm:%s2]
    %s4 = smov 12
    %v5 = vld [vmem:[%s0] ss:$16 sm:%s4]
    %vm6 = vcmask 1043458
    %v7 = vsel %vm6, %v5, %v3
    %vm8 = vcmask 64512
    %9 = vst.msk [vmem:[#allocation0] ss:$8 sm:$0xf] %vm8, %v7
    %s10 = scalar_lea.vmem %s0, 15
    %s11 = smov 3
    %v12 = vld [vmem:[%s10] ss:$16 sm:%s11]
    %s13 = scalar_lea.vmem %s0, 15
    %s14 = smov 12
    %v15 = vld [vmem:[%s13] ss:$16 sm:%s14]
    %vm16 = vcmask 1043458
    %v17 = vsel %vm16, %v15, %v12
    %18 = vrot.lane.b32.xlu0 %v17, 120
    %v19 = vpop.permute.xlu0 %18
    %vm20 = vcmask 1048512
    %21 = vst.msk [vmem:[#allocation0] ss:$8 sm:$0xf] %vm20, %v19
    %s22 = scalar_lea.vmem %s0, 14
    %s23 = smov 3
    %v24 = vld [vmem:[%s22] ss:$16 sm:%s23]
    %s25 = scalar_lea.vmem %s0, 14
    %s26 = smov 12
    %v27 = vld [vmem:[%s25] ss:$16 sm:%s26]
    %vm28 = vcmask 1043458
    %v29 = vsel %vm28, %v27, %v24
    %30 = vrot.lane.b32.xlu0 %v29, 112
    %v31 = vpop.permute.xlu0 %30
    %vm32 = vcmask 982912
    %33 = vst.msk [vmem:[#allocation0] ss:$8 sm:$0xf] %vm32, %v31
    %s34 = scalar_lea.vmem %s0, 13
    %s35 = smov 3
    %v36 = vld [vmem:[%s34] ss:$16 sm:%s35]
    %s37 = scalar_lea.vmem %s0, 13
    %s38 = smov 12
    %v39 = vld [vmem:[%s37] ss:$16 sm:%s38]
    %vm40 = vcmask 1043458
    %v41 = vsel %vm40, %v39, %v36
    %42 = vrot.lane.b32.xlu0 %v41, 104
    %v43 = vpop.permute.xlu0 %42
    %vm44 = vcmask 917312
    %45 = vst.msk [vmem:[#allocation0] ss:$8 sm:$0xf] %vm44, %v43
    %s46 = scalar_lea.vmem %s0, 12
    %s47 = smov 3
    %v48 = vld [vmem:[%s46] ss:$16 sm:%s47]
    %s49 = scalar_lea.vmem %s0, 12
    %s50 = smov 12
    %v51 = vld [vmem:[%s49] ss:$16 sm:%s50]
    %vm52 = vcmask 1043458
    %v53 = vsel %vm52, %v51, %v48
    %54 = vrot.lane.b32.xlu0 %v53, 96
    %v55 = vpop.permute.xlu0 %54
    %vm56 = vcmask 851712
    %57 = vst.msk [vmem:[#allocation0] ss:$8 sm:$0xf] %vm56, %v55
    %s58 = scalar_lea.vmem %s0, 11
    %s59 = smov 3
    %v60 = vld [vmem:[%s58] ss:$16 sm:%s59]
    %s61 = scalar_lea.vmem %s0, 11
    %s62 = smov 12
    %v63 = vld [vmem:[%s61] ss:$16 sm:%s62]
    %vm64 = vcmask 1043458
    %v65 = vsel %vm64, %v63, %v60
    %66 = vrot.lane.b32.xlu0 %v65, 88
    %v67 = vpop.permute.xlu0 %66
    %vm68 = vcmask 786112
    %69 = vst.msk [vmem:[#allocation0] ss:$8 sm:$0xf] %vm68, %v67
    %s70 = scalar_lea.vmem %s0, 10
    %s71 = smov 3
    %v72 = vld [vmem:[%s70] ss:$16 sm:%s71]
    %s73 = scalar_lea.vmem %s0, 10
    %s74 = smov 12
    %v75 = vld [vmem:[%s73] ss:$16 sm:%s74]
    %vm76 = vcmask 1043458
    %v77 = vsel %vm76, %v75, %v72
    %78 = vrot.lane.b32.xlu0 %v77, 80
    %v79 = vpop.permute.xlu0 %78
    %vm80 = vcmask 720512
    %81 = vst.msk [vmem:[#allocation0] ss:$8 sm:$0xf] %vm80, %v79
    %s82 = scalar_lea.vmem %s0, 9
    %s83 = smov 3
    %v84 = vld [vmem:[%s82] ss:$16 sm:%s83]
    %s85 = scalar_lea.vmem %s0, 9
    %s86 = smov 12
    %v87 = vld [vmem:[%s85] ss:$16 sm:%s86]
    %vm88 = vcmask 1043458
    %v89 = vsel %vm88, %v87, %v84
    %90 = vrot.lane.b32.xlu0 %v89, 72
    %v91 = vpop.permute.xlu0 %90
    %vm92 = vcmask 654912
    %93 = vst.msk [vmem:[#allocation0] ss:$8 sm:$0xf] %vm92, %v91
    %s94 = scalar_lea.vmem %s0, 8
    %s95 = smov 3
    %v96 = vld [vmem:[%s94] ss:$16 sm:%s95]
    %s97 = scalar_lea.vmem %s0, 8
    %s98 = smov 12
    %v99 = vld [vmem:[%s97] ss:$16 sm:%s98]
    %vm100 = vcmask 1043458
    %v101 = vsel %vm100, %v99, %v96
    %102 = vrot.lane.b32.xlu0 %v101, 64
    %v103 = vpop.permute.xlu0 %102
    %vm104 = vcmask 589312
    %105 = vst.msk [vmem:[#allocation0] ss:$8 sm:$0xf] %vm104, %v103
    %s106 = scalar_lea.vmem %s0, 7
    %s107 = smov 3
    %v108 = vld [vmem:[%s106] ss:$16 sm:%s107]
    %s109 = scalar_lea.vmem %s0, 7
    %s110 = smov 12
    %v111 = vld [vmem:[%s109] ss:$16 sm:%s110]
    %vm112 = vcmask 1043458
    %v113 = vsel %vm112, %v111, %v108
    %114 = vrot.lane.b32.xlu0 %v113, 56
    %v115 = vpop.permute.xlu0 %114
    %vm116 = vcmask 523712
    %117 = vst.msk [vmem:[#allocation0] ss:$8 sm:$0xf] %vm116, %v115
    %s118 = scalar_lea.vmem %s0, 6
    %s119 = smov 3
    %v120 = vld [vmem:[%s118] ss:$16 sm:%s119]
    %s121 = scalar_lea.vmem %s0, 6
    %s122 = smov 12
    %v123 = vld [vmem:[%s121] ss:$16 sm:%s122]
    %vm124 = vcmask 1043458
    %v125 = vsel %vm124, %v123, %v120
    %126 = vrot.lane.b32.xlu0 %v125, 48
    %v127 = vpop.permute.xlu0 %126
    %vm128 = vcmask 458112
    %129 = vst.msk [vmem:[#allocation0] ss:$8 sm:$0xf] %vm128, %v127
    %s130 = scalar_lea.vmem %s0, 5
    %s131 = smov 3
    %v132 = vld [vmem:[%s130] ss:$16 sm:%s131]
    %s133 = scalar_lea.vmem %s0, 5
    %s134 = smov 12
    %v135 = vld [vmem:[%s133] ss:$16 sm:%s134]
    %vm136 = vcmask 1043458
    %v137 = vsel %vm136, %v135, %v132
    %138 = vrot.lane.b32.xlu0 %v137, 40
    %v139 = vpop.permute.xlu0 %138
    %vm140 = vcmask 392512
    %141 = vst.msk [vmem:[#allocation0] ss:$8 sm:$0xf] %vm140, %v139
    %s142 = scalar_lea.vmem %s0, 4
    %s143 = smov 3
    %v144 = vld [vmem:[%s142] ss:$16 sm:%s143]
    %s145 = scalar_lea.vmem %s0, 4
    %s146 = smov 12
    %v147 = vld [vmem:[%s145] ss:$16 sm:%s146]
    %vm148 = vcmask 1043458
    %v149 = vsel %vm148, %v147, %v144
    %150 = vrot.lane.b32.xlu0 %v149, 32
    %v151 = vpop.permute.xlu0 %150
    %vm152 = vcmask 326912
    %153 = vst.msk [vmem:[#allocation0] ss:$8 sm:$0xf] %vm152, %v151
    %s154 = scalar_lea.vmem %s0, 3
    %s155 = smov 3
    %v156 = vld [vmem:[%s154] ss:$16 sm:%s155]
    %s157 = scalar_lea.vmem %s0, 3
    %s158 = smov 12
    %v159 = vld [vmem:[%s157] ss:$16 sm:%s158]
    %vm160 = vcmask 1043458
    %v161 = vsel %vm160, %v159, %v156
    %162 = vrot.lane.b32.xlu0 %v161, 24
    %v163 = vpop.permute.xlu0 %162
    %vm164 = vcmask 261312
    %165 = vst.msk [vmem:[#allocation0] ss:$8 sm:$0xf] %vm164, %v163
    %s166 = scalar_lea.vmem %s0, 2
    %s167 = smov 3
    %v168 = vld [vmem:[%s166] ss:$16 sm:%s167]
    %s169 = scalar_lea.vmem %s0, 2
    %s170 = smov 12
    %v171 = vld [vmem:[%s169] ss:$16 sm:%s170]
    %vm172 = vcmask 1043458
    %v173 = vsel %vm172, %v171, %v168
    %174 = vrot.lane.b32.xlu0 %v173, 16
    %v175 = vpop.permute.xlu0 %174
    %vm176 = vcmask 195712
    %177 = vst.msk [vmem:[#allocation0] ss:$8 sm:$0xf] %vm176, %v175
    %s178 = scalar_lea.vmem %s0, 1
    %s179 = smov 3
    %v180 = vld [vmem:[%s178] ss:$16 sm:%s179]
    %s181 = scalar_lea.vmem %s0, 1
    %s182 = smov 12
    %v183 = vld [vmem:[%s181] ss:$16 sm:%s182]
    %vm184 = vcmask 1043458
    %v185 = vsel %vm184, %v183, %v180
    %186 = vrot.lane.b32.xlu0 %v185, 8
    %v187 = vpop.permute.xlu0 %186
    %vm188 = vcmask 130112
    %189 = vst.msk [vmem:[#allocation0] ss:$8 sm:$0xf] %vm188, %v187
    %s191 = sshllo.u32 0, 1
    %v193 = vld [vmem:[#allocation0] sm:%s191]
    %s194 = sshllo.u32 0, 1
    %195 = vst [vmem:[%s1] sm:%s194] %v193
    %s196 = scalar_lea.vmem [#allocation0], 8
    %v197 = vld [vmem:[%s196] sm:%s191]
    %s198 = sshllo.u32 0, 1
    %s199 = scalar_lea.vmem %s1, 1
    %200 = vst [vmem:[%s199] sm:%s198] %v197
    %s201 = scalar_lea.vmem [#allocation0], 16
    %v202 = vld [vmem:[%s201] sm:%s191]
    %s203 = sshllo.u32 0, 1
    %s204 = smul.addr 1, 2
    %s205 = scalar_lea.vmem %s1, %s204
    %206 = vst [vmem:[%s205] sm:%s203] %v202
    %s207 = scalar_lea.vmem [#allocation0], 24
    %v208 = vld [vmem:[%s207] sm:%s191]
    %s209 = sshllo.u32 0, 1
    %s210 = smul.addr 1, 3
    %s211 = scalar_lea.vmem %s1, %s210
    %212 = vst [vmem:[%s211] sm:%s209] %v208

// kernel: residual_block_forward.6
$region0: #{residual_block_forward.6}
  #allocation0 [shape = 'u32[]', space=smem, size = 0x4, offset = 0x4, fixed_abs, tag = 'smem constant byte address 0x4 - core index']
  #allocation1 [shape = 'u32[144,128]{1,0:T(1,128)}', space=vmem, size = 0x12000, scoped, tag = 'internal scratch']
  #allocation2 [shape = 'bf16[6,32,14]{2,1,0:T(16,128)(2,1)}', space=vmem, size = 0xc000, scoped, tag = 'scratch operand']
  %s0 = inlined_call_operand.vmem [shape: bf16[2,4,64,14], index: 0, kind: input, shape index: {}]
  %s1 = inlined_call_operand.vmem [shape: f32[1,14], index: 1, kind: input, shape index: {}]
  %s2 = inlined_call_operand.vmem [shape: f32[1,14], index: 2, kind: input, shape index: {}]
  %s3 = inlined_call_operand.vmem [shape: bf16[3,14,8], index: 3, kind: input, shape index: {}]
  %s4 = inlined_call_operand.vmem [shape: f32[1,8], index: 4, kind: input, shape index: {}]
  %s5 = inlined_call_operand.vmem [shape: bf16[2,4,64,8], index: 5, kind: output, shape index: {0}]
  %s6 = inlined_call_operand.vmem [shape: f32[4,1,8], index: 6, kind: output, shape index: {1}]
  %s7 = inlined_call_operand.vmem [shape: f32[4,1,8], index: 7, kind: output, shape index: {2}]
  %8 = xla_tuple %s5, %s6, %s7
  %s9 = sld [smem:[#allocation0]]
  $region147: #{residual_block_forward.6} parent=0
    _
  %s11 = ssub.s32 1, %s9
  %s12 = scalar_select 0, %s11, %s9
  $region1: #{residual_block_forward.6} parent=0
    #allocation3 [shape = 'u8[65536]{0}', space=vmem, size = 0x10000, scoped, tag = 'input window, operand 0']
    #allocation4 [shape = 'u8[65536]{0}', space=vmem, size = 0x10000, scoped, tag = 'output window, operand 0']
    loop: start=0, step=1, limit=6
    $region2: #{residual_block_forward.6} parent=1 // loop_pre_header
      _
    $region3: #{residual_block_forward.6} parent=1 // loop_header
      %s14 = sphi 0, %s18
      %p15 = scmp.ge.s32.totalorder %s14, 6
      %s21 = sphi 0, %s33
      %s22 = sphi 0, %s29
      %s23 = sphi 0, %s21
      %s24 = sphi 0, %s22
      %s25 = sphi 0, %s23
      %s26 = sphi 0, %s24
      %s38 = sphi 0, %s40
      %s41 = sphi 0, %s38
      %s42 = sphi 0, %s41
      %s58 = sphi 0, %s42
      %s62 = sphi 0, %s62
      %s64 = sphi 0, %s62
      %s65 = sphi 0, %s64
      %s79 = sphi 0, %s65
      %s83 = sphi 0, %s83
      %s85 = sphi 0, %s83
      %s86 = sphi 0, %s85
      %s100 = sphi 0, %s86
      %s104 = sphi 0, %s104
      %s106 = sphi 0, %s104
      %s107 = sphi 0, %s106
      %s121 = sphi 0, %s107
      %s125 = sphi 0, %s125
      %s127 = sphi 0, %s125
      %s128 = sphi 0, %s127
      %s142 = sphi 0, %s128
      %s150 = sphi 0, %s152
      %s153 = sphi 0, %s150
      %s154 = sphi 0, %s153
      %s170 = sphi 0, %s154
      %s180 = sphi 0, %s182
      %s183 = sphi 0, %s180
      %s184 = sphi 0, %s183
      %s200 = sphi 0, %s184
      %s210 = sphi 0, %s212
      %s213 = sphi 0, %s210
      %s214 = sphi 0, %s213
      %s230 = sphi 0, %s214
    $region4: #{residual_block_forward.6} parent=1 // loop_header_branch
      %17 = sbr.rel (%p15) target = $region8
    $region5: #{residual_block_forward.6} parent=1 // loop_body
      %s19 = ssub.s32 %s14, 1
      %s20 = ssub.s32 %s14, 2
      %s27 = sadd.s32 1, %s22
      %p28 = scmp.ge.s32.totalorder %s27, 2
      %s29 = scalar_select %p28, 0, %s27
      %s30 = sadd.s32 1, %s21
      %s31 = scalar_select %p28, %s30, %s21
      %p32 = scmp.ge.s32.totalorder %s31, 2
      %s33 = scalar_select %p32, 0, %s31
      %s34 = ssub.s32 %s21, %s33
      %s35 = ssub.s32 %s22, %s29
      %s36 = sor.u32 %s34, %s35
      %p37 = scmp.eq.s32.totalorder %s36, 0
      %s39 = sadd.s32 %s38, 1
      %s40 = scalar_select %p37, %s38, %s39
      %p43 = pneg %p37
      %p44 = scmp.eq.s32.totalorder %s14, 3
      %p45 = por %p43, %p44
      %p46 = scmp.ne.s32.totalorder %s38, %s41
      %p47 = scmp.eq.s32.totalorder %s14, 0
      %p48 = por %p46, %p47
      %p49 = scmp.ne.s32.totalorder %s38, %s41
      %p50 = scmp.eq.s32.totalorder %s19, 3
      %p51 = por %p49, %p50
      %p52 = scmp.ne.s32.totalorder %s41, %s42
      %p53 = scmp.eq.s32.totalorder %s19, 0
      %p54 = por %p52, %p53
      %p55 = scmp.ne.s32.totalorder %s41, %s42
      %p56 = scmp.eq.s32.totalorder %s20, 3
      %p57 = por %p55, %p56
      %p59 = scmp.ne.s32.totalorder %s42, %s58
      %p60 = scmp.eq.s32.totalorder %s20, 0
      %p61 = por %p59, %p60
      %s63 = sadd.s32 %s62, 1
      %p66 = scmp.eq.s32.totalorder %s14, 3
      %p67 = scmp.ne.s32.totalorder %s62, %s64
      %p68 = scmp.eq.s32.totalorder %s14, 0
      %p69 = por %p67, %p68
      %p70 = scmp.ne.s32.totalorder %s62, %s64
      %p71 = scmp.eq.s32.totalorder %s19, 3
      %p72 = por %p70, %p71
      %p73 = scmp.ne.s32.totalorder %s64, %s65
      %p74 = scmp.eq.s32.totalorder %s19, 0
      %p75 = por %p73, %p74
      %p76 = scmp.ne.s32.totalorder %s64, %s65
      %p77 = scmp.eq.s32.totalorder %s20, 3
      %p78 = por %p76, %p77
      %p80 = scmp.ne.s32.totalorder %s65, %s79
      %p81 = scmp.eq.s32.totalorder %s20, 0
      %p82 = por %p80, %p81
      %s84 = sadd.s32 %s83, 1
      %p87 = scmp.eq.s32.totalorder %s14, 3
      %p88 = scmp.ne.s32.totalorder %s83, %s85
      %p89 = scmp.eq.s32.totalorder %s14, 0
      %p90 = por %p88, %p89
      %p91 = scmp.ne.s32.totalorder %s83, %s85
      %p92 = scmp.eq.s32.totalorder %s19, 3
      %p93 = por %p91, %p92
      %p94 = scmp.ne.s32.totalorder %s85, %s86
      %p95 = scmp.eq.s32.totalorder %s19, 0
      %p96 = por %p94, %p95
      %p97 = scmp.ne.s32.totalorder %s85, %s86
      %p98 = scmp.eq.s32.totalorder %s20, 3
      %p99 = por %p97, %p98
      %p101 = scmp.ne.s32.totalorder %s86, %s100
      %p102 = scmp.eq.s32.totalorder %s20, 0
      %p103 = por %p101, %p102
      %s105 = sadd.s32 %s104, 1
      %p108 = scmp.eq.s32.totalorder %s14, 3
      %p109 = scmp.ne.s32.totalorder %s104, %s106
      %p110 = scmp.eq.s32.totalorder %s14, 0
      %p111 = por %p109, %p110
      %p112 = scmp.ne.s32.totalorder %s104, %s106
      %p113 = scmp.eq.s32.totalorder %s19, 3
      %p114 = por %p112, %p113
      %p115 = scmp.ne.s32.totalorder %s106, %s107
      %p116 = scmp.eq.s32.totalorder %s19, 0
      %p117 = por %p115, %p116
      %p118 = scmp.ne.s32.totalorder %s106, %s107
      %p119 = scmp.eq.s32.totalorder %s20, 3
      %p120 = por %p118, %p119
      %p122 = scmp.ne.s32.totalorder %s107, %s121
      %p123 = scmp.eq.s32.totalorder %s20, 0
      %p124 = por %p122, %p123
      %s126 = sadd.s32 %s125, 1
      %p129 = scmp.eq.s32.totalorder %s14, 3
      %p130 = scmp.ne.s32.totalorder %s125, %s127
      %p131 = scmp.eq.s32.totalorder %s14, 0
      %p132 = por %p130, %p131
      %p133 = scmp.ne.s32.totalorder %s125, %s127
      %p134 = scmp.eq.s32.totalorder %s19, 3
      %p135 = por %p133, %p134
      %p136 = scmp.ne.s32.totalorder %s127, %s128
      %p137 = scmp.eq.s32.totalorder %s19, 0
      %p138 = por %p136, %p137
      %p139 = scmp.ne.s32.totalorder %s127, %s128
      %p140 = scmp.eq.s32.totalorder %s20, 3
      %p141 = por %p139, %p140
      %p143 = scmp.ne.s32.totalorder %s128, %s142
      %p144 = scmp.eq.s32.totalorder %s20, 0
      %p145 = por %p143, %p144
      %s146 = ssub.s32 %s21, %s33
      %s147 = ssub.s32 %s22, %s29
      %s148 = sor.u32 %s146, %s147
      %p149 = scmp.eq.s32.totalorder %s148, 0
      %s151 = sadd.s32 %s150, 1
      %s152 = scalar_select %p149, %s150, %s151
      %p155 = pneg %p149
      %p156 = scmp.eq.s32.totalorder %s14, 3
      %p157 = por %p155, %p156
      %p158 = scmp.ne.s32.totalorder %s150, %s153
      %p159 = scmp.eq.s32.totalorder %s14, 0
      %p160 = por %p158, %p159
      %p161 = scmp.ne.s32.totalorder %s150, %s153
      %p162 = scmp.eq.s32.totalorder %s19, 3
      %p163 = por %p161, %p162
      %p164 = scmp.ne.s32.totalorder %s153, %s154
      %p165 = scmp.eq.s32.totalorder %s19, 0
      %p166 = por %p164, %p165
      %p167 = scmp.ne.s32.totalorder %s153, %s154
      %p168 = scmp.eq.s32.totalorder %s20, 3
      %p169 = por %p167, %p168
      %p171 = scmp.ne.s32.totalorder %s154, %s170
      %p172 = scmp.eq.s32.totalorder %s20, 0
      %p173 = por %p171, %p172
      %s174 = smul.u32 %s21, 2
      %s175 = sadd.s32 %s174, %s22
      %s176 = smul.u32 %s33, 2
      %s177 = sadd.s32 %s176, %s29
      %s178 = ssub.s32 %s175, %s177
      %p179 = scmp.eq.s32.totalorder %s178, 0
      %s181 = sadd.s32 %s180, 1
      %s182 = scalar_select %p179, %s180, %s181
      %p185 = pneg %p179
      %p186 = scmp.eq.s32.totalorder %s14, 3
      %p187 = por %p185, %p186
      %p188 = scmp.ne.s32.totalorder %s180, %s183
      %p189 = scmp.eq.s32.totalorder %s14, 0
      %p190 = por %p188, %p189
      %p191 = scmp.ne.s32.totalorder %s180, %s183
      %p192 = scmp.eq.s32.totalorder %s19, 3
      %p193 = por %p191, %p192
      %p194 = scmp.ne.s32.totalorder %s183, %s184
      %p195 = scmp.eq.s32.totalorder %s19, 0
      %p196 = por %p194, %p195
      %p197 = scmp.ne.s32.totalorder %s183, %s184
      %p198 = scmp.eq.s32.totalorder %s20, 3
      %p199 = por %p197, %p198
      %p201 = scmp.ne.s32.totalorder %s184, %s200
      %p202 = scmp.eq.s32.totalorder %s20, 0
      %p203 = por %p201, %p202
      %s204 = smul.u32 %s21, 2
      %s205 = sadd.s32 %s204, %s22
      %s206 = smul.u32 %s33, 2
      %s207 = sadd.s32 %s206, %s29
      %s208 = ssub.s32 %s205, %s207
      %p209 = scmp.eq.s32.totalorder %s208, 0
      %s211 = sadd.s32 %s210, 1
      %s212 = scalar_select %p209, %s210, %s211
      %p215 = pneg %p209
      %p216 = scmp.eq.s32.totalorder %s14, 3
      %p217 = por %p215, %p216
      %p218 = scmp.ne.s32.totalorder %s210, %s213
      %p219 = scmp.eq.s32.totalorder %s14, 0
      %p220 = por %p218, %p219
      %p221 = scmp.ne.s32.totalorder %s210, %s213
      %p222 = scmp.eq.s32.totalorder %s19, 3
      %p223 = por %p221, %p222
      %p224 = scmp.ne.s32.totalorder %s213, %s214
      %p225 = scmp.eq.s32.totalorder %s19, 0
      %p226 = por %p224, %p225
      %p227 = scmp.ne.s32.totalorder %s213, %s214
      %p228 = scmp.eq.s32.totalorder %s20, 3
      %p229 = por %p227, %p228
      %p231 = scmp.ne.s32.totalorder %s214, %s230
      %p232 = scmp.eq.s32.totalorder %s20, 0
      %p233 = por %p231, %p232
      %p234 = scmp.le.s32.totalorder 1, %s14
      %p235 = scmp.lt.s32.totalorder %s14, 5
      %p236 = pnand %p234, %p235
      %p237 = pneg %p236
      // Predicated region
      $region9: #{residual_block_forward.6} parent=5 // pred_check
        _
      $region10: #{residual_block_forward.6} parent=5 // pred_check_branch
        %239 = sbr.rel (%p236) target = $region12
      $region11: #{residual_block_forward.6} parent=5 // pred_region
        %s240 = ssub.s32 %s14, 1
        // Predicated region
        $region13: #{residual_block_forward.6} parent=11 // pred_check
          %p241 = pneg %p75
        $region14: #{residual_block_forward.6} parent=11 // pred_check_branch
          %243 = sbr.rel (%p241) target = $region16
        $region15: #{residual_block_forward.6} parent=11 // pred_region
          _
        $region16: #{residual_block_forward.6} parent=11 // pred_fallthru
          _
        // Predicated region
        $region17: #{residual_block_forward.6} parent=11 // pred_check
          %p244 = pneg %p96
        $region18: #{residual_block_forward.6} parent=11 // pred_check_branch
          %246 = sbr.rel (%p244) target = $region20
        $region19: #{residual_block_forward.6} parent=11 // pred_region
          _
        $region20: #{residual_block_forward.6} parent=11 // pred_fallthru
          _
        // Predicated region
        $region21: #{residual_block_forward.6} parent=11 // pred_check
          %p247 = pneg %p117
        $region22: #{residual_block_forward.6} parent=11 // pred_check_branch
          %249 = sbr.rel (%p247) target = $region24
        $region23: #{residual_block_forward.6} parent=11 // pred_region
          _
        $region24: #{residual_block_forward.6} parent=11 // pred_fallthru
          _
        // Predicated region
        $region25: #{residual_block_forward.6} parent=11 // pred_check
          %p250 = pneg %p138
        $region26: #{residual_block_forward.6} parent=11 // pred_check_branch
          %252 = sbr.rel (%p250) target = $region28
        $region27: #{residual_block_forward.6} parent=11 // pred_region
          _
        $region28: #{residual_block_forward.6} parent=11 // pred_fallthru
          _
      $region12: #{residual_block_forward.6} parent=5 // pred_fallthru
        _
      %p253 = scmp.lt.s32.totalorder %s14, 4
      // Predicated region
      $region29: #{residual_block_forward.6} parent=5 // pred_check
        %p254 = pneg %p253
      $region30: #{residual_block_forward.6} parent=5 // pred_check_branch
        %256 = sbr.rel (%p254) target = $region32
      $region31: #{residual_block_forward.6} parent=5 // pred_region
        // Predicated region
        $region33: #{residual_block_forward.6} parent=31 // pred_check
          %p257 = pneg %p48
        $region34: #{residual_block_forward.6} parent=31 // pred_check_branch
          %259 = sbr.rel (%p257) target = $region36
        $region35: #{residual_block_forward.6} parent=31 // pred_region
          %s260 = sand.u32 %s38, 1
          %s261 = sand.u32 %s38, 1
          %s262 = smul.addr %s261, 64
          %s263 = scalar_lea.vmem [#allocation3], %s262
          %s264 = smul.u32 4, %s22
          %s265 = smul.addr %s21, 32
          %s266 = sadd.s32 %s264, %s265
          %s267 = smul.addr %s266, 4
          %s268 = scalar_lea.vmem %s0, %s267
          // Predicated region
          $region37: #{residual_block_forward.6} parent=35 // pred_check
            _
          $region38: #{residual_block_forward.6} parent=35 // pred_check_branch
            %270 = sbr.rel (0) target = $region40
          $region39: #{residual_block_forward.6} parent=35 // pred_region
            // Predicated region
            $region41: #{residual_block_forward.6} parent=39 // pred_check
              _
            $region42: #{residual_block_forward.6} parent=39 // pred_check_branch
              %272 = sbr.rel target = $region44
            $region43: #{residual_block_forward.6} parent=39 // pred_region
              // Predicated region
              $region56: #{residual_block_forward.6} parent=43 // pred_check
                _
              $region57: #{residual_block_forward.6} parent=43 // pred_check_branch
                %317 = sbr.rel (0) target = $region59
              $region58: #{residual_block_forward.6} parent=43 // pred_region
                loop: start=0, step=1, limit=1
                $region60: #{residual_block_forward.6} parent=58 // loop_pre_header
                  _
                $region61: #{residual_block_forward.6} parent=58 // loop_header
                  %s319 = sphi 0, %s323
                  %p320 = scmp.ge.s32.totalorder %s319, 1
                  %s324 = sphi %s268, %s268
                  %s325 = sphi %s263, %s263
                $region62: #{residual_block_forward.6} parent=58 // loop_header_branch
                  %322 = sbr.rel (%p320) target = $region66
                $region63: #{residual_block_forward.6} parent=58 // loop_body
                  _
                $region64: #{residual_block_forward.6} parent=58 // loop_footer
                  %s323 = sadd.s32 1, %s319
                $region65: #{residual_block_forward.6} parent=58 // loop_footer_branch
                  %318 = sbr.rel target = $region61
                $region66: #{residual_block_forward.6} parent=58 // loop_exit
                  _
                loop: start=0, step=1, limit=1
                $region67: #{residual_block_forward.6} parent=58 // loop_pre_header
                  _
                $region68: #{residual_block_forward.6} parent=58 // loop_header
                  %s328 = sphi 0, %s332
                  %p329 = scmp.ge.s32.totalorder %s328, 1
                  %s333 = sphi %s268, %s268
                  %s334 = sphi %s263, %s263
                $region69: #{residual_block_forward.6} parent=58 // loop_header_branch
                  %331 = sbr.rel (%p329) target = $region73
                $region70: #{residual_block_forward.6} parent=58 // loop_body
                  %v335 = vld [vmem:[%s333] sm:$0xf]
                  %336 = vst [vmem:[%s334] sm:$0xf] %v335
                  %v337 = vld [vmem:[%s333 + $0x4] sm:$0xf]
                  %338 = vst [vmem:[%s334 + $0x4] sm:$0xf] %v337
                  %v339 = vld [vmem:[%s333 + $0x8] sm:$0xf]
                  %340 = vst [vmem:[%s334 + $0x8] sm:$0xf] %v339
                  %v341 = vld [vmem:[%s333 + $0xc] sm:$0xf]
                  %342 = vst [vmem:[%s334 + $0xc] sm:$0xf] %v341
                  %v343 = vld [vmem:[%s333 + $0x20] sm:$0xf]
                  %344 = vst [vmem:[%s334 + $0x10] sm:$0xf] %v343
                  %v345 = vld [vmem:[%s333 + $0x24] sm:$0xf]
                  %346 = vst [vmem:[%s334 + $0x14] sm:$0xf] %v345
                  %v347 = vld [vmem:[%s333 + $0x28] sm:$0xf]
                  %348 = vst [vmem:[%s334 + $0x18] sm:$0xf] %v347
                  %v349 = vld [vmem:[%s333 + $0x2c] sm:$0xf]
                  %350 = vst [vmem:[%s334 + $0x1c] sm:$0xf] %v349
                  %v351 = vld [vmem:[%s333 + $0x40] sm:$0xf]
                  %352 = vst [vmem:[%s334 + $0x20] sm:$0xf] %v351
                  %v353 = vld [vmem:[%s333 + $0x44] sm:$0xf]
                  %354 = vst [vmem:[%s334 + $0x24] sm:$0xf] %v353
                  %v355 = vld [vmem:[%s333 + $0x48] sm:$0xf]
                  %356 = vst [vmem:[%s334 + $0x28] sm:$0xf] %v355
                  %v357 = vld [vmem:[%s333 + $0x4c] sm:$0xf]
                  %358 = vst [vmem:[%s334 + $0x2c] sm:$0xf] %v357
                  %v359 = vld [vmem:[%s333 + $0x60] sm:$0xf]
                  %360 = vst [vmem:[%s334 + $0x30] sm:$0xf] %v359
                  %v361 = vld [vmem:[%s333 + $0x64] sm:$0xf]
                  %362 = vst [vmem:[%s334 + $0x34] sm:$0xf] %v361
                  %v363 = vld [vmem:[%s333 + $0x68] sm:$0xf]
                  %364 = vst [vmem:[%s334 + $0x38] sm:$0xf] %v363
                  %v365 = vld [vmem:[%s333 + $0x6c] sm:$0xf]
                  %366 = vst [vmem:[%s334 + $0x3c] sm:$0xf] %v365
                $region71: #{residual_block_forward.6} parent=58 // loop_footer
                  %s332 = sadd.s32 1, %s328
                $region72: #{residual_block_forward.6} parent=58 // loop_footer_branch
                  %327 = sbr.rel target = $region68
                $region73: #{residual_block_forward.6} parent=58 // loop_exit
                  _
              $region59: #{residual_block_forward.6} parent=43 // pred_fallthru
                _
            $region44: #{residual_block_forward.6} parent=39 // pred_fallthru
              _
            // Predicated region
            $region45: #{residual_block_forward.6} parent=39 // pred_check
              _
            $region46: #{residual_block_forward.6} parent=39 // pred_check_branch
              %274 = sbr.rel (0) target = $region48
            $region47: #{residual_block_forward.6} parent=39 // pred_region
              loop: start=0, step=1, limit=1
              $region49: #{residual_block_forward.6} parent=47 // loop_pre_header
                _
              $region50: #{residual_block_forward.6} parent=47 // loop_header
                %s277 = sphi 0, %s281
                %p278 = scmp.ge.s32.totalorder %s277, 1
                %s282 = sphi %s268, %s268
                %s283 = sphi %s263, %s263
              $region51: #{residual_block_forward.6} parent=47 // loop_header_branch
                %280 = sbr.rel (%p278) target = $region55
              $region52: #{residual_block_forward.6} parent=47 // loop_body
                %v284 = vld [vmem:[%s282] sm:$0xf]
                %285 = vst [vmem:[%s283] sm:$0xf] %v284
                %v286 = vld [vmem:[%s282 + $0x4] sm:$0xf]
                %287 = vst [vmem:[%s283 + $0x4] sm:$0xf] %v286
                %v288 = vld [vmem:[%s282 + $0x8] sm:$0xf]
                %289 = vst [vmem:[%s283 + $0x8] sm:$0xf] %v288
                %v290 = vld [vmem:[%s282 + $0xc] sm:$0xf]
                %291 = vst [vmem:[%s283 + $0xc] sm:$0xf] %v290
                %v292 = vld [vmem:[%s282 + $0x20] sm:$0xf]
                %293 = vst [vmem:[%s283 + $0x10] sm:$0xf] %v292
                %v294 = vld [vmem:[%s282 + $0x24] sm:$0xf]
                %295 = vst [vmem:[%s283 + $0x14] sm:$0xf] %v294
                %v296 = vld [vmem:[%s282 + $0x28] sm:$0xf]
                %297 = vst [vmem:[%s283 + $0x18] sm:$0xf] %v296
                %v298 = vld [vmem:[%s282 + $0x2c] sm:$0xf]
                %299 = vst [vmem:[%s283 + $0x1c] sm:$0xf] %v298
                %v300 = vld [vmem:[%s282 + $0x40] sm:$0xf]
                %301 = vst [vmem:[%s283 + $0x20] sm:$0xf] %v300
                %v302 = vld [vmem:[%s282 + $0x44] sm:$0xf]
                %303 = vst [vmem:[%s283 + $0x24] sm:$0xf] %v302
                %v304 = vld [vmem:[%s282 + $0x48] sm:$0xf]
                %305 = vst [vmem:[%s283 + $0x28] sm:$0xf] %v304
                %v306 = vld [vmem:[%s282 + $0x4c] sm:$0xf]
                %307 = vst [vmem:[%s283 + $0x2c] sm:$0xf] %v306
                %v308 = vld [vmem:[%s282 + $0x60] sm:$0xf]
                %309 = vst [vmem:[%s283 + $0x30] sm:$0xf] %v308
                %v310 = vld [vmem:[%s282 + $0x64] sm:$0xf]
                %311 = vst [vmem:[%s283 + $0x34] sm:$0xf] %v310
                %v312 = vld [vmem:[%s282 + $0x68] sm:$0xf]
                %313 = vst [vmem:[%s283 + $0x38] sm:$0xf] %v312
                %v314 = vld [vmem:[%s282 + $0x6c] sm:$0xf]
                %315 = vst [vmem:[%s283 + $0x3c] sm:$0xf] %v314
              $region53: #{residual_block_forward.6} parent=47 // loop_footer
                %s281 = sadd.s32 1, %s277
              $region54: #{residual_block_forward.6} parent=47 // loop_footer_branch
                %276 = sbr.rel target = $region50
              $region55: #{residual_block_forward.6} parent=47 // loop_exit
                _
            $region48: #{residual_block_forward.6} parent=39 // pred_fallthru
              _
          $region40: #{residual_block_forward.6} parent=35 // pred_fallthru
            _
          %367 = vnop
        $region36: #{residual_block_forward.6} parent=31 // pred_fallthru
          _
      $region32: #{residual_block_forward.6} parent=5 // pred_fallthru
        _
      %p368 = scmp.le.s32.totalorder 1, %s14
      %p369 = scmp.lt.s32.totalorder %s14, 5
      %p370 = pnand %p368, %p369
      %p371 = pneg %p370
      // Predicated region
      $region74: #{residual_block_forward.6} parent=5 // pred_check
        _
      $region75: #{residual_block_forward.6} parent=5 // pred_check_branch
        %373 = sbr.rel (%p370) target = $region77
      $region76: #{residual_block_forward.6} parent=5 // pred_region
        %s374 = ssub.s32 %s14, 1
        %s375 = sand.u32 %s41, 1
        %s376 = sand.u32 %s41, 1
        %s377 = smul.addr %s376, 64
        %s378 = scalar_lea.vmem [#allocation3], %s377
        // Predicated region
        $region78: #{residual_block_forward.6} parent=76 // pred_check
          %p379 = pneg %p54
        $region79: #{residual_block_forward.6} parent=76 // pred_check_branch
          %381 = sbr.rel (%p379) target = $region81
        $region80: #{residual_block_forward.6} parent=76 // pred_region
          _
        $region81: #{residual_block_forward.6} parent=76 // pred_fallthru
          _
        %s382 = sand.u32 %s41, 1
        %s383 = sand.u32 %s41, 1
        %s384 = smul.addr %s383, 64
        %s385 = scalar_lea.vmem [#allocation3], %s384
        %p386 = pneg %p54
        %p387 = pneg %p51
        %p388 = pneg %p75
        %p389 = pneg %p72
        %p390 = pneg %p96
        %p391 = pneg %p93
        %p392 = pneg %p117
        %p393 = pneg %p114
        %p394 = pneg %p138
        %p395 = pneg %p135
        %p396 = pneg %p166
        %p397 = pneg %p163
        %s398 = sand.u32 %s153, 1
        %s399 = sand.u32 %s153, 1
        %s400 = smul.addr %s399, 64
        %s401 = scalar_lea.vmem [#allocation4], %s400
        %p402 = pneg %p196
        %p403 = pneg %p193
        %s404 = smul.u32 %s23, 2
        %s405 = sadd.s32 %s404, %s24
        %p406 = scmp.lt.s32.totalorder %s405, 3
        %s407 = scalar_select %p406, %s405, 3
        %s408 = scalar_lea.vmem %s6, %s407
        %p409 = pneg %p226
        %p410 = pneg %p223
        %s411 = smul.u32 %s23, 2
        %s412 = sadd.s32 %s411, %s24
        %p413 = scmp.lt.s32.totalorder %s412, 3
        %s414 = scalar_select %p413, %s412, 3
        %s415 = scalar_lea.vmem %s7, %s414
        %s416 = smul.u32 4, %s24
        %s417 = smul.u32 4, %s24
        %s418 = smul.u32 %s23, 2
        %s419 = sadd.s32 %s418, %s24
        %p420 = scmp.lt.s32.totalorder %s419, 3
        %s421 = scalar_select %p420, %s419, 3
        %s422 = scalar_lea.vmem %s6, %s421
        %s423 = smul.u32 %s23, 2
        %s424 = sadd.s32 %s423, %s24
        %s425 = smul.u32 %s23, 2
        %s426 = sadd.s32 %s425, %s24
        %p427 = scmp.lt.s32.totalorder %s426, 3
        %s428 = scalar_select %p427, %s426, 3
        %s429 = scalar_lea.vmem %s7, %s428
        %s430 = smul.u32 %s23, 2
        %s431 = sadd.s32 %s430, %s24
        %v433 = vld [vmem:[%s378] sm:$0xf]
        %v434 = vld [vmem:[%s378 + $0x4] sm:$0xf]
        %v435 = vld [vmem:[%s378 + $0x8] sm:$0xf]
        %v436 = vld [vmem:[%s378 + $0xc] sm:$0xf]
        %v437 = vld [vmem:[%s378 + $0x10] sm:$0xf]
        %v438 = vld [vmem:[%s378 + $0x14] sm:$0xf]
        %v439 = vld [vmem:[%s378 + $0x18] sm:$0xf]
        %v440 = vld [vmem:[%s378 + $0x1c] sm:$0xf]
        %v441 = vld [vmem:[%s378 + $0x20] sm:$0xf]
        %v442 = vld [vmem:[%s378 + $0x24] sm:$0xf]
        %v443 = vld [vmem:[%s378 + $0x28] sm:$0xf]
        %v444 = vld [vmem:[%s378 + $0x2c] sm:$0xf]
        %v445 = vld [vmem:[%s378 + $0x30] sm:$0xf]
        %v446 = vld [vmem:[%s378 + $0x34] sm:$0xf]
        %v447 = vld [vmem:[%s378 + $0x38] sm:$0xf]
        %v448 = vld [vmem:[%s378 + $0x3c] sm:$0xf]
        %v449 = vunpack.c.l.bf16 %v433
        %v450 = vunpack.c.l.bf16 %v434
        %v451 = vunpack.c.l.bf16 %v435
        %v452 = vunpack.c.l.bf16 %v436
        %v453 = vunpack.c.l.bf16 %v437
        %v454 = vunpack.c.l.bf16 %v438
        %v455 = vunpack.c.l.bf16 %v439
        %v456 = vunpack.c.l.bf16 %v440
        %v457 = vunpack.c.l.bf16 %v441
        %v458 = vunpack.c.l.bf16 %v442
        %v459 = vunpack.c.l.bf16 %v443
        %v460 = vunpack.c.l.bf16 %v444
        %v461 = vunpack.c.l.bf16 %v445
        %v462 = vunpack.c.l.bf16 %v446
        %v463 = vunpack.c.l.bf16 %v447
        %v464 = vunpack.c.l.bf16 %v448
        %v465 = vld [vmem:[%s1] sm:$0x1]
        %v467 = vlaneseq
        %v468 = vshrl.u32 %v467, 7
        %v469 = vsub.s32 0, %v468
        %v470 = vrot.slane %v465, %v469
        %v472 = vmul.f32 %v449, %v470
        %v473 = vmul.f32 %v450, %v470
        %v474 = vmul.f32 %v451, %v470
        %v475 = vmul.f32 %v452, %v470
        %v476 = vmul.f32 %v453, %v470
        %v477 = vmul.f32 %v454, %v470
        %v478 = vmul.f32 %v455, %v470
        %v479 = vmul.f32 %v456, %v470
        %v480 = vmul.f32 %v457, %v470
        %v481 = vmul.f32 %v458, %v470
        %v482 = vmul.f32 %v459, %v470
        %v483 = vmul.f32 %v460, %v470
        %v484 = vmul.f32 %v461, %v470
        %v485 = vmul.f32 %v462, %v470
        %v486 = vmul.f32 %v463, %v470
        %v487 = vmul.f32 %v464, %v470
        %v488 = vld [vmem:[%s2] sm:$0x1]
        %v490 = vlaneseq
        %v491 = vshrl.u32 %v490, 7
        %v492 = vsub.s32 0, %v491
        %v493 = vrot.slane %v488, %v492
        %v495 = vadd.f32 %v472, %v493
        %v496 = vadd.f32 %v473, %v493
        %v497 = vadd.f32 %v474, %v493
        %v498 = vadd.f32 %v475, %v493
        %v499 = vadd.f32 %v476, %v493
        %v500 = vadd.f32 %v477, %v493
        %v501 = vadd.f32 %v478, %v493
        %v502 = vadd.f32 %v479, %v493
        %v503 = vadd.f32 %v480, %v493
        %v504 = vadd.f32 %v481, %v493
        %v505 = vadd.f32 %v482, %v493
        %v506 = vadd.f32 %v483, %v493
        %v507 = vadd.f32 %v484, %v493
        %v508 = vadd.f32 %v485, %v493
        %v509 = vadd.f32 %v486, %v493
        %v510 = vadd.f32 %v487, %v493
        %v511 = vmax.f32 %v495, 0.0
        %v512 = vmax.f32 %v496, 0.0
        %v513 = vmax.f32 %v497, 0.0
        %v514 = vmax.f32 %v498, 0.0
        %v515 = vmax.f32 %v499, 0.0
        %v516 = vmax.f32 %v500, 0.0
        %v517 = vmax.f32 %v501, 0.0
        %v518 = vmax.f32 %v502, 0.0
        %v519 = vmax.f32 %v503, 0.0
        %v520 = vmax.f32 %v504, 0.0
        %v521 = vmax.f32 %v505, 0.0
        %v522 = vmax.f32 %v506, 0.0
        %v523 = vmax.f32 %v507, 0.0
        %v524 = vmax.f32 %v508, 0.0
        %v525 = vmax.f32 %v509, 0.0
        %v526 = vmax.f32 %v510, 0.0
        %vm527 = vcmask 113664
        %528 = vst.msk [vmem:[#allocation2] sm:$0xff] %vm527, 0
        %529 = vst.msk [vmem:[#allocation2 + $0x8] sm:$0xff] %vm527, 0
        %s530 = scalar_lea.vmem [#allocation2], 80
        %531 = vst.msk [vmem:[%s530] sm:$0xff] %vm527, 0
        %532 = vst.msk [vmem:[%s530 + $0x8] sm:$0xff] %vm527, 0
        %v533 = vpack.c.bf16 %v512, %v511
        %v534 = vpack.c.bf16 %v514, %v513
        %v535 = vpack.c.bf16 %v516, %v515
        %v536 = vpack.c.bf16 %v518, %v517
        %v537 = vpack.c.bf16 %v520, %v519
        %v538 = vpack.c.bf16 %v522, %v521
        %v539 = vpack.c.bf16 %v524, %v523
        %v540 = vpack.c.bf16 %v526, %v525
        %s541 = scalar_lea.vmem [#allocation2], 16
        %542 = vst.msk [vmem:[%s541] sm:$0xff] %vm527, %v533
        %543 = vst.msk [vmem:[%s541 + $0x8] sm:$0xff] %vm527, %v534
        %544 = vst.msk [vmem:[%s541 + $0x10] sm:$0xff] %vm527, %v535
        %545 = vst.msk [vmem:[%s541 + $0x18] sm:$0xff] %vm527, %v536
        %546 = vst.msk [vmem:[%s541 + $0x20] sm:$0xff] %vm527, %v537
        %547 = vst.msk [vmem:[%s541 + $0x28] sm:$0xff] %vm527, %v538
        %548 = vst.msk [vmem:[%s541 + $0x30] sm:$0xff] %vm527, %v539
        %549 = vst.msk [vmem:[%s541 + $0x38] sm:$0xff] %vm527, %v540
        %v550 = vld [vmem:[#allocation2] sm:$0xff]
        %v551 = vld [vmem:[#allocation2 + $0x8] sm:$0xff]
        %v552 = vld [vmem:[#allocation2 + $0x10] sm:$0xff]
        %v553 = vld [vmem:[#allocation2 + $0x18] sm:$0xff]
        %v554 = vld [vmem:[#allocation2 + $0x20] sm:$0xff]
        %v555 = vld [vmem:[#allocation2 + $0x28] sm:$0xff]
        %v556 = vld [vmem:[#allocation2 + $0x30] sm:$0xff]
        %v557 = vld [vmem:[#allocation2 + $0x38] sm:$0xff]
        %v558 = vld [vmem:[%s3] sm:$0xf]
        %v559 = vld [vmem:[%s3 + $0x4] sm:$0x7]
        %v560 = vld [vmem:[%s541] sm:$0xff]
        %v561 = vld [vmem:[%s541 + $0x8] sm:$0xff]
        %v562 = vld [vmem:[%s541 + $0x10] sm:$0xff]
        %v563 = vld [vmem:[%s541 + $0x18] sm:$0xff]
        %v564 = vld [vmem:[%s541 + $0x20] sm:$0xff]
        %v565 = vld [vmem:[%s541 + $0x28] sm:$0xff]
        %v566 = vld [vmem:[%s541 + $0x30] sm:$0xff]
        %v567 = vld [vmem:[%s541 + $0x38] sm:$0xff]
        %s568 = scalar_lea.vmem %s3, 8
        %v569 = vld [vmem:[%s568] sm:$0xf]
        %v570 = vld [vmem:[%s568 + $0x4] sm:$0x7]
        %v573 = vunpack.c.l.b16 %v569
        %v574 = vunpack.c.l.b16 %v570
        %v575 = vpack.c.b16 %v574, %v573
        %v577 = vsel %vm527, %v560, 0
        %v580 = vsel %vm527, %v561, 0
        %v583 = vsel %vm527, %v562, 0
        %v586 = vsel %vm527, %v563, 0
        %v589 = vsel %vm527, %v564, 0
        %v592 = vsel %vm527, %v565, 0
        %v595 = vsel %vm527, %v566, 0
        %v598 = vsel %vm527, %v567, 0
        %vm600 = vcmask 1046528
        %v602 = vsel %vm600, %v575, 0
        %604 = vmatprep.subr.bf16.mxu0 0
        %605 = vmatpush1.bf16.msra.mxu0 %v602
        %606 = vmatprep.subr.bf16.mxu0 0
        %607 = vmatpush1.bf16.msra.mxu0 0
        %608 = vmatprep.subr.bf16.mxu0 0
        %609 = vmatpush1.bf16.msra.mxu0 0
        %610 = vmatprep.subr.bf16.mxu0 0
        %611 = vmatpush1.bf16.msra.mxu0 0
        %612 = vmatprep.subr.bf16.mxu0 0
        %613 = vmatpush1.bf16.msra.mxu0 0
        %614 = vmatprep.subr.bf16.mxu0 0
        %615 = vmatpush1.bf16.msra.mxu0 0
        %616 = vmatprep.subr.bf16.mxu0 0
        %617 = vmatpush1.bf16.msra.mxu0 0
        %618 = vmatprep.subr.bf16.mxu0 0
        %619 = vmatpush1.bf16.msra.mxu0 0
        %620 = vmatprep.subr.bf16.mxu0 0
        %621 = vmatpush1.bf16.msra.mxu0 0
        %622 = vmatprep.subr.bf16.mxu0 0
        %623 = vmatpush1.bf16.msra.mxu0 0
        %624 = vmatprep.subr.bf16.mxu0 0
        %625 = vmatpush1.bf16.msra.mxu0 0
        %626 = vmatprep.subr.bf16.mxu0 0
        %627 = vmatpush1.bf16.msra.mxu0 0
        %628 = vmatprep.subr.bf16.mxu0 0
        %629 = vmatpush1.bf16.msra.mxu0 0
        %630 = vmatprep.subr.bf16.mxu0 0
        %631 = vmatpush1.bf16.msra.mxu0 0
        %632 = vmatprep.subr.bf16.mxu0 0
        %633 = vmatpush1.bf16.msra.mxu0 0
        %634 = vmatprep.subr.bf16.mxu0 0
        %635 = vmatpush1.bf16.msra.mxu0 0
        %636 = vmatprep.mubr.bf16.mxu0 0
        %637 = vmatmul.mubr.bf16.gmra.mrb[0].mxu0 %v577
        %v638 = vpop.f32.mrb[0].mxu0
        %v639 = vadd.f32 0.0, %v638
        %v640 = vpop.f32.mrb[0].mxu0
        %v641 = vpop.f32.mrb[0].mxu0
        %v642 = vadd.f32 0.0, %v641
        %v643 = vpop.f32.mrb[0].mxu0
        %644 = vmatprep.mubr.bf16.mxu0 0
        %645 = vmatmul.mubr.bf16.gmra.mrb[0].mxu0 %v580
        %v646 = vpop.f32.mrb[0].mxu0
        %v647 = vadd.f32 0.0, %v646
        %v648 = vpop.f32.mrb[0].mxu0
        %v649 = vpop.f32.mrb[0].mxu0
        %v650 = vadd.f32 0.0, %v649
        %v651 = vpop.f32.mrb[0].mxu0
        %652 = vmatprep.mubr.bf16.mxu0 0
        %653 = vmatmul.mubr.bf16.gmra.mrb[0].mxu0 %v583
        %v654 = vpop.f32.mrb[0].mxu0
        %v655 = vadd.f32 0.0, %v654
        %v656 = vpop.f32.mrb[0].mxu0
        %v657 = vpop.f32.mrb[0].mxu0
        %v658 = vadd.f32 0.0, %v657
        %v659 = vpop.f32.mrb[0].mxu0
        %660 = vmatprep.mubr.bf16.mxu0 0
        %661 = vmatmul.mubr.bf16.gmra.mrb[0].mxu0 %v586
        %v662 = vpop.f32.mrb[0].mxu0
        %v663 = vadd.f32 0.0, %v662
        %v664 = vpop.f32.mrb[0].mxu0
        %v665 = vpop.f32.mrb[0].mxu0
        %v666 = vadd.f32 0.0, %v665
        %v667 = vpop.f32.mrb[0].mxu0
        %668 = vmatprep.mubr.bf16.mxu0 0
        %669 = vmatmul.mubr.bf16.gmra.mrb[0].mxu0 %v589
        %v670 = vpop.f32.mrb[0].mxu0
        %v671 = vadd.f32 0.0, %v670
        %v672 = vpop.f32.mrb[0].mxu0
        %v673 = vpop.f32.mrb[0].mxu0
        %v674 = vadd.f32 0.0, %v673
        %v675 = vpop.f32.mrb[0].mxu0
        %676 = vmatprep.mubr.bf16.mxu0 0
        %677 = vmatmul.mubr.bf16.gmra.mrb[0].mxu0 %v592
        %v678 = vpop.f32.mrb[0].mxu0
        %v679 = vadd.f32 0.0, %v678
        %v680 = vpop.f32.mrb[0].mxu0
        %v681 = vpop.f32.mrb[0].mxu0
        %v682 = vadd.f32 0.0, %v681
        %v683 = vpop.f32.mrb[0].mxu0
        %684 = vmatprep.mubr.bf16.mxu0 0
        %685 = vmatmul.mubr.bf16.gmra.mrb[0].mxu0 %v595
        %v686 = vpop.f32.mrb[0].mxu0
        %v687 = vadd.f32 0.0, %v686
        %v688 = vpop.f32.mrb[0].mxu0
        %v689 = vpop.f32.mrb[0].mxu0
        %v690 = vadd.f32 0.0, %v689
        %v691 = vpop.f32.mrb[0].mxu0
        %692 = vmatprep.mubr.bf16.mxu0 0
        %693 = vmatmul.mubr.bf16.gmra.mrb[0].mxu0 %v598
        %v694 = vpop.f32.mrb[0].mxu0
        %v695 = vadd.f32 0.0, %v694
        %v696 = vpop.f32.mrb[0].mxu0
        %v697 = vpop.f32.mrb[0].mxu0
        %v698 = vadd.f32 0.0, %v697
        %v699 = vpop.f32.mrb[0].mxu0
        %700 = vdwg.mxu0
        %v703 = vunpack.c.l.b16 %v558
        %v704 = vunpack.c.l.b16 %v559
        %v705 = vpack.c.b16 %v704, %v703
        %v707 = vsel %vm527, %v550, 0
        %v710 = vsel %vm527, %v551, 0
        %v713 = vsel %vm527, %v552, 0
        %v716 = vsel %vm527, %v553, 0
        %v719 = vsel %vm527, %v554, 0
        %v722 = vsel %vm527, %v555, 0
        %v725 = vsel %vm527, %v556, 0
        %v728 = vsel %vm527, %v557, 0
        %v731 = vsel %vm600, %v705, 0
        %733 = vmatprep.subr.bf16.mxu0 0
        %734 = vmatpush1.bf16.msra.mxu0 %v731
        %735 = vmatprep.subr.bf16.mxu0 0
        %736 = vmatpush1.bf16.msra.mxu0 0
        %737 = vmatprep.subr.bf16.mxu0 0
        %738 = vmatpush1.bf16.msra.mxu0 0
        %739 = vmatprep.subr.bf16.mxu0 0
        %740 = vmatpush1.bf16.msra.mxu0 0
        %741 = vmatprep.subr.bf16.mxu0 0
        %742 = vmatpush1.bf16.msra.mxu0 0
        %743 = vmatprep.subr.bf16.mxu0 0
        %744 = vmatpush1.bf16.msra.mxu0 0
        %745 = vmatprep.subr.bf16.mxu0 0
        %746 = vmatpush1.bf16.msra.mxu0 0
        %747 = vmatprep.subr.bf16.mxu0 0
        %748 = vmatpush1.bf16.msra.mxu0 0
        %749 = vmatprep.subr.bf16.mxu0 0
        %750 = vmatpush1.bf16.msra.mxu0 0
        %751 = vmatprep.subr.bf16.mxu0 0
        %752 = vmatpush1.bf16.msra.mxu0 0
        %753 = vmatprep.subr.bf16.mxu0 0
        %754 = vmatpush1.bf16.msra.mxu0 0
        %755 = vmatprep.subr.bf16.mxu0 0
        %756 = vmatpush1.bf16.msra.mxu0 0
        %757 = vmatprep.subr.bf16.mxu0 0
        %758 = vmatpush1.bf16.msra.mxu0 0
        %759 = vmatprep.subr.bf16.mxu0 0
        %760 = vmatpush1.bf16.msra.mxu0 0
        %761 = vmatprep.subr.bf16.mxu0 0
        %762 = vmatpush1.bf16.msra.mxu0 0
        %763 = vmatprep.subr.bf16.mxu0 0
        %764 = vmatpush1.bf16.msra.mxu0 0
        %765 = vmatprep.mubr.bf16.mxu0 0
        %766 = vmatmul.mubr.bf16.gmra.mrb[0].mxu0 %v707
        %v767 = vpop.f32.mrb[0].mxu0
        %v768 = vadd.f32 %v639, %v767
        %v769 = vpop.f32.mrb[0].mxu0
        %v770 = vpop.f32.mrb[0].mxu0
        %v771 = vadd.f32 %v642, %v770
        %v772 = vpop.f32.mrb[0].mxu0
        %773 = vmatprep.mubr.bf16.mxu0 0
        %774 = vmatmul.mubr.bf16.gmra.mrb[0].mxu0 %v710
        %v775 = vpop.f32.mrb[0].mxu0
        %v776 = vadd.f32 %v647, %v775
        %v777 = vpop.f32.mrb[0].mxu0
        %v778 = vpop.f32.mrb[0].mxu0
        %v779 = vadd.f32 %v650, %v778
        %v780 = vpop.f32.mrb[0].mxu0
        %781 = vmatprep.mubr.bf16.mxu0 0
        %782 = vmatmul.mubr.bf16.gmra.mrb[0].mxu0 %v713
        %v783 = vpop.f32.mrb[0].mxu0
        %v784 = vadd.f32 %v655, %v783
        %v785 = vpop.f32.mrb[0].mxu0
        %v786 = vpop.f32.mrb[0].mxu0
        %v787 = vadd.f32 %v658, %v786
        %v788 = vpop.f32.mrb[0].mxu0
        %789 = vmatprep.mubr.bf16.mxu0 0
        %790 = vmatmul.mubr.bf16.gmra.mrb[0].mxu0 %v716
        %v791 = vpop.f32.mrb[0].mxu0
        %v792 = vadd.f32 %v663, %v791
        %v793 = vpop.f32.mrb[0].mxu0
        %v794 = vpop.f32.mrb[0].mxu0
        %v795 = vadd.f32 %v666, %v794
        %v796 = vpop.f32.mrb[0].mxu0
        %797 = vmatprep.mubr.bf16.mxu0 0
        %798 = vmatmul.mubr.bf16.gmra.mrb[0].mxu0 %v719
        %v799 = vpop.f32.mrb[0].mxu0
        %v800 = vadd.f32 %v671, %v799
        %v801 = vpop.f32.mrb[0].mxu0
        %v802 = vpop.f32.mrb[0].mxu0
        %v803 = vadd.f32 %v674, %v802
        %v804 = vpop.f32.mrb[0].mxu0
        %805 = vmatprep.mubr.bf16.mxu0 0
        %806 = vmatmul.mubr.bf16.gmra.mrb[0].mxu0 %v722
        %v807 = vpop.f32.mrb[0].mxu0
        %v808 = vadd.f32 %v679, %v807
        %v809 = vpop.f32.mrb[0].mxu0
        %v810 = vpop.f32.mrb[0].mxu0
        %v811 = vadd.f32 %v682, %v810
        %v812 = vpop.f32.mrb[0].mxu0
        %813 = vmatprep.mubr.bf16.mxu0 0
        %814 = vmatmul.mubr.bf16.gmra.mrb[0].mxu0 %v725
        %v815 = vpop.f32.mrb[0].mxu0
        %v816 = vadd.f32 %v687, %v815
        %v817 = vpop.f32.mrb[0].mxu0
        %v818 = vpop.f32.mrb[0].mxu0
        %v819 = vadd.f32 %v690, %v818
        %v820 = vpop.f32.mrb[0].mxu0
        %821 = vmatprep.mubr.bf16.mxu0 0
        %822 = vmatmul.mubr.bf16.gmra.mrb[0].mxu0 %v728
        %v823 = vpop.f32.mrb[0].mxu0
        %v824 = vadd.f32 %v695, %v823
        %v825 = vpop.f32.mrb[0].mxu0
        %v826 = vpop.f32.mrb[0].mxu0
        %v827 = vadd.f32 %v698, %v826
        %v828 = vpop.f32.mrb[0].mxu0
        %829 = vdwg.mxu0
        %s830 = scalar_lea.vmem [#allocation2], 32
        %v831 = vld [vmem:[%s830] sm:$0xff]
        %v832 = vld [vmem:[%s830 + $0x8] sm:$0xff]
        %v833 = vld [vmem:[%s830 + $0x10] sm:$0xff]
        %v834 = vld [vmem:[%s830 + $0x18] sm:$0xff]
        %v835 = vld [vmem:[%s830 + $0x20] sm:$0xff]
        %v836 = vld [vmem:[%s830 + $0x28] sm:$0xff]
        %v837 = vld [vmem:[%s830 + $0x30] sm:$0xff]
        %v838 = vld [vmem:[%s830 + $0x38] sm:$0xff]
        %s839 = scalar_lea.vmem %s3, 16
        %v840 = vld [vmem:[%s839] sm:$0xf]
        %v841 = vld [vmem:[%s839 + $0x4] sm:$0x7]
        %v844 = vunpack.c.l.b16 %v840
        %v845 = vunpack.c.l.b16 %v841
        %v846 = vpack.c.b16 %v845, %v844
        %v848 = vsel %vm527, %v831, 0
        %v851 = vsel %vm527, %v832, 0
        %v854 = vsel %vm527, %v833, 0
        %v857 = vsel %vm527, %v834, 0
        %v860 = vsel %vm527, %v835, 0
        %v863 = vsel %vm527, %v836, 0
        %v866 = vsel %vm527, %v837, 0
        %v869 = vsel %vm527, %v838, 0
        %v872 = vsel %vm600, %v846, 0
        %874 = vmatprep.subr.bf16.mxu0 0
        %875 = vmatpush1.bf16.msra.mxu0 %v872
        %876 = vmatprep.subr.bf16.mxu0 0
        %877 = vmatpush1.bf16.msra.mxu0 0
        %878 = vmatprep.subr.bf16.mxu0 0
        %879 = vmatpush1.bf16.msra.mxu0 0
        %880 = vmatprep.subr.bf16.mxu0 0
        %881 = vmatpush1.bf16.msra.mxu0 0
        %882 = vmatprep.subr.bf16.mxu0 0
        %883 = vmatpush1.bf16.msra.mxu0 0
        %884 = vmatprep.subr.bf16.mxu0 0
        %885 = vmatpush1.bf16.msra.mxu0 0
        %886 = vmatprep.subr.bf16.mxu0 0
        %887 = vmatpush1.bf16.msra.mxu0 0
        %888 = vmatprep.subr.bf16.mxu0 0
        %889 = vmatpush1.bf16.msra.mxu0 0
        %890 = vmatprep.subr.bf16.mxu0 0
        %891 = vmatpush1.bf16.msra.mxu0 0
        %892 = vmatprep.subr.bf16.mxu0 0
        %893 = vmatpush1.bf16.msra.mxu0 0
        %894 = vmatprep.subr.bf16.mxu0 0
        %895 = vmatpush1.bf16.msra.mxu0 0
        %896 = vmatprep.subr.bf16.mxu0 0
        %897 = vmatpush1.bf16.msra.mxu0 0
        %898 = vmatprep.subr.bf16.mxu0 0
        %899 = vmatpush1.bf16.msra.mxu0 0
        %900 = vmatprep.subr.bf16.mxu0 0
        %901 = vmatpush1.bf16.msra.mxu0 0
        %902 = vmatprep.subr.bf16.mxu0 0
        %903 = vmatpush1.bf16.msra.mxu0 0
        %904 = vmatprep.subr.bf16.mxu0 0
        %905 = vmatpush1.bf16.msra.mxu0 0
        %906 = vmatprep.mubr.bf16.mxu0 0
        %907 = vmatmul.mubr.bf16.gmra.mrb[0].mxu0 %v848
        %v908 = vpop.f32.mrb[0].mxu0
        %v909 = vadd.f32 0.0, %v908
        %v910 = vpop.f32.mrb[0].mxu0
        %v911 = vpop.f32.mrb[0].mxu0
        %v912 = vadd.f32 0.0, %v911
        %v913 = vpop.f32.mrb[0].mxu0
        %914 = vmatprep.mubr.bf16.mxu0 0
        %915 = vmatmul.mubr.bf16.gmra.mrb[0].mxu0 %v851
        %v916 = vpop.f32.mrb[0].mxu0
        %v917 = vadd.f32 0.0, %v916
        %v918 = vpop.f32.mrb[0].mxu0
        %v919 = vpop.f32.mrb[0].mxu0
        %v920 = vadd.f32 0.0, %v919
        %v921 = vpop.f32.mrb[0].mxu0
        %922 = vmatprep.mubr.bf16.mxu0 0
        %923 = vmatmul.mubr.bf16.gmra.mrb[0].mxu0 %v854
        %v924 = vpop.f32.mrb[0].mxu0
        %v925 = vadd.f32 0.0, %v924
        %v926 = vpop.f32.mrb[0].mxu0
        %v927 = vpop.f32.mrb[0].mxu0
        %v928 = vadd.f32 0.0, %v927
        %v929 = vpop.f32.mrb[0].mxu0
        %930 = vmatprep.mubr.bf16.mxu0 0
        %931 = vmatmul.mubr.bf16.gmra.mrb[0].mxu0 %v857
        %v932 = vpop.f32.mrb[0].mxu0
        %v933 = vadd.f32 0.0, %v932
        %v934 = vpop.f32.mrb[0].mxu0
        %v935 = vpop.f32.mrb[0].mxu0
        %v936 = vadd.f32 0.0, %v935
        %v937 = vpop.f32.mrb[0].mxu0
        %938 = vmatprep.mubr.bf16.mxu0 0
        %939 = vmatmul.mubr.bf16.gmra.mrb[0].mxu0 %v860
        %v940 = vpop.f32.mrb[0].mxu0
        %v941 = vadd.f32 0.0, %v940
        %v942 = vpop.f32.mrb[0].mxu0
        %v943 = vpop.f32.mrb[0].mxu0
        %v944 = vadd.f32 0.0, %v943
        %v945 = vpop.f32.mrb[0].mxu0
        %946 = vmatprep.mubr.bf16.mxu0 0
        %947 = vmatmul.mubr.bf16.gmra.mrb[0].mxu0 %v863
        %v948 = vpop.f32.mrb[0].mxu0
        %v949 = vadd.f32 0.0, %v948
        %v950 = vpop.f32.mrb[0].mxu0
        %v951 = vpop.f32.mrb[0].mxu0
        %v952 = vadd.f32 0.0, %v951
        %v953 = vpop.f32.mrb[0].mxu0
        %954 = vmatprep.mubr.bf16.mxu0 0
        %955 = vmatmul.mubr.bf16.gmra.mrb[0].mxu0 %v866
        %v956 = vpop.f32.mrb[0].mxu0
        %v957 = vadd.f32 0.0, %v956
        %v958 = vpop.f32.mrb[0].mxu0
        %v959 = vpop.f32.mrb[0].mxu0
        %v960 = vadd.f32 0.0, %v959
        %v961 = vpop.f32.mrb[0].mxu0
        %962 = vmatprep.mubr.bf16.mxu0 0
        %963 = vmatmul.mubr.bf16.gmra.mrb[0].mxu0 %v869
        %v964 = vpop.f32.mrb[0].mxu0
        %v965 = vadd.f32 0.0, %v964
        %v966 = vpop.f32.mrb[0].mxu0
        %v967 = vpop.f32.mrb[0].mxu0
        %v968 = vadd.f32 0.0, %v967
        %v969 = vpop.f32.mrb[0].mxu0
        %970 = vdwg.mxu0
        %v971 = vadd.f32 %v768, %v909
        %v972 = vadd.f32 %v771, %v912
        %v973 = vadd.f32 %v776, %v917
        %v974 = vadd.f32 %v779, %v920
        %v975 = vadd.f32 %v784, %v925
        %v976 = vadd.f32 %v787, %v928
        %v977 = vadd.f32 %v792, %v933
        %v978 = vadd.f32 %v795, %v936
        %v979 = vadd.f32 %v800, %v941
        %v980 = vadd.f32 %v803, %v944
        %v981 = vadd.f32 %v808, %v949
        %v982 = vadd.f32 %v811, %v952
        %v983 = vadd.f32 %v816, %v957
        %v984 = vadd.f32 %v819, %v960
        %v985 = vadd.f32 %v824, %v965
        %v986 = vadd.f32 %v827, %v968
        %v987 = vld [vmem:[%s4] sm:$0x1]
        %v989 = vlaneseq
        %v990 = vshrl.u32 %v989, 7
        %v991 = vsub.s32 0, %v990
        %v992 = vrot.slane %v987, %v991
        %v994 = vadd.f32 %v971, %v992
        %v995 = vadd.f32 %v972, %v992
        %v996 = vadd.f32 %v973, %v992
        %v997 = vadd.f32 %v974, %v992
        %v998 = vadd.f32 %v975, %v992
        %v999 = vadd.f32 %v976, %v992
        %v1000 = vadd.f32 %v977, %v992
        %v1001 = vadd.f32 %v978, %v992
        %v1002 = vadd.f32 %v979, %v992
        %v1003 = vadd.f32 %v980, %v992
        %v1004 = vadd.f32 %v981, %v992
        %v1005 = vadd.f32 %v982, %v992
        %v1006 = vadd.f32 %v983, %v992
        %v1007 = vadd.f32 %v984, %v992
        %v1008 = vadd.f32 %v985, %v992
        %v1009 = vadd.f32 %v986, %v992
        %v1010 = vpack.c.bf16 %v995, %v994
        %v1011 = vpack.c.bf16 %v997, %v996
        %v1012 = vpack.c.bf16 %v999, %v998
        %v1013 = vpack.c.bf16 %v1001, %v1000
        %v1014 = vpack.c.bf16 %v1003, %v1002
        %v1015 = vpack.c.bf16 %v1005, %v1004
        %v1016 = vpack.c.bf16 %v1007, %v1006
        %v1017 = vpack.c.bf16 %v1009, %v1008
        %v1026 = vunpack.c.l.b16 %v1010
        %v1027 = vunpack.c.h.b16 %v1010
        %v1028 = vunpack.c.l.b16 %v1011
        %v1029 = vunpack.c.h.b16 %v1011
        %v1030 = vunpack.c.l.b16 %v1012
        %v1031 = vunpack.c.h.b16 %v1012
        %v1032 = vunpack.c.l.b16 %v1013
        %v1033 = vunpack.c.h.b16 %v1013
        %v1034 = vunpack.c.l.b16 %v1014
        %v1035 = vunpack.c.h.b16 %v1014
        %v1036 = vunpack.c.l.b16 %v1015
        %v1037 = vunpack.c.h.b16 %v1015
        %v1038 = vunpack.c.l.b16 %v1016
        %v1039 = vunpack.c.h.b16 %v1016
        %v1040 = vunpack.c.l.b16 %v1017
        %v1041 = vunpack.c.h.b16 %v1017
        %v1042 = vpack.c.b16 %v1026, %v1026
        %v1043 = vpack.c.b16 %v1027, %v1027
        %v1044 = vpack.c.b16 %v1028, %v1028
        %v1045 = vpack.c.b16 %v1029, %v1029
        %v1046 = vpack.c.b16 %v1030, %v1030
        %v1047 = vpack.c.b16 %v1031, %v1031
        %v1048 = vpack.c.b16 %v1032, %v1032
        %v1049 = vpack.c.b16 %v1033, %v1033
        %v1050 = vpack.c.b16 %v1034, %v1034
        %v1051 = vpack.c.b16 %v1035, %v1035
        %v1052 = vpack.c.b16 %v1036, %v1036
        %v1053 = vpack.c.b16 %v1037, %v1037
        %v1054 = vpack.c.b16 %v1038, %v1038
        %v1055 = vpack.c.b16 %v1039, %v1039
        %v1056 = vpack.c.b16 %v1040, %v1040
        %v1057 = vpack.c.b16 %v1041, %v1041
        %vm1074 = vcmask 60416
        %1075 = vst.msk [vmem:[%s401] sm:$0xf] %vm1074, %v1042
        %1076 = vst.msk [vmem:[%s401 + $0x4] sm:$0xf] %vm1074, %v1043
        %1077 = vst.msk [vmem:[%s401 + $0x8] sm:$0xf] %vm1074, %v1044
        %1078 = vst.msk [vmem:[%s401 + $0xc] sm:$0xf] %vm1074, %v1045
        %1079 = vst.msk [vmem:[%s401 + $0x10] sm:$0xf] %vm1074, %v1046
        %1080 = vst.msk [vmem:[%s401 + $0x14] sm:$0xf] %vm1074, %v1047
        %1081 = vst.msk [vmem:[%s401 + $0x18] sm:$0xf] %vm1074, %v1048
        %1082 = vst.msk [vmem:[%s401 + $0x1c] sm:$0xf] %vm1074, %v1049
        %1083 = vst.msk [vmem:[%s401 + $0x20] sm:$0xf] %vm1074, %v1050
        %1084 = vst.msk [vmem:[%s401 + $0x24] sm:$0xf] %vm1074, %v1051
        %1085 = vst.msk [vmem:[%s401 + $0x28] sm:$0xf] %vm1074, %v1052
        %1086 = vst.msk [vmem:[%s401 + $0x2c] sm:$0xf] %vm1074, %v1053
        %1087 = vst.msk [vmem:[%s401 + $0x30] sm:$0xf] %vm1074, %v1054
        %1088 = vst.msk [vmem:[%s401 + $0x34] sm:$0xf] %vm1074, %v1055
        %1089 = vst.msk [vmem:[%s401 + $0x38] sm:$0xf] %vm1074, %v1056
        %1090 = vst.msk [vmem:[%s401 + $0x3c] sm:$0xf] %vm1074, %v1057
        %vm1091 = vcmask 64512
        %v1092 = vsel %vm1091, %v994, 0.0
        %v1093 = vsel %vm1091, %v995, 0.0
        %v1094 = vadd.f32 %v1092, %v1093
        %v1095 = vsel %vm1091, %v996, 0.0
        %v1096 = vadd.f32 %v1094, %v1095
        %v1097 = vsel %vm1091, %v997, 0.0
        %v1098 = vadd.f32 %v1096, %v1097
        %v1099 = vsel %vm1091, %v998, 0.0
        %v1100 = vadd.f32 %v1098, %v1099
        %v1101 = vsel %vm1091, %v999, 0.0
        %v1102 = vadd.f32 %v1100, %v1101
        %v1103 = vsel %vm1091, %v1000, 0.0
        %v1104 = vadd.f32 %v1102, %v1103
        %v1105 = vsel %vm1091, %v1001, 0.0
        %v1106 = vadd.f32 %v1104, %v1105
        %v1107 = vsel %vm1091, %v1002, 0.0
        %v1108 = vadd.f32 %v1106, %v1107
        %v1109 = vsel %vm1091, %v1003, 0.0
        %v1110 = vadd.f32 %v1108, %v1109
        %v1111 = vsel %vm1091, %v1004, 0.0
        %v1112 = vadd.f32 %v1110, %v1111
        %v1113 = vsel %vm1091, %v1005, 0.0
        %v1114 = vadd.f32 %v1112, %v1113
        %v1115 = vsel %vm1091, %v1006, 0.0
        %v1116 = vadd.f32 %v1114, %v1115
        %v1117 = vsel %vm1091, %v1007, 0.0
        %v1118 = vadd.f32 %v1116, %v1117
        %v1119 = vsel %vm1091, %v1008, 0.0
        %v1120 = vadd.f32 %v1118, %v1119
        %v1121 = vsel %vm1091, %v1009, 0.0
        %v1122 = vadd.f32 %v1120, %v1121
        %v1123 = vrot.slane %v1122, 4
        %v1124 = vadd.f32 %v1122, %v1123
        %v1125 = vrot.slane %v1124, 2
        %v1126 = vadd.f32 %v1124, %v1125
        %v1127 = vrot.slane %v1126, 1
        %v1128 = vadd.f32 %v1126, %v1127
        %vm1129 = vcmask 57344
        %1130 = vst.msk [vmem:[%s422] sm:$0x1] %vm1129, %v1128
        %v1131 = vmul.f32 %v994, %v994
        %v1132 = vmul.f32 %v995, %v995
        %v1133 = vmul.f32 %v996, %v996
        %v1134 = vmul.f32 %v997, %v997
        %v1135 = vmul.f32 %v998, %v998
        %v1136 = vmul.f32 %v999, %v999
        %v1137 = vmul.f32 %v1000, %v1000
        %v1138 = vmul.f32 %v1001, %v1001
        %v1139 = vmul.f32 %v1002, %v1002
        %v1140 = vmul.f32 %v1003, %v1003
        %v1141 = vmul.f32 %v1004, %v1004
        %v1142 = vmul.f32 %v1005, %v1005
        %v1143 = vmul.f32 %v1006, %v1006
        %v1144 = vmul.f32 %v1007, %v1007
        %v1145 = vmul.f32 %v1008, %v1008
        %v1146 = vmul.f32 %v1009, %v1009
        %v1147 = vsel %vm1091, %v1131, 0.0
        %v1148 = vsel %vm1091, %v1132, 0.0
        %v1149 = vadd.f32 %v1147, %v1148
        %v1150 = vsel %vm1091, %v1133, 0.0
        %v1151 = vadd.f32 %v1149, %v1150
        %v1152 = vsel %vm1091, %v1134, 0.0
        %v1153 = vadd.f32 %v1151, %v1152
        %v1154 = vsel %vm1091, %v1135, 0.0
        %v1155 = vadd.f32 %v1153, %v1154
        %v1156 = vsel %vm1091, %v1136, 0.0
        %v1157 = vadd.f32 %v1155, %v1156
        %v1158 = vsel %vm1091, %v1137, 0.0
        %v1159 = vadd.f32 %v1157, %v1158
        %v1160 = vsel %vm1091, %v1138, 0.0
        %v1161 = vadd.f32 %v1159, %v1160
        %v1162 = vsel %vm1091, %v1139, 0.0
        %v1163 = vadd.f32 %v1161, %v1162
        %v1164 = vsel %vm1091, %v1140, 0.0
        %v1165 = vadd.f32 %v1163, %v1164
        %v1166 = vsel %vm1091, %v1141, 0.0
        %v1167 = vadd.f32 %v1165, %v1166
        %v1168 = vsel %vm1091, %v1142, 0.0
        %v1169 = vadd.f32 %v1167, %v1168
        %v1170 = vsel %vm1091, %v1143, 0.0
        %v1171 = vadd.f32 %v1169, %v1170
        %v1172 = vsel %vm1091, %v1144, 0.0
        %v1173 = vadd.f32 %v1171, %v1172
        %v1174 = vsel %vm1091, %v1145, 0.0
        %v1175 = vadd.f32 %v1173, %v1174
        %v1176 = vsel %vm1091, %v1146, 0.0
        %v1177 = vadd.f32 %v1175, %v1176
        %v1178 = vrot.slane %v1177, 4
        %v1179 = vadd.f32 %v1177, %v1178
        %v1180 = vrot.slane %v1179, 2
        %v1181 = vadd.f32 %v1179, %v1180
        %v1182 = vrot.slane %v1181, 1
        %v1183 = vadd.f32 %v1181, %v1182
        %1184 = vst.msk [vmem:[%s429] sm:$0x1] %vm1129, %v1183
        %s1185 = sand.u32 %s153, 1
        %s1186 = sand.u32 %s153, 1
        %s1187 = smul.addr %s1186, 64
        %s1188 = scalar_lea.vmem [#allocation4], %s1187
        %s1189 = smul.u32 %s23, 2
        %s1190 = sadd.s32 %s1189, %s24
        %p1191 = scmp.lt.s32.totalorder %s1190, 3
        %s1192 = scalar_select %p1191, %s1190, 3
        %s1193 = scalar_lea.vmem %s6, %s1192
        %s1194 = smul.u32 %s23, 2
        %s1195 = sadd.s32 %s1194, %s24
        %p1196 = scmp.lt.s32.totalorder %s1195, 3
        %s1197 = scalar_select %p1196, %s1195, 3
        %s1198 = scalar_lea.vmem %s7, %s1197
        // Predicated region
        $region82: #{residual_block_forward.6} parent=76 // pred_check
          %p1199 = pneg %p163
        $region83: #{residual_block_forward.6} parent=76 // pred_check_branch
          %1201 = sbr.rel (%p1199) target = $region85
        $region84: #{residual_block_forward.6} parent=76 // pred_region
          %s1202 = smul.u32 4, %s24
          %s1203 = smul.addr %s23, 32
          %s1204 = sadd.s32 %s1202, %s1203
          %s1205 = smul.addr %s1204, 4
          %s1206 = scalar_lea.vmem %s5, %s1205
          // Predicated region
          $region86: #{residual_block_forward.6} parent=84 // pred_check
            _
          $region87: #{residual_block_forward.6} parent=84 // pred_check_branch
            %1208 = sbr.rel (0) target = $region89
          $region88: #{residual_block_forward.6} parent=84 // pred_region
            // Predicated region
            $region90: #{residual_block_forward.6} parent=88 // pred_check
              _
            $region91: #{residual_block_forward.6} parent=88 // pred_check_branch
              %1210 = sbr.rel target = $region93
            $region92: #{residual_block_forward.6} parent=88 // pred_region
              // Predicated region
              $region105: #{residual_block_forward.6} parent=92 // pred_check
                _
              $region106: #{residual_block_forward.6} parent=92 // pred_check_branch
                %1255 = sbr.rel (0) target = $region108
              $region107: #{residual_block_forward.6} parent=92 // pred_region
                loop: start=0, step=1, limit=1
                $region109: #{residual_block_forward.6} parent=107 // loop_pre_header
                  _
                $region110: #{residual_block_forward.6} parent=107 // loop_header
                  %s1257 = sphi 0, %s1261
                  %p1258 = scmp.ge.s32.totalorder %s1257, 1
                  %s1262 = sphi %s1188, %s1188
                  %s1263 = sphi %s1206, %s1206
                $region111: #{residual_block_forward.6} parent=107 // loop_header_branch
                  %1260 = sbr.rel (%p1258) target = $region115
                $region112: #{residual_block_forward.6} parent=107 // loop_body
                  _
                $region113: #{residual_block_forward.6} parent=107 // loop_footer
                  %s1261 = sadd.s32 1, %s1257
                $region114: #{residual_block_forward.6} parent=107 // loop_footer_branch
                  %1256 = sbr.rel target = $region110
                $region115: #{residual_block_forward.6} parent=107 // loop_exit
                  _
                loop: start=0, step=1, limit=1
                $region116: #{residual_block_forward.6} parent=107 // loop_pre_header
                  _
                $region117: #{residual_block_forward.6} parent=107 // loop_header
                  %s1266 = sphi 0, %s1270
                  %p1267 = scmp.ge.s32.totalorder %s1266, 1
                  %s1271 = sphi %s1188, %s1188
                  %s1272 = sphi %s1206, %s1206
                $region118: #{residual_block_forward.6} parent=107 // loop_header_branch
                  %1269 = sbr.rel (%p1267) target = $region122
                $region119: #{residual_block_forward.6} parent=107 // loop_body
                  %v1273 = vld [vmem:[%s1271] sm:$0xf]
                  %1274 = vst [vmem:[%s1272] sm:$0xf] %v1273
                  %v1275 = vld [vmem:[%s1271 + $0x4] sm:$0xf]
                  %1276 = vst [vmem:[%s1272 + $0x4] sm:$0xf] %v1275
                  %v1277 = vld [vmem:[%s1271 + $0x8] sm:$0xf]
                  %1278 = vst [vmem:[%s1272 + $0x8] sm:$0xf] %v1277
                  %v1279 = vld [vmem:[%s1271 + $0xc] sm:$0xf]
                  %1280 = vst [vmem:[%s1272 + $0xc] sm:$0xf] %v1279
                  %v1281 = vld [vmem:[%s1271 + $0x10] sm:$0xf]
                  %1282 = vst [vmem:[%s1272 + $0x20] sm:$0xf] %v1281
                  %v1283 = vld [vmem:[%s1271 + $0x14] sm:$0xf]
                  %1284 = vst [vmem:[%s1272 + $0x24] sm:$0xf] %v1283
                  %v1285 = vld [vmem:[%s1271 + $0x18] sm:$0xf]
                  %1286 = vst [vmem:[%s1272 + $0x28] sm:$0xf] %v1285
                  %v1287 = vld [vmem:[%s1271 + $0x1c] sm:$0xf]
                  %1288 = vst [vmem:[%s1272 + $0x2c] sm:$0xf] %v1287
                  %v1289 = vld [vmem:[%s1271 + $0x20] sm:$0xf]
                  %1290 = vst [vmem:[%s1272 + $0x40] sm:$0xf] %v1289
                  %v1291 = vld [vmem:[%s1271 + $0x24] sm:$0xf]
                  %1292 = vst [vmem:[%s1272 + $0x44] sm:$0xf] %v1291
                  %v1293 = vld [vmem:[%s1271 + $0x28] sm:$0xf]
                  %1294 = vst [vmem:[%s1272 + $0x48] sm:$0xf] %v1293
                  %v1295 = vld [vmem:[%s1271 + $0x2c] sm:$0xf]
                  %1296 = vst [vmem:[%s1272 + $0x4c] sm:$0xf] %v1295
                  %v1297 = vld [vmem:[%s1271 + $0x30] sm:$0xf]
                  %1298 = vst [vmem:[%s1272 + $0x60] sm:$0xf] %v1297
                  %v1299 = vld [vmem:[%s1271 + $0x34] sm:$0xf]
                  %1300 = vst [vmem:[%s1272 + $0x64] sm:$0xf] %v1299
                  %v1301 = vld [vmem:[%s1271 + $0x38] sm:$0xf]
                  %1302 = vst [vmem:[%s1272 + $0x68] sm:$0xf] %v1301
                  %v1303 = vld [vmem:[%s1271 + $0x3c] sm:$0xf]
                  %1304 = vst [vmem:[%s1272 + $0x6c] sm:$0xf] %v1303
                $region120: #{residual_block_forward.6} parent=107 // loop_footer
                  %s1270 = sadd.s32 1, %s1266
                $region121: #{residual_block_forward.6} parent=107 // loop_footer_branch
                  %1265 = sbr.rel target = $region117
                $region122: #{residual_block_forward.6} parent=107 // loop_exit
                  _
              $region108: #{residual_block_forward.6} parent=92 // pred_fallthru
                _
            $region93: #{residual_block_forward.6} parent=88 // pred_fallthru
              _
            // Predicated region
            $region94: #{residual_block_forward.6} parent=88 // pred_check
              _
            $region95: #{residual_block_forward.6} parent=88 // pred_check_branch
              %1212 = sbr.rel (0) target = $region97
            $region96: #{residual_block_forward.6} parent=88 // pred_region
              loop: start=0, step=1, limit=1
              $region98: #{residual_block_forward.6} parent=96 // loop_pre_header
                _
              $region99: #{residual_block_forward.6} parent=96 // loop_header
                %s1215 = sphi 0, %s1219
                %p1216 = scmp.ge.s32.totalorder %s1215, 1
                %s1220 = sphi %s1188, %s1188
                %s1221 = sphi %s1206, %s1206
              $region100: #{residual_block_forward.6} parent=96 // loop_header_branch
                %1218 = sbr.rel (%p1216) target = $region104
              $region101: #{residual_block_forward.6} parent=96 // loop_body
                %v1222 = vld [vmem:[%s1220] sm:$0xf]
                %1223 = vst [vmem:[%s1221] sm:$0xf] %v1222
                %v1224 = vld [vmem:[%s1220 + $0x4] sm:$0xf]
                %1225 = vst [vmem:[%s1221 + $0x4] sm:$0xf] %v1224
                %v1226 = vld [vmem:[%s1220 + $0x8] sm:$0xf]
                %1227 = vst [vmem:[%s1221 + $0x8] sm:$0xf] %v1226
                %v1228 = vld [vmem:[%s1220 + $0xc] sm:$0xf]
                %1229 = vst [vmem:[%s1221 + $0xc] sm:$0xf] %v1228
                %v1230 = vld [vmem:[%s1220 + $0x10] sm:$0xf]
                %1231 = vst [vmem:[%s1221 + $0x20] sm:$0xf] %v1230
                %v1232 = vld [vmem:[%s1220 + $0x14] sm:$0xf]
                %1233 = vst [vmem:[%s1221 + $0x24] sm:$0xf] %v1232
                %v1234 = vld [vmem:[%s1220 + $0x18] sm:$0xf]
                %1235 = vst [vmem:[%s1221 + $0x28] sm:$0xf] %v1234
                %v1236 = vld [vmem:[%s1220 + $0x1c] sm:$0xf]
                %1237 = vst [vmem:[%s1221 + $0x2c] sm:$0xf] %v1236
                %v1238 = vld [vmem:[%s1220 + $0x20] sm:$0xf]
                %1239 = vst [vmem:[%s1221 + $0x40] sm:$0xf] %v1238
                %v1240 = vld [vmem:[%s1220 + $0x24] sm:$0xf]
                %1241 = vst [vmem:[%s1221 + $0x44] sm:$0xf] %v1240
                %v1242 = vld [vmem:[%s1220 + $0x28] sm:$0xf]
                %1243 = vst [vmem:[%s1221 + $0x48] sm:$0xf] %v1242
                %v1244 = vld [vmem:[%s1220 + $0x2c] sm:$0xf]
                %1245 = vst [vmem:[%s1221 + $0x4c] sm:$0xf] %v1244
                %v1246 = vld [vmem:[%s1220 + $0x30] sm:$0xf]
                %1247 = vst [vmem:[%s1221 + $0x60] sm:$0xf] %v1246
                %v1248 = vld [vmem:[%s1220 + $0x34] sm:$0xf]
                %1249 = vst [vmem:[%s1221 + $0x64] sm:$0xf] %v1248
                %v1250 = vld [vmem:[%s1220 + $0x38] sm:$0xf]
                %1251 = vst [vmem:[%s1221 + $0x68] sm:$0xf] %v1250
                %v1252 = vld [vmem:[%s1220 + $0x3c] sm:$0xf]
                %1253 = vst [vmem:[%s1221 + $0x6c] sm:$0xf] %v1252
              $region102: #{residual_block_forward.6} parent=96 // loop_footer
                %s1219 = sadd.s32 1, %s1215
              $region103: #{residual_block_forward.6} parent=96 // loop_footer_branch
                %1214 = sbr.rel target = $region99
              $region104: #{residual_block_forward.6} parent=96 // loop_exit
                _
            $region97: #{residual_block_forward.6} parent=88 // pred_fallthru
              _
          $region89: #{residual_block_forward.6} parent=84 // pred_fallthru
            _
          %1305 = vnop
        $region85: #{residual_block_forward.6} parent=76 // pred_fallthru
          _
        // Predicated region
        $region123: #{residual_block_forward.6} parent=76 // pred_check
          %p1306 = pneg %p193
        $region124: #{residual_block_forward.6} parent=76 // pred_check_branch
          %1308 = sbr.rel (%p1306) target = $region126
        $region125: #{residual_block_forward.6} parent=76 // pred_region
          %s1309 = smul.u32 %s23, 2
          %s1310 = sadd.s32 %s1309, %s24
        $region126: #{residual_block_forward.6} parent=76 // pred_fallthru
          _
        // Predicated region
        $region127: #{residual_block_forward.6} parent=76 // pred_check
          %p1311 = pneg %p223
        $region128: #{residual_block_forward.6} parent=76 // pred_check_branch
          %1313 = sbr.rel (%p1311) target = $region130
        $region129: #{residual_block_forward.6} parent=76 // pred_region
          %s1314 = smul.u32 %s23, 2
          %s1315 = sadd.s32 %s1314, %s24
        $region130: #{residual_block_forward.6} parent=76 // pred_fallthru
          _
      $region77: #{residual_block_forward.6} parent=5 // pred_fallthru
        _
      %p1316 = scmp.le.s32.totalorder 2, %s14
      // Predicated region
      $region131: #{residual_block_forward.6} parent=5 // pred_check
        %p1317 = pneg %p1316
      $region132: #{residual_block_forward.6} parent=5 // pred_check_branch
        %1319 = sbr.rel (%p1317) target = $region134
      $region133: #{residual_block_forward.6} parent=5 // pred_region
        %s1320 = ssub.s32 %s14, 2
        // Predicated region
        $region135: #{residual_block_forward.6} parent=133 // pred_check
          %p1321 = pneg %p169
        $region136: #{residual_block_forward.6} parent=133 // pred_check_branch
          %1323 = sbr.rel (%p1321) target = $region138
        $region137: #{residual_block_forward.6} parent=133 // pred_region
          %s1324 = sand.u32 %s154, 1
          %s1325 = sand.u32 %s154, 1
          %s1326 = smul.addr %s1325, 64
          %s1327 = scalar_lea.vmem [#allocation4], %s1326
        $region138: #{residual_block_forward.6} parent=133 // pred_fallthru
          _
        // Predicated region
        $region139: #{residual_block_forward.6} parent=133 // pred_check
          %p1328 = pneg %p199
        $region140: #{residual_block_forward.6} parent=133 // pred_check_branch
          %1330 = sbr.rel (%p1328) target = $region142
        $region141: #{residual_block_forward.6} parent=133 // pred_region
          %s1331 = smul.u32 %s25, 2
          %s1332 = sadd.s32 %s1331, %s26
          %p1333 = scmp.lt.s32.totalorder %s1332, 3
          %s1334 = scalar_select %p1333, %s1332, 3
          %s1335 = scalar_lea.vmem %s6, %s1334
        $region142: #{residual_block_forward.6} parent=133 // pred_fallthru
          _
        // Predicated region
        $region143: #{residual_block_forward.6} parent=133 // pred_check
          %p1336 = pneg %p229
        $region144: #{residual_block_forward.6} parent=133 // pred_check_branch
          %1338 = sbr.rel (%p1336) target = $region146
        $region145: #{residual_block_forward.6} parent=133 // pred_region
          %s1339 = smul.u32 %s25, 2
          %s1340 = sadd.s32 %s1339, %s26
          %p1341 = scmp.lt.s32.totalorder %s1340, 3
          %s1342 = scalar_select %p1341, %s1340, 3
          %s1343 = scalar_lea.vmem %s7, %s1342
        $region146: #{residual_block_forward.6} parent=133 // pred_fallthru
          _
      $region134: #{residual_block_forward.6} parent=5 // pred_fallthru
        _
    $region6: #{residual_block_forward.6} parent=1 // loop_footer
      %s18 = sadd.s32 1, %s14
    $region7: #{residual_block_forward.6} parent=1 // loop_footer_branch
      %13 = sbr.rel target = $region3
    $region8: #{residual_block_forward.6} parent=1 // loop_exit
      _

// kernel: residual_block_forward.5
$region0: #{residual_block_forward.5}
  #allocation0 [shape = 'u32[]', space=smem, size = 0x4, offset = 0x4, fixed_abs, tag = 'smem constant byte address 0x4 - core index']
  #allocation1 [shape = 'u32[144,128]{1,0:T(1,128)}', space=vmem, size = 0x12000, scoped, tag = 'internal scratch']
  #allocation2 [shape = 'bf16[2,10,10,4]{3,2,1,0:T(8,128)(2,1)}', space=vmem, size = 0x14000, scoped, tag = 'scratch operand']
  #allocation3 [shape = 'bf16[2,10,8,12]{3,2,1,0:T(8,128)(2,1)}', space=vmem, size = 0xa000, scoped, tag = 'scratch operand']
  %s0 = inlined_call_operand.vmem [shape: bf16[8,8,8,4], index: 0, kind: input, shape index: {}]
  %s1 = inlined_call_operand.vmem [shape: f32[1,4], index: 1, kind: input, shape index: {}]
  %s2 = inlined_call_operand.vmem [shape: f32[1,4], index: 2, kind: input, shape index: {}]
  %s3 = inlined_call_operand.vmem [shape: bf16[3,12,14], index: 3, kind: input, shape index: {}]
  %s4 = inlined_call_operand.vmem [shape: f32[1,14], index: 4, kind: input, shape index: {}]
  %s5 = inlined_call_operand.vmem [shape: bf16[8,64,14], index: 5, kind: output, shape index: {0}]
  %s6 = inlined_call_operand.vmem [shape: f32[4,1,14], index: 6, kind: output, shape index: {1}]
  %s7 = inlined_call_operand.vmem [shape: f32[4,1,14], index: 7, kind: output, shape index: {2}]
  %8 = xla_tuple %s5, %s6, %s7
  %s9 = sld [smem:[#allocation0]]
  $region69: #{residual_block_forward.5} parent=0
    _
  %s11 = ssub.s32 1, %s9
  %s12 = scalar_select 0, %s11, %s9
  loop: start=0, step=1, limit=6
  $region2: #{residual_block_forward.5} parent=0 // loop_pre_header
    _
  $region3: #{residual_block_forward.5} parent=0 // loop_header
    %s14 = sphi 0, %s18
    %p15 = scmp.ge.s32.totalorder %s14, 6
    %s24 = sphi 0, %s26
    %s27 = sphi 0, %s24
    %s28 = sphi 0, %s27
    %s44 = sphi 0, %s28
    %s48 = sphi 0, %s48
    %s50 = sphi 0, %s48
    %s51 = sphi 0, %s50
    %s65 = sphi 0, %s51
    %s69 = sphi 0, %s69
    %s71 = sphi 0, %s69
    %s72 = sphi 0, %s71
    %s86 = sphi 0, %s72
    %s90 = sphi 0, %s90
    %s92 = sphi 0, %s90
    %s93 = sphi 0, %s92
    %s107 = sphi 0, %s93
    %s111 = sphi 0, %s111
    %s113 = sphi 0, %s111
    %s114 = sphi 0, %s113
    %s128 = sphi 0, %s114
    %s134 = sphi 0, %s136
    %s137 = sphi 0, %s134
    %s138 = sphi 0, %s137
    %s154 = sphi 0, %s138
    %s160 = sphi 0, %s162
    %s163 = sphi 0, %s160
    %s164 = sphi 0, %s163
    %s180 = sphi 0, %s164
    %s186 = sphi 0, %s188
    %s189 = sphi 0, %s186
    %s190 = sphi 0, %s189
    %s206 = sphi 0, %s190
  $region4: #{residual_block_forward.5} parent=0 // loop_header_branch
    %17 = sbr.rel (%p15) target = $region8
  $region5: #{residual_block_forward.5} parent=0 // loop_body
    %s19 = ssub.s32 %s14, 1
    %s20 = ssub.s32 %s14, 2
    %s21 = sadd.s32 %s14, 1
    %s22 = ssub.s32 %s14, %s21
    %p23 = scmp.eq.s32.totalorder %s22, 0
    %s25 = sadd.s32 %s24, 1
    %s26 = scalar_select %p23, %s24, %s25
    %p29 = pneg %p23
    %p30 = scmp.eq.s32.totalorder %s14, 3
    %p31 = por %p29, %p30
    %p32 = scmp.ne.s32.totalorder %s24, %s27
    %p33 = scmp.eq.s32.totalorder %s14, 0
    %p34 = por %p32, %p33
    %p35 = scmp.ne.s32.totalorder %s24, %s27
    %p36 = scmp.eq.s32.totalorder %s19, 3
    %p37 = por %p35, %p36
    %p38 = scmp.ne.s32.totalorder %s27, %s28
    %p39 = scmp.eq.s32.totalorder %s19, 0
    %p40 = por %p38, %p39
    %p41 = scmp.ne.s32.totalorder %s27, %s28
    %p42 = scmp.eq.s32.totalorder %s20, 3
    %p43 = por %p41, %p42
    %p45 = scmp.ne.s32.totalorder %s28, %s44
    %p46 = scmp.eq.s32.totalorder %s20, 0
    %p47 = por %p45, %p46
    %s49 = sadd.s32 %s48, 1
    %p52 = scmp.eq.s32.totalorder %s14, 3
    %p53 = scmp.ne.s32.totalorder %s48, %s50
    %p54 = scmp.eq.s32.totalorder %s14, 0
    %p55 = por %p53, %p54
    %p56 = scmp.ne.s32.totalorder %s48, %s50
    %p57 = scmp.eq.s32.totalorder %s19, 3
    %p58 = por %p56, %p57
    %p59 = scmp.ne.s32.totalorder %s50, %s51
    %p60 = scmp.eq.s32.totalorder %s19, 0
    %p61 = por %p59, %p60
    %p62 = scmp.ne.s32.totalorder %s50, %s51
    %p63 = scmp.eq.s32.totalorder %s20, 3
    %p64 = por %p62, %p63
    %p66 = scmp.ne.s32.totalorder %s51, %s65
    %p67 = scmp.eq.s32.totalorder %s20, 0
    %p68 = por %p66, %p67
    %s70 = sadd.s32 %s69, 1
    %p73 = scmp.eq.s32.totalorder %s14, 3
    %p74 = scmp.ne.s32.totalorder %s69, %s71
    %p75 = scmp.eq.s32.totalorder %s14, 0
    %p76 = por %p74, %p75
    %p77 = scmp.ne.s32.totalorder %s69, %s71
    %p78 = scmp.eq.s32.totalorder %s19, 3
    %p79 = por %p77, %p78
    %p80 = scmp.ne.s32.totalorder %s71, %s72
    %p81 = scmp.eq.s32.totalorder %s19, 0
    %p82 = por %p80, %p81
    %p83 = scmp.ne.s32.totalorder %s71, %s72
    %p84 = scmp.eq.s32.totalorder %s20, 3
    %p85 = por %p83, %p84
    %p87 = scmp.ne.s32.totalorder %s72, %s86
    %p88 = scmp.eq.s32.totalorder %s20, 0
    %p89 = por %p87, %p88
    %s91 = sadd.s32 %s90, 1
    %p94 = scmp.eq.s32.totalorder %s14, 3
    %p95 = scmp.ne.s32.totalorder %s90, %s92
    %p96 = scmp.eq.s32.totalorder %s14, 0
    %p97 = por %p95, %p96
    %p98 = scmp.ne.s32.totalorder %s90, %s92
    %p99 = scmp.eq.s32.totalorder %s19, 3
    %p100 = por %p98, %p99
    %p101 = scmp.ne.s32.totalorder %s92, %s93
    %p102 = scmp.eq.s32.totalorder %s19, 0
    %p103 = por %p101, %p102
    %p104 = scmp.ne.s32.totalorder %s92, %s93
    %p105 = scmp.eq.s32.totalorder %s20, 3
    %p106 = por %p104, %p105
    %p108 = scmp.ne.s32.totalorder %s93, %s107
    %p109 = scmp.eq.s32.totalorder %s20, 0
    %p110 = por %p108, %p109
    %s112 = sadd.s32 %s111, 1
    %p115 = scmp.eq.s32.totalorder %s14, 3
    %p116 = scmp.ne.s32.totalorder %s111, %s113
    %p117 = scmp.eq.s32.totalorder %s14, 0
    %p118 = por %p116, %p117
    %p119 = scmp.ne.s32.totalorder %s111, %s113
    %p120 = scmp.eq.s32.totalorder %s19, 3
    %p121 = por %p119, %p120
    %p122 = scmp.ne.s32.totalorder %s113, %s114
    %p123 = scmp.eq.s32.totalorder %s19, 0
    %p124 = por %p122, %p123
    %p125 = scmp.ne.s32.totalorder %s113, %s114
    %p126 = scmp.eq.s32.totalorder %s20, 3
    %p127 = por %p125, %p126
    %p129 = scmp.ne.s32.totalorder %s114, %s128
    %p130 = scmp.eq.s32.totalorder %s20, 0
    %p131 = por %p129, %p130
    %s132 = ssub.s32 %s14, %s21
    %p133 = scmp.eq.s32.totalorder %s132, 0
    %s135 = sadd.s32 %s134, 1
    %s136 = scalar_select %p133, %s134, %s135
    %p139 = pneg %p133
    %p140 = scmp.eq.s32.totalorder %s14, 3
    %p141 = por %p139, %p140
    %p142 = scmp.ne.s32.totalorder %s134, %s137
    %p143 = scmp.eq.s32.totalorder %s14, 0
    %p144 = por %p142, %p143
    %p145 = scmp.ne.s32.totalorder %s134, %s137
    %p146 = scmp.eq.s32.totalorder %s19, 3
    %p147 = por %p145, %p146
    %p148 = scmp.ne.s32.totalorder %s137, %s138
    %p149 = scmp.eq.s32.totalorder %s19, 0
    %p150 = por %p148, %p149
    %p151 = scmp.ne.s32.totalorder %s137, %s138
    %p152 = scmp.eq.s32.totalorder %s20, 3
    %p153 = por %p151, %p152
    %p155 = scmp.ne.s32.totalorder %s138, %s154
    %p156 = scmp.eq.s32.totalorder %s20, 0
    %p157 = por %p155, %p156
    %s158 = ssub.s32 %s14, %s21
    %p159 = scmp.eq.s32.totalorder %s158, 0
    %s161 = sadd.s32 %s160, 1
    %s162 = scalar_select %p159, %s160, %s161
    %p165 = pneg %p159
    %p166 = scmp.eq.s32.totalorder %s14, 3
    %p167 = por %p165, %p166
    %p168 = scmp.ne.s32.totalorder %s160, %s163
    %p169 = scmp.eq.s32.totalorder %s14, 0
    %p170 = por %p168, %p169
    %p171 = scmp.ne.s32.totalorder %s160, %s163
    %p172 = scmp.eq.s32.totalorder %s19, 3
    %p173 = por %p171, %p172
    %p174 = scmp.ne.s32.totalorder %s163, %s164
    %p175 = scmp.eq.s32.totalorder %s19, 0
    %p176 = por %p174, %p175
    %p177 = scmp.ne.s32.totalorder %s163, %s164
    %p178 = scmp.eq.s32.totalorder %s20, 3
    %p179 = por %p177, %p178
    %p181 = scmp.ne.s32.totalorder %s164, %s180
    %p182 = scmp.eq.s32.totalorder %s20, 0
    %p183 = por %p181, %p182
    %s184 = ssub.s32 %s14, %s21
    %p185 = scmp.eq.s32.totalorder %s184, 0
    %s187 = sadd.s32 %s186, 1
    %s188 = scalar_select %p185, %s186, %s187
    %p191 = pneg %p185
    %p192 = scmp.eq.s32.totalorder %s14, 3
    %p193 = por %p191, %p192
    %p194 = scmp.ne.s32.totalorder %s186, %s189
    %p195 = scmp.eq.s32.totalorder %s14, 0
    %p196 = por %p194, %p195
    %p197 = scmp.ne.s32.totalorder %s186, %s189
    %p198 = scmp.eq.s32.totalorder %s19, 3
    %p199 = por %p197, %p198
    %p200 = scmp.ne.s32.totalorder %s189, %s190
    %p201 = scmp.eq.s32.totalorder %s19, 0
    %p202 = por %p200, %p201
    %p203 = scmp.ne.s32.totalorder %s189, %s190
    %p204 = scmp.eq.s32.totalorder %s20, 3
    %p205 = por %p203, %p204
    %p207 = scmp.ne.s32.totalorder %s190, %s206
    %p208 = scmp.eq.s32.totalorder %s20, 0
    %p209 = por %p207, %p208
    %p210 = scmp.le.s32.totalorder 1, %s14
    %p211 = scmp.lt.s32.totalorder %s14, 5
    %p212 = pnand %p210, %p211
    %p213 = pneg %p212
    // Predicated region
    $region9: #{residual_block_forward.5} parent=5 // pred_check
      _
    $region10: #{residual_block_forward.5} parent=5 // pred_check_branch
      %215 = sbr.rel (%p212) target = $region12
    $region11: #{residual_block_forward.5} parent=5 // pred_region
      %s216 = ssub.s32 %s14, 1
      // Predicated region
      $region13: #{residual_block_forward.5} parent=11 // pred_check
        %p217 = pneg %p61
      $region14: #{residual_block_forward.5} parent=11 // pred_check_branch
        %219 = sbr.rel (%p217) target = $region16
      $region15: #{residual_block_forward.5} parent=11 // pred_region
        _
      $region16: #{residual_block_forward.5} parent=11 // pred_fallthru
        _
      // Predicated region
      $region17: #{residual_block_forward.5} parent=11 // pred_check
        %p220 = pneg %p82
      $region18: #{residual_block_forward.5} parent=11 // pred_check_branch
        %222 = sbr.rel (%p220) target = $region20
      $region19: #{residual_block_forward.5} parent=11 // pred_region
        _
      $region20: #{residual_block_forward.5} parent=11 // pred_fallthru
        _
      // Predicated region
      $region21: #{residual_block_forward.5} parent=11 // pred_check
        %p223 = pneg %p103
      $region22: #{residual_block_forward.5} parent=11 // pred_check_branch
        %225 = sbr.rel (%p223) target = $region24
      $region23: #{residual_block_forward.5} parent=11 // pred_region
        _
      $region24: #{residual_block_forward.5} parent=11 // pred_fallthru
        _
      // Predicated region
      $region25: #{residual_block_forward.5} parent=11 // pred_check
        %p226 = pneg %p124
      $region26: #{residual_block_forward.5} parent=11 // pred_check_branch
        %228 = sbr.rel (%p226) target = $region28
      $region27: #{residual_block_forward.5} parent=11 // pred_region
        _
      $region28: #{residual_block_forward.5} parent=11 // pred_fallthru
        _
    $region12: #{residual_block_forward.5} parent=5 // pred_fallthru
      _
    %p229 = scmp.lt.s32.totalorder %s14, 4
    // Predicated region
    $region29: #{residual_block_forward.5} parent=5 // pred_check
      %p230 = pneg %p229
    $region30: #{residual_block_forward.5} parent=5 // pred_check_branch
      %232 = sbr.rel (%p230) target = $region32
    $region31: #{residual_block_forward.5} parent=5 // pred_region
      // Predicated region
      $region33: #{residual_block_forward.5} parent=31 // pred_check
        %p233 = pneg %p34
      $region34: #{residual_block_forward.5} parent=31 // pred_check_branch
        %235 = sbr.rel (%p233) target = $region36
      $region35: #{residual_block_forward.5} parent=31 // pred_region
        %s236 = smul.u32 2, %s14
        %p237 = scmp.lt.s32.totalorder %s236, 7
        %s238 = scalar_select %p237, %s236, 7
        %s239 = smul.addr %s238, 8
        %s240 = smul.addr %s239, 4
        %s241 = scalar_lea.vmem %s0, %s240
        %s242 = smul.u32 2, %s14
      $region36: #{residual_block_forward.5} parent=31 // pred_fallthru
        _
    $region32: #{residual_block_forward.5} parent=5 // pred_fallthru
      _
    %p243 = scmp.le.s32.totalorder 1, %s14
    %p244 = scmp.lt.s32.totalorder %s14, 5
    %p245 = pnand %p243, %p244
    %p246 = pneg %p245
    // Predicated region
    $region37: #{residual_block_forward.5} parent=5 // pred_check
      _
    $region38: #{residual_block_forward.5} parent=5 // pred_check_branch
      %248 = sbr.rel (%p245) target = $region40
    $region39: #{residual_block_forward.5} parent=5 // pred_region
      %s249 = ssub.s32 %s14, 1
      %s250 = smul.u32 2, %s19
      %p251 = scmp.lt.s32.totalorder %s250, 7
      %s252 = scalar_select %p251, %s250, 7
      %s253 = smul.addr %s252, 8
      %s254 = smul.addr %s253, 4
      %s255 = scalar_lea.vmem %s0, %s254
      %p256 = pneg %p40
      %p257 = pneg %p37
      %p258 = pneg %p61
      %p259 = pneg %p58
      %p260 = pneg %p82
      %p261 = pneg %p79
      %p262 = pneg %p103
      %p263 = pneg %p100
      %p264 = pneg %p124
      %p265 = pneg %p121
      %p266 = pneg %p150
      %p267 = pneg %p147
      %s268 = smul.u32 2, %s19
      %p269 = scmp.lt.s32.totalorder %s268, 7
      %s270 = scalar_select %p269, %s268, 7
      %s271 = smul.addr %s270, 8
      %s272 = smul.addr %s271, 4
      %s273 = scalar_lea.vmem %s5, %s272
      %p274 = pneg %p176
      %p275 = pneg %p173
      %p276 = scmp.lt.s32.totalorder %s19, 3
      %s277 = scalar_select %p276, %s19, 3
      %s278 = scalar_lea.vmem %s6, %s277
      %p279 = pneg %p202
      %p280 = pneg %p199
      %p281 = scmp.lt.s32.totalorder %s19, 3
      %s282 = scalar_select %p281, %s19, 3
      %s283 = scalar_lea.vmem %s7, %s282
      %s284 = smul.u32 2, %s19
      %p285 = scmp.lt.s32.totalorder %s284, 7
      %s286 = scalar_select %p285, %s284, 7
      %s287 = smul.addr %s286, 8
      %s288 = smul.addr %s287, 4
      %s289 = scalar_lea.vmem %s0, %s288
      %s290 = smul.u32 2, %s19
      %s291 = smul.u32 2, %s19
      %p292 = scmp.lt.s32.totalorder %s291, 7
      %s293 = scalar_select %p292, %s291, 7
      %s294 = smul.addr %s293, 8
      %s295 = smul.addr %s294, 4
      %s296 = scalar_lea.vmem %s5, %s295
      %s297 = smul.u32 2, %s19
      %p298 = scmp.lt.s32.totalorder %s19, 3
      %s299 = scalar_select %p298, %s19, 3
      %s300 = scalar_lea.vmem %s6, %s299
      %p301 = scmp.lt.s32.totalorder %s19, 3
      %s302 = scalar_select %p301, %s19, 3
      %s303 = scalar_lea.vmem %s7, %s302
      %v305 = vld [vmem:[%s289] sm:$0xf]
      %v306 = vld [vmem:[%s289 + $0x4] sm:$0xf]
      %v307 = vld [vmem:[%s289 + $0x8] sm:$0xf]
      %v308 = vld [vmem:[%s289 + $0xc] sm:$0xf]
      %v309 = vld [vmem:[%s289 + $0x10] sm:$0xf]
      %v310 = vld [vmem:[%s289 + $0x14] sm:$0xf]
      %v311 = vld [vmem:[%s289 + $0x18] sm:$0xf]
      %v312 = vld [vmem:[%s289 + $0x1c] sm:$0xf]
      %v313 = vld [vmem:[%s289 + $0x20] sm:$0xf]
      %v314 = vld [vmem:[%s289 + $0x24] sm:$0xf]
      %v315 = vld [vmem:[%s289 + $0x28] sm:$0xf]
      %v316 = vld [vmem:[%s289 + $0x2c] sm:$0xf]
      %v317 = vld [vmem:[%s289 + $0x30] sm:$0xf]
      %v318 = vld [vmem:[%s289 + $0x34] sm:$0xf]
      %v319 = vld [vmem:[%s289 + $0x38] sm:$0xf]
      %v320 = vld [vmem:[%s289 + $0x3c] sm:$0xf]
      %v321 = vunpack.c.l.bf16 %v305
      %v322 = vunpack.c.l.bf16 %v306
      %v323 = vunpack.c.l.bf16 %v307
      %v324 = vunpack.c.l.bf16 %v308
      %v325 = vunpack.c.l.bf16 %v309
      %v326 = vunpack.c.l.bf16 %v310
      %v327 = vunpack.c.l.bf16 %v311
      %v328 = vunpack.c.l.bf16 %v312
      %v329 = vunpack.c.l.bf16 %v313
      %v330 = vunpack.c.l.bf16 %v314
      %v331 = vunpack.c.l.bf16 %v315
      %v332 = vunpack.c.l.bf16 %v316
      %v333 = vunpack.c.l.bf16 %v317
      %v334 = vunpack.c.l.bf16 %v318
      %v335 = vunpack.c.l.bf16 %v319
      %v336 = vunpack.c.l.bf16 %v320
      %v337 = vld [vmem:[%s1] sm:$0x1]
      %v339 = vlaneseq
      %v340 = vshrl.u32 %v339, 7
      %v341 = vsub.s32 0, %v340
      %v342 = vrot.slane %v337, %v341
      %v344 = vmul.f32 %v321, %v342
      %v345 = vmul.f32 %v322, %v342
      %v346 = vmul.f32 %v323, %v342
      %v347 = vmul.f32 %v324, %v342
      %v348 = vmul.f32 %v325, %v342
      %v349 = vmul.f32 %v326, %v342
      %v350 = vmul.f32 %v327, %v342
      %v351 = vmul.f32 %v328, %v342
      %v352 = vmul.f32 %v329, %v342
      %v353 = vmul.f32 %v330, %v342
      %v354 = vmul.f32 %v331, %v342
      %v355 = vmul.f32 %v332, %v342
      %v356 = vmul.f32 %v333, %v342
      %v357 = vmul.f32 %v334, %v342
      %v358 = vmul.f32 %v335, %v342
      %v359 = vmul.f32 %v336, %v342
      %v360 = vld [vmem:[%s2] sm:$0x1]
      %v362 = vlaneseq
      %v363 = vshrl.u32 %v362, 7
      %v364 = vsub.s32 0, %v363
      %v365 = vrot.slane %v360, %v364
      %v367 = vadd.f32 %v344, %v365
      %v368 = vadd.f32 %v345, %v365
      %v369 = vadd.f32 %v346, %v365
      %v370 = vadd.f32 %v347, %v365
      %v371 = vadd.f32 %v348, %v365
      %v372 = vadd.f32 %v349, %v365
      %v373 = vadd.f32 %v350, %v365
      %v374 = vadd.f32 %v351, %v365
      %v375 = vadd.f32 %v352, %v365
      %v376 = vadd.f32 %v353, %v365
      %v377 = vadd.f32 %v354, %v365
      %v378 = vadd.f32 %v355, %v365
      %v379 = vadd.f32 %v356, %v365
      %v380 = vadd.f32 %v357, %v365
      %v381 = vadd.f32 %v358, %v365
      %v382 = vadd.f32 %v359, %v365
      %v383 = vpack.c.bf16 %v367, %v367
      %v384 = vpack.c.bf16 %v368, %v368
      %v385 = vpack.c.bf16 %v369, %v369
      %v386 = vpack.c.bf16 %v370, %v370
      %v387 = vpack.c.bf16 %v371, %v371
      %v388 = vpack.c.bf16 %v372, %v372
      %v389 = vpack.c.bf16 %v373, %v373
      %v390 = vpack.c.bf16 %v374, %v374
      %v391 = vpack.c.bf16 %v375, %v375
      %v392 = vpack.c.bf16 %v376, %v376
      %v393 = vpack.c.bf16 %v377, %v377
      %v394 = vpack.c.bf16 %v378, %v378
      %v395 = vpack.c.bf16 %v379, %v379
      %v396 = vpack.c.bf16 %v380, %v380
      %v397 = vpack.c.bf16 %v381, %v381
      %v398 = vpack.c.bf16 %v382, %v382
      %vm399 = vcmask 27648
      %400 = vst.msk [vmem:[#allocation2] sm:$0xf] %vm399, 0
      %vm401 = vcmask 24576
      %402 = vst.msk [vmem:[#allocation2 + $0x4] sm:$0x1] %vm401, 0
      %403 = vst.msk [vmem:[#allocation2 + $0x50] sm:$0xf] %vm399, 0
      %404 = vst.msk [vmem:[#allocation2 + $0x54] sm:$0x1] %vm401, 0
      %s405 = scalar_lea.vmem [#allocation2], 72
      %406 = vst.msk [vmem:[%s405] sm:$0xf] %vm399, 0
      %407 = vst.msk [vmem:[%s405 + $0x4] sm:$0x1] %vm401, 0
      %408 = vst.msk [vmem:[%s405 + $0x50] sm:$0xf] %vm399, 0
      %409 = vst.msk [vmem:[%s405 + $0x54] sm:$0x1] %vm401, 0
      %s410 = scalar_lea.vmem [#allocation2], 8
      %vm411 = vcmask 24576
      %vm412 = vsmask.f32 256
      %vm413 = vmand %vm411, %vm412
      %v414 = vld [vmem:[%s410] sm:$0x1]
      %v415 = vsel %vm413, 0, %v414
      %416 = vst [vmem:[%s410] sm:$0x1] %v415
      %v417 = vld [vmem:[%s410 + $0x8] sm:$0x1]
      %v418 = vsel %vm413, 0, %v417
      %419 = vst [vmem:[%s410 + $0x8] sm:$0x1] %v418
      %v420 = vld [vmem:[%s410 + $0x10] sm:$0x1]
      %v421 = vsel %vm413, 0, %v420
      %422 = vst [vmem:[%s410 + $0x10] sm:$0x1] %v421
      %v423 = vld [vmem:[%s410 + $0x18] sm:$0x1]
      %v424 = vsel %vm413, 0, %v423
      %425 = vst [vmem:[%s410 + $0x18] sm:$0x1] %v424
      %v426 = vld [vmem:[%s410 + $0x20] sm:$0x1]
      %v427 = vsel %vm413, 0, %v426
      %428 = vst [vmem:[%s410 + $0x20] sm:$0x1] %v427
      %v429 = vld [vmem:[%s410 + $0x28] sm:$0x1]
      %v430 = vsel %vm413, 0, %v429
      %431 = vst [vmem:[%s410 + $0x28] sm:$0x1] %v430
      %v432 = vld [vmem:[%s410 + $0x30] sm:$0x1]
      %v433 = vsel %vm413, 0, %v432
      %434 = vst [vmem:[%s410 + $0x30] sm:$0x1] %v433
      %v435 = vld [vmem:[%s410 + $0x38] sm:$0x1]
      %v436 = vsel %vm413, 0, %v435
      %437 = vst [vmem:[%s410 + $0x38] sm:$0x1] %v436
      %v438 = vld [vmem:[%s410 + $0x50] sm:$0x1]
      %v439 = vsel %vm413, 0, %v438
      %440 = vst [vmem:[%s410 + $0x50] sm:$0x1] %v439
      %v441 = vld [vmem:[%s410 + $0x58] sm:$0x1]
      %v442 = vsel %vm413, 0, %v441
      %443 = vst [vmem:[%s410 + $0x58] sm:$0x1] %v442
      %v444 = vld [vmem:[%s410 + $0x60] sm:$0x1]
      %v445 = vsel %vm413, 0, %v444
      %446 = vst [vmem:[%s410 + $0x60] sm:$0x1] %v445
      %v447 = vld [vmem:[%s410 + $0x68] sm:$0x1]
      %v448 = vsel %vm413, 0, %v447
      %449 = vst [vmem:[%s410 + $0x68] sm:$0x1] %v448
      %v450 = vld [vmem:[%s410 + $0x70] sm:$0x1]
      %v451 = vsel %vm413, 0, %v450
      %452 = vst [vmem:[%s410 + $0x70] sm:$0x1] %v451
      %v453 = vld [vmem:[%s410 + $0x78] sm:$0x1]
      %v454 = vsel %vm413, 0, %v453
      %455 = vst [vmem:[%s410 + $0x78] sm:$0x1] %v454
      %v456 = vld [vmem:[%s410 + $0x80] sm:$0x1]
      %v457 = vsel %vm413, 0, %v456
      %458 = vst [vmem:[%s410 + $0x80] sm:$0x1] %v457
      %v459 = vld [vmem:[%s410 + $0x88] sm:$0x1]
      %v460 = vsel %vm413, 0, %v459
      %461 = vst [vmem:[%s410 + $0x88] sm:$0x1] %v460
      %vm462 = vsmask.f32 7938
      %vm463 = vmand %vm411, %vm462
      %v464 = vld [vmem:[%s410 + $0x4] sm:$0x1]
      %v465 = vsel %vm463, 0, %v464
      %466 = vst [vmem:[%s410 + $0x4] sm:$0x1] %v465
      %v467 = vld [vmem:[%s410 + $0xc] sm:$0x1]
      %v468 = vsel %vm463, 0, %v467
      %469 = vst [vmem:[%s410 + $0xc] sm:$0x1] %v468
      %v470 = vld [vmem:[%s410 + $0x14] sm:$0x1]
      %v471 = vsel %vm463, 0, %v470
      %472 = vst [vmem:[%s410 + $0x14] sm:$0x1] %v471
      %v473 = vld [vmem:[%s410 + $0x1c] sm:$0x1]
      %v474 = vsel %vm463, 0, %v473
      %475 = vst [vmem:[%s410 + $0x1c] sm:$0x1] %v474
      %v476 = vld [vmem:[%s410 + $0x24] sm:$0x1]
      %v477 = vsel %vm463, 0, %v476
      %478 = vst [vmem:[%s410 + $0x24] sm:$0x1] %v477
      %v479 = vld [vmem:[%s410 + $0x2c] sm:$0x1]
      %v480 = vsel %vm463, 0, %v479
      %481 = vst [vmem:[%s410 + $0x2c] sm:$0x1] %v480
      %v482 = vld [vmem:[%s410 + $0x34] sm:$0x1]
      %v483 = vsel %vm463, 0, %v482
      %484 = vst [vmem:[%s410 + $0x34] sm:$0x1] %v483
      %v485 = vld [vmem:[%s410 + $0x3c] sm:$0x1]
      %v486 = vsel %vm463, 0, %v485
      %487 = vst [vmem:[%s410 + $0x3c] sm:$0x1] %v486
      %v488 = vld [vmem:[%s410 + $0x54] sm:$0x1]
      %v489 = vsel %vm463, 0, %v488
      %490 = vst [vmem:[%s410 + $0x54] sm:$0x1] %v489
      %v491 = vld [vmem:[%s410 + $0x5c] sm:$0x1]
      %v492 = vsel %vm463, 0, %v491
      %493 = vst [vmem:[%s410 + $0x5c] sm:$0x1] %v492
      %v494 = vld [vmem:[%s410 + $0x64] sm:$0x1]
      %v495 = vsel %vm463, 0, %v494
      %496 = vst [vmem:[%s410 + $0x64] sm:$0x1] %v495
      %v497 = vld [vmem:[%s410 + $0x6c] sm:$0x1]
      %v498 = vsel %vm463, 0, %v497
      %499 = vst [vmem:[%s410 + $0x6c] sm:$0x1] %v498
      %v500 = vld [vmem:[%s410 + $0x74] sm:$0x1]
      %v501 = vsel %vm463, 0, %v500
      %502 = vst [vmem:[%s410 + $0x74] sm:$0x1] %v501
      %v503 = vld [vmem:[%s410 + $0x7c] sm:$0x1]
      %v504 = vsel %vm463, 0, %v503
      %505 = vst [vmem:[%s410 + $0x7c] sm:$0x1] %v504
      %v506 = vld [vmem:[%s410 + $0x84] sm:$0x1]
      %v507 = vsel %vm463, 0, %v506
      %508 = vst [vmem:[%s410 + $0x84] sm:$0x1] %v507
      %v509 = vld [vmem:[%s410 + $0x8c] sm:$0x1]
      %v510 = vsel %vm463, 0, %v509
      %511 = vst [vmem:[%s410 + $0x8c] sm:$0x1] %v510
      %v528 = vunpack.c.l.b16 %v383
      %v529 = vunpack.c.l.b16 %v384
      %v530 = vunpack.c.l.b16 %v385
      %v531 = vunpack.c.l.b16 %v386
      %v532 = vunpack.c.l.b16 %v387
      %v533 = vunpack.c.l.b16 %v388
      %v534 = vunpack.c.l.b16 %v389
      %v535 = vunpack.c.l.b16 %v390
      %v536 = vunpack.c.l.b16 %v391
      %v537 = vunpack.c.l.b16 %v392
      %v538 = vunpack.c.l.b16 %v393
      %v539 = vunpack.c.l.b16 %v394
      %v540 = vunpack.c.l.b16 %v395
      %v541 = vunpack.c.l.b16 %v396
      %v542 = vunpack.c.l.b16 %v397
      %v543 = vunpack.c.l.b16 %v398
      %v544 = vpack.c.b16 %v528, %v528
      %v545 = vpack.c.b16 %v529, %v529
      %v546 = vpack.c.b16 %v530, %v530
      %v547 = vpack.c.b16 %v531, %v531
      %v548 = vpack.c.b16 %v532, %v532
      %v549 = vpack.c.b16 %v533, %v533
      %v550 = vpack.c.b16 %v534, %v534
      %v551 = vpack.c.b16 %v535, %v535
      %v552 = vpack.c.b16 %v536, %v536
      %v553 = vpack.c.b16 %v537, %v537
      %v554 = vpack.c.b16 %v538, %v538
      %v555 = vpack.c.b16 %v539, %v539
      %v556 = vpack.c.b16 %v540, %v540
      %v557 = vpack.c.b16 %v541, %v541
      %v558 = vpack.c.b16 %v542, %v542
      %v559 = vpack.c.b16 %v543, %v543
      %v561 = vshrl.u32 %v544, 16
      %v563 = vrot.slane %v561, 7
      %v564 = vshll.u32 %v544, 16
      %v566 = vor.u32 %v563, %v564
      %v567 = vrot.slane %v563, 4
      %v569 = vshrl.u32 %v545, 16
      %v571 = vrot.slane %v569, 7
      %v572 = vshll.u32 %v545, 16
      %v574 = vor.u32 %v571, %v572
      %v575 = vrot.slane %v571, 4
      %v577 = vshrl.u32 %v546, 16
      %v579 = vrot.slane %v577, 7
      %v580 = vshll.u32 %v546, 16
      %v582 = vor.u32 %v579, %v580
      %v583 = vrot.slane %v579, 4
      %v585 = vshrl.u32 %v547, 16
      %v587 = vrot.slane %v585, 7
      %v588 = vshll.u32 %v547, 16
      %v590 = vor.u32 %v587, %v588
      %v591 = vrot.slane %v587, 4
      %v593 = vshrl.u32 %v548, 16
      %v595 = vrot.slane %v593, 7
      %v596 = vshll.u32 %v548, 16
      %v598 = vor.u32 %v595, %v596
      %v599 = vrot.slane %v595, 4
      %v601 = vshrl.u32 %v549, 16
      %v603 = vrot.slane %v601, 7
      %v604 = vshll.u32 %v549, 16
      %v606 = vor.u32 %v603, %v604
      %v607 = vrot.slane %v603, 4
      %v609 = vshrl.u32 %v550, 16
      %v611 = vrot.slane %v609, 7
      %v612 = vshll.u32 %v550, 16
      %v614 = vor.u32 %v611, %v612
      %v615 = vrot.slane %v611, 4
      %v617 = vshrl.u32 %v551, 16
      %v619 = vrot.slane %v617, 7
      %v620 = vshll.u32 %v551, 16
      %v622 = vor.u32 %v619, %v620
      %v623 = vrot.slane %v619, 4
      %v625 = vshrl.u32 %v552, 16
      %v627 = vrot.slane %v625, 7
      %v628 = vshll.u32 %v552, 16
      %v630 = vor.u32 %v627, %v628
      %v631 = vrot.slane %v627, 4
      %v633 = vshrl.u32 %v553, 16
      %v635 = vrot.slane %v633, 7
      %v636 = vshll.u32 %v553, 16
      %v638 = vor.u32 %v635, %v636
      %v639 = vrot.slane %v635, 4
      %v641 = vshrl.u32 %v554, 16
      %v643 = vrot.slane %v641, 7
      %v644 = vshll.u32 %v554, 16
      %v646 = vor.u32 %v643, %v644
      %v647 = vrot.slane %v643, 4
      %v649 = vshrl.u32 %v555, 16
      %v651 = vrot.slane %v649, 7
      %v652 = vshll.u32 %v555, 16
      %v654 = vor.u32 %v651, %v652
      %v655 = vrot.slane %v651, 4
      %v657 = vshrl.u32 %v556, 16
      %v659 = vrot.slane %v657, 7
      %v660 = vshll.u32 %v556, 16
      %v662 = vor.u32 %v659, %v660
      %v663 = vrot.slane %v659, 4
      %v665 = vshrl.u32 %v557, 16
      %v667 = vrot.slane %v665, 7
      %v668 = vshll.u32 %v557, 16
      %v670 = vor.u32 %v667, %v668
      %v671 = vrot.slane %v667, 4
      %v673 = vshrl.u32 %v558, 16
      %v675 = vrot.slane %v673, 7
      %v676 = vshll.u32 %v558, 16
      %v678 = vor.u32 %v675, %v676
      %v679 = vrot.slane %v675, 4
      %v681 = vshrl.u32 %v559, 16
      %v683 = vrot.slane %v681, 7
      %v684 = vshll.u32 %v559, 16
      %v686 = vor.u32 %v683, %v684
      %v687 = vrot.slane %v683, 4
      %vm720 = vcmask 27648
      %vm721 = vmand %vm720, %vm462
      %v722 = vld [vmem:[%s410] sm:$0xf]
      %v723 = vsel %vm721, %v566, %v722
      %724 = vst [vmem:[%s410] sm:$0xf] %v723
      %v725 = vld [vmem:[%s410 + $0x4] sm:$0x1]
      %v726 = vsel %vm413, %v567, %v725
      %727 = vst [vmem:[%s410 + $0x4] sm:$0x1] %v726
      %v728 = vld [vmem:[%s410 + $0x8] sm:$0xf]
      %v729 = vsel %vm721, %v574, %v728
      %730 = vst [vmem:[%s410 + $0x8] sm:$0xf] %v729
      %v731 = vld [vmem:[%s410 + $0xc] sm:$0x1]
      %v732 = vsel %vm413, %v575, %v731
      %733 = vst [vmem:[%s410 + $0xc] sm:$0x1] %v732
      %v734 = vld [vmem:[%s410 + $0x10] sm:$0xf]
      %v735 = vsel %vm721, %v582, %v734
      %736 = vst [vmem:[%s410 + $0x10] sm:$0xf] %v735
      %v737 = vld [vmem:[%s410 + $0x14] sm:$0x1]
      %v738 = vsel %vm413, %v583, %v737
      %739 = vst [vmem:[%s410 + $0x14] sm:$0x1] %v738
      %v740 = vld [vmem:[%s410 + $0x18] sm:$0xf]
      %v741 = vsel %vm721, %v590, %v740
      %742 = vst [vmem:[%s410 + $0x18] sm:$0xf] %v741
      %v743 = vld [vmem:[%s410 + $0x1c] sm:$0x1]
      %v744 = vsel %vm413, %v591, %v743
      %745 = vst [vmem:[%s410 + $0x1c] sm:$0x1] %v744
      %v746 = vld [vmem:[%s410 + $0x20] sm:$0xf]
      %v747 = vsel %vm721, %v598, %v746
      %748 = vst [vmem:[%s410 + $0x20] sm:$0xf] %v747
      %v749 = vld [vmem:[%s410 + $0x24] sm:$0x1]
      %v750 = vsel %vm413, %v599, %v749
      %751 = vst [vmem:[%s410 + $0x24] sm:$0x1] %v750
      %v752 = vld [vmem:[%s410 + $0x28] sm:$0xf]
      %v753 = vsel %vm721, %v606, %v752
      %754 = vst [vmem:[%s410 + $0x28] sm:$0xf] %v753
      %v755 = vld [vmem:[%s410 + $0x2c] sm:$0x1]
      %v756 = vsel %vm413, %v607, %v755
      %757 = vst [vmem:[%s410 + $0x2c] sm:$0x1] %v756
      %v758 = vld [vmem:[%s410 + $0x30] sm:$0xf]
      %v759 = vsel %vm721, %v614, %v758
      %760 = vst [vmem:[%s410 + $0x30] sm:$0xf] %v759
      %v761 = vld [vmem:[%s410 + $0x34] sm:$0x1]
      %v762 = vsel %vm413, %v615, %v761
      %763 = vst [vmem:[%s410 + $0x34] sm:$0x1] %v762
      %v764 = vld [vmem:[%s410 + $0x38] sm:$0xf]
      %v765 = vsel %vm721, %v622, %v764
      %766 = vst [vmem:[%s410 + $0x38] sm:$0xf] %v765
      %v767 = vld [vmem:[%s410 + $0x3c] sm:$0x1]
      %v768 = vsel %vm413, %v623, %v767
      %769 = vst [vmem:[%s410 + $0x3c] sm:$0x1] %v768
      %v770 = vld [vmem:[%s410 + $0x50] sm:$0xf]
      %v771 = vsel %vm721, %v630, %v770
      %772 = vst [vmem:[%s410 + $0x50] sm:$0xf] %v771
      %v773 = vld [vmem:[%s410 + $0x54] sm:$0x1]
      %v774 = vsel %vm413, %v631, %v773
      %775 = vst [vmem:[%s410 + $0x54] sm:$0x1] %v774
      %v776 = vld [vmem:[%s410 + $0x58] sm:$0xf]
      %v777 = vsel %vm721, %v638, %v776
      %778 = vst [vmem:[%s410 + $0x58] sm:$0xf] %v777
      %v779 = vld [vmem:[%s410 + $0x5c] sm:$0x1]
      %v780 = vsel %vm413, %v639, %v779
      %781 = vst [vmem:[%s410 + $0x5c] sm:$0x1] %v780
      %v782 = vld [vmem:[%s410 + $0x60] sm:$0xf]
      %v783 = vsel %vm721, %v646, %v782
      %784 = vst [vmem:[%s410 + $0x60] sm:$0xf] %v783
      %v785 = vld [vmem:[%s410 + $0x64] sm:$0x1]
      %v786 = vsel %vm413, %v647, %v785
      %787 = vst [vmem:[%s410 + $0x64] sm:$0x1] %v786
      %v788 = vld [vmem:[%s410 + $0x68] sm:$0xf]
      %v789 = vsel %vm721, %v654, %v788
      %790 = vst [vmem:[%s410 + $0x68] sm:$0xf] %v789
      %v791 = vld [vmem:[%s410 + $0x6c] sm:$0x1]
      %v792 = vsel %vm413, %v655, %v791
      %793 = vst [vmem:[%s410 + $0x6c] sm:$0x1] %v792
      %v794 = vld [vmem:[%s410 + $0x70] sm:$0xf]
      %v795 = vsel %vm721, %v662, %v794
      %796 = vst [vmem:[%s410 + $0x70] sm:$0xf] %v795
      %v797 = vld [vmem:[%s410 + $0x74] sm:$0x1]
      %v798 = vsel %vm413, %v663, %v797
      %799 = vst [vmem:[%s410 + $0x74] sm:$0x1] %v798
      %v800 = vld [vmem:[%s410 + $0x78] sm:$0xf]
      %v801 = vsel %vm721, %v670, %v800
      %802 = vst [vmem:[%s410 + $0x78] sm:$0xf] %v801
      %v803 = vld [vmem:[%s410 + $0x7c] sm:$0x1]
      %v804 = vsel %vm413, %v671, %v803
      %805 = vst [vmem:[%s410 + $0x7c] sm:$0x1] %v804
      %v806 = vld [vmem:[%s410 + $0x80] sm:$0xf]
      %v807 = vsel %vm721, %v678, %v806
      %808 = vst [vmem:[%s410 + $0x80] sm:$0xf] %v807
      %v809 = vld [vmem:[%s410 + $0x84] sm:$0x1]
      %v810 = vsel %vm413, %v679, %v809
      %811 = vst [vmem:[%s410 + $0x84] sm:$0x1] %v810
      %v812 = vld [vmem:[%s410 + $0x88] sm:$0xf]
      %v813 = vsel %vm721, %v686, %v812
      %814 = vst [vmem:[%s410 + $0x88] sm:$0xf] %v813
      %v815 = vld [vmem:[%s410 + $0x8c] sm:$0x1]
      %v816 = vsel %vm413, %v687, %v815
      %817 = vst [vmem:[%s410 + $0x8c] sm:$0x1] %v816
      %v818 = vld [vmem:[#allocation2] sm:$0xf]
      %v819 = vld [vmem:[#allocation2 + $0x8] sm:$0xf]
      %v820 = vld [vmem:[#allocation2 + $0x10] sm:$0xf]
      %v821 = vld [vmem:[#allocation2 + $0x18] sm:$0xf]
      %v822 = vld [vmem:[#allocation2 + $0x20] sm:$0xf]
      %v823 = vld [vmem:[#allocation2 + $0x28] sm:$0xf]
      %v824 = vld [vmem:[#allocation2 + $0x30] sm:$0xf]
      %v825 = vld [vmem:[#allocation2 + $0x38] sm:$0xf]
      %v826 = vld [vmem:[#allocation2 + $0x40] sm:$0xf]
      %v827 = vld [vmem:[#allocation2 + $0x48] sm:$0xf]
      %v828 = vld [vmem:[#allocation2 + $0x50] sm:$0xf]
      %v829 = vld [vmem:[#allocation2 + $0x58] sm:$0xf]
      %v830 = vld [vmem:[#allocation2 + $0x60] sm:$0xf]
      %v831 = vld [vmem:[#allocation2 + $0x68] sm:$0xf]
      %v832 = vld [vmem:[#allocation2 + $0x70] sm:$0xf]
      %v833 = vld [vmem:[#allocation2 + $0x78] sm:$0xf]
      %v834 = vld [vmem:[#allocation2 + $0x80] sm:$0xf]
      %v835 = vld [vmem:[#allocation2 + $0x88] sm:$0xf]
      %v836 = vld [vmem:[#allocation2 + $0x90] sm:$0xf]
      %v837 = vld [vmem:[#allocation2 + $0x98] sm:$0xf]
      %838 = vst.msk [vmem:[#allocation3] sm:$0xf] %vm399, %v818
      %839 = vst.msk [vmem:[#allocation3 + $0x4] sm:$0xf] %vm399, %v819
      %840 = vst.msk [vmem:[#allocation3 + $0x8] sm:$0xf] %vm399, %v820
      %841 = vst.msk [vmem:[#allocation3 + $0xc] sm:$0xf] %vm399, %v821
      %842 = vst.msk [vmem:[#allocation3 + $0x10] sm:$0xf] %vm399, %v822
      %843 = vst.msk [vmem:[#allocation3 + $0x14] sm:$0xf] %vm399, %v823
      %844 = vst.msk [vmem:[#allocation3 + $0x18] sm:$0xf] %vm399, %v824
      %845 = vst.msk [vmem:[#allocation3 + $0x1c] sm:$0xf] %vm399, %v825
      %846 = vst.msk [vmem:[#allocation3 + $0x20] sm:$0xf] %vm399, %v826
      %847 = vst.msk [vmem:[#allocation3 + $0x24] sm:$0xf] %vm399, %v827
      %848 = vst.msk [vmem:[#allocation3 + $0x28] sm:$0xf] %vm399, %v828
      %849 = vst.msk [vmem:[#allocation3 + $0x2c] sm:$0xf] %vm399, %v829
      %850 = vst.msk [vmem:[#allocation3 + $0x30] sm:$0xf] %vm399, %v830
      %851 = vst.msk [vmem:[#allocation3 + $0x34] sm:$0xf] %vm399, %v831
      %852 = vst.msk [vmem:[#allocation3 + $0x38] sm:$0xf] %vm399, %v832
      %853 = vst.msk [vmem:[#allocation3 + $0x3c] sm:$0xf] %vm399, %v833
      %854 = vst.msk [vmem:[#allocation3 + $0x40] sm:$0xf] %vm399, %v834
      %855 = vst.msk [vmem:[#allocation3 + $0x44] sm:$0xf] %vm399, %v835
      %856 = vst.msk [vmem:[#allocation3 + $0x48] sm:$0xf] %vm399, %v836
      %857 = vst.msk [vmem:[#allocation3 + $0x4c] sm:$0xf] %vm399, %v837
      %v858 = vld [vmem:[#allocation2] sm:$0xf]
      %v859 = vld [vmem:[#allocation2 + $0x4] sm:$0x1]
      %v860 = vld [vmem:[#allocation2 + $0x8] sm:$0xf]
      %v861 = vld [vmem:[#allocation2 + $0xc] sm:$0x1]
      %v862 = vld [vmem:[#allocation2 + $0x10] sm:$0xf]
      %v863 = vld [vmem:[#allocation2 + $0x14] sm:$0x1]
      %v864 = vld [vmem:[#allocation2 + $0x18] sm:$0xf]
      %v865 = vld [vmem:[#allocation2 + $0x1c] sm:$0x1]
      %v866 = vld [vmem:[#allocation2 + $0x20] sm:$0xf]
      %v867 = vld [vmem:[#allocation2 + $0x24] sm:$0x1]
      %v868 = vld [vmem:[#allocation2 + $0x28] sm:$0xf]
      %v869 = vld [vmem:[#allocation2 + $0x2c] sm:$0x1]
      %v870 = vld [vmem:[#allocation2 + $0x30] sm:$0xf]
      %v871 = vld [vmem:[#allocation2 + $0x34] sm:$0x1]
      %v872 = vld [vmem:[#allocation2 + $0x38] sm:$0xf]
      %v873 = vld [vmem:[#allocation2 + $0x3c] sm:$0x1]
      %v874 = vld [vmem:[#allocation2 + $0x40] sm:$0xf]
      %v875 = vld [vmem:[#allocation2 + $0x44] sm:$0x1]
      %v876 = vld [vmem:[#allocation2 + $0x48] sm:$0xf]
      %v877 = vld [vmem:[#allocation2 + $0x4c] sm:$0x1]
      %v878 = vld [vmem:[#allocation2 + $0x50] sm:$0xf]
      %v879 = vld [vmem:[#allocation2 + $0x54] sm:$0x1]
      %v880 = vld [vmem:[#allocation2 + $0x58] sm:$0xf]
      %v881 = vld [vmem:[#allocation2 + $0x5c] sm:$0x1]
      %v882 = vld [vmem:[#allocation2 + $0x60] sm:$0xf]
      %v883 = vld [vmem:[#allocation2 + $0x64] sm:$0x1]
      %v884 = vld [vmem:[#allocation2 + $0x68] sm:$0xf]
      %v885 = vld [vmem:[#allocation2 + $0x6c] sm:$0x1]
      %v886 = vld [vmem:[#allocation2 + $0x70] sm:$0xf]
      %v887 = vld [vmem:[#allocation2 + $0x74] sm:$0x1]
      %v888 = vld [vmem:[#allocation2 + $0x78] sm:$0xf]
      %v889 = vld [vmem:[#allocation2 + $0x7c] sm:$0x1]
      %v890 = vld [vmem:[#allocation2 + $0x80] sm:$0xf]
      %v891 = vld [vmem:[#allocation2 + $0x84] sm:$0x1]
      %v892 = vld [vmem:[#allocation2 + $0x88] sm:$0xf]
      %v893 = vld [vmem:[#allocation2 + $0x8c] sm:$0x1]
      %v894 = vld [vmem:[#allocation2 + $0x90] sm:$0xf]
      %v895 = vld [vmem:[#allocation2 + $0x94] sm:$0x1]
      %v896 = vld [vmem:[#allocation2 + $0x98] sm:$0xf]
      %v897 = vld [vmem:[#allocation2 + $0x9c] sm:$0x1]
      %vm898 = vsmask.f32 3328
      %vm899 = vsmask.f32 7440
      %vm900 = vmor %vm898, %vm899
      %v902 = vshrl.u32 %v858, 16
      %v904 = vrot.slane %v902, 4
      %v905 = vshll.u32 %v858, 16
      %v907 = vrot.slane %v905, 5
      %v908 = vor.u32 %v904, %v907
      %v909 = vrot.slane %v908, 4
      %v911 = vshll.u32 %v859, 16
      %v913 = vrot.slane %v911, 5
      %v914 = vsel %vm900, %v909, %v913
      %v916 = vshrl.u32 %v860, 16
      %v918 = vrot.slane %v916, 4
      %v919 = vshll.u32 %v860, 16
      %v921 = vrot.slane %v919, 5
      %v922 = vor.u32 %v918, %v921
      %v923 = vrot.slane %v922, 4
      %v925 = vshll.u32 %v861, 16
      %v927 = vrot.slane %v925, 5
      %v928 = vsel %vm900, %v923, %v927
      %v930 = vshrl.u32 %v862, 16
      %v932 = vrot.slane %v930, 4
      %v933 = vshll.u32 %v862, 16
      %v935 = vrot.slane %v933, 5
      %v936 = vor.u32 %v932, %v935
      %v937 = vrot.slane %v936, 4
      %v939 = vshll.u32 %v863, 16
      %v941 = vrot.slane %v939, 5
      %v942 = vsel %vm900, %v937, %v941
      %v944 = vshrl.u32 %v864, 16
      %v946 = vrot.slane %v944, 4
      %v947 = vshll.u32 %v864, 16
      %v949 = vrot.slane %v947, 5
      %v950 = vor.u32 %v946, %v949
      %v951 = vrot.slane %v950, 4
      %v953 = vshll.u32 %v865, 16
      %v955 = vrot.slane %v953, 5
      %v956 = vsel %vm900, %v951, %v955
      %v958 = vshrl.u32 %v866, 16
      %v960 = vrot.slane %v958, 4
      %v961 = vshll.u32 %v866, 16
      %v963 = vrot.slane %v961, 5
      %v964 = vor.u32 %v960, %v963
      %v965 = vrot.slane %v964, 4
      %v967 = vshll.u32 %v867, 16
      %v969 = vrot.slane %v967, 5
      %v970 = vsel %vm900, %v965, %v969
      %v972 = vshrl.u32 %v868, 16
      %v974 = vrot.slane %v972, 4
      %v975 = vshll.u32 %v868, 16
      %v977 = vrot.slane %v975, 5
      %v978 = vor.u32 %v974, %v977
      %v979 = vrot.slane %v978, 4
      %v981 = vshll.u32 %v869, 16
      %v983 = vrot.slane %v981, 5
      %v984 = vsel %vm900, %v979, %v983
      %v986 = vshrl.u32 %v870, 16
      %v988 = vrot.slane %v986, 4
      %v989 = vshll.u32 %v870, 16
      %v991 = vrot.slane %v989, 5
      %v992 = vor.u32 %v988, %v991
      %v993 = vrot.slane %v992, 4
      %v995 = vshll.u32 %v871, 16
      %v997 = vrot.slane %v995, 5
      %v998 = vsel %vm900, %v993, %v997
      %v1000 = vshrl.u32 %v872, 16
      %v1002 = vrot.slane %v1000, 4
      %v1003 = vshll.u32 %v872, 16
      %v1005 = vrot.slane %v1003, 5
      %v1006 = vor.u32 %v1002, %v1005
      %v1007 = vrot.slane %v1006, 4
      %v1009 = vshll.u32 %v873, 16
      %v1011 = vrot.slane %v1009, 5
      %v1012 = vsel %vm900, %v1007, %v1011
      %v1014 = vshrl.u32 %v874, 16
      %v1016 = vrot.slane %v1014, 4
      %v1017 = vshll.u32 %v874, 16
      %v1019 = vrot.slane %v1017, 5
      %v1020 = vor.u32 %v1016, %v1019
      %v1021 = vrot.slane %v1020, 4
      %v1023 = vshll.u32 %v875, 16
      %v1025 = vrot.slane %v1023, 5
      %v1026 = vsel %vm900, %v1021, %v1025
      %v1028 = vshrl.u32 %v876, 16
      %v1030 = vrot.slane %v1028, 4
      %v1031 = vshll.u32 %v876, 16
      %v1033 = vrot.slane %v1031, 5
      %v1034 = vor.u32 %v1030, %v1033
      %v1035 = vrot.slane %v1034, 4
      %v1037 = vshll.u32 %v877, 16
      %v1039 = vrot.slane %v1037, 5
      %v1040 = vsel %vm900, %v1035, %v1039
      %v1042 = vshrl.u32 %v878, 16
      %v1044 = vrot.slane %v1042, 4
      %v1045 = vshll.u32 %v878, 16
      %v1047 = vrot.slane %v1045, 5
      %v1048 = vor.u32 %v1044, %v1047
      %v1049 = vrot.slane %v1048, 4
      %v1051 = vshll.u32 %v879, 16
      %v1053 = vrot.slane %v1051, 5
      %v1054 = vsel %vm900, %v1049, %v1053
      %v1056 = vshrl.u32 %v880, 16
      %v1058 = vrot.slane %v1056, 4
      %v1059 = vshll.u32 %v880, 16
      %v1061 = vrot.slane %v1059, 5
      %v1062 = vor.u32 %v1058, %v1061
      %v1063 = vrot.slane %v1062, 4
      %v1065 = vshll.u32 %v881, 16
      %v1067 = vrot.slane %v1065, 5
      %v1068 = vsel %vm900, %v1063, %v1067
      %v1070 = vshrl.u32 %v882, 16
      %v1072 = vrot.slane %v1070, 4
      %v1073 = vshll.u32 %v882, 16
      %v1075 = vrot.slane %v1073, 5
      %v1076 = vor.u32 %v1072, %v1075
      %v1077 = vrot.slane %v1076, 4
      %v1079 = vshll.u32 %v883, 16
      %v1081 = vrot.slane %v1079, 5
      %v1082 = vsel %vm900, %v1077, %v1081
      %v1084 = vshrl.u32 %v884, 16
      %v1086 = vrot.slane %v1084, 4
      %v1087 = vshll.u32 %v884, 16
      %v1089 = vrot.slane %v1087, 5
      %v1090 = vor.u32 %v1086, %v1089
      %v1091 = vrot.slane %v1090, 4
      %v1093 = vshll.u32 %v885, 16
      %v1095 = vrot.slane %v1093, 5
      %v1096 = vsel %vm900, %v1091, %v1095
      %v1098 = vshrl.u32 %v886, 16
      %v1100 = vrot.slane %v1098, 4
      %v1101 = vshll.u32 %v886, 16
      %v1103 = vrot.slane %v1101, 5
      %v1104 = vor.u32 %v1100, %v1103
      %v1105 = vrot.slane %v1104, 4
      %v1107 = vshll.u32 %v887, 16
      %v1109 = vrot.slane %v1107, 5
      %v1110 = vsel %vm900, %v1105, %v1109
      %v1112 = vshrl.u32 %v888, 16
      %v1114 = vrot.slane %v1112, 4
      %v1115 = vshll.u32 %v888, 16
      %v1117 = vrot.slane %v1115, 5
      %v1118 = vor.u32 %v1114, %v1117
      %v1119 = vrot.slane %v1118, 4
      %v1121 = vshll.u32 %v889, 16
      %v1123 = vrot.slane %v1121, 5
      %v1124 = vsel %vm900, %v1119, %v1123
      %v1126 = vshrl.u32 %v890, 16
      %v1128 = vrot.slane %v1126, 4
      %v1129 = vshll.u32 %v890, 16
      %v1131 = vrot.slane %v1129, 5
      %v1132 = vor.u32 %v1128, %v1131
      %v1133 = vrot.slane %v1132, 4
      %v1135 = vshll.u32 %v891, 16
      %v1137 = vrot.slane %v1135, 5
      %v1138 = vsel %vm900, %v1133, %v1137
      %v1140 = vshrl.u32 %v892, 16
      %v1142 = vrot.slane %v1140, 4
      %v1143 = vshll.u32 %v892, 16
      %v1145 = vrot.slane %v1143, 5
      %v1146 = vor.u32 %v1142, %v1145
      %v1147 = vrot.slane %v1146, 4
      %v1149 = vshll.u32 %v893, 16
      %v1151 = vrot.slane %v1149, 5
      %v1152 = vsel %vm900, %v1147, %v1151
      %v1154 = vshrl.u32 %v894, 16
      %v1156 = vrot.slane %v1154, 4
      %v1157 = vshll.u32 %v894, 16
      %v1159 = vrot.slane %v1157, 5
      %v1160 = vor.u32 %v1156, %v1159
      %v1161 = vrot.slane %v1160, 4
      %v1163 = vshll.u32 %v895, 16
      %v1165 = vrot.slane %v1163, 5
      %v1166 = vsel %vm900, %v1161, %v1165
      %v1168 = vshrl.u32 %v896, 16
      %v1170 = vrot.slane %v1168, 4
      %v1171 = vshll.u32 %v896, 16
      %v1173 = vrot.slane %v1171, 5
      %v1174 = vor.u32 %v1170, %v1173
      %v1175 = vrot.slane %v1174, 4
      %v1177 = vshll.u32 %v897, 16
      %v1179 = vrot.slane %v1177, 5
      %v1180 = vsel %vm900, %v1175, %v1179
      %1181 = vrot.lane.b32.xlu0 %v914, 4
      %v1182 = vpop.permute.xlu0 %1181
      %1183 = vrot.lane.b32.xlu0 %v928, 4
      %v1184 = vpop.permute.xlu0 %1183
      %1185 = vrot.lane.b32.xlu0 %v942, 4
      %v1186 = vpop.permute.xlu0 %1185
      %1187 = vrot.lane.b32.xlu0 %v956, 4
      %v1188 = vpop.permute.xlu0 %1187
      %1189 = vrot.lane.b32.xlu0 %v970, 4
      %v1190 = vpop.permute.xlu0 %1189
      %1191 = vrot.lane.b32.xlu0 %v984, 4
      %v1192 = vpop.permute.xlu0 %1191
      %1193 = vrot.lane.b32.xlu0 %v998, 4
      %v1194 = vpop.permute.xlu0 %1193
      %1195 = vrot.lane.b32.xlu0 %v1012, 4
      %v1196 = vpop.permute.xlu0 %1195
      %1197 = vrot.lane.b32.xlu0 %v1026, 4
      %v1198 = vpop.permute.xlu0 %1197
      %1199 = vrot.lane.b32.xlu0 %v1040, 4
      %v1200 = vpop.permute.xlu0 %1199
      %1201 = vrot.lane.b32.xlu0 %v1054, 4
      %v1202 = vpop.permute.xlu0 %1201
      %1203 = vrot.lane.b32.xlu0 %v1068, 4
      %v1204 = vpop.permute.xlu0 %1203
      %1205 = vrot.lane.b32.xlu0 %v1082, 4
      %v1206 = vpop.permute.xlu0 %1205
      %1207 = vrot.lane.b32.xlu0 %v1096, 4
      %v1208 = vpop.permute.xlu0 %1207
      %1209 = vrot.lane.b32.xlu0 %v1110, 4
      %v1210 = vpop.permute.xlu0 %1209
      %1211 = vrot.lane.b32.xlu0 %v1124, 4
      %v1212 = vpop.permute.xlu0 %1211
      %1213 = vrot.lane.b32.xlu0 %v1138, 4
      %v1214 = vpop.permute.xlu0 %1213
      %1215 = vrot.lane.b32.xlu0 %v1152, 4
      %v1216 = vpop.permute.xlu0 %1215
      %1217 = vrot.lane.b32.xlu0 %v1166, 4
      %v1218 = vpop.permute.xlu0 %1217
      %1219 = vrot.lane.b32.xlu0 %v1180, 4
      %v1220 = vpop.permute.xlu0 %1219
      %vm1241 = vcmask 60448
      %1242 = vst.msk [vmem:[#allocation3] sm:$0xf] %vm1241, %v1182
      %1243 = vst.msk [vmem:[#allocation3 + $0x4] sm:$0xf] %vm1241, %v1184
      %1244 = vst.msk [vmem:[#allocation3 + $0x8] sm:$0xf] %vm1241, %v1186
      %1245 = vst.msk [vmem:[#allocation3 + $0xc] sm:$0xf] %vm1241, %v1188
      %1246 = vst.msk [vmem:[#allocation3 + $0x10] sm:$0xf] %vm1241, %v1190
      %1247 = vst.msk [vmem:[#allocation3 + $0x14] sm:$0xf] %vm1241, %v1192
      %1248 = vst.msk [vmem:[#allocation3 + $0x18] sm:$0xf] %vm1241, %v1194
      %1249 = vst.msk [vmem:[#allocation3 + $0x1c] sm:$0xf] %vm1241, %v1196
      %1250 = vst.msk [vmem:[#allocation3 + $0x20] sm:$0xf] %vm1241, %v1198
      %1251 = vst.msk [vmem:[#allocation3 + $0x24] sm:$0xf] %vm1241, %v1200
      %1252 = vst.msk [vmem:[#allocation3 + $0x28] sm:$0xf] %vm1241, %v1202
      %1253 = vst.msk [vmem:[#allocation3 + $0x2c] sm:$0xf] %vm1241, %v1204
      %1254 = vst.msk [vmem:[#allocation3 + $0x30] sm:$0xf] %vm1241, %v1206
      %1255 = vst.msk [vmem:[#allocation3 + $0x34] sm:$0xf] %vm1241, %v1208
      %1256 = vst.msk [vmem:[#allocation3 + $0x38] sm:$0xf] %vm1241, %v1210
      %1257 = vst.msk [vmem:[#allocation3 + $0x3c] sm:$0xf] %vm1241, %v1212
      %1258 = vst.msk [vmem:[#allocation3 + $0x40] sm:$0xf] %vm1241, %v1214
      %1259 = vst.msk [vmem:[#allocation3 + $0x44] sm:$0xf] %vm1241, %v1216
      %1260 = vst.msk [vmem:[#allocation3 + $0x48] sm:$0xf] %vm1241, %v1218
      %1261 = vst.msk [vmem:[#allocation3 + $0x4c] sm:$0xf] %vm1241, %v1220
      %v1262 = vld [vmem:[#allocation2] sm:$0xe]
      %v1263 = vld [vmem:[#allocation2 + $0x4] sm:$0x1]
      %v1264 = vld [vmem:[#allocation2 + $0x8] sm:$0xe]
      %v1265 = vld [vmem:[#allocation2 + $0xc] sm:$0x1]
      %v1266 = vld [vmem:[#allocation2 + $0x10] sm:$0xe]
      %v1267 = vld [vmem:[#allocation2 + $0x14] sm:$0x1]
      %v1268 = vld [vmem:[#allocation2 + $0x18] sm:$0xe]
      %v1269 = vld [vmem:[#allocation2 + $0x1c] sm:$0x1]
      %v1270 = vld [vmem:[#allocation2 + $0x20] sm:$0xe]
      %v1271 = vld [vmem:[#allocation2 + $0x24] sm:$0x1]
      %v1272 = vld [vmem:[#allocation2 + $0x28] sm:$0xe]
      %v1273 = vld [vmem:[#allocation2 + $0x2c] sm:$0x1]
      %v1274 = vld [vmem:[#allocation2 + $0x30] sm:$0xe]
      %v1275 = vld [vmem:[#allocation2 + $0x34] sm:$0x1]
      %v1276 = vld [vmem:[#allocation2 + $0x38] sm:$0xe]
      %v1277 = vld [vmem:[#allocation2 + $0x3c] sm:$0x1]
      %v1278 = vld [vmem:[#allocation2 + $0x40] sm:$0xe]
      %v1279 = vld [vmem:[#allocation2 + $0x44] sm:$0x1]
      %v1280 = vld [vmem:[#allocation2 + $0x48] sm:$0xe]
      %v1281 = vld [vmem:[#allocation2 + $0x4c] sm:$0x1]
      %v1282 = vld [vmem:[#allocation2 + $0x50] sm:$0xe]
      %v1283 = vld [vmem:[#allocation2 + $0x54] sm:$0x1]
      %v1284 = vld [vmem:[#allocation2 + $0x58] sm:$0xe]
      %v1285 = vld [vmem:[#allocation2 + $0x5c] sm:$0x1]
      %v1286 = vld [vmem:[#allocation2 + $0x60] sm:$0xe]
      %v1287 = vld [vmem:[#allocation2 + $0x64] sm:$0x1]
      %v1288 = vld [vmem:[#allocation2 + $0x68] sm:$0xe]
      %v1289 = vld [vmem:[#allocation2 + $0x6c] sm:$0x1]
      %v1290 = vld [vmem:[#allocation2 + $0x70] sm:$0xe]
      %v1291 = vld [vmem:[#allocation2 + $0x74] sm:$0x1]
      %v1292 = vld [vmem:[#allocation2 + $0x78] sm:$0xe]
      %v1293 = vld [vmem:[#allocation2 + $0x7c] sm:$0x1]
      %v1294 = vld [vmem:[#allocation2 + $0x80] sm:$0xe]
      %v1295 = vld [vmem:[#allocation2 + $0x84] sm:$0x1]
      %v1296 = vld [vmem:[#allocation2 + $0x88] sm:$0xe]
      %v1297 = vld [vmem:[#allocation2 + $0x8c] sm:$0x1]
      %v1298 = vld [vmem:[#allocation2 + $0x90] sm:$0xe]
      %v1299 = vld [vmem:[#allocation2 + $0x94] sm:$0x1]
      %v1300 = vld [vmem:[#allocation2 + $0x98] sm:$0xe]
      %v1301 = vld [vmem:[#allocation2 + $0x9c] sm:$0x1]
      %vm1342 = vcmask 1042432
      %vm1343 = vcmask 1046532
      %vm1344 = vmor %vm1342, %vm1343
      %v1345 = vrot.slane %v1262, 5
      %v1346 = vrot.slane %v1345, 4
      %v1347 = vrot.slane %v1263, 5
      %v1348 = vsel %vm1344, %v1346, %v1347
      %v1349 = vrot.slane %v1264, 5
      %v1350 = vrot.slane %v1349, 4
      %v1351 = vrot.slane %v1265, 5
      %v1352 = vsel %vm1344, %v1350, %v1351
      %v1353 = vrot.slane %v1266, 5
      %v1354 = vrot.slane %v1353, 4
      %v1355 = vrot.slane %v1267, 5
      %v1356 = vsel %vm1344, %v1354, %v1355
      %v1357 = vrot.slane %v1268, 5
      %v1358 = vrot.slane %v1357, 4
      %v1359 = vrot.slane %v1269, 5
      %v1360 = vsel %vm1344, %v1358, %v1359
      %v1361 = vrot.slane %v1270, 5
      %v1362 = vrot.slane %v1361, 4
      %v1363 = vrot.slane %v1271, 5
      %v1364 = vsel %vm1344, %v1362, %v1363
      %v1365 = vrot.slane %v1272, 5
      %v1366 = vrot.slane %v1365, 4
      %v1367 = vrot.slane %v1273, 5
      %v1368 = vsel %vm1344, %v1366, %v1367
      %v1369 = vrot.slane %v1274, 5
      %v1370 = vrot.slane %v1369, 4
      %v1371 = vrot.slane %v1275, 5
      %v1372 = vsel %vm1344, %v1370, %v1371
      %v1373 = vrot.slane %v1276, 5
      %v1374 = vrot.slane %v1373, 4
      %v1375 = vrot.slane %v1277, 5
      %v1376 = vsel %vm1344, %v1374, %v1375
      %v1377 = vrot.slane %v1278, 5
      %v1378 = vrot.slane %v1377, 4
      %v1379 = vrot.slane %v1279, 5
      %v1380 = vsel %vm1344, %v1378, %v1379
      %v1381 = vrot.slane %v1280, 5
      %v1382 = vrot.slane %v1381, 4
      %v1383 = vrot.slane %v1281, 5
      %v1384 = vsel %vm1344, %v1382, %v1383
      %v1385 = vrot.slane %v1282, 5
      %v1386 = vrot.slane %v1385, 4
      %v1387 = vrot.slane %v1283, 5
      %v1388 = vsel %vm1344, %v1386, %v1387
      %v1389 = vrot.slane %v1284, 5
      %v1390 = vrot.slane %v1389, 4
      %v1391 = vrot.slane %v1285, 5
      %v1392 = vsel %vm1344, %v1390, %v1391
      %v1393 = vrot.slane %v1286, 5
      %v1394 = vrot.slane %v1393, 4
      %v1395 = vrot.slane %v1287, 5
      %v1396 = vsel %vm1344, %v1394, %v1395
      %v1397 = vrot.slane %v1288, 5
      %v1398 = vrot.slane %v1397, 4
      %v1399 = vrot.slane %v1289, 5
      %v1400 = vsel %vm1344, %v1398, %v1399
      %v1401 = vrot.slane %v1290, 5
      %v1402 = vrot.slane %v1401, 4
      %v1403 = vrot.slane %v1291, 5
      %v1404 = vsel %vm1344, %v1402, %v1403
      %v1405 = vrot.slane %v1292, 5
      %v1406 = vrot.slane %v1405, 4
      %v1407 = vrot.slane %v1293, 5
      %v1408 = vsel %vm1344, %v1406, %v1407
      %v1409 = vrot.slane %v1294, 5
      %v1410 = vrot.slane %v1409, 4
      %v1411 = vrot.slane %v1295, 5
      %v1412 = vsel %vm1344, %v1410, %v1411
      %v1413 = vrot.slane %v1296, 5
      %v1414 = vrot.slane %v1413, 4
      %v1415 = vrot.slane %v1297, 5
      %v1416 = vsel %vm1344, %v1414, %v1415
      %v1417 = vrot.slane %v1298, 5
      %v1418 = vrot.slane %v1417, 4
      %v1419 = vrot.slane %v1299, 5
      %v1420 = vsel %vm1344, %v1418, %v1419
      %v1421 = vrot.slane %v1300, 5
      %v1422 = vrot.slane %v1421, 4
      %v1423 = vrot.slane %v1301, 5
      %v1424 = vsel %vm1344, %v1422, %v1423
      %1425 = vrot.lane.b32.xlu0 %v1348, 8
      %v1426 = vpop.permute.xlu0 %1425
      %1427 = vrot.lane.b32.xlu0 %v1352, 8
      %v1428 = vpop.permute.xlu0 %1427
      %1429 = vrot.lane.b32.xlu0 %v1356, 8
      %v1430 = vpop.permute.xlu0 %1429
      %1431 = vrot.lane.b32.xlu0 %v1360, 8
      %v1432 = vpop.permute.xlu0 %1431
      %1433 = vrot.lane.b32.xlu0 %v1364, 8
      %v1434 = vpop.permute.xlu0 %1433
      %1435 = vrot.lane.b32.xlu0 %v1368, 8
      %v1436 = vpop.permute.xlu0 %1435
      %1437 = vrot.lane.b32.xlu0 %v1372, 8
      %v1438 = vpop.permute.xlu0 %1437
      %1439 = vrot.lane.b32.xlu0 %v1376, 8
      %v1440 = vpop.permute.xlu0 %1439
      %1441 = vrot.lane.b32.xlu0 %v1380, 8
      %v1442 = vpop.permute.xlu0 %1441
      %1443 = vrot.lane.b32.xlu0 %v1384, 8
      %v1444 = vpop.permute.xlu0 %1443
      %1445 = vrot.lane.b32.xlu0 %v1388, 8
      %v1446 = vpop.permute.xlu0 %1445
      %1447 = vrot.lane.b32.xlu0 %v1392, 8
      %v1448 = vpop.permute.xlu0 %1447
      %1449 = vrot.lane.b32.xlu0 %v1396, 8
      %v1450 = vpop.permute.xlu0 %1449
      %1451 = vrot.lane.b32.xlu0 %v1400, 8
      %v1452 = vpop.permute.xlu0 %1451
      %1453 = vrot.lane.b32.xlu0 %v1404, 8
      %v1454 = vpop.permute.xlu0 %1453
      %1455 = vrot.lane.b32.xlu0 %v1408, 8
      %v1456 = vpop.permute.xlu0 %1455
      %1457 = vrot.lane.b32.xlu0 %v1412, 8
      %v1458 = vpop.permute.xlu0 %1457
      %1459 = vrot.lane.b32.xlu0 %v1416, 8
      %v1460 = vpop.permute.xlu0 %1459
      %1461 = vrot.lane.b32.xlu0 %v1420, 8
      %v1462 = vpop.permute.xlu0 %1461
      %1463 = vrot.lane.b32.xlu0 %v1424, 8
      %v1464 = vpop.permute.xlu0 %1463
      %vm1485 = vcmask 93248
      %1486 = vst.msk [vmem:[#allocation3] sm:$0xf] %vm1485, %v1426
      %1487 = vst.msk [vmem:[#allocation3 + $0x4] sm:$0xf] %vm1485, %v1428
      %1488 = vst.msk [vmem:[#allocation3 + $0x8] sm:$0xf] %vm1485, %v1430
      %1489 = vst.msk [vmem:[#allocation3 + $0xc] sm:$0xf] %vm1485, %v1432
      %1490 = vst.msk [vmem:[#allocation3 + $0x10] sm:$0xf] %vm1485, %v1434
      %1491 = vst.msk [vmem:[#allocation3 + $0x14] sm:$0xf] %vm1485, %v1436
      %1492 = vst.msk [vmem:[#allocation3 + $0x18] sm:$0xf] %vm1485, %v1438
      %1493 = vst.msk [vmem:[#allocation3 + $0x1c] sm:$0xf] %vm1485, %v1440
      %1494 = vst.msk [vmem:[#allocation3 + $0x20] sm:$0xf] %vm1485, %v1442
      %1495 = vst.msk [vmem:[#allocation3 + $0x24] sm:$0xf] %vm1485, %v1444
      %1496 = vst.msk [vmem:[#allocation3 + $0x28] sm:$0xf] %vm1485, %v1446
      %1497 = vst.msk [vmem:[#allocation3 + $0x2c] sm:$0xf] %vm1485, %v1448
      %1498 = vst.msk [vmem:[#allocation3 + $0x30] sm:$0xf] %vm1485, %v1450
      %1499 = vst.msk [vmem:[#allocation3 + $0x34] sm:$0xf] %vm1485, %v1452
      %1500 = vst.msk [vmem:[#allocation3 + $0x38] sm:$0xf] %vm1485, %v1454
      %1501 = vst.msk [vmem:[#allocation3 + $0x3c] sm:$0xf] %vm1485, %v1456
      %1502 = vst.msk [vmem:[#allocation3 + $0x40] sm:$0xf] %vm1485, %v1458
      %1503 = vst.msk [vmem:[#allocation3 + $0x44] sm:$0xf] %vm1485, %v1460
      %1504 = vst.msk [vmem:[#allocation3 + $0x48] sm:$0xf] %vm1485, %v1462
      %1505 = vst.msk [vmem:[#allocation3 + $0x4c] sm:$0xf] %vm1485, %v1464
      %v1506 = vld [vmem:[#allocation3] sm:$0xf]
      %v1507 = vld [vmem:[#allocation3 + $0x4] sm:$0xf]
      %v1508 = vld [vmem:[#allocation3 + $0x8] sm:$0xf]
      %v1509 = vld [vmem:[#allocation3 + $0xc] sm:$0xf]
      %v1510 = vld [vmem:[#allocation3 + $0x10] sm:$0xf]
      %v1511 = vld [vmem:[#allocation3 + $0x14] sm:$0xf]
      %v1512 = vld [vmem:[#allocation3 + $0x18] sm:$0xf]
      %v1513 = vld [vmem:[#allocation3 + $0x1c] sm:$0xf]
      %v1514 = vld [vmem:[#allocation3 + $0x28] sm:$0xf]
      %v1515 = vld [vmem:[#allocation3 + $0x2c] sm:$0xf]
      %v1516 = vld [vmem:[#allocation3 + $0x30] sm:$0xf]
      %v1517 = vld [vmem:[#allocation3 + $0x34] sm:$0xf]
      %v1518 = vld [vmem:[#allocation3 + $0x38] sm:$0xf]
      %v1519 = vld [vmem:[#allocation3 + $0x3c] sm:$0xf]
      %v1520 = vld [vmem:[#allocation3 + $0x40] sm:$0xf]
      %v1521 = vld [vmem:[#allocation3 + $0x44] sm:$0xf]
      %v1522 = vld [vmem:[%s3] sm:$0xf]
      %v1523 = vld [vmem:[%s3 + $0x4] sm:$0x3]
      %s1524 = scalar_lea.vmem [#allocation3], 4
      %v1525 = vld [vmem:[%s1524] sm:$0xf]
      %v1526 = vld [vmem:[%s1524 + $0x4] sm:$0xf]
      %v1527 = vld [vmem:[%s1524 + $0x8] sm:$0xf]
      %v1528 = vld [vmem:[%s1524 + $0xc] sm:$0xf]
      %v1529 = vld [vmem:[%s1524 + $0x10] sm:$0xf]
      %v1530 = vld [vmem:[%s1524 + $0x14] sm:$0xf]
      %v1531 = vld [vmem:[%s1524 + $0x18] sm:$0xf]
      %v1532 = vld [vmem:[%s1524 + $0x1c] sm:$0xf]
      %v1533 = vld [vmem:[%s1524 + $0x28] sm:$0xf]
      %v1534 = vld [vmem:[%s1524 + $0x2c] sm:$0xf]
      %v1535 = vld [vmem:[%s1524 + $0x30] sm:$0xf]
      %v1536 = vld [vmem:[%s1524 + $0x34] sm:$0xf]
      %v1537 = vld [vmem:[%s1524 + $0x38] sm:$0xf]
      %v1538 = vld [vmem:[%s1524 + $0x3c] sm:$0xf]
      %v1539 = vld [vmem:[%s1524 + $0x40] sm:$0xf]
      %v1540 = vld [vmem:[%s1524 + $0x44] sm:$0xf]
      %s1541 = scalar_lea.vmem %s3, 8
      %v1542 = vld [vmem:[%s1541] sm:$0xf]
      %v1543 = vld [vmem:[%s1541 + $0x4] sm:$0x3]
      %v1560 = vunpack.c.l.b16 %v1525
      %v1561 = vunpack.c.l.b16 %v1526
      %v1562 = vunpack.c.l.b16 %v1527
      %v1563 = vunpack.c.l.b16 %v1528
      %v1564 = vunpack.c.l.b16 %v1529
      %v1565 = vunpack.c.l.b16 %v1530
      %v1566 = vunpack.c.l.b16 %v1531
      %v1567 = vunpack.c.l.b16 %v1532
      %v1568 = vunpack.c.l.b16 %v1533
      %v1569 = vunpack.c.l.b16 %v1534
      %v1570 = vunpack.c.l.b16 %v1535
      %v1571 = vunpack.c.l.b16 %v1536
      %v1572 = vunpack.c.l.b16 %v1537
      %v1573 = vunpack.c.l.b16 %v1538
      %v1574 = vunpack.c.l.b16 %v1539
      %v1575 = vunpack.c.l.b16 %v1540
      %v1576 = vpack.c.b16 %v1561, %v1560
      %v1577 = vpack.c.b16 %v1563, %v1562
      %v1578 = vpack.c.b16 %v1565, %v1564
      %v1579 = vpack.c.b16 %v1567, %v1566
      %v1580 = vpack.c.b16 %v1569, %v1568
      %v1581 = vpack.c.b16 %v1571, %v1570
      %v1582 = vpack.c.b16 %v1573, %v1572
      %v1583 = vpack.c.b16 %v1575, %v1574
      %v1586 = vunpack.c.l.b16 %v1542
      %v1587 = vunpack.c.l.b16 %v1543
      %v1588 = vpack.c.b16 %v1587, %v1586
      %vm1589 = vcmask 97280
      %v1591 = vsel %vm1589, %v1576, 0
      %v1594 = vsel %vm1589, %v1577, 0
      %v1597 = vsel %vm1589, %v1578, 0
      %v1600 = vsel %vm1589, %v1579, 0
      %v1603 = vsel %vm1589, %v1580, 0
      %v1606 = vsel %vm1589, %v1581, 0
      %v1609 = vsel %vm1589, %v1582, 0
      %v1612 = vsel %vm1589, %v1583, 0
      %vm1614 = vcmask 1045504
      %v1616 = vsel %vm1614, %v1588, 0
      %1618 = vmatprep.subr.bf16.mxu0 0
      %1619 = vmatpush1.bf16.msra.mxu0 %v1616
      %1620 = vmatprep.subr.bf16.mxu0 0
      %1621 = vmatpush1.bf16.msra.mxu0 0
      %1622 = vmatprep.subr.bf16.mxu0 0
      %1623 = vmatpush1.bf16.msra.mxu0 0
      %1624 = vmatprep.subr.bf16.mxu0 0
      %1625 = vmatpush1.bf16.msra.mxu0 0
      %1626 = vmatprep.subr.bf16.mxu0 0
      %1627 = vmatpush1.bf16.msra.mxu0 0
      %1628 = vmatprep.subr.bf16.mxu0 0
      %1629 = vmatpush1.bf16.msra.mxu0 0
      %1630 = vmatprep.subr.bf16.mxu0 0
      %1631 = vmatpush1.bf16.msra.mxu0 0
      %1632 = vmatprep.subr.bf16.mxu0 0
      %1633 = vmatpush1.bf16.msra.mxu0 0
      %1634 = vmatprep.subr.bf16.mxu0 0
      %1635 = vmatpush1.bf16.msra.mxu0 0
      %1636 = vmatprep.subr.bf16.mxu0 0
      %1637 = vmatpush1.bf16.msra.mxu0 0
      %1638 = vmatprep.subr.bf16.mxu0 0
      %1639 = vmatpush1.bf16.msra.mxu0 0
      %1640 = vmatprep.subr.bf16.mxu0 0
      %1641 = vmatpush1.bf16.msra.mxu0 0
      %1642 = vmatprep.subr.bf16.mxu0 0
      %1643 = vmatpush1.bf16.msra.mxu0 0
      %1644 = vmatprep.subr.bf16.mxu0 0
      %1645 = vmatpush1.bf16.msra.mxu0 0
      %1646 = vmatprep.subr.bf16.mxu0 0
      %1647 = vmatpush1.bf16.msra.mxu0 0
      %1648 = vmatprep.subr.bf16.mxu0 0
      %1649 = vmatpush1.bf16.msra.mxu0 0
      %1650 = vmatprep.mubr.bf16.mxu0 0
      %1651 = vmatmul.mubr.bf16.gmra.mrb[0].mxu0 %v1591
      %v1652 = vpop.f32.mrb[0].mxu0
      %v1653 = vadd.f32 0.0, %v1652
      %v1654 = vpop.f32.mrb[0].mxu0
      %v1655 = vpop.f32.mrb[0].mxu0
      %v1656 = vadd.f32 0.0, %v1655
      %v1657 = vpop.f32.mrb[0].mxu0
      %1658 = vmatprep.mubr.bf16.mxu0 0
      %1659 = vmatmul.mubr.bf16.gmra.mrb[0].mxu0 %v1594
      %v1660 = vpop.f32.mrb[0].mxu0
      %v1661 = vadd.f32 0.0, %v1660
      %v1662 = vpop.f32.mrb[0].mxu0
      %v1663 = vpop.f32.mrb[0].mxu0
      %v1664 = vadd.f32 0.0, %v1663
      %v1665 = vpop.f32.mrb[0].mxu0
      %1666 = vmatprep.mubr.bf16.mxu0 0
      %1667 = vmatmul.mubr.bf16.gmra.mrb[0].mxu0 %v1597
      %v1668 = vpop.f32.mrb[0].mxu0
      %v1669 = vadd.f32 0.0, %v1668
      %v1670 = vpop.f32.mrb[0].mxu0
      %v1671 = vpop.f32.mrb[0].mxu0
      %v1672 = vadd.f32 0.0, %v1671
      %v1673 = vpop.f32.mrb[0].mxu0
      %1674 = vmatprep.mubr.bf16.mxu0 0
      %1675 = vmatmul.mubr.bf16.gmra.mrb[0].mxu0 %v1600
      %v1676 = vpop.f32.mrb[0].mxu0
      %v1677 = vadd.f32 0.0, %v1676
      %v1678 = vpop.f32.mrb[0].mxu0
      %v1679 = vpop.f32.mrb[0].mxu0
      %v1680 = vadd.f32 0.0, %v1679
      %v1681 = vpop.f32.mrb[0].mxu0
      %1682 = vmatprep.mubr.bf16.mxu0 0
      %1683 = vmatmul.mubr.bf16.gmra.mrb[0].mxu0 %v1603
      %v1684 = vpop.f32.mrb[0].mxu0
      %v1685 = vadd.f32 0.0, %v1684
      %v1686 = vpop.f32.mrb[0].mxu0
      %v1687 = vpop.f32.mrb[0].mxu0
      %v1688 = vadd.f32 0.0, %v1687
      %v1689 = vpop.f32.mrb[0].mxu0
      %1690 = vmatprep.mubr.bf16.mxu0 0
      %1691 = vmatmul.mubr.bf16.gmra.mrb[0].mxu0 %v1606
      %v1692 = vpop.f32.mrb[0].mxu0
      %v1693 = vadd.f32 0.0, %v1692
      %v1694 = vpop.f32.mrb[0].mxu0
      %v1695 = vpop.f32.mrb[0].mxu0
      %v1696 = vadd.f32 0.0, %v1695
      %v1697 = vpop.f32.mrb[0].mxu0
      %1698 = vmatprep.mubr.bf16.mxu0 0
      %1699 = vmatmul.mubr.bf16.gmra.mrb[0].mxu0 %v1609
      %v1700 = vpop.f32.mrb[0].mxu0
      %v1701 = vadd.f32 0.0, %v1700
      %v1702 = vpop.f32.mrb[0].mxu0
      %v1703 = vpop.f32.mrb[0].mxu0
      %v1704 = vadd.f32 0.0, %v1703
      %v1705 = vpop.f32.mrb[0].mxu0
      %1706 = vmatprep.mubr.bf16.mxu0 0
      %1707 = vmatmul.mubr.bf16.gmra.mrb[0].mxu0 %v1612
      %v1708 = vpop.f32.mrb[0].mxu0
      %v1709 = vadd.f32 0.0, %v1708
      %v1710 = vpop.f32.mrb[0].mxu0
      %v1711 = vpop.f32.mrb[0].mxu0
      %v1712 = vadd.f32 0.0, %v1711
      %v1713 = vpop.f32.mrb[0].mxu0
      %1714 = vdwg.mxu0
      %v1731 = vunpack.c.l.b16 %v1506
      %v1732 = vunpack.c.l.b16 %v1507
      %v1733 = vunpack.c.l.b16 %v1508
      %v1734 = vunpack.c.l.b16 %v1509
      %v1735 = vunpack.c.l.b16 %v1510
      %v1736 = vunpack.c.l.b16 %v1511
      %v1737 = vunpack.c.l.b16 %v1512
      %v1738 = vunpack.c.l.b16 %v1513
      %v1739 = vunpack.c.l.b16 %v1514
      %v1740 = vunpack.c.l.b16 %v1515
      %v1741 = vunpack.c.l.b16 %v1516
      %v1742 = vunpack.c.l.b16 %v1517
      %v1743 = vunpack.c.l.b16 %v1518
      %v1744 = vunpack.c.l.b16 %v1519
      %v1745 = vunpack.c.l.b16 %v1520
      %v1746 = vunpack.c.l.b16 %v1521
      %v1747 = vpack.c.b16 %v1732, %v1731
      %v1748 = vpack.c.b16 %v1734, %v1733
      %v1749 = vpack.c.b16 %v1736, %v1735
      %v1750 = vpack.c.b16 %v1738, %v1737
      %v1751 = vpack.c.b16 %v1740, %v1739
      %v1752 = vpack.c.b16 %v1742, %v1741
      %v1753 = vpack.c.b16 %v1744, %v1743
      %v1754 = vpack.c.b16 %v1746, %v1745
      %v1757 = vunpack.c.l.b16 %v1522
      %v1758 = vunpack.c.l.b16 %v1523
      %v1759 = vpack.c.b16 %v1758, %v1757
      %v1761 = vsel %vm1589, %v1747, 0
      %v1764 = vsel %vm1589, %v1748, 0
      %v1767 = vsel %vm1589, %v1749, 0
      %v1770 = vsel %vm1589, %v1750, 0
      %v1773 = vsel %vm1589, %v1751, 0
      %v1776 = vsel %vm1589, %v1752, 0
      %v1779 = vsel %vm1589, %v1753, 0
      %v1782 = vsel %vm1589, %v1754, 0
      %v1785 = vsel %vm1614, %v1759, 0
      %1787 = vmatprep.subr.bf16.mxu0 0
      %1788 = vmatpush1.bf16.msra.mxu0 %v1785
      %1789 = vmatprep.subr.bf16.mxu0 0
      %1790 = vmatpush1.bf16.msra.mxu0 0
      %1791 = vmatprep.subr.bf16.mxu0 0
      %1792 = vmatpush1.bf16.msra.mxu0 0
      %1793 = vmatprep.subr.bf16.mxu0 0
      %1794 = vmatpush1.bf16.msra.mxu0 0
      %1795 = vmatprep.subr.bf16.mxu0 0
      %1796 = vmatpush1.bf16.msra.mxu0 0
      %1797 = vmatprep.subr.bf16.mxu0 0
      %1798 = vmatpush1.bf16.msra.mxu0 0
      %1799 = vmatprep.subr.bf16.mxu0 0
      %1800 = vmatpush1.bf16.msra.mxu0 0
      %1801 = vmatprep.subr.bf16.mxu0 0
      %1802 = vmatpush1.bf16.msra.mxu0 0
      %1803 = vmatprep.subr.bf16.mxu0 0
      %1804 = vmatpush1.bf16.msra.mxu0 0
      %1805 = vmatprep.subr.bf16.mxu0 0
      %1806 = vmatpush1.bf16.msra.mxu0 0
      %1807 = vmatprep.subr.bf16.mxu0 0
      %1808 = vmatpush1.bf16.msra.mxu0 0
      %1809 = vmatprep.subr.bf16.mxu0 0
      %1810 = vmatpush1.bf16.msra.mxu0 0
      %1811 = vmatprep.subr.bf16.mxu0 0
      %1812 = vmatpush1.bf16.msra.mxu0 0
      %1813 = vmatprep.subr.bf16.mxu0 0
      %1814 = vmatpush1.bf16.msra.mxu0 0
      %1815 = vmatprep.subr.bf16.mxu0 0
      %1816 = vmatpush1.bf16.msra.mxu0 0
      %1817 = vmatprep.subr.bf16.mxu0 0
      %1818 = vmatpush1.bf16.msra.mxu0 0
      %1819 = vmatprep.mubr.bf16.mxu0 0
      %1820 = vmatmul.mubr.bf16.gmra.mrb[0].mxu0 %v1761
      %v1821 = vpop.f32.mrb[0].mxu0
      %v1822 = vadd.f32 %v1653, %v1821
      %v1823 = vpop.f32.mrb[0].mxu0
      %v1824 = vpop.f32.mrb[0].mxu0
      %v1825 = vadd.f32 %v1656, %v1824
      %v1826 = vpop.f32.mrb[0].mxu0
      %1827 = vmatprep.mubr.bf16.mxu0 0
      %1828 = vmatmul.mubr.bf16.gmra.mrb[0].mxu0 %v1764
      %v1829 = vpop.f32.mrb[0].mxu0
      %v1830 = vadd.f32 %v1661, %v1829
      %v1831 = vpop.f32.mrb[0].mxu0
      %v1832 = vpop.f32.mrb[0].mxu0
      %v1833 = vadd.f32 %v1664, %v1832
      %v1834 = vpop.f32.mrb[0].mxu0
      %1835 = vmatprep.mubr.bf16.mxu0 0
      %1836 = vmatmul.mubr.bf16.gmra.mrb[0].mxu0 %v1767
      %v1837 = vpop.f32.mrb[0].mxu0
      %v1838 = vadd.f32 %v1669, %v1837
      %v1839 = vpop.f32.mrb[0].mxu0
      %v1840 = vpop.f32.mrb[0].mxu0
      %v1841 = vadd.f32 %v1672, %v1840
      %v1842 = vpop.f32.mrb[0].mxu0
      %1843 = vmatprep.mubr.bf16.mxu0 0
      %1844 = vmatmul.mubr.bf16.gmra.mrb[0].mxu0 %v1770
      %v1845 = vpop.f32.mrb[0].mxu0
      %v1846 = vadd.f32 %v1677, %v1845
      %v1847 = vpop.f32.mrb[0].mxu0
      %v1848 = vpop.f32.mrb[0].mxu0
      %v1849 = vadd.f32 %v1680, %v1848
      %v1850 = vpop.f32.mrb[0].mxu0
      %1851 = vmatprep.mubr.bf16.mxu0 0
      %1852 = vmatmul.mubr.bf16.gmra.mrb[0].mxu0 %v1773
      %v1853 = vpop.f32.mrb[0].mxu0
      %v1854 = vadd.f32 %v1685, %v1853
      %v1855 = vpop.f32.mrb[0].mxu0
      %v1856 = vpop.f32.mrb[0].mxu0
      %v1857 = vadd.f32 %v1688, %v1856
      %v1858 = vpop.f32.mrb[0].mxu0
      %1859 = vmatprep.mubr.bf16.mxu0 0
      %1860 = vmatmul.mubr.bf16.gmra.mrb[0].mxu0 %v1776
      %v1861 = vpop.f32.mrb[0].mxu0
      %v1862 = vadd.f32 %v1693, %v1861
      %v1863 = vpop.f32.mrb[0].mxu0
      %v1864 = vpop.f32.mrb[0].mxu0
      %v1865 = vadd.f32 %v1696, %v1864
      %v1866 = vpop.f32.mrb[0].mxu0
      %1867 = vmatprep.mubr.bf16.mxu0 0
      %1868 = vmatmul.mubr.bf16.gmra.mrb[0].mxu0 %v1779
      %v1869 = vpop.f32.mrb[0].mxu0
      %v1870 = vadd.f32 %v1701, %v1869
      %v1871 = vpop.f32.mrb[0].mxu0
      %v1872 = vpop.f32.mrb[0].mxu0
      %v1873 = vadd.f32 %v1704, %v1872
      %v1874 = vpop.f32.mrb[0].mxu0
      %1875 = vmatprep.mubr.bf16.mxu0 0
      %1876 = vmatmul.mubr.bf16.gmra.mrb[0].mxu0 %v1782
      %v1877 = vpop.f32.mrb[0].mxu0
      %v1878 = vadd.f32 %v1709, %v1877
      %v1879 = vpop.f32.mrb[0].mxu0
      %v1880 = vpop.f32.mrb[0].mxu0
      %v1881 = vadd.f32 %v1712, %v1880
      %v1882 = vpop.f32.mrb[0].mxu0
      %1883 = vdwg.mxu0
      %s1884 = scalar_lea.vmem [#allocation3], 8
      %v1885 = vld [vmem:[%s1884] sm:$0xf]
      %v1886 = vld [vmem:[%s1884 + $0x4] sm:$0xf]
      %v1887 = vld [vmem:[%s1884 + $0x8] sm:$0xf]
      %v1888 = vld [vmem:[%s1884 + $0xc] sm:$0xf]
      %v1889 = vld [vmem:[%s1884 + $0x10] sm:$0xf]
      %v1890 = vld [vmem:[%s1884 + $0x14] sm:$0xf]
      %v1891 = vld [vmem:[%s1884 + $0x18] sm:$0xf]
      %v1892 = vld [vmem:[%s1884 + $0x1c] sm:$0xf]
      %v1893 = vld [vmem:[%s1884 + $0x28] sm:$0xf]
      %v1894 = vld [vmem:[%s1884 + $0x2c] sm:$0xf]
      %v1895 = vld [vmem:[%s1884 + $0x30] sm:$0xf]
      %v1896 = vld [vmem:[%s1884 + $0x34] sm:$0xf]
      %v1897 = vld [vmem:[%s1884 + $0x38] sm:$0xf]
      %v1898 = vld [vmem:[%s1884 + $0x3c] sm:$0xf]
      %v1899 = vld [vmem:[%s1884 + $0x40] sm:$0xf]
      %v1900 = vld [vmem:[%s1884 + $0x44] sm:$0xf]
      %s1901 = scalar_lea.vmem %s3, 16
      %v1902 = vld [vmem:[%s1901] sm:$0xf]
      %v1903 = vld [vmem:[%s1901 + $0x4] sm:$0x3]
      %v1920 = vunpack.c.l.b16 %v1885
      %v1921 = vunpack.c.l.b16 %v1886
      %v1922 = vunpack.c.l.b16 %v1887
      %v1923 = vunpack.c.l.b16 %v1888
      %v1924 = vunpack.c.l.b16 %v1889
      %v1925 = vunpack.c.l.b16 %v1890
      %v1926 = vunpack.c.l.b16 %v1891
      %v1927 = vunpack.c.l.b16 %v1892
      %v1928 = vunpack.c.l.b16 %v1893
      %v1929 = vunpack.c.l.b16 %v1894
      %v1930 = vunpack.c.l.b16 %v1895
      %v1931 = vunpack.c.l.b16 %v1896
      %v1932 = vunpack.c.l.b16 %v1897
      %v1933 = vunpack.c.l.b16 %v1898
      %v1934 = vunpack.c.l.b16 %v1899
      %v1935 = vunpack.c.l.b16 %v1900
      %v1936 = vpack.c.b16 %v1921, %v1920
      %v1937 = vpack.c.b16 %v1923, %v1922
      %v1938 = vpack.c.b16 %v1925, %v1924
      %v1939 = vpack.c.b16 %v1927, %v1926
      %v1940 = vpack.c.b16 %v1929, %v1928
      %v1941 = vpack.c.b16 %v1931, %v1930
      %v1942 = vpack.c.b16 %v1933, %v1932
      %v1943 = vpack.c.b16 %v1935, %v1934
      %v1946 = vunpack.c.l.b16 %v1902
      %v1947 = vunpack.c.l.b16 %v1903
      %v1948 = vpack.c.b16 %v1947, %v1946
      %v1950 = vsel %vm1589, %v1936, 0
      %v1953 = vsel %vm1589, %v1937, 0
      %v1956 = vsel %vm1589, %v1938, 0
      %v1959 = vsel %vm1589, %v1939, 0
      %v1962 = vsel %vm1589, %v1940, 0
      %v1965 = vsel %vm1589, %v1941, 0
      %v1968 = vsel %vm1589, %v1942, 0
      %v1971 = vsel %vm1589, %v1943, 0
      %v1974 = vsel %vm1614, %v1948, 0
      %1976 = vmatprep.subr.bf16.mxu0 0
      %1977 = vmatpush1.bf16.msra.mxu0 %v1974
      %1978 = vmatprep.subr.bf16.mxu0 0
      %1979 = vmatpush1.bf16.msra.mxu0 0
      %1980 = vmatprep.subr.bf16.mxu0 0
      %1981 = vmatpush1.bf16.msra.mxu0 0
      %1982 = vmatprep.subr.bf16.mxu0 0
      %1983 = vmatpush1.bf16.msra.mxu0 0
      %1984 = vmatprep.subr.bf16.mxu0 0
      %1985 = vmatpush1.bf16.msra.mxu0 0
      %1986 = vmatprep.subr.bf16.mxu0 0
      %1987 = vmatpush1.bf16.msra.mxu0 0
      %1988 = vmatprep.subr.bf16.mxu0 0
      %1989 = vmatpush1.bf16.msra.mxu0 0
      %1990 = vmatprep.subr.bf16.mxu0 0
      %1991 = vmatpush1.bf16.msra.mxu0 0
      %1992 = vmatprep.subr.bf16.mxu0 0
      %1993 = vmatpush1.bf16.msra.mxu0 0
      %1994 = vmatprep.subr.bf16.mxu0 0
      %1995 = vmatpush1.bf16.msra.mxu0 0
      %1996 = vmatprep.subr.bf16.mxu0 0
      %1997 = vmatpush1.bf16.msra.mxu0 0
      %1998 = vmatprep.subr.bf16.mxu0 0
      %1999 = vmatpush1.bf16.msra.mxu0 0
      %2000 = vmatprep.subr.bf16.mxu0 0
      %2001 = vmatpush1.bf16.msra.mxu0 0
      %2002 = vmatprep.subr.bf16.mxu0 0
      %2003 = vmatpush1.bf16.msra.mxu0 0
      %2004 = vmatprep.subr.bf16.mxu0 0
      %2005 = vmatpush1.bf16.msra.mxu0 0
      %2006 = vmatprep.subr.bf16.mxu0 0
      %2007 = vmatpush1.bf16.msra.mxu0 0
      %2008 = vmatprep.mubr.bf16.mxu0 0
      %2009 = vmatmul.mubr.bf16.gmra.mrb[0].mxu0 %v1950
      %v2010 = vpop.f32.mrb[0].mxu0
      %v2011 = vadd.f32 0.0, %v2010
      %v2012 = vpop.f32.mrb[0].mxu0
      %v2013 = vpop.f32.mrb[0].mxu0
      %v2014 = vadd.f32 0.0, %v2013
      %v2015 = vpop.f32.mrb[0].mxu0
      %2016 = vmatprep.mubr.bf16.mxu0 0
      %2017 = vmatmul.mubr.bf16.gmra.mrb[0].mxu0 %v1953
      %v2018 = vpop.f32.mrb[0].mxu0
      %v2019 = vadd.f32 0.0, %v2018
      %v2020 = vpop.f32.mrb[0].mxu0
      %v2021 = vpop.f32.mrb[0].mxu0
      %v2022 = vadd.f32 0.0, %v2021
      %v2023 = vpop.f32.mrb[0].mxu0
      %2024 = vmatprep.mubr.bf16.mxu0 0
      %2025 = vmatmul.mubr.bf16.gmra.mrb[0].mxu0 %v1956
      %v2026 = vpop.f32.mrb[0].mxu0
      %v2027 = vadd.f32 0.0, %v2026
      %v2028 = vpop.f32.mrb[0].mxu0
      %v2029 = vpop.f32.mrb[0].mxu0
      %v2030 = vadd.f32 0.0, %v2029
      %v2031 = vpop.f32.mrb[0].mxu0
      %2032 = vmatprep.mubr.bf16.mxu0 0
      %2033 = vmatmul.mubr.bf16.gmra.mrb[0].mxu0 %v1959
      %v2034 = vpop.f32.mrb[0].mxu0
      %v2035 = vadd.f32 0.0, %v2034
      %v2036 = vpop.f32.mrb[0].mxu0
      %v2037 = vpop.f32.mrb[0].mxu0
      %v2038 = vadd.f32 0.0, %v2037
      %v2039 = vpop.f32.mrb[0].mxu0
      %2040 = vmatprep.mubr.bf16.mxu0 0
      %2041 = vmatmul.mubr.bf16.gmra.mrb[0].mxu0 %v1962
      %v2042 = vpop.f32.mrb[0].mxu0
      %v2043 = vadd.f32 0.0, %v2042
      %v2044 = vpop.f32.mrb[0].mxu0
      %v2045 = vpop.f32.mrb[0].mxu0
      %v2046 = vadd.f32 0.0, %v2045
      %v2047 = vpop.f32.mrb[0].mxu0
      %2048 = vmatprep.mubr.bf16.mxu0 0
      %2049 = vmatmul.mubr.bf16.gmra.mrb[0].mxu0 %v1965
      %v2050 = vpop.f32.mrb[0].mxu0
      %v2051 = vadd.f32 0.0, %v2050
      %v2052 = vpop.f32.mrb[0].mxu0
      %v2053 = vpop.f32.mrb[0].mxu0
      %v2054 = vadd.f32 0.0, %v2053
      %v2055 = vpop.f32.mrb[0].mxu0
      %2056 = vmatprep.mubr.bf16.mxu0 0
      %2057 = vmatmul.mubr.bf16.gmra.mrb[0].mxu0 %v1968
      %v2058 = vpop.f32.mrb[0].mxu0
      %v2059 = vadd.f32 0.0, %v2058
      %v2060 = vpop.f32.mrb[0].mxu0
      %v2061 = vpop.f32.mrb[0].mxu0
      %v2062 = vadd.f32 0.0, %v2061
      %v2063 = vpop.f32.mrb[0].mxu0
      %2064 = vmatprep.mubr.bf16.mxu0 0
      %2065 = vmatmul.mubr.bf16.gmra.mrb[0].mxu0 %v1971
      %v2066 = vpop.f32.mrb[0].mxu0
      %v2067 = vadd.f32 0.0, %v2066
      %v2068 = vpop.f32.mrb[0].mxu0
      %v2069 = vpop.f32.mrb[0].mxu0
      %v2070 = vadd.f32 0.0, %v2069
      %v2071 = vpop.f32.mrb[0].mxu0
      %2072 = vdwg.mxu0
      %v2073 = vadd.f32 %v1822, %v2011
      %v2074 = vadd.f32 %v1825, %v2014
      %v2075 = vadd.f32 %v1830, %v2019
      %v2076 = vadd.f32 %v1833, %v2022
      %v2077 = vadd.f32 %v1838, %v2027
      %v2078 = vadd.f32 %v1841, %v2030
      %v2079 = vadd.f32 %v1846, %v2035
      %v2080 = vadd.f32 %v1849, %v2038
      %v2081 = vadd.f32 %v1854, %v2043
      %v2082 = vadd.f32 %v1857, %v2046
      %v2083 = vadd.f32 %v1862, %v2051
      %v2084 = vadd.f32 %v1865, %v2054
      %v2085 = vadd.f32 %v1870, %v2059
      %v2086 = vadd.f32 %v1873, %v2062
      %v2087 = vadd.f32 %v1878, %v2067
      %v2088 = vadd.f32 %v1881, %v2070
      %v2089 = vld [vmem:[%s4] sm:$0x1]
      %v2091 = vlaneseq
      %v2092 = vshrl.u32 %v2091, 7
      %v2093 = vsub.s32 0, %v2092
      %v2094 = vrot.slane %v2089, %v2093
      %v2096 = vadd.f32 %v2073, %v2094
      %v2097 = vadd.f32 %v2074, %v2094
      %v2098 = vadd.f32 %v2075, %v2094
      %v2099 = vadd.f32 %v2076, %v2094
      %v2100 = vadd.f32 %v2077, %v2094
      %v2101 = vadd.f32 %v2078, %v2094
      %v2102 = vadd.f32 %v2079, %v2094
      %v2103 = vadd.f32 %v2080, %v2094
      %v2104 = vadd.f32 %v2081, %v2094
      %v2105 = vadd.f32 %v2082, %v2094
      %v2106 = vadd.f32 %v2083, %v2094
      %v2107 = vadd.f32 %v2084, %v2094
      %v2108 = vadd.f32 %v2085, %v2094
      %v2109 = vadd.f32 %v2086, %v2094
      %v2110 = vadd.f32 %v2087, %v2094
      %v2111 = vadd.f32 %v2088, %v2094
      %v2112 = vpack.c.bf16 %v2097, %v2096
      %v2113 = vpack.c.bf16 %v2099, %v2098
      %v2114 = vpack.c.bf16 %v2101, %v2100
      %v2115 = vpack.c.bf16 %v2103, %v2102
      %v2116 = vpack.c.bf16 %v2105, %v2104
      %v2117 = vpack.c.bf16 %v2107, %v2106
      %v2118 = vpack.c.bf16 %v2109, %v2108
      %v2119 = vpack.c.bf16 %v2111, %v2110
      %v2128 = vunpack.c.l.b16 %v2112
      %v2129 = vunpack.c.h.b16 %v2112
      %v2130 = vunpack.c.l.b16 %v2113
      %v2131 = vunpack.c.h.b16 %v2113
      %v2132 = vunpack.c.l.b16 %v2114
      %v2133 = vunpack.c.h.b16 %v2114
      %v2134 = vunpack.c.l.b16 %v2115
      %v2135 = vunpack.c.h.b16 %v2115
      %v2136 = vunpack.c.l.b16 %v2116
      %v2137 = vunpack.c.h.b16 %v2116
      %v2138 = vunpack.c.l.b16 %v2117
      %v2139 = vunpack.c.h.b16 %v2117
      %v2140 = vunpack.c.l.b16 %v2118
      %v2141 = vunpack.c.h.b16 %v2118
      %v2142 = vunpack.c.l.b16 %v2119
      %v2143 = vunpack.c.h.b16 %v2119
      %v2144 = vpack.c.b16 %v2128, %v2128
      %v2145 = vpack.c.b16 %v2129, %v2129
      %v2146 = vpack.c.b16 %v2130, %v2130
      %v2147 = vpack.c.b16 %v2131, %v2131
      %v2148 = vpack.c.b16 %v2132, %v2132
      %v2149 = vpack.c.b16 %v2133, %v2133
      %v2150 = vpack.c.b16 %v2134, %v2134
      %v2151 = vpack.c.b16 %v2135, %v2135
      %v2152 = vpack.c.b16 %v2136, %v2136
      %v2153 = vpack.c.b16 %v2137, %v2137
      %v2154 = vpack.c.b16 %v2138, %v2138
      %v2155 = vpack.c.b16 %v2139, %v2139
      %v2156 = vpack.c.b16 %v2140, %v2140
      %v2157 = vpack.c.b16 %v2141, %v2141
      %v2158 = vpack.c.b16 %v2142, %v2142
      %v2159 = vpack.c.b16 %v2143, %v2143
      %vm2176 = vcmask 109568
      %2177 = vst.msk [vmem:[%s296] sm:$0xf] %vm2176, %v2144
      %2178 = vst.msk [vmem:[%s296 + $0x4] sm:$0xf] %vm2176, %v2145
      %2179 = vst.msk [vmem:[%s296 + $0x8] sm:$0xf] %vm2176, %v2146
      %2180 = vst.msk [vmem:[%s296 + $0xc] sm:$0xf] %vm2176, %v2147
      %2181 = vst.msk [vmem:[%s296 + $0x10] sm:$0xf] %vm2176, %v2148
      %2182 = vst.msk [vmem:[%s296 + $0x14] sm:$0xf] %vm2176, %v2149
      %2183 = vst.msk [vmem:[%s296 + $0x18] sm:$0xf] %vm2176, %v2150
      %2184 = vst.msk [vmem:[%s296 + $0x1c] sm:$0xf] %vm2176, %v2151
      %2185 = vst.msk [vmem:[%s296 + $0x20] sm:$0xf] %vm2176, %v2152
      %2186 = vst.msk [vmem:[%s296 + $0x24] sm:$0xf] %vm2176, %v2153
      %2187 = vst.msk [vmem:[%s296 + $0x28] sm:$0xf] %vm2176, %v2154
      %2188 = vst.msk [vmem:[%s296 + $0x2c] sm:$0xf] %vm2176, %v2155
      %2189 = vst.msk [vmem:[%s296 + $0x30] sm:$0xf] %vm2176, %v2156
      %2190 = vst.msk [vmem:[%s296 + $0x34] sm:$0xf] %vm2176, %v2157
      %2191 = vst.msk [vmem:[%s296 + $0x38] sm:$0xf] %vm2176, %v2158
      %2192 = vst.msk [vmem:[%s296 + $0x3c] sm:$0xf] %vm2176, %v2159
      %vm2193 = vcmask 113664
      %v2194 = vsel %vm2193, %v2096, 0.0
      %v2195 = vsel %vm2193, %v2097, 0.0
      %v2196 = vadd.f32 %v2194, %v2195
      %v2197 = vsel %vm2193, %v2098, 0.0
      %v2198 = vadd.f32 %v2196, %v2197
      %v2199 = vsel %vm2193, %v2099, 0.0
      %v2200 = vadd.f32 %v2198, %v2199
      %v2201 = vsel %vm2193, %v2100, 0.0
      %v2202 = vadd.f32 %v2200, %v2201
      %v2203 = vsel %vm2193, %v2101, 0.0
      %v2204 = vadd.f32 %v2202, %v2203
      %v2205 = vsel %vm2193, %v2102, 0.0
      %v2206 = vadd.f32 %v2204, %v2205
      %v2207 = vsel %vm2193, %v2103, 0.0
      %v2208 = vadd.f32 %v2206, %v2207
      %v2209 = vsel %vm2193, %v2104, 0.0
      %v2210 = vadd.f32 %v2208, %v2209
      %v2211 = vsel %vm2193, %v2105, 0.0
      %v2212 = vadd.f32 %v2210, %v2211
      %v2213 = vsel %vm2193, %v2106, 0.0
      %v2214 = vadd.f32 %v2212, %v2213
      %v2215 = vsel %vm2193, %v2107, 0.0
      %v2216 = vadd.f32 %v2214, %v2215
      %v2217 = vsel %vm2193, %v2108, 0.0
      %v2218 = vadd.f32 %v2216, %v2217
      %v2219 = vsel %vm2193, %v2109, 0.0
      %v2220 = vadd.f32 %v2218, %v2219
      %v2221 = vsel %vm2193, %v2110, 0.0
      %v2222 = vadd.f32 %v2220, %v2221
      %v2223 = vsel %vm2193, %v2111, 0.0
      %v2224 = vadd.f32 %v2222, %v2223
      %v2225 = vrot.slane %v2224, 4
      %v2226 = vadd.f32 %v2224, %v2225
      %v2227 = vrot.slane %v2226, 2
      %v2228 = vadd.f32 %v2226, %v2227
      %v2229 = vrot.slane %v2228, 1
      %v2230 = vadd.f32 %v2228, %v2229
      %vm2231 = vcmask 106496
      %2232 = vst.msk [vmem:[%s300] sm:$0x1] %vm2231, %v2230
      %v2233 = vmul.f32 %v2096, %v2096
      %v2234 = vmul.f32 %v2097, %v2097
      %v2235 = vmul.f32 %v2098, %v2098
      %v2236 = vmul.f32 %v2099, %v2099
      %v2237 = vmul.f32 %v2100, %v2100
      %v2238 = vmul.f32 %v2101, %v2101
      %v2239 = vmul.f32 %v2102, %v2102
      %v2240 = vmul.f32 %v2103, %v2103
      %v2241 = vmul.f32 %v2104, %v2104
      %v2242 = vmul.f32 %v2105, %v2105
      %v2243 = vmul.f32 %v2106, %v2106
      %v2244 = vmul.f32 %v2107, %v2107
      %v2245 = vmul.f32 %v2108, %v2108
      %v2246 = vmul.f32 %v2109, %v2109
      %v2247 = vmul.f32 %v2110, %v2110
      %v2248 = vmul.f32 %v2111, %v2111
      %v2249 = vsel %vm2193, %v2233, 0.0
      %v2250 = vsel %vm2193, %v2234, 0.0
      %v2251 = vadd.f32 %v2249, %v2250
      %v2252 = vsel %vm2193, %v2235, 0.0
      %v2253 = vadd.f32 %v2251, %v2252
      %v2254 = vsel %vm2193, %v2236, 0.0
      %v2255 = vadd.f32 %v2253, %v2254
      %v2256 = vsel %vm2193, %v2237, 0.0
      %v2257 = vadd.f32 %v2255, %v2256
      %v2258 = vsel %vm2193, %v2238, 0.0
      %v2259 = vadd.f32 %v2257, %v2258
      %v2260 = vsel %vm2193, %v2239, 0.0
      %v2261 = vadd.f32 %v2259, %v2260
      %v2262 = vsel %vm2193, %v2240, 0.0
      %v2263 = vadd.f32 %v2261, %v2262
      %v2264 = vsel %vm2193, %v2241, 0.0
      %v2265 = vadd.f32 %v2263, %v2264
      %v2266 = vsel %vm2193, %v2242, 0.0
      %v2267 = vadd.f32 %v2265, %v2266
      %v2268 = vsel %vm2193, %v2243, 0.0
      %v2269 = vadd.f32 %v2267, %v2268
      %v2270 = vsel %vm2193, %v2244, 0.0
      %v2271 = vadd.f32 %v2269, %v2270
      %v2272 = vsel %vm2193, %v2245, 0.0
      %v2273 = vadd.f32 %v2271, %v2272
      %v2274 = vsel %vm2193, %v2246, 0.0
      %v2275 = vadd.f32 %v2273, %v2274
      %v2276 = vsel %vm2193, %v2247, 0.0
      %v2277 = vadd.f32 %v2275, %v2276
      %v2278 = vsel %vm2193, %v2248, 0.0
      %v2279 = vadd.f32 %v2277, %v2278
      %v2280 = vrot.slane %v2279, 4
      %v2281 = vadd.f32 %v2279, %v2280
      %v2282 = vrot.slane %v2281, 2
      %v2283 = vadd.f32 %v2281, %v2282
      %v2284 = vrot.slane %v2283, 1
      %v2285 = vadd.f32 %v2283, %v2284
      %2286 = vst.msk [vmem:[%s303] sm:$0x1] %vm2231, %v2285
      %s2287 = smul.u32 2, %s19
      %p2288 = scmp.lt.s32.totalorder %s2287, 7
      %s2289 = scalar_select %p2288, %s2287, 7
      %s2290 = smul.addr %s2289, 8
      %s2291 = smul.addr %s2290, 4
      %s2292 = scalar_lea.vmem %s5, %s2291
      %p2293 = scmp.lt.s32.totalorder %s19, 3
      %s2294 = scalar_select %p2293, %s19, 3
      %s2295 = scalar_lea.vmem %s6, %s2294
      %p2296 = scmp.lt.s32.totalorder %s19, 3
      %s2297 = scalar_select %p2296, %s19, 3
      %s2298 = scalar_lea.vmem %s7, %s2297
      // Predicated region
      $region41: #{residual_block_forward.5} parent=39 // pred_check
        %p2299 = pneg %p147
      $region42: #{residual_block_forward.5} parent=39 // pred_check_branch
        %2301 = sbr.rel (%p2299) target = $region44
      $region43: #{residual_block_forward.5} parent=39 // pred_region
        %s2302 = smul.u32 2, %s19
      $region44: #{residual_block_forward.5} parent=39 // pred_fallthru
        _
      // Predicated region
      $region45: #{residual_block_forward.5} parent=39 // pred_check
        %p2303 = pneg %p173
      $region46: #{residual_block_forward.5} parent=39 // pred_check_branch
        %2305 = sbr.rel (%p2303) target = $region48
      $region47: #{residual_block_forward.5} parent=39 // pred_region
        _
      $region48: #{residual_block_forward.5} parent=39 // pred_fallthru
        _
      // Predicated region
      $region49: #{residual_block_forward.5} parent=39 // pred_check
        %p2306 = pneg %p199
      $region50: #{residual_block_forward.5} parent=39 // pred_check_branch
        %2308 = sbr.rel (%p2306) target = $region52
      $region51: #{residual_block_forward.5} parent=39 // pred_region
        _
      $region52: #{residual_block_forward.5} parent=39 // pred_fallthru
        _
    $region40: #{residual_block_forward.5} parent=5 // pred_fallthru
      _
    %p2309 = scmp.le.s32.totalorder 2, %s14
    // Predicated region
    $region53: #{residual_block_forward.5} parent=5 // pred_check
      %p2310 = pneg %p2309
    $region54: #{residual_block_forward.5} parent=5 // pred_check_branch
      %2312 = sbr.rel (%p2310) target = $region56
    $region55: #{residual_block_forward.5} parent=5 // pred_region
      %s2313 = ssub.s32 %s14, 2
      // Predicated region
      $region57: #{residual_block_forward.5} parent=55 // pred_check
        %p2314 = pneg %p153
      $region58: #{residual_block_forward.5} parent=55 // pred_check_branch
        %2316 = sbr.rel (%p2314) target = $region60
      $region59: #{residual_block_forward.5} parent=55 // pred_region
        %s2317 = smul.u32 2, %s20
        %p2318 = scmp.lt.s32.totalorder %s2317, 7
        %s2319 = scalar_select %p2318, %s2317, 7
        %s2320 = smul.addr %s2319, 8
        %s2321 = smul.addr %s2320, 4
        %s2322 = scalar_lea.vmem %s5, %s2321
      $region60: #{residual_block_forward.5} parent=55 // pred_fallthru
        _
      // Predicated region
      $region61: #{residual_block_forward.5} parent=55 // pred_check
        %p2323 = pneg %p179
      $region62: #{residual_block_forward.5} parent=55 // pred_check_branch
        %2325 = sbr.rel (%p2323) target = $region64
      $region63: #{residual_block_forward.5} parent=55 // pred_region
        %p2326 = scmp.lt.s32.totalorder %s20, 3
        %s2327 = scalar_select %p2326, %s20, 3
        %s2328 = scalar_lea.vmem %s6, %s2327
      $region64: #{residual_block_forward.5} parent=55 // pred_fallthru
        _
      // Predicated region
      $region65: #{residual_block_forward.5} parent=55 // pred_check
        %p2329 = pneg %p205
      $region66: #{residual_block_forward.5} parent=55 // pred_check_branch
        %2331 = sbr.rel (%p2329) target = $region68
      $region67: #{residual_block_forward.5} parent=55 // pred_region
        %p2332 = scmp.lt.s32.totalorder %s20, 3
        %s2333 = scalar_select %p2332, %s20, 3
        %s2334 = scalar_lea.vmem %s7, %s2333
      $region68: #{residual_block_forward.5} parent=55 // pred_fallthru
        _
    $region56: #{residual_block_forward.5} parent=5 // pred_fallthru
      _
  $region6: #{residual_block_forward.5} parent=0 // loop_footer
    %s18 = sadd.s32 1, %s14
  $region7: #{residual_block_forward.5} parent=0 // loop_footer_branch
    %13 = sbr.rel target = $region3
  $region8: #{residual_block_forward.5} parent=0 // loop_exit
    _

// kernel: residual_block_forward.9
$region0: #{residual_block_forward.9}
  #allocation0 [shape = 'u32[]', space=smem, size = 0x4, offset = 0x4, fixed_abs, tag = 'smem constant byte address 0x4 - core index']
  #allocation1 [shape = 'u32[144,128]{1,0:T(1,128)}', space=vmem, size = 0x12000, scoped, tag = 'internal scratch']
  %s0 = inlined_call_operand.vmem [shape: bf16[8,512], index: 0, kind: input, shape index: {}]
  %s1 = inlined_call_operand.vmem [shape: bf16[8,512], index: 1, kind: input, shape index: {}]
  %s2 = inlined_call_operand.vmem [shape: f32[1,512], index: 2, kind: input, shape index: {}]
  %s3 = inlined_call_operand.vmem [shape: f32[1,512], index: 3, kind: input, shape index: {}]
  %s4 = inlined_call_operand.vmem [shape: f32[1,512], index: 4, kind: input, shape index: {}]
  %s5 = inlined_call_operand.vmem [shape: f32[1,512], index: 5, kind: input, shape index: {}]
  %s6 = inlined_call_operand.vmem [shape: f32[8,512], index: 6, kind: output, shape index: {}]
  %s7 = sld [smem:[#allocation0]]
  $region34: #{residual_block_forward.9} parent=0
    _
  %s9 = ssub.s32 1, %s7
  %s10 = scalar_select 0, %s9, %s7
  // Predicated region
  $region2: #{residual_block_forward.9} parent=0 // pred_check
    _
  $region3: #{residual_block_forward.9} parent=0 // pred_check_branch
    %12 = sbr.rel (0) target = $region5
  $region4: #{residual_block_forward.9} parent=0 // pred_region
    _
  $region5: #{residual_block_forward.9} parent=0 // pred_fallthru
    _
  // Predicated region
  $region6: #{residual_block_forward.9} parent=0 // pred_check
    _
  $region7: #{residual_block_forward.9} parent=0 // pred_check_branch
    %14 = sbr.rel (0) target = $region9
  $region8: #{residual_block_forward.9} parent=0 // pred_region
    _
  $region9: #{residual_block_forward.9} parent=0 // pred_fallthru
    _
  // Predicated region
  $region10: #{residual_block_forward.9} parent=0 // pred_check
    _
  $region11: #{residual_block_forward.9} parent=0 // pred_check_branch
    %16 = sbr.rel (0) target = $region13
  $region12: #{residual_block_forward.9} parent=0 // pred_region
    _
  $region13: #{residual_block_forward.9} parent=0 // pred_fallthru
    _
  // Predicated region
  $region14: #{residual_block_forward.9} parent=0 // pred_check
    _
  $region15: #{residual_block_forward.9} parent=0 // pred_check_branch
    %18 = sbr.rel (0) target = $region17
  $region16: #{residual_block_forward.9} parent=0 // pred_region
    _
  $region17: #{residual_block_forward.9} parent=0 // pred_fallthru
    _
  // Predicated region
  $region18: #{residual_block_forward.9} parent=0 // pred_check
    _
  $region19: #{residual_block_forward.9} parent=0 // pred_check_branch
    %20 = sbr.rel (0) target = $region21
  $region20: #{residual_block_forward.9} parent=0 // pred_region
    _
  $region21: #{residual_block_forward.9} parent=0 // pred_fallthru
    _
  // Predicated region
  $region22: #{residual_block_forward.9} parent=0 // pred_check
    _
  $region23: #{residual_block_forward.9} parent=0 // pred_check_branch
    %22 = sbr.rel (0) target = $region25
  $region24: #{residual_block_forward.9} parent=0 // pred_region
    _
  $region25: #{residual_block_forward.9} parent=0 // pred_fallthru
    _
  %v23 = vld [vmem:[%s0] sm:$0xff]
  %v24 = vld [vmem:[%s0 + $0x8] sm:$0xff]
  %v25 = vunpack.c.l.bf16 %v23
  %v26 = vunpack.c.h.bf16 %v23
  %v27 = vunpack.c.l.bf16 %v24
  %v28 = vunpack.c.h.bf16 %v24
  %v29 = vld [vmem:[%s1] sm:$0xff]
  %v30 = vld [vmem:[%s1 + $0x8] sm:$0xff]
  %v31 = vunpack.c.l.bf16 %v29
  %v32 = vunpack.c.h.bf16 %v29
  %v33 = vunpack.c.l.bf16 %v30
  %v34 = vunpack.c.h.bf16 %v30
  %v35 = vld [vmem:[%s2] sm:$0xf]
  %v37 = vlaneseq
  %v38 = vshrl.u32 %v37, 7
  %v39 = vsub.s32 0, %v38
  %v40 = vrot.slane %v35, %v39
  %v41 = vlaneseq
  %v42 = vshrl.u32 %v41, 7
  %v43 = vsub.s32 1, %v42
  %v44 = vrot.slane %v35, %v43
  %v45 = vlaneseq
  %v46 = vshrl.u32 %v45, 7
  %v47 = vsub.s32 2, %v46
  %v48 = vrot.slane %v35, %v47
  %v49 = vlaneseq
  %v50 = vshrl.u32 %v49, 7
  %v51 = vsub.s32 3, %v50
  %v52 = vrot.slane %v35, %v51
  %v57 = vmul.f32 %v25, %v40
  %v58 = vmul.f32 %v26, %v44
  %v59 = vmul.f32 %v27, %v48
  %v60 = vmul.f32 %v28, %v52
  %v61 = vld [vmem:[%s3] sm:$0xf]
  %v63 = vlaneseq
  %v64 = vshrl.u32 %v63, 7
  %v65 = vsub.s32 0, %v64
  %v66 = vrot.slane %v61, %v65
  %v67 = vlaneseq
  %v68 = vshrl.u32 %v67, 7
  %v69 = vsub.s32 1, %v68
  %v70 = vrot.slane %v61, %v69
  %v71 = vlaneseq
  %v72 = vshrl.u32 %v71, 7
  %v73 = vsub.s32 2, %v72
  %v74 = vrot.slane %v61, %v73
  %v75 = vlaneseq
  %v76 = vshrl.u32 %v75, 7
  %v77 = vsub.s32 3, %v76
  %v78 = vrot.slane %v61, %v77
  %v83 = vadd.f32 %v57, %v66
  %v84 = vadd.f32 %v58, %v70
  %v85 = vadd.f32 %v59, %v74
  %v86 = vadd.f32 %v60, %v78
  %v87 = vmax.f32 %v83, 0.0
  %v88 = vmax.f32 %v84, 0.0
  %v89 = vmax.f32 %v85, 0.0
  %v90 = vmax.f32 %v86, 0.0
  %v91 = vld [vmem:[%s4] sm:$0xf]
  %v93 = vlaneseq
  %v94 = vshrl.u32 %v93, 7
  %v95 = vsub.s32 0, %v94
  %v96 = vrot.slane %v91, %v95
  %v97 = vlaneseq
  %v98 = vshrl.u32 %v97, 7
  %v99 = vsub.s32 1, %v98
  %v100 = vrot.slane %v91, %v99
  %v101 = vlaneseq
  %v102 = vshrl.u32 %v101, 7
  %v103 = vsub.s32 2, %v102
  %v104 = vrot.slane %v91, %v103
  %v105 = vlaneseq
  %v106 = vshrl.u32 %v105, 7
  %v107 = vsub.s32 3, %v106
  %v108 = vrot.slane %v91, %v107
  %v113 = vmul.f32 %v31, %v96
  %v114 = vmul.f32 %v32, %v100
  %v115 = vmul.f32 %v33, %v104
  %v116 = vmul.f32 %v34, %v108
  %v117 = vld [vmem:[%s5] sm:$0xf]
  %v119 = vlaneseq
  %v120 = vshrl.u32 %v119, 7
  %v121 = vsub.s32 0, %v120
  %v122 = vrot.slane %v117, %v121
  %v123 = vlaneseq
  %v124 = vshrl.u32 %v123, 7
  %v125 = vsub.s32 1, %v124
  %v126 = vrot.slane %v117, %v125
  %v127 = vlaneseq
  %v128 = vshrl.u32 %v127, 7
  %v129 = vsub.s32 2, %v128
  %v130 = vrot.slane %v117, %v129
  %v131 = vlaneseq
  %v132 = vshrl.u32 %v131, 7
  %v133 = vsub.s32 3, %v132
  %v134 = vrot.slane %v117, %v133
  %v139 = vadd.f32 %v113, %v122
  %v140 = vadd.f32 %v114, %v126
  %v141 = vadd.f32 %v115, %v130
  %v142 = vadd.f32 %v116, %v134
  %v143 = vadd.f32 %v139, %v87
  %v144 = vadd.f32 %v140, %v88
  %v145 = vadd.f32 %v141, %v89
  %v146 = vadd.f32 %v142, %v90
  %v147 = vmax.f32 %v143, 0.0
  %v148 = vmax.f32 %v144, 0.0
  %v149 = vmax.f32 %v145, 0.0
  %v150 = vmax.f32 %v146, 0.0
  %151 = vst [vmem:[%s6] sm:$0xff] %v147
  %152 = vst [vmem:[%s6 + $0x8] sm:$0xff] %v148
  %153 = vst [vmem:[%s6 + $0x10] sm:$0xff] %v149
  %154 = vst [vmem:[%s6 + $0x18] sm:$0xff] %v150
  // Predicated region
  $region26: #{residual_block_forward.9} parent=0 // pred_check
    _
  $region27: #{residual_block_forward.9} parent=0 // pred_check_branch
    %156 = sbr.rel (0) target = $region29
  $region28: #{residual_block_forward.9} parent=0 // pred_region
    _
  $region29: #{residual_block_forward.9} parent=0 // pred_fallthru
    _
  // Predicated region
  $region30: #{residual_block_forward.9} parent=0 // pred_check
    _
  $region31: #{residual_block_forward.9} parent=0 // pred_check_branch
    %158 = sbr.rel (0) target = $region33
  $region32: #{residual_block_forward.9} parent=0 // pred_region
    _
  $region33: #{residual_block_forward.9} parent=0 // pred_fallthru
    _

// kernel: residual_block_forward.8
$region0: #{residual_block_forward.8}
  #allocation0 [shape = 'u32[]', space=smem, size = 0x4, offset = 0x4, fixed_abs, tag = 'smem constant byte address 0x4 - core index']
  #allocation1 [shape = 'u32[144,128]{1,0:T(1,128)}', space=vmem, size = 0x12000, scoped, tag = 'internal scratch']
  #allocation2 [shape = 'bf16[6,32,18]{2,1,0:T(16,128)(2,1)}', space=vmem, size = 0xc000, scoped, tag = 'scratch operand']
  %s0 = inlined_call_operand.vmem [shape: bf16[2,4,64,18], index: 0, kind: input, shape index: {}]
  %s1 = inlined_call_operand.vmem [shape: f32[1,18], index: 1, kind: input, shape index: {}]
  %s2 = inlined_call_operand.vmem [shape: f32[1,18], index: 2, kind: input, shape index: {}]
  %s3 = inlined_call_operand.vmem [shape: bf16[3,18,8], index: 3, kind: input, shape index: {}]
  %s4 = inlined_call_operand.vmem [shape: f32[1,8], index: 4, kind: input, shape index: {}]
  %s5 = inlined_call_operand.vmem [shape: bf16[2,4,64,8], index: 5, kind: output, shape index: {0}]
  %s6 = inlined_call_operand.vmem [shape: f32[4,1,8], index: 6, kind: output, shape index: {1}]
  %s7 = inlined_call_operand.vmem [shape: f32[4,1,8], index: 7, kind: output, shape index: {2}]
  %8 = xla_tuple %s5, %s6, %s7
  %s9 = sld [smem:[#allocation0]]
  $region147: #{residual_block_forward.8} parent=0
    _
  %s11 = ssub.s32 1, %s9
  %s12 = scalar_select 0, %s11, %s9
  $region1: #{residual_block_forward.8} parent=0
    #allocation3 [shape = 'u8[65536]{0}', space=vmem, size = 0x10000, scoped, tag = 'input window, operand 0']
    #allocation4 [shape = 'u8[65536]{0}', space=vmem, size = 0x10000, scoped, tag = 'output window, operand 0']
    loop: start=0, step=1, limit=6
    $region2: #{residual_block_forward.8} parent=1 // loop_pre_header
      _
    $region3: #{residual_block_forward.8} parent=1 // loop_header
      %s14 = sphi 0, %s18
      %p15 = scmp.ge.s32.totalorder %s14, 6
      %s21 = sphi 0, %s33
      %s22 = sphi 0, %s29
      %s23 = sphi 0, %s21
      %s24 = sphi 0, %s22
      %s25 = sphi 0, %s23
      %s26 = sphi 0, %s24
      %s38 = sphi 0, %s40
      %s41 = sphi 0, %s38
      %s42 = sphi 0, %s41
      %s58 = sphi 0, %s42
      %s62 = sphi 0, %s62
      %s64 = sphi 0, %s62
      %s65 = sphi 0, %s64
      %s79 = sphi 0, %s65
      %s83 = sphi 0, %s83
      %s85 = sphi 0, %s83
      %s86 = sphi 0, %s85
      %s100 = sphi 0, %s86
      %s104 = sphi 0, %s104
      %s106 = sphi 0, %s104
      %s107 = sphi 0, %s106
      %s121 = sphi 0, %s107
      %s125 = sphi 0, %s125
      %s127 = sphi 0, %s125
      %s128 = sphi 0, %s127
      %s142 = sphi 0, %s128
      %s150 = sphi 0, %s152
      %s153 = sphi 0, %s150
      %s154 = sphi 0, %s153
      %s170 = sphi 0, %s154
      %s180 = sphi 0, %s182
      %s183 = sphi 0, %s180
      %s184 = sphi 0, %s183
      %s200 = sphi 0, %s184
      %s210 = sphi 0, %s212
      %s213 = sphi 0, %s210
      %s214 = sphi 0, %s213
      %s230 = sphi 0, %s214
    $region4: #{residual_block_forward.8} parent=1 // loop_header_branch
      %17 = sbr.rel (%p15) target = $region8
    $region5: #{residual_block_forward.8} parent=1 // loop_body
      %s19 = ssub.s32 %s14, 1
      %s20 = ssub.s32 %s14, 2
      %s27 = sadd.s32 1, %s22
      %p28 = scmp.ge.s32.totalorder %s27, 2
      %s29 = scalar_select %p28, 0, %s27
      %s30 = sadd.s32 1, %s21
      %s31 = scalar_select %p28, %s30, %s21
      %p32 = scmp.ge.s32.totalorder %s31, 2
      %s33 = scalar_select %p32, 0, %s31
      %s34 = ssub.s32 %s21, %s33
      %s35 = ssub.s32 %s22, %s29
      %s36 = sor.u32 %s34, %s35
      %p37 = scmp.eq.s32.totalorder %s36, 0
      %s39 = sadd.s32 %s38, 1
      %s40 = scalar_select %p37, %s38, %s39
      %p43 = pneg %p37
      %p44 = scmp.eq.s32.totalorder %s14, 3
      %p45 = por %p43, %p44
      %p46 = scmp.ne.s32.totalorder %s38, %s41
      %p47 = scmp.eq.s32.totalorder %s14, 0
      %p48 = por %p46, %p47
      %p49 = scmp.ne.s32.totalorder %s38, %s41
      %p50 = scmp.eq.s32.totalorder %s19, 3
      %p51 = por %p49, %p50
      %p52 = scmp.ne.s32.totalorder %s41, %s42
      %p53 = scmp.eq.s32.totalorder %s19, 0
      %p54 = por %p52, %p53
      %p55 = scmp.ne.s32.totalorder %s41, %s42
      %p56 = scmp.eq.s32.totalorder %s20, 3
      %p57 = por %p55, %p56
      %p59 = scmp.ne.s32.totalorder %s42, %s58
      %p60 = scmp.eq.s32.totalorder %s20, 0
      %p61 = por %p59, %p60
      %s63 = sadd.s32 %s62, 1
      %p66 = scmp.eq.s32.totalorder %s14, 3
      %p67 = scmp.ne.s32.totalorder %s62, %s64
      %p68 = scmp.eq.s32.totalorder %s14, 0
      %p69 = por %p67, %p68
      %p70 = scmp.ne.s32.totalorder %s62, %s64
      %p71 = scmp.eq.s32.totalorder %s19, 3
      %p72 = por %p70, %p71
      %p73 = scmp.ne.s32.totalorder %s64, %s65
      %p74 = scmp.eq.s32.totalorder %s19, 0
      %p75 = por %p73, %p74
      %p76 = scmp.ne.s32.totalorder %s64, %s65
      %p77 = scmp.eq.s32.totalorder %s20, 3
      %p78 = por %p76, %p77
      %p80 = scmp.ne.s32.totalorder %s65, %s79
      %p81 = scmp.eq.s32.totalorder %s20, 0
      %p82 = por %p80, %p81
      %s84 = sadd.s32 %s83, 1
      %p87 = scmp.eq.s32.totalorder %s14, 3
      %p88 = scmp.ne.s32.totalorder %s83, %s85
      %p89 = scmp.eq.s32.totalorder %s14, 0
      %p90 = por %p88, %p89
      %p91 = scmp.ne.s32.totalorder %s83, %s85
      %p92 = scmp.eq.s32.totalorder %s19, 3
      %p93 = por %p91, %p92
      %p94 = scmp.ne.s32.totalorder %s85, %s86
      %p95 = scmp.eq.s32.totalorder %s19, 0
      %p96 = por %p94, %p95
      %p97 = scmp.ne.s32.totalorder %s85, %s86
      %p98 = scmp.eq.s32.totalorder %s20, 3
      %p99 = por %p97, %p98
      %p101 = scmp.ne.s32.totalorder %s86, %s100
      %p102 = scmp.eq.s32.totalorder %s20, 0
      %p103 = por %p101, %p102
      %s105 = sadd.s32 %s104, 1
      %p108 = scmp.eq.s32.totalorder %s14, 3
      %p109 = scmp.ne.s32.totalorder %s104, %s106
      %p110 = scmp.eq.s32.totalorder %s14, 0
      %p111 = por %p109, %p110
      %p112 = scmp.ne.s32.totalorder %s104, %s106
      %p113 = scmp.eq.s32.totalorder %s19, 3
      %p114 = por %p112, %p113
      %p115 = scmp.ne.s32.totalorder %s106, %s107
      %p116 = scmp.eq.s32.totalorder %s19, 0
      %p117 = por %p115, %p116
      %p118 = scmp.ne.s32.totalorder %s106, %s107
      %p119 = scmp.eq.s32.totalorder %s20, 3
      %p120 = por %p118, %p119
      %p122 = scmp.ne.s32.totalorder %s107, %s121
      %p123 = scmp.eq.s32.totalorder %s20, 0
      %p124 = por %p122, %p123
      %s126 = sadd.s32 %s125, 1
      %p129 = scmp.eq.s32.totalorder %s14, 3
      %p130 = scmp.ne.s32.totalorder %s125, %s127
      %p131 = scmp.eq.s32.totalorder %s14, 0
      %p132 = por %p130, %p131
      %p133 = scmp.ne.s32.totalorder %s125, %s127
      %p134 = scmp.eq.s32.totalorder %s19, 3
      %p135 = por %p133, %p134
      %p136 = scmp.ne.s32.totalorder %s127, %s128
      %p137 = scmp.eq.s32.totalorder %s19, 0
      %p138 = por %p136, %p137
      %p139 = scmp.ne.s32.totalorder %s127, %s128
      %p140 = scmp.eq.s32.totalorder %s20, 3
      %p141 = por %p139, %p140
      %p143 = scmp.ne.s32.totalorder %s128, %s142
      %p144 = scmp.eq.s32.totalorder %s20, 0
      %p145 = por %p143, %p144
      %s146 = ssub.s32 %s21, %s33
      %s147 = ssub.s32 %s22, %s29
      %s148 = sor.u32 %s146, %s147
      %p149 = scmp.eq.s32.totalorder %s148, 0
      %s151 = sadd.s32 %s150, 1
      %s152 = scalar_select %p149, %s150, %s151
      %p155 = pneg %p149
      %p156 = scmp.eq.s32.totalorder %s14, 3
      %p157 = por %p155, %p156
      %p158 = scmp.ne.s32.totalorder %s150, %s153
      %p159 = scmp.eq.s32.totalorder %s14, 0
      %p160 = por %p158, %p159
      %p161 = scmp.ne.s32.totalorder %s150, %s153
      %p162 = scmp.eq.s32.totalorder %s19, 3
      %p163 = por %p161, %p162
      %p164 = scmp.ne.s32.totalorder %s153, %s154
      %p165 = scmp.eq.s32.totalorder %s19, 0
      %p166 = por %p164, %p165
      %p167 = scmp.ne.s32.totalorder %s153, %s154
      %p168 = scmp.eq.s32.totalorder %s20, 3
      %p169 = por %p167, %p168
      %p171 = scmp.ne.s32.totalorder %s154, %s170
      %p172 = scmp.eq.s32.totalorder %s20, 0
      %p173 = por %p171, %p172
      %s174 = smul.u32 %s21, 2
      %s175 = sadd.s32 %s174, %s22
      %s176 = smul.u32 %s33, 2
      %s177 = sadd.s32 %s176, %s29
      %s178 = ssub.s32 %s175, %s177
      %p179 = scmp.eq.s32.totalorder %s178, 0
      %s181 = sadd.s32 %s180, 1
      %s182 = scalar_select %p179, %s180, %s181
      %p185 = pneg %p179
      %p186 = scmp.eq.s32.totalorder %s14, 3
      %p187 = por %p185, %p186
      %p188 = scmp.ne.s32.totalorder %s180, %s183
      %p189 = scmp.eq.s32.totalorder %s14, 0
      %p190 = por %p188, %p189
      %p191 = scmp.ne.s32.totalorder %s180, %s183
      %p192 = scmp.eq.s32.totalorder %s19, 3
      %p193 = por %p191, %p192
      %p194 = scmp.ne.s32.totalorder %s183, %s184
      %p195 = scmp.eq.s32.totalorder %s19, 0
      %p196 = por %p194, %p195
      %p197 = scmp.ne.s32.totalorder %s183, %s184
      %p198 = scmp.eq.s32.totalorder %s20, 3
      %p199 = por %p197, %p198
      %p201 = scmp.ne.s32.totalorder %s184, %s200
      %p202 = scmp.eq.s32.totalorder %s20, 0
      %p203 = por %p201, %p202
      %s204 = smul.u32 %s21, 2
      %s205 = sadd.s32 %s204, %s22
      %s206 = smul.u32 %s33, 2
      %s207 = sadd.s32 %s206, %s29
      %s208 = ssub.s32 %s205, %s207
      %p209 = scmp.eq.s32.totalorder %s208, 0
      %s211 = sadd.s32 %s210, 1
      %s212 = scalar_select %p209, %s210, %s211
      %p215 = pneg %p209
      %p216 = scmp.eq.s32.totalorder %s14, 3
      %p217 = por %p215, %p216
      %p218 = scmp.ne.s32.totalorder %s210, %s213
      %p219 = scmp.eq.s32.totalorder %s14, 0
      %p220 = por %p218, %p219
      %p221 = scmp.ne.s32.totalorder %s210, %s213
      %p222 = scmp.eq.s32.totalorder %s19, 3
      %p223 = por %p221, %p222
      %p224 = scmp.ne.s32.totalorder %s213, %s214
      %p225 = scmp.eq.s32.totalorder %s19, 0
      %p226 = por %p224, %p225
      %p227 = scmp.ne.s32.totalorder %s213, %s214
      %p228 = scmp.eq.s32.totalorder %s20, 3
      %p229 = por %p227, %p228
      %p231 = scmp.ne.s32.totalorder %s214, %s230
      %p232 = scmp.eq.s32.totalorder %s20, 0
      %p233 = por %p231, %p232
      %p234 = scmp.le.s32.totalorder 1, %s14
      %p235 = scmp.lt.s32.totalorder %s14, 5
      %p236 = pnand %p234, %p235
      %p237 = pneg %p236
      // Predicated region
      $region9: #{residual_block_forward.8} parent=5 // pred_check
        _
      $region10: #{residual_block_forward.8} parent=5 // pred_check_branch
        %239 = sbr.rel (%p236) target = $region12
      $region11: #{residual_block_forward.8} parent=5 // pred_region
        %s240 = ssub.s32 %s14, 1
        // Predicated region
        $region13: #{residual_block_forward.8} parent=11 // pred_check
          %p241 = pneg %p75
        $region14: #{residual_block_forward.8} parent=11 // pred_check_branch
          %243 = sbr.rel (%p241) target = $region16
        $region15: #{residual_block_forward.8} parent=11 // pred_region
          _
        $region16: #{residual_block_forward.8} parent=11 // pred_fallthru
          _
        // Predicated region
        $region17: #{residual_block_forward.8} parent=11 // pred_check
          %p244 = pneg %p96
        $region18: #{residual_block_forward.8} parent=11 // pred_check_branch
          %246 = sbr.rel (%p244) target = $region20
        $region19: #{residual_block_forward.8} parent=11 // pred_region
          _
        $region20: #{residual_block_forward.8} parent=11 // pred_fallthru
          _
        // Predicated region
        $region21: #{residual_block_forward.8} parent=11 // pred_check
          %p247 = pneg %p117
        $region22: #{residual_block_forward.8} parent=11 // pred_check_branch
          %249 = sbr.rel (%p247) target = $region24
        $region23: #{residual_block_forward.8} parent=11 // pred_region
          _
        $region24: #{residual_block_forward.8} parent=11 // pred_fallthru
          _
        // Predicated region
        $region25: #{residual_block_forward.8} parent=11 // pred_check
          %p250 = pneg %p138
        $region26: #{residual_block_forward.8} parent=11 // pred_check_branch
          %252 = sbr.rel (%p250) target = $region28
        $region27: #{residual_block_forward.8} parent=11 // pred_region
          _
        $region28: #{residual_block_forward.8} parent=11 // pred_fallthru
          _
      $region12: #{residual_block_forward.8} parent=5 // pred_fallthru
        _
      %p253 = scmp.lt.s32.totalorder %s14, 4
      // Predicated region
      $region29: #{residual_block_forward.8} parent=5 // pred_check
        %p254 = pneg %p253
      $region30: #{residual_block_forward.8} parent=5 // pred_check_branch
        %256 = sbr.rel (%p254) target = $region32
      $region31: #{residual_block_forward.8} parent=5 // pred_region
        // Predicated region
        $region33: #{residual_block_forward.8} parent=31 // pred_check
          %p257 = pneg %p48
        $region34: #{residual_block_forward.8} parent=31 // pred_check_branch
          %259 = sbr.rel (%p257) target = $region36
        $region35: #{residual_block_forward.8} parent=31 // pred_region
          %s260 = sand.u32 %s38, 1
          %s261 = sand.u32 %s38, 1
          %s262 = smul.addr %s261, 64
          %s263 = scalar_lea.vmem [#allocation3], %s262
          %s264 = smul.u32 4, %s22
          %s265 = smul.addr %s21, 32
          %s266 = sadd.s32 %s264, %s265
          %s267 = smul.addr %s266, 4
          %s268 = scalar_lea.vmem %s0, %s267
          // Predicated region
          $region37: #{residual_block_forward.8} parent=35 // pred_check
            _
          $region38: #{residual_block_forward.8} parent=35 // pred_check_branch
            %270 = sbr.rel (0) target = $region40
          $region39: #{residual_block_forward.8} parent=35 // pred_region
            // Predicated region
            $region41: #{residual_block_forward.8} parent=39 // pred_check
              _
            $region42: #{residual_block_forward.8} parent=39 // pred_check_branch
              %272 = sbr.rel target = $region44
            $region43: #{residual_block_forward.8} parent=39 // pred_region
              // Predicated region
              $region56: #{residual_block_forward.8} parent=43 // pred_check
                _
              $region57: #{residual_block_forward.8} parent=43 // pred_check_branch
                %317 = sbr.rel (0) target = $region59
              $region58: #{residual_block_forward.8} parent=43 // pred_region
                loop: start=0, step=1, limit=1
                $region60: #{residual_block_forward.8} parent=58 // loop_pre_header
                  _
                $region61: #{residual_block_forward.8} parent=58 // loop_header
                  %s319 = sphi 0, %s323
                  %p320 = scmp.ge.s32.totalorder %s319, 1
                  %s324 = sphi %s268, %s268
                  %s325 = sphi %s263, %s263
                $region62: #{residual_block_forward.8} parent=58 // loop_header_branch
                  %322 = sbr.rel (%p320) target = $region66
                $region63: #{residual_block_forward.8} parent=58 // loop_body
                  _
                $region64: #{residual_block_forward.8} parent=58 // loop_footer
                  %s323 = sadd.s32 1, %s319
                $region65: #{residual_block_forward.8} parent=58 // loop_footer_branch
                  %318 = sbr.rel target = $region61
                $region66: #{residual_block_forward.8} parent=58 // loop_exit
                  _
                loop: start=0, step=1, limit=1
                $region67: #{residual_block_forward.8} parent=58 // loop_pre_header
                  _
                $region68: #{residual_block_forward.8} parent=58 // loop_header
                  %s328 = sphi 0, %s332
                  %p329 = scmp.ge.s32.totalorder %s328, 1
                  %s333 = sphi %s268, %s268
                  %s334 = sphi %s263, %s263
                $region69: #{residual_block_forward.8} parent=58 // loop_header_branch
                  %331 = sbr.rel (%p329) target = $region73
                $region70: #{residual_block_forward.8} parent=58 // loop_body
                  %v335 = vld [vmem:[%s333] sm:$0xf]
                  %336 = vst [vmem:[%s334] sm:$0xf] %v335
                  %v337 = vld [vmem:[%s333 + $0x4] sm:$0xf]
                  %338 = vst [vmem:[%s334 + $0x4] sm:$0xf] %v337
                  %v339 = vld [vmem:[%s333 + $0x8] sm:$0xf]
                  %340 = vst [vmem:[%s334 + $0x8] sm:$0xf] %v339
                  %v341 = vld [vmem:[%s333 + $0xc] sm:$0xf]
                  %342 = vst [vmem:[%s334 + $0xc] sm:$0xf] %v341
                  %v343 = vld [vmem:[%s333 + $0x20] sm:$0xf]
                  %344 = vst [vmem:[%s334 + $0x10] sm:$0xf] %v343
                  %v345 = vld [vmem:[%s333 + $0x24] sm:$0xf]
                  %346 = vst [vmem:[%s334 + $0x14] sm:$0xf] %v345
                  %v347 = vld [vmem:[%s333 + $0x28] sm:$0xf]
                  %348 = vst [vmem:[%s334 + $0x18] sm:$0xf] %v347
                  %v349 = vld [vmem:[%s333 + $0x2c] sm:$0xf]
                  %350 = vst [vmem:[%s334 + $0x1c] sm:$0xf] %v349
                  %v351 = vld [vmem:[%s333 + $0x40] sm:$0xf]
                  %352 = vst [vmem:[%s334 + $0x20] sm:$0xf] %v351
                  %v353 = vld [vmem:[%s333 + $0x44] sm:$0xf]
                  %354 = vst [vmem:[%s334 + $0x24] sm:$0xf] %v353
                  %v355 = vld [vmem:[%s333 + $0x48] sm:$0xf]
                  %356 = vst [vmem:[%s334 + $0x28] sm:$0xf] %v355
                  %v357 = vld [vmem:[%s333 + $0x4c] sm:$0xf]
                  %358 = vst [vmem:[%s334 + $0x2c] sm:$0xf] %v357
                  %v359 = vld [vmem:[%s333 + $0x60] sm:$0xf]
                  %360 = vst [vmem:[%s334 + $0x30] sm:$0xf] %v359
                  %v361 = vld [vmem:[%s333 + $0x64] sm:$0xf]
                  %362 = vst [vmem:[%s334 + $0x34] sm:$0xf] %v361
                  %v363 = vld [vmem:[%s333 + $0x68] sm:$0xf]
                  %364 = vst [vmem:[%s334 + $0x38] sm:$0xf] %v363
                  %v365 = vld [vmem:[%s333 + $0x6c] sm:$0xf]
                  %366 = vst [vmem:[%s334 + $0x3c] sm:$0xf] %v365
                $region71: #{residual_block_forward.8} parent=58 // loop_footer
                  %s332 = sadd.s32 1, %s328
                $region72: #{residual_block_forward.8} parent=58 // loop_footer_branch
                  %327 = sbr.rel target = $region68
                $region73: #{residual_block_forward.8} parent=58 // loop_exit
                  _
              $region59: #{residual_block_forward.8} parent=43 // pred_fallthru
                _
            $region44: #{residual_block_forward.8} parent=39 // pred_fallthru
              _
            // Predicated region
            $region45: #{residual_block_forward.8} parent=39 // pred_check
              _
            $region46: #{residual_block_forward.8} parent=39 // pred_check_branch
              %274 = sbr.rel (0) target = $region48
            $region47: #{residual_block_forward.8} parent=39 // pred_region
              loop: start=0, step=1, limit=1
              $region49: #{residual_block_forward.8} parent=47 // loop_pre_header
                _
              $region50: #{residual_block_forward.8} parent=47 // loop_header
                %s277 = sphi 0, %s281
                %p278 = scmp.ge.s32.totalorder %s277, 1
                %s282 = sphi %s268, %s268
                %s283 = sphi %s263, %s263
              $region51: #{residual_block_forward.8} parent=47 // loop_header_branch
                %280 = sbr.rel (%p278) target = $region55
              $region52: #{residual_block_forward.8} parent=47 // loop_body
                %v284 = vld [vmem:[%s282] sm:$0xf]
                %285 = vst [vmem:[%s283] sm:$0xf] %v284
                %v286 = vld [vmem:[%s282 + $0x4] sm:$0xf]
                %287 = vst [vmem:[%s283 + $0x4] sm:$0xf] %v286
                %v288 = vld [vmem:[%s282 + $0x8] sm:$0xf]
                %289 = vst [vmem:[%s283 + $0x8] sm:$0xf] %v288
                %v290 = vld [vmem:[%s282 + $0xc] sm:$0xf]
                %291 = vst [vmem:[%s283 + $0xc] sm:$0xf] %v290
                %v292 = vld [vmem:[%s282 + $0x20] sm:$0xf]
                %293 = vst [vmem:[%s283 + $0x10] sm:$0xf] %v292
                %v294 = vld [vmem:[%s282 + $0x24] sm:$0xf]
                %295 = vst [vmem:[%s283 + $0x14] sm:$0xf] %v294
                %v296 = vld [vmem:[%s282 + $0x28] sm:$0xf]
                %297 = vst [vmem:[%s283 + $0x18] sm:$0xf] %v296
                %v298 = vld [vmem:[%s282 + $0x2c] sm:$0xf]
                %299 = vst [vmem:[%s283 + $0x1c] sm:$0xf] %v298
                %v300 = vld [vmem:[%s282 + $0x40] sm:$0xf]
                %301 = vst [vmem:[%s283 + $0x20] sm:$0xf] %v300
                %v302 = vld [vmem:[%s282 + $0x44] sm:$0xf]
                %303 = vst [vmem:[%s283 + $0x24] sm:$0xf] %v302
                %v304 = vld [vmem:[%s282 + $0x48] sm:$0xf]
                %305 = vst [vmem:[%s283 + $0x28] sm:$0xf] %v304
                %v306 = vld [vmem:[%s282 + $0x4c] sm:$0xf]
                %307 = vst [vmem:[%s283 + $0x2c] sm:$0xf] %v306
                %v308 = vld [vmem:[%s282 + $0x60] sm:$0xf]
                %309 = vst [vmem:[%s283 + $0x30] sm:$0xf] %v308
                %v310 = vld [vmem:[%s282 + $0x64] sm:$0xf]
                %311 = vst [vmem:[%s283 + $0x34] sm:$0xf] %v310
                %v312 = vld [vmem:[%s282 + $0x68] sm:$0xf]
                %313 = vst [vmem:[%s283 + $0x38] sm:$0xf] %v312
                %v314 = vld [vmem:[%s282 + $0x6c] sm:$0xf]
                %315 = vst [vmem:[%s283 + $0x3c] sm:$0xf] %v314
              $region53: #{residual_block_forward.8} parent=47 // loop_footer
                %s281 = sadd.s32 1, %s277
              $region54: #{residual_block_forward.8} parent=47 // loop_footer_branch
                %276 = sbr.rel target = $region50
              $region55: #{residual_block_forward.8} parent=47 // loop_exit
                _
            $region48: #{residual_block_forward.8} parent=39 // pred_fallthru
              _
          $region40: #{residual_block_forward.8} parent=35 // pred_fallthru
            _
          %367 = vnop
        $region36: #{residual_block_forward.8} parent=31 // pred_fallthru
          _
      $region32: #{residual_block_forward.8} parent=5 // pred_fallthru
        _
      %p368 = scmp.le.s32.totalorder 1, %s14
      %p369 = scmp.lt.s32.totalorder %s14, 5
      %p370 = pnand %p368, %p369
      %p371 = pneg %p370
      // Predicated region
      $region74: #{residual_block_forward.8} parent=5 // pred_check
        _
      $region75: #{residual_block_forward.8} parent=5 // pred_check_branch
        %373 = sbr.rel (%p370) target = $region77
      $region76: #{residual_block_forward.8} parent=5 // pred_region
        %s374 = ssub.s32 %s14, 1
        %s375 = sand.u32 %s41, 1
        %s376 = sand.u32 %s41, 1
        %s377 = smul.addr %s376, 64
        %s378 = scalar_lea.vmem [#allocation3], %s377
        // Predicated region
        $region78: #{residual_block_forward.8} parent=76 // pred_check
          %p379 = pneg %p54
        $region79: #{residual_block_forward.8} parent=76 // pred_check_branch
          %381 = sbr.rel (%p379) target = $region81
        $region80: #{residual_block_forward.8} parent=76 // pred_region
          _
        $region81: #{residual_block_forward.8} parent=76 // pred_fallthru
          _
        %s382 = sand.u32 %s41, 1
        %s383 = sand.u32 %s41, 1
        %s384 = smul.addr %s383, 64
        %s385 = scalar_lea.vmem [#allocation3], %s384
        %p386 = pneg %p54
        %p387 = pneg %p51
        %p388 = pneg %p75
        %p389 = pneg %p72
        %p390 = pneg %p96
        %p391 = pneg %p93
        %p392 = pneg %p117
        %p393 = pneg %p114
        %p394 = pneg %p138
        %p395 = pneg %p135
        %p396 = pneg %p166
        %p397 = pneg %p163
        %s398 = sand.u32 %s153, 1
        %s399 = sand.u32 %s153, 1
        %s400 = smul.addr %s399, 64
        %s401 = scalar_lea.vmem [#allocation4], %s400
        %p402 = pneg %p196
        %p403 = pneg %p193
        %s404 = smul.u32 %s23, 2
        %s405 = sadd.s32 %s404, %s24
        %p406 = scmp.lt.s32.totalorder %s405, 3
        %s407 = scalar_select %p406, %s405, 3
        %s408 = scalar_lea.vmem %s6, %s407
        %p409 = pneg %p226
        %p410 = pneg %p223
        %s411 = smul.u32 %s23, 2
        %s412 = sadd.s32 %s411, %s24
        %p413 = scmp.lt.s32.totalorder %s412, 3
        %s414 = scalar_select %p413, %s412, 3
        %s415 = scalar_lea.vmem %s7, %s414
        %s416 = smul.u32 4, %s24
        %s417 = smul.u32 4, %s24
        %s418 = smul.u32 %s23, 2
        %s419 = sadd.s32 %s418, %s24
        %p420 = scmp.lt.s32.totalorder %s419, 3
        %s421 = scalar_select %p420, %s419, 3
        %s422 = scalar_lea.vmem %s6, %s421
        %s423 = smul.u32 %s23, 2
        %s424 = sadd.s32 %s423, %s24
        %s425 = smul.u32 %s23, 2
        %s426 = sadd.s32 %s425, %s24
        %p427 = scmp.lt.s32.totalorder %s426, 3
        %s428 = scalar_select %p427, %s426, 3
        %s429 = scalar_lea.vmem %s7, %s428
        %s430 = smul.u32 %s23, 2
        %s431 = sadd.s32 %s430, %s24
        %v433 = vld [vmem:[%s378] sm:$0xf]
        %v434 = vld [vmem:[%s378 + $0x4] sm:$0xf]
        %v435 = vld [vmem:[%s378 + $0x8] sm:$0xf]
        %v436 = vld [vmem:[%s378 + $0xc] sm:$0xf]
        %v437 = vld [vmem:[%s378 + $0x10] sm:$0xf]
        %v438 = vld [vmem:[%s378 + $0x14] sm:$0xf]
        %v439 = vld [vmem:[%s378 + $0x18] sm:$0xf]
        %v440 = vld [vmem:[%s378 + $0x1c] sm:$0xf]
        %v441 = vld [vmem:[%s378 + $0x20] sm:$0xf]
        %v442 = vld [vmem:[%s378 + $0x24] sm:$0xf]
        %v443 = vld [vmem:[%s378 + $0x28] sm:$0xf]
        %v444 = vld [vmem:[%s378 + $0x2c] sm:$0xf]
        %v445 = vld [vmem:[%s378 + $0x30] sm:$0xf]
        %v446 = vld [vmem:[%s378 + $0x34] sm:$0xf]
        %v447 = vld [vmem:[%s378 + $0x38] sm:$0xf]
        %v448 = vld [vmem:[%s378 + $0x3c] sm:$0xf]
        %v449 = vunpack.c.l.bf16 %v433
        %v450 = vunpack.c.l.bf16 %v434
        %v451 = vunpack.c.l.bf16 %v435
        %v452 = vunpack.c.l.bf16 %v436
        %v453 = vunpack.c.l.bf16 %v437
        %v454 = vunpack.c.l.bf16 %v438
        %v455 = vunpack.c.l.bf16 %v439
        %v456 = vunpack.c.l.bf16 %v440
        %v457 = vunpack.c.l.bf16 %v441
        %v458 = vunpack.c.l.bf16 %v442
        %v459 = vunpack.c.l.bf16 %v443
        %v460 = vunpack.c.l.bf16 %v444
        %v461 = vunpack.c.l.bf16 %v445
        %v462 = vunpack.c.l.bf16 %v446
        %v463 = vunpack.c.l.bf16 %v447
        %v464 = vunpack.c.l.bf16 %v448
        %v465 = vld [vmem:[%s1] sm:$0x1]
        %v467 = vlaneseq
        %v468 = vshrl.u32 %v467, 7
        %v469 = vsub.s32 0, %v468
        %v470 = vrot.slane %v465, %v469
        %v472 = vmul.f32 %v449, %v470
        %v473 = vmul.f32 %v450, %v470
        %v474 = vmul.f32 %v451, %v470
        %v475 = vmul.f32 %v452, %v470
        %v476 = vmul.f32 %v453, %v470
        %v477 = vmul.f32 %v454, %v470
        %v478 = vmul.f32 %v455, %v470
        %v479 = vmul.f32 %v456, %v470
        %v480 = vmul.f32 %v457, %v470
        %v481 = vmul.f32 %v458, %v470
        %v482 = vmul.f32 %v459, %v470
        %v483 = vmul.f32 %v460, %v470
        %v484 = vmul.f32 %v461, %v470
        %v485 = vmul.f32 %v462, %v470
        %v486 = vmul.f32 %v463, %v470
        %v487 = vmul.f32 %v464, %v470
        %v488 = vld [vmem:[%s2] sm:$0x1]
        %v490 = vlaneseq
        %v491 = vshrl.u32 %v490, 7
        %v492 = vsub.s32 0, %v491
        %v493 = vrot.slane %v488, %v492
        %v495 = vadd.f32 %v472, %v493
        %v496 = vadd.f32 %v473, %v493
        %v497 = vadd.f32 %v474, %v493
        %v498 = vadd.f32 %v475, %v493
        %v499 = vadd.f32 %v476, %v493
        %v500 = vadd.f32 %v477, %v493
        %v501 = vadd.f32 %v478, %v493
        %v502 = vadd.f32 %v479, %v493
        %v503 = vadd.f32 %v480, %v493
        %v504 = vadd.f32 %v481, %v493
        %v505 = vadd.f32 %v482, %v493
        %v506 = vadd.f32 %v483, %v493
        %v507 = vadd.f32 %v484, %v493
        %v508 = vadd.f32 %v485, %v493
        %v509 = vadd.f32 %v486, %v493
        %v510 = vadd.f32 %v487, %v493
        %v511 = vmax.f32 %v495, 0.0
        %v512 = vmax.f32 %v496, 0.0
        %v513 = vmax.f32 %v497, 0.0
        %v514 = vmax.f32 %v498, 0.0
        %v515 = vmax.f32 %v499, 0.0
        %v516 = vmax.f32 %v500, 0.0
        %v517 = vmax.f32 %v501, 0.0
        %v518 = vmax.f32 %v502, 0.0
        %v519 = vmax.f32 %v503, 0.0
        %v520 = vmax.f32 %v504, 0.0
        %v521 = vmax.f32 %v505, 0.0
        %v522 = vmax.f32 %v506, 0.0
        %v523 = vmax.f32 %v507, 0.0
        %v524 = vmax.f32 %v508, 0.0
        %v525 = vmax.f32 %v509, 0.0
        %v526 = vmax.f32 %v510, 0.0
        %vm527 = vcmask 146432
        %528 = vst.msk [vmem:[#allocation2] sm:$0xff] %vm527, 0
        %529 = vst.msk [vmem:[#allocation2 + $0x8] sm:$0xff] %vm527, 0
        %s530 = scalar_lea.vmem [#allocation2], 80
        %531 = vst.msk [vmem:[%s530] sm:$0xff] %vm527, 0
        %532 = vst.msk [vmem:[%s530 + $0x8] sm:$0xff] %vm527, 0
        %v533 = vpack.c.bf16 %v512, %v511
        %v534 = vpack.c.bf16 %v514, %v513
        %v535 = vpack.c.bf16 %v516, %v515
        %v536 = vpack.c.bf16 %v518, %v517
        %v537 = vpack.c.bf16 %v520, %v519
        %v538 = vpack.c.bf16 %v522, %v521
        %v539 = vpack.c.bf16 %v524, %v523
        %v540 = vpack.c.bf16 %v526, %v525
        %s541 = scalar_lea.vmem [#allocation2], 16
        %542 = vst.msk [vmem:[%s541] sm:$0xff] %vm527, %v533
        %543 = vst.msk [vmem:[%s541 + $0x8] sm:$0xff] %vm527, %v534
        %544 = vst.msk [vmem:[%s541 + $0x10] sm:$0xff] %vm527, %v535
        %545 = vst.msk [vmem:[%s541 + $0x18] sm:$0xff] %vm527, %v536
        %546 = vst.msk [vmem:[%s541 + $0x20] sm:$0xff] %vm527, %v537
        %547 = vst.msk [vmem:[%s541 + $0x28] sm:$0xff] %vm527, %v538
        %548 = vst.msk [vmem:[%s541 + $0x30] sm:$0xff] %vm527, %v539
        %549 = vst.msk [vmem:[%s541 + $0x38] sm:$0xff] %vm527, %v540
        %v550 = vld [vmem:[#allocation2] sm:$0xff]
        %v551 = vld [vmem:[#allocation2 + $0x8] sm:$0xff]
        %v552 = vld [vmem:[#allocation2 + $0x10] sm:$0xff]
        %v553 = vld [vmem:[#allocation2 + $0x18] sm:$0xff]
        %v554 = vld [vmem:[#allocation2 + $0x20] sm:$0xff]
        %v555 = vld [vmem:[#allocation2 + $0x28] sm:$0xff]
        %v556 = vld [vmem:[#allocation2 + $0x30] sm:$0xff]
        %v557 = vld [vmem:[#allocation2 + $0x38] sm:$0xff]
        %v558 = vld [vmem:[%s3] sm:$0xf]
        %v559 = vld [vmem:[%s3 + $0x4] sm:$0xf]
        %v560 = vld [vmem:[%s3 + $0x8] sm:$0x1]
        %v561 = vld [vmem:[%s541] sm:$0xff]
        %v562 = vld [vmem:[%s541 + $0x8] sm:$0xff]
        %v563 = vld [vmem:[%s541 + $0x10] sm:$0xff]
        %v564 = vld [vmem:[%s541 + $0x18] sm:$0xff]
        %v565 = vld [vmem:[%s541 + $0x20] sm:$0xff]
        %v566 = vld [vmem:[%s541 + $0x28] sm:$0xff]
        %v567 = vld [vmem:[%s541 + $0x30] sm:$0xff]
        %v568 = vld [vmem:[%s541 + $0x38] sm:$0xff]
        %s569 = scalar_lea.vmem %s3, 12
        %v570 = vld [vmem:[%s569] sm:$0xf]
        %v571 = vld [vmem:[%s569 + $0x4] sm:$0xf]
        %v572 = vld [vmem:[%s569 + $0x8] sm:$0x1]
        %v576 = vunpack.c.l.b16 %v570
        %v577 = vunpack.c.l.b16 %v571
        %v578 = vunpack.c.l.b16 %v572
        %v579 = vpack.c.b16 %v577, %v576
        %v580 = vpack.c.b16 %v578, %v578
        %v583 = vsel %vm527, %v561, 0
        %v586 = vsel %vm527, %v562, 0
        %v589 = vsel %vm527, %v563, 0
        %v592 = vsel %vm527, %v564, 0
        %v595 = vsel %vm527, %v565, 0
        %v598 = vsel %vm527, %v566, 0
        %v601 = vsel %vm527, %v567, 0
        %v604 = vsel %vm527, %v568, 0
        %vm606 = vcmask 1040384
        %v608 = vsel %vm606, %v580, 0
        %610 = vmatprep.subr.bf16.mxu0 0
        %611 = vmatpush1.bf16.msra.mxu0 %v579
        %612 = vmatprep.subr.bf16.mxu0 0
        %613 = vmatpush1.bf16.msra.mxu0 %v608
        %614 = vmatprep.subr.bf16.mxu0 0
        %615 = vmatpush1.bf16.msra.mxu0 0
        %616 = vmatprep.subr.bf16.mxu0 0
        %617 = vmatpush1.bf16.msra.mxu0 0
        %618 = vmatprep.subr.bf16.mxu0 0
        %619 = vmatpush1.bf16.msra.mxu0 0
        %620 = vmatprep.subr.bf16.mxu0 0
        %621 = vmatpush1.bf16.msra.mxu0 0
        %622 = vmatprep.subr.bf16.mxu0 0
        %623 = vmatpush1.bf16.msra.mxu0 0
        %624 = vmatprep.subr.bf16.mxu0 0
        %625 = vmatpush1.bf16.msra.mxu0 0
        %626 = vmatprep.subr.bf16.mxu0 0
        %627 = vmatpush1.bf16.msra.mxu0 0
        %628 = vmatprep.subr.bf16.mxu0 0
        %629 = vmatpush1.bf16.msra.mxu0 0
        %630 = vmatprep.subr.bf16.mxu0 0
        %631 = vmatpush1.bf16.msra.mxu0 0
        %632 = vmatprep.subr.bf16.mxu0 0
        %633 = vmatpush1.bf16.msra.mxu0 0
        %634 = vmatprep.subr.bf16.mxu0 0
        %635 = vmatpush1.bf16.msra.mxu0 0
        %636 = vmatprep.subr.bf16.mxu0 0
        %637 = vmatpush1.bf16.msra.mxu0 0
        %638 = vmatprep.subr.bf16.mxu0 0
        %639 = vmatpush1.bf16.msra.mxu0 0
        %640 = vmatprep.subr.bf16.mxu0 0
        %641 = vmatpush1.bf16.msra.mxu0 0
        %642 = vmatprep.mubr.bf16.mxu0 0
        %643 = vmatmul.mubr.bf16.gmra.mrb[0].mxu0 %v583
        %v644 = vpop.f32.mrb[0].mxu0
        %v645 = vadd.f32 0.0, %v644
        %v646 = vpop.f32.mrb[0].mxu0
        %v647 = vpop.f32.mrb[0].mxu0
        %v648 = vadd.f32 0.0, %v647
        %v649 = vpop.f32.mrb[0].mxu0
        %650 = vmatprep.mubr.bf16.mxu0 0
        %651 = vmatmul.mubr.bf16.gmra.mrb[0].mxu0 %v586
        %v652 = vpop.f32.mrb[0].mxu0
        %v653 = vadd.f32 0.0, %v652
        %v654 = vpop.f32.mrb[0].mxu0
        %v655 = vpop.f32.mrb[0].mxu0
        %v656 = vadd.f32 0.0, %v655
        %v657 = vpop.f32.mrb[0].mxu0
        %658 = vmatprep.mubr.bf16.mxu0 0
        %659 = vmatmul.mubr.bf16.gmra.mrb[0].mxu0 %v589
        %v660 = vpop.f32.mrb[0].mxu0
        %v661 = vadd.f32 0.0, %v660
        %v662 = vpop.f32.mrb[0].mxu0
        %v663 = vpop.f32.mrb[0].mxu0
        %v664 = vadd.f32 0.0, %v663
        %v665 = vpop.f32.mrb[0].mxu0
        %666 = vmatprep.mubr.bf16.mxu0 0
        %667 = vmatmul.mubr.bf16.gmra.mrb[0].mxu0 %v592
        %v668 = vpop.f32.mrb[0].mxu0
        %v669 = vadd.f32 0.0, %v668
        %v670 = vpop.f32.mrb[0].mxu0
        %v671 = vpop.f32.mrb[0].mxu0
        %v672 = vadd.f32 0.0, %v671
        %v673 = vpop.f32.mrb[0].mxu0
        %674 = vmatprep.mubr.bf16.mxu0 0
        %675 = vmatmul.mubr.bf16.gmra.mrb[0].mxu0 %v595
        %v676 = vpop.f32.mrb[0].mxu0
        %v677 = vadd.f32 0.0, %v676
        %v678 = vpop.f32.mrb[0].mxu0
        %v679 = vpop.f32.mrb[0].mxu0
        %v680 = vadd.f32 0.0, %v679
        %v681 = vpop.f32.mrb[0].mxu0
        %682 = vmatprep.mubr.bf16.mxu0 0
        %683 = vmatmul.mubr.bf16.gmra.mrb[0].mxu0 %v598
        %v684 = vpop.f32.mrb[0].mxu0
        %v685 = vadd.f32 0.0, %v684
        %v686 = vpop.f32.mrb[0].mxu0
        %v687 = vpop.f32.mrb[0].mxu0
        %v688 = vadd.f32 0.0, %v687
        %v689 = vpop.f32.mrb[0].mxu0
        %690 = vmatprep.mubr.bf16.mxu0 0
        %691 = vmatmul.mubr.bf16.gmra.mrb[0].mxu0 %v601
        %v692 = vpop.f32.mrb[0].mxu0
        %v693 = vadd.f32 0.0, %v692
        %v694 = vpop.f32.mrb[0].mxu0
        %v695 = vpop.f32.mrb[0].mxu0
        %v696 = vadd.f32 0.0, %v695
        %v697 = vpop.f32.mrb[0].mxu0
        %698 = vmatprep.mubr.bf16.mxu0 0
        %699 = vmatmul.mubr.bf16.gmra.mrb[0].mxu0 %v604
        %v700 = vpop.f32.mrb[0].mxu0
        %v701 = vadd.f32 0.0, %v700
        %v702 = vpop.f32.mrb[0].mxu0
        %v703 = vpop.f32.mrb[0].mxu0
        %v704 = vadd.f32 0.0, %v703
        %v705 = vpop.f32.mrb[0].mxu0
        %706 = vdwg.mxu0
        %v710 = vunpack.c.l.b16 %v558
        %v711 = vunpack.c.l.b16 %v559
        %v712 = vunpack.c.l.b16 %v560
        %v713 = vpack.c.b16 %v711, %v710
        %v714 = vpack.c.b16 %v712, %v712
        %v717 = vsel %vm527, %v550, 0
        %v720 = vsel %vm527, %v551, 0
        %v723 = vsel %vm527, %v552, 0
        %v726 = vsel %vm527, %v553, 0
        %v729 = vsel %vm527, %v554, 0
        %v732 = vsel %vm527, %v555, 0
        %v735 = vsel %vm527, %v556, 0
        %v738 = vsel %vm527, %v557, 0
        %v741 = vsel %vm606, %v714, 0
        %743 = vmatprep.subr.bf16.mxu0 0
        %744 = vmatpush1.bf16.msra.mxu0 %v713
        %745 = vmatprep.subr.bf16.mxu0 0
        %746 = vmatpush1.bf16.msra.mxu0 %v741
        %747 = vmatprep.subr.bf16.mxu0 0
        %748 = vmatpush1.bf16.msra.mxu0 0
        %749 = vmatprep.subr.bf16.mxu0 0
        %750 = vmatpush1.bf16.msra.mxu0 0
        %751 = vmatprep.subr.bf16.mxu0 0
        %752 = vmatpush1.bf16.msra.mxu0 0
        %753 = vmatprep.subr.bf16.mxu0 0
        %754 = vmatpush1.bf16.msra.mxu0 0
        %755 = vmatprep.subr.bf16.mxu0 0
        %756 = vmatpush1.bf16.msra.mxu0 0
        %757 = vmatprep.subr.bf16.mxu0 0
        %758 = vmatpush1.bf16.msra.mxu0 0
        %759 = vmatprep.subr.bf16.mxu0 0
        %760 = vmatpush1.bf16.msra.mxu0 0
        %761 = vmatprep.subr.bf16.mxu0 0
        %762 = vmatpush1.bf16.msra.mxu0 0
        %763 = vmatprep.subr.bf16.mxu0 0
        %764 = vmatpush1.bf16.msra.mxu0 0
        %765 = vmatprep.subr.bf16.mxu0 0
        %766 = vmatpush1.bf16.msra.mxu0 0
        %767 = vmatprep.subr.bf16.mxu0 0
        %768 = vmatpush1.bf16.msra.mxu0 0
        %769 = vmatprep.subr.bf16.mxu0 0
        %770 = vmatpush1.bf16.msra.mxu0 0
        %771 = vmatprep.subr.bf16.mxu0 0
        %772 = vmatpush1.bf16.msra.mxu0 0
        %773 = vmatprep.subr.bf16.mxu0 0
        %774 = vmatpush1.bf16.msra.mxu0 0
        %775 = vmatprep.mubr.bf16.mxu0 0
        %776 = vmatmul.mubr.bf16.gmra.mrb[0].mxu0 %v717
        %v777 = vpop.f32.mrb[0].mxu0
        %v778 = vadd.f32 %v645, %v777
        %v779 = vpop.f32.mrb[0].mxu0
        %v780 = vpop.f32.mrb[0].mxu0
        %v781 = vadd.f32 %v648, %v780
        %v782 = vpop.f32.mrb[0].mxu0
        %783 = vmatprep.mubr.bf16.mxu0 0
        %784 = vmatmul.mubr.bf16.gmra.mrb[0].mxu0 %v720
        %v785 = vpop.f32.mrb[0].mxu0
        %v786 = vadd.f32 %v653, %v785
        %v787 = vpop.f32.mrb[0].mxu0
        %v788 = vpop.f32.mrb[0].mxu0
        %v789 = vadd.f32 %v656, %v788
        %v790 = vpop.f32.mrb[0].mxu0
        %791 = vmatprep.mubr.bf16.mxu0 0
        %792 = vmatmul.mubr.bf16.gmra.mrb[0].mxu0 %v723
        %v793 = vpop.f32.mrb[0].mxu0
        %v794 = vadd.f32 %v661, %v793
        %v795 = vpop.f32.mrb[0].mxu0
        %v796 = vpop.f32.mrb[0].mxu0
        %v797 = vadd.f32 %v664, %v796
        %v798 = vpop.f32.mrb[0].mxu0
        %799 = vmatprep.mubr.bf16.mxu0 0
        %800 = vmatmul.mubr.bf16.gmra.mrb[0].mxu0 %v726
        %v801 = vpop.f32.mrb[0].mxu0
        %v802 = vadd.f32 %v669, %v801
        %v803 = vpop.f32.mrb[0].mxu0
        %v804 = vpop.f32.mrb[0].mxu0
        %v805 = vadd.f32 %v672, %v804
        %v806 = vpop.f32.mrb[0].mxu0
        %807 = vmatprep.mubr.bf16.mxu0 0
        %808 = vmatmul.mubr.bf16.gmra.mrb[0].mxu0 %v729
        %v809 = vpop.f32.mrb[0].mxu0
        %v810 = vadd.f32 %v677, %v809
        %v811 = vpop.f32.mrb[0].mxu0
        %v812 = vpop.f32.mrb[0].mxu0
        %v813 = vadd.f32 %v680, %v812
        %v814 = vpop.f32.mrb[0].mxu0
        %815 = vmatprep.mubr.bf16.mxu0 0
        %816 = vmatmul.mubr.bf16.gmra.mrb[0].mxu0 %v732
        %v817 = vpop.f32.mrb[0].mxu0
        %v818 = vadd.f32 %v685, %v817
        %v819 = vpop.f32.mrb[0].mxu0
        %v820 = vpop.f32.mrb[0].mxu0
        %v821 = vadd.f32 %v688, %v820
        %v822 = vpop.f32.mrb[0].mxu0
        %823 = vmatprep.mubr.bf16.mxu0 0
        %824 = vmatmul.mubr.bf16.gmra.mrb[0].mxu0 %v735
        %v825 = vpop.f32.mrb[0].mxu0
        %v826 = vadd.f32 %v693, %v825
        %v827 = vpop.f32.mrb[0].mxu0
        %v828 = vpop.f32.mrb[0].mxu0
        %v829 = vadd.f32 %v696, %v828
        %v830 = vpop.f32.mrb[0].mxu0
        %831 = vmatprep.mubr.bf16.mxu0 0
        %832 = vmatmul.mubr.bf16.gmra.mrb[0].mxu0 %v738
        %v833 = vpop.f32.mrb[0].mxu0
        %v834 = vadd.f32 %v701, %v833
        %v835 = vpop.f32.mrb[0].mxu0
        %v836 = vpop.f32.mrb[0].mxu0
        %v837 = vadd.f32 %v704, %v836
        %v838 = vpop.f32.mrb[0].mxu0
        %839 = vdwg.mxu0
        %s840 = scalar_lea.vmem [#allocation2], 32
        %v841 = vld [vmem:[%s840] sm:$0xff]
        %v842 = vld [vmem:[%s840 + $0x8] sm:$0xff]
        %v843 = vld [vmem:[%s840 + $0x10] sm:$0xff]
        %v844 = vld [vmem:[%s840 + $0x18] sm:$0xff]
        %v845 = vld [vmem:[%s840 + $0x20] sm:$0xff]
        %v846 = vld [vmem:[%s840 + $0x28] sm:$0xff]
        %v847 = vld [vmem:[%s840 + $0x30] sm:$0xff]
        %v848 = vld [vmem:[%s840 + $0x38] sm:$0xff]
        %s849 = scalar_lea.vmem %s3, 24
        %v850 = vld [vmem:[%s849] sm:$0xf]
        %v851 = vld [vmem:[%s849 + $0x4] sm:$0xf]
        %v852 = vld [vmem:[%s849 + $0x8] sm:$0x1]
        %v856 = vunpack.c.l.b16 %v850
        %v857 = vunpack.c.l.b16 %v851
        %v858 = vunpack.c.l.b16 %v852
        %v859 = vpack.c.b16 %v857, %v856
        %v860 = vpack.c.b16 %v858, %v858
        %v863 = vsel %vm527, %v841, 0
        %v866 = vsel %vm527, %v842, 0
        %v869 = vsel %vm527, %v843, 0
        %v872 = vsel %vm527, %v844, 0
        %v875 = vsel %vm527, %v845, 0
        %v878 = vsel %vm527, %v846, 0
        %v881 = vsel %vm527, %v847, 0
        %v884 = vsel %vm527, %v848, 0
        %v887 = vsel %vm606, %v860, 0
        %889 = vmatprep.subr.bf16.mxu0 0
        %890 = vmatpush1.bf16.msra.mxu0 %v859
        %891 = vmatprep.subr.bf16.mxu0 0
        %892 = vmatpush1.bf16.msra.mxu0 %v887
        %893 = vmatprep.subr.bf16.mxu0 0
        %894 = vmatpush1.bf16.msra.mxu0 0
        %895 = vmatprep.subr.bf16.mxu0 0
        %896 = vmatpush1.bf16.msra.mxu0 0
        %897 = vmatprep.subr.bf16.mxu0 0
        %898 = vmatpush1.bf16.msra.mxu0 0
        %899 = vmatprep.subr.bf16.mxu0 0
        %900 = vmatpush1.bf16.msra.mxu0 0
        %901 = vmatprep.subr.bf16.mxu0 0
        %902 = vmatpush1.bf16.msra.mxu0 0
        %903 = vmatprep.subr.bf16.mxu0 0
        %904 = vmatpush1.bf16.msra.mxu0 0
        %905 = vmatprep.subr.bf16.mxu0 0
        %906 = vmatpush1.bf16.msra.mxu0 0
        %907 = vmatprep.subr.bf16.mxu0 0
        %908 = vmatpush1.bf16.msra.mxu0 0
        %909 = vmatprep.subr.bf16.mxu0 0
        %910 = vmatpush1.bf16.msra.mxu0 0
        %911 = vmatprep.subr.bf16.mxu0 0
        %912 = vmatpush1.bf16.msra.mxu0 0
        %913 = vmatprep.subr.bf16.mxu0 0
        %914 = vmatpush1.bf16.msra.mxu0 0
        %915 = vmatprep.subr.bf16.mxu0 0
        %916 = vmatpush1.bf16.msra.mxu0 0
        %917 = vmatprep.subr.bf16.mxu0 0
        %918 = vmatpush1.bf16.msra.mxu0 0
        %919 = vmatprep.subr.bf16.mxu0 0
        %920 = vmatpush1.bf16.msra.mxu0 0
        %921 = vmatprep.mubr.bf16.mxu0 0
        %922 = vmatmul.mubr.bf16.gmra.mrb[0].mxu0 %v863
        %v923 = vpop.f32.mrb[0].mxu0
        %v924 = vadd.f32 0.0, %v923
        %v925 = vpop.f32.mrb[0].mxu0
        %v926 = vpop.f32.mrb[0].mxu0
        %v927 = vadd.f32 0.0, %v926
        %v928 = vpop.f32.mrb[0].mxu0
        %929 = vmatprep.mubr.bf16.mxu0 0
        %930 = vmatmul.mubr.bf16.gmra.mrb[0].mxu0 %v866
        %v931 = vpop.f32.mrb[0].mxu0
        %v932 = vadd.f32 0.0, %v931
        %v933 = vpop.f32.mrb[0].mxu0
        %v934 = vpop.f32.mrb[0].mxu0
        %v935 = vadd.f32 0.0, %v934
        %v936 = vpop.f32.mrb[0].mxu0
        %937 = vmatprep.mubr.bf16.mxu0 0
        %938 = vmatmul.mubr.bf16.gmra.mrb[0].mxu0 %v869
        %v939 = vpop.f32.mrb[0].mxu0
        %v940 = vadd.f32 0.0, %v939
        %v941 = vpop.f32.mrb[0].mxu0
        %v942 = vpop.f32.mrb[0].mxu0
        %v943 = vadd.f32 0.0, %v942
        %v944 = vpop.f32.mrb[0].mxu0
        %945 = vmatprep.mubr.bf16.mxu0 0
        %946 = vmatmul.mubr.bf16.gmra.mrb[0].mxu0 %v872
        %v947 = vpop.f32.mrb[0].mxu0
        %v948 = vadd.f32 0.0, %v947
        %v949 = vpop.f32.mrb[0].mxu0
        %v950 = vpop.f32.mrb[0].mxu0
        %v951 = vadd.f32 0.0, %v950
        %v952 = vpop.f32.mrb[0].mxu0
        %953 = vmatprep.mubr.bf16.mxu0 0
        %954 = vmatmul.mubr.bf16.gmra.mrb[0].mxu0 %v875
        %v955 = vpop.f32.mrb[0].mxu0
        %v956 = vadd.f32 0.0, %v955
        %v957 = vpop.f32.mrb[0].mxu0
        %v958 = vpop.f32.mrb[0].mxu0
        %v959 = vadd.f32 0.0, %v958
        %v960 = vpop.f32.mrb[0].mxu0
        %961 = vmatprep.mubr.bf16.mxu0 0
        %962 = vmatmul.mubr.bf16.gmra.mrb[0].mxu0 %v878
        %v963 = vpop.f32.mrb[0].mxu0
        %v964 = vadd.f32 0.0, %v963
        %v965 = vpop.f32.mrb[0].mxu0
        %v966 = vpop.f32.mrb[0].mxu0
        %v967 = vadd.f32 0.0, %v966
        %v968 = vpop.f32.mrb[0].mxu0
        %969 = vmatprep.mubr.bf16.mxu0 0
        %970 = vmatmul.mubr.bf16.gmra.mrb[0].mxu0 %v881
        %v971 = vpop.f32.mrb[0].mxu0
        %v972 = vadd.f32 0.0, %v971
        %v973 = vpop.f32.mrb[0].mxu0
        %v974 = vpop.f32.mrb[0].mxu0
        %v975 = vadd.f32 0.0, %v974
        %v976 = vpop.f32.mrb[0].mxu0
        %977 = vmatprep.mubr.bf16.mxu0 0
        %978 = vmatmul.mubr.bf16.gmra.mrb[0].mxu0 %v884
        %v979 = vpop.f32.mrb[0].mxu0
        %v980 = vadd.f32 0.0, %v979
        %v981 = vpop.f32.mrb[0].mxu0
        %v982 = vpop.f32.mrb[0].mxu0
        %v983 = vadd.f32 0.0, %v982
        %v984 = vpop.f32.mrb[0].mxu0
        %985 = vdwg.mxu0
        %v986 = vadd.f32 %v778, %v924
        %v987 = vadd.f32 %v781, %v927
        %v988 = vadd.f32 %v786, %v932
        %v989 = vadd.f32 %v789, %v935
        %v990 = vadd.f32 %v794, %v940
        %v991 = vadd.f32 %v797, %v943
        %v992 = vadd.f32 %v802, %v948
        %v993 = vadd.f32 %v805, %v951
        %v994 = vadd.f32 %v810, %v956
        %v995 = vadd.f32 %v813, %v959
        %v996 = vadd.f32 %v818, %v964
        %v997 = vadd.f32 %v821, %v967
        %v998 = vadd.f32 %v826, %v972
        %v999 = vadd.f32 %v829, %v975
        %v1000 = vadd.f32 %v834, %v980
        %v1001 = vadd.f32 %v837, %v983
        %v1002 = vld [vmem:[%s4] sm:$0x1]
        %v1004 = vlaneseq
        %v1005 = vshrl.u32 %v1004, 7
        %v1006 = vsub.s32 0, %v1005
        %v1007 = vrot.slane %v1002, %v1006
        %v1009 = vadd.f32 %v986, %v1007
        %v1010 = vadd.f32 %v987, %v1007
        %v1011 = vadd.f32 %v988, %v1007
        %v1012 = vadd.f32 %v989, %v1007
        %v1013 = vadd.f32 %v990, %v1007
        %v1014 = vadd.f32 %v991, %v1007
        %v1015 = vadd.f32 %v992, %v1007
        %v1016 = vadd.f32 %v993, %v1007
        %v1017 = vadd.f32 %v994, %v1007
        %v1018 = vadd.f32 %v995, %v1007
        %v1019 = vadd.f32 %v996, %v1007
        %v1020 = vadd.f32 %v997, %v1007
        %v1021 = vadd.f32 %v998, %v1007
        %v1022 = vadd.f32 %v999, %v1007
        %v1023 = vadd.f32 %v1000, %v1007
        %v1024 = vadd.f32 %v1001, %v1007
        %v1025 = vpack.c.bf16 %v1010, %v1009
        %v1026 = vpack.c.bf16 %v1012, %v1011
        %v1027 = vpack.c.bf16 %v1014, %v1013
        %v1028 = vpack.c.bf16 %v1016, %v1015
        %v1029 = vpack.c.bf16 %v1018, %v1017
        %v1030 = vpack.c.bf16 %v1020, %v1019
        %v1031 = vpack.c.bf16 %v1022, %v1021
        %v1032 = vpack.c.bf16 %v1024, %v1023
        %v1041 = vunpack.c.l.b16 %v1025
        %v1042 = vunpack.c.h.b16 %v1025
        %v1043 = vunpack.c.l.b16 %v1026
        %v1044 = vunpack.c.h.b16 %v1026
        %v1045 = vunpack.c.l.b16 %v1027
        %v1046 = vunpack.c.h.b16 %v1027
        %v1047 = vunpack.c.l.b16 %v1028
        %v1048 = vunpack.c.h.b16 %v1028
        %v1049 = vunpack.c.l.b16 %v1029
        %v1050 = vunpack.c.h.b16 %v1029
        %v1051 = vunpack.c.l.b16 %v1030
        %v1052 = vunpack.c.h.b16 %v1030
        %v1053 = vunpack.c.l.b16 %v1031
        %v1054 = vunpack.c.h.b16 %v1031
        %v1055 = vunpack.c.l.b16 %v1032
        %v1056 = vunpack.c.h.b16 %v1032
        %v1057 = vpack.c.b16 %v1041, %v1041
        %v1058 = vpack.c.b16 %v1042, %v1042
        %v1059 = vpack.c.b16 %v1043, %v1043
        %v1060 = vpack.c.b16 %v1044, %v1044
        %v1061 = vpack.c.b16 %v1045, %v1045
        %v1062 = vpack.c.b16 %v1046, %v1046
        %v1063 = vpack.c.b16 %v1047, %v1047
        %v1064 = vpack.c.b16 %v1048, %v1048
        %v1065 = vpack.c.b16 %v1049, %v1049
        %v1066 = vpack.c.b16 %v1050, %v1050
        %v1067 = vpack.c.b16 %v1051, %v1051
        %v1068 = vpack.c.b16 %v1052, %v1052
        %v1069 = vpack.c.b16 %v1053, %v1053
        %v1070 = vpack.c.b16 %v1054, %v1054
        %v1071 = vpack.c.b16 %v1055, %v1055
        %v1072 = vpack.c.b16 %v1056, %v1056
        %vm1089 = vcmask 60416
        %1090 = vst.msk [vmem:[%s401] sm:$0xf] %vm1089, %v1057
        %1091 = vst.msk [vmem:[%s401 + $0x4] sm:$0xf] %vm1089, %v1058
        %1092 = vst.msk [vmem:[%s401 + $0x8] sm:$0xf] %vm1089, %v1059
        %1093 = vst.msk [vmem:[%s401 + $0xc] sm:$0xf] %vm1089, %v1060
        %1094 = vst.msk [vmem:[%s401 + $0x10] sm:$0xf] %vm1089, %v1061
        %1095 = vst.msk [vmem:[%s401 + $0x14] sm:$0xf] %vm1089, %v1062
        %1096 = vst.msk [vmem:[%s401 + $0x18] sm:$0xf] %vm1089, %v1063
        %1097 = vst.msk [vmem:[%s401 + $0x1c] sm:$0xf] %vm1089, %v1064
        %1098 = vst.msk [vmem:[%s401 + $0x20] sm:$0xf] %vm1089, %v1065
        %1099 = vst.msk [vmem:[%s401 + $0x24] sm:$0xf] %vm1089, %v1066
        %1100 = vst.msk [vmem:[%s401 + $0x28] sm:$0xf] %vm1089, %v1067
        %1101 = vst.msk [vmem:[%s401 + $0x2c] sm:$0xf] %vm1089, %v1068
        %1102 = vst.msk [vmem:[%s401 + $0x30] sm:$0xf] %vm1089, %v1069
        %1103 = vst.msk [vmem:[%s401 + $0x34] sm:$0xf] %vm1089, %v1070
        %1104 = vst.msk [vmem:[%s401 + $0x38] sm:$0xf] %vm1089, %v1071
        %1105 = vst.msk [vmem:[%s401 + $0x3c] sm:$0xf] %vm1089, %v1072
        %vm1106 = vcmask 64512
        %v1107 = vsel %vm1106, %v1009, 0.0
        %v1108 = vsel %vm1106, %v1010, 0.0
        %v1109 = vadd.f32 %v1107, %v1108
        %v1110 = vsel %vm1106, %v1011, 0.0
        %v1111 = vadd.f32 %v1109, %v1110
        %v1112 = vsel %vm1106, %v1012, 0.0
        %v1113 = vadd.f32 %v1111, %v1112
        %v1114 = vsel %vm1106, %v1013, 0.0
        %v1115 = vadd.f32 %v1113, %v1114
        %v1116 = vsel %vm1106, %v1014, 0.0
        %v1117 = vadd.f32 %v1115, %v1116
        %v1118 = vsel %vm1106, %v1015, 0.0
        %v1119 = vadd.f32 %v1117, %v1118
        %v1120 = vsel %vm1106, %v1016, 0.0
        %v1121 = vadd.f32 %v1119, %v1120
        %v1122 = vsel %vm1106, %v1017, 0.0
        %v1123 = vadd.f32 %v1121, %v1122
        %v1124 = vsel %vm1106, %v1018, 0.0
        %v1125 = vadd.f32 %v1123, %v1124
        %v1126 = vsel %vm1106, %v1019, 0.0
        %v1127 = vadd.f32 %v1125, %v1126
        %v1128 = vsel %vm1106, %v1020, 0.0
        %v1129 = vadd.f32 %v1127, %v1128
        %v1130 = vsel %vm1106, %v1021, 0.0
        %v1131 = vadd.f32 %v1129, %v1130
        %v1132 = vsel %vm1106, %v1022, 0.0
        %v1133 = vadd.f32 %v1131, %v1132
        %v1134 = vsel %vm1106, %v1023, 0.0
        %v1135 = vadd.f32 %v1133, %v1134
        %v1136 = vsel %vm1106, %v1024, 0.0
        %v1137 = vadd.f32 %v1135, %v1136
        %v1138 = vrot.slane %v1137, 4
        %v1139 = vadd.f32 %v1137, %v1138
        %v1140 = vrot.slane %v1139, 2
        %v1141 = vadd.f32 %v1139, %v1140
        %v1142 = vrot.slane %v1141, 1
        %v1143 = vadd.f32 %v1141, %v1142
        %vm1144 = vcmask 57344
        %1145 = vst.msk [vmem:[%s422] sm:$0x1] %vm1144, %v1143
        %v1146 = vmul.f32 %v1009, %v1009
        %v1147 = vmul.f32 %v1010, %v1010
        %v1148 = vmul.f32 %v1011, %v1011
        %v1149 = vmul.f32 %v1012, %v1012
        %v1150 = vmul.f32 %v1013, %v1013
        %v1151 = vmul.f32 %v1014, %v1014
        %v1152 = vmul.f32 %v1015, %v1015
        %v1153 = vmul.f32 %v1016, %v1016
        %v1154 = vmul.f32 %v1017, %v1017
        %v1155 = vmul.f32 %v1018, %v1018
        %v1156 = vmul.f32 %v1019, %v1019
        %v1157 = vmul.f32 %v1020, %v1020
        %v1158 = vmul.f32 %v1021, %v1021
        %v1159 = vmul.f32 %v1022, %v1022
        %v1160 = vmul.f32 %v1023, %v1023
        %v1161 = vmul.f32 %v1024, %v1024
        %v1162 = vsel %vm1106, %v1146, 0.0
        %v1163 = vsel %vm1106, %v1147, 0.0
        %v1164 = vadd.f32 %v1162, %v1163
        %v1165 = vsel %vm1106, %v1148, 0.0
        %v1166 = vadd.f32 %v1164, %v1165
        %v1167 = vsel %vm1106, %v1149, 0.0
        %v1168 = vadd.f32 %v1166, %v1167
        %v1169 = vsel %vm1106, %v1150, 0.0
        %v1170 = vadd.f32 %v1168, %v1169
        %v1171 = vsel %vm1106, %v1151, 0.0
        %v1172 = vadd.f32 %v1170, %v1171
        %v1173 = vsel %vm1106, %v1152, 0.0
        %v1174 = vadd.f32 %v1172, %v1173
        %v1175 = vsel %vm1106, %v1153, 0.0
        %v1176 = vadd.f32 %v1174, %v1175
        %v1177 = vsel %vm1106, %v1154, 0.0
        %v1178 = vadd.f32 %v1176, %v1177
        %v1179 = vsel %vm1106, %v1155, 0.0
        %v1180 = vadd.f32 %v1178, %v1179
        %v1181 = vsel %vm1106, %v1156, 0.0
        %v1182 = vadd.f32 %v1180, %v1181
        %v1183 = vsel %vm1106, %v1157, 0.0
        %v1184 = vadd.f32 %v1182, %v1183
        %v1185 = vsel %vm1106, %v1158, 0.0
        %v1186 = vadd.f32 %v1184, %v1185
        %v1187 = vsel %vm1106, %v1159, 0.0
        %v1188 = vadd.f32 %v1186, %v1187
        %v1189 = vsel %vm1106, %v1160, 0.0
        %v1190 = vadd.f32 %v1188, %v1189
        %v1191 = vsel %vm1106, %v1161, 0.0
        %v1192 = vadd.f32 %v1190, %v1191
        %v1193 = vrot.slane %v1192, 4
        %v1194 = vadd.f32 %v1192, %v1193
        %v1195 = vrot.slane %v1194, 2
        %v1196 = vadd.f32 %v1194, %v1195
        %v1197 = vrot.slane %v1196, 1
        %v1198 = vadd.f32 %v1196, %v1197
        %1199 = vst.msk [vmem:[%s429] sm:$0x1] %vm1144, %v1198
        %s1200 = sand.u32 %s153, 1
        %s1201 = sand.u32 %s153, 1
        %s1202 = smul.addr %s1201, 64
        %s1203 = scalar_lea.vmem [#allocation4], %s1202
        %s1204 = smul.u32 %s23, 2
        %s1205 = sadd.s32 %s1204, %s24
        %p1206 = scmp.lt.s32.totalorder %s1205, 3
        %s1207 = scalar_select %p1206, %s1205, 3
        %s1208 = scalar_lea.vmem %s6, %s1207
        %s1209 = smul.u32 %s23, 2
        %s1210 = sadd.s32 %s1209, %s24
        %p1211 = scmp.lt.s32.totalorder %s1210, 3
        %s1212 = scalar_select %p1211, %s1210, 3
        %s1213 = scalar_lea.vmem %s7, %s1212
        // Predicated region
        $region82: #{residual_block_forward.8} parent=76 // pred_check
          %p1214 = pneg %p163
        $region83: #{residual_block_forward.8} parent=76 // pred_check_branch
          %1216 = sbr.rel (%p1214) target = $region85
        $region84: #{residual_block_forward.8} parent=76 // pred_region
          %s1217 = smul.u32 4, %s24
          %s1218 = smul.addr %s23, 32
          %s1219 = sadd.s32 %s1217, %s1218
          %s1220 = smul.addr %s1219, 4
          %s1221 = scalar_lea.vmem %s5, %s1220
          // Predicated region
          $region86: #{residual_block_forward.8} parent=84 // pred_check
            _
          $region87: #{residual_block_forward.8} parent=84 // pred_check_branch
            %1223 = sbr.rel (0) target = $region89
          $region88: #{residual_block_forward.8} parent=84 // pred_region
            // Predicated region
            $region90: #{residual_block_forward.8} parent=88 // pred_check
              _
            $region91: #{residual_block_forward.8} parent=88 // pred_check_branch
              %1225 = sbr.rel target = $region93
            $region92: #{residual_block_forward.8} parent=88 // pred_region
              // Predicated region
              $region105: #{residual_block_forward.8} parent=92 // pred_check
                _
              $region106: #{residual_block_forward.8} parent=92 // pred_check_branch
                %1270 = sbr.rel (0) target = $region108
              $region107: #{residual_block_forward.8} parent=92 // pred_region
                loop: start=0, step=1, limit=1
                $region109: #{residual_block_forward.8} parent=107 // loop_pre_header
                  _
                $region110: #{residual_block_forward.8} parent=107 // loop_header
                  %s1272 = sphi 0, %s1276
                  %p1273 = scmp.ge.s32.totalorder %s1272, 1
                  %s1277 = sphi %s1203, %s1203
                  %s1278 = sphi %s1221, %s1221
                $region111: #{residual_block_forward.8} parent=107 // loop_header_branch
                  %1275 = sbr.rel (%p1273) target = $region115
                $region112: #{residual_block_forward.8} parent=107 // loop_body
                  _
                $region113: #{residual_block_forward.8} parent=107 // loop_footer
                  %s1276 = sadd.s32 1, %s1272
                $region114: #{residual_block_forward.8} parent=107 // loop_footer_branch
                  %1271 = sbr.rel target = $region110
                $region115: #{residual_block_forward.8} parent=107 // loop_exit
                  _
                loop: start=0, step=1, limit=1
                $region116: #{residual_block_forward.8} parent=107 // loop_pre_header
                  _
                $region117: #{residual_block_forward.8} parent=107 // loop_header
                  %s1281 = sphi 0, %s1285
                  %p1282 = scmp.ge.s32.totalorder %s1281, 1
                  %s1286 = sphi %s1203, %s1203
                  %s1287 = sphi %s1221, %s1221
                $region118: #{residual_block_forward.8} parent=107 // loop_header_branch
                  %1284 = sbr.rel (%p1282) target = $region122
                $region119: #{residual_block_forward.8} parent=107 // loop_body
                  %v1288 = vld [vmem:[%s1286] sm:$0xf]
                  %1289 = vst [vmem:[%s1287] sm:$0xf] %v1288
                  %v1290 = vld [vmem:[%s1286 + $0x4] sm:$0xf]
                  %1291 = vst [vmem:[%s1287 + $0x4] sm:$0xf] %v1290
                  %v1292 = vld [vmem:[%s1286 + $0x8] sm:$0xf]
                  %1293 = vst [vmem:[%s1287 + $0x8] sm:$0xf] %v1292
                  %v1294 = vld [vmem:[%s1286 + $0xc] sm:$0xf]
                  %1295 = vst [vmem:[%s1287 + $0xc] sm:$0xf] %v1294
                  %v1296 = vld [vmem:[%s1286 + $0x10] sm:$0xf]
                  %1297 = vst [vmem:[%s1287 + $0x20] sm:$0xf] %v1296
                  %v1298 = vld [vmem:[%s1286 + $0x14] sm:$0xf]
                  %1299 = vst [vmem:[%s1287 + $0x24] sm:$0xf] %v1298
                  %v1300 = vld [vmem:[%s1286 + $0x18] sm:$0xf]
                  %1301 = vst [vmem:[%s1287 + $0x28] sm:$0xf] %v1300
                  %v1302 = vld [vmem:[%s1286 + $0x1c] sm:$0xf]
                  %1303 = vst [vmem:[%s1287 + $0x2c] sm:$0xf] %v1302
                  %v1304 = vld [vmem:[%s1286 + $0x20] sm:$0xf]
                  %1305 = vst [vmem:[%s1287 + $0x40] sm:$0xf] %v1304
                  %v1306 = vld [vmem:[%s1286 + $0x24] sm:$0xf]
                  %1307 = vst [vmem:[%s1287 + $0x44] sm:$0xf] %v1306
                  %v1308 = vld [vmem:[%s1286 + $0x28] sm:$0xf]
                  %1309 = vst [vmem:[%s1287 + $0x48] sm:$0xf] %v1308
                  %v1310 = vld [vmem:[%s1286 + $0x2c] sm:$0xf]
                  %1311 = vst [vmem:[%s1287 + $0x4c] sm:$0xf] %v1310
                  %v1312 = vld [vmem:[%s1286 + $0x30] sm:$0xf]
                  %1313 = vst [vmem:[%s1287 + $0x60] sm:$0xf] %v1312
                  %v1314 = vld [vmem:[%s1286 + $0x34] sm:$0xf]
                  %1315 = vst [vmem:[%s1287 + $0x64] sm:$0xf] %v1314
                  %v1316 = vld [vmem:[%s1286 + $0x38] sm:$0xf]
                  %1317 = vst [vmem:[%s1287 + $0x68] sm:$0xf] %v1316
                  %v1318 = vld [vmem:[%s1286 + $0x3c] sm:$0xf]
                  %1319 = vst [vmem:[%s1287 + $0x6c] sm:$0xf] %v1318
                $region120: #{residual_block_forward.8} parent=107 // loop_footer
                  %s1285 = sadd.s32 1, %s1281
                $region121: #{residual_block_forward.8} parent=107 // loop_footer_branch
                  %1280 = sbr.rel target = $region117
                $region122: #{residual_block_forward.8} parent=107 // loop_exit
                  _
              $region108: #{residual_block_forward.8} parent=92 // pred_fallthru
                _
            $region93: #{residual_block_forward.8} parent=88 // pred_fallthru
              _
            // Predicated region
            $region94: #{residual_block_forward.8} parent=88 // pred_check
              _
            $region95: #{residual_block_forward.8} parent=88 // pred_check_branch
              %1227 = sbr.rel (0) target = $region97
            $region96: #{residual_block_forward.8} parent=88 // pred_region
              loop: start=0, step=1, limit=1
              $region98: #{residual_block_forward.8} parent=96 // loop_pre_header
                _
              $region99: #{residual_block_forward.8} parent=96 // loop_header
                %s1230 = sphi 0, %s1234
                %p1231 = scmp.ge.s32.totalorder %s1230, 1
                %s1235 = sphi %s1203, %s1203
                %s1236 = sphi %s1221, %s1221
              $region100: #{residual_block_forward.8} parent=96 // loop_header_branch
                %1233 = sbr.rel (%p1231) target = $region104
              $region101: #{residual_block_forward.8} parent=96 // loop_body
                %v1237 = vld [vmem:[%s1235] sm:$0xf]
                %1238 = vst [vmem:[%s1236] sm:$0xf] %v1237
                %v1239 = vld [vmem:[%s1235 + $0x4] sm:$0xf]
                %1240 = vst [vmem:[%s1236 + $0x4] sm:$0xf] %v1239
                %v1241 = vld [vmem:[%s1235 + $0x8] sm:$0xf]
                %1242 = vst [vmem:[%s1236 + $0x8] sm:$0xf] %v1241
                %v1243 = vld [vmem:[%s1235 + $0xc] sm:$0xf]
                %1244 = vst [vmem:[%s1236 + $0xc] sm:$0xf] %v1243
                %v1245 = vld [vmem:[%s1235 + $0x10] sm:$0xf]
                %1246 = vst [vmem:[%s1236 + $0x20] sm:$0xf] %v1245
                %v1247 = vld [vmem:[%s1235 + $0x14] sm:$0xf]
                %1248 = vst [vmem:[%s1236 + $0x24] sm:$0xf] %v1247
                %v1249 = vld [vmem:[%s1235 + $0x18] sm:$0xf]
                %1250 = vst [vmem:[%s1236 + $0x28] sm:$0xf] %v1249
                %v1251 = vld [vmem:[%s1235 + $0x1c] sm:$0xf]
                %1252 = vst [vmem:[%s1236 + $0x2c] sm:$0xf] %v1251
                %v1253 = vld [vmem:[%s1235 + $0x20] sm:$0xf]
                %1254 = vst [vmem:[%s1236 + $0x40] sm:$0xf] %v1253
                %v1255 = vld [vmem:[%s1235 + $0x24] sm:$0xf]
                %1256 = vst [vmem:[%s1236 + $0x44] sm:$0xf] %v1255
                %v1257 = vld [vmem:[%s1235 + $0x28] sm:$0xf]
                %1258 = vst [vmem:[%s1236 + $0x48] sm:$0xf] %v1257
                %v1259 = vld [vmem:[%s1235 + $0x2c] sm:$0xf]
                %1260 = vst [vmem:[%s1236 + $0x4c] sm:$0xf] %v1259
                %v1261 = vld [vmem:[%s1235 + $0x30] sm:$0xf]
                %1262 = vst [vmem:[%s1236 + $0x60] sm:$0xf] %v1261
                %v1263 = vld [vmem:[%s1235 + $0x34] sm:$0xf]
                %1264 = vst [vmem:[%s1236 + $0x64] sm:$0xf] %v1263
                %v1265 = vld [vmem:[%s1235 + $0x38] sm:$0xf]
                %1266 = vst [vmem:[%s1236 + $0x68] sm:$0xf] %v1265
                %v1267 = vld [vmem:[%s1235 + $0x3c] sm:$0xf]
                %1268 = vst [vmem:[%s1236 + $0x6c] sm:$0xf] %v1267
              $region102: #{residual_block_forward.8} parent=96 // loop_footer
                %s1234 = sadd.s32 1, %s1230
              $region103: #{residual_block_forward.8} parent=96 // loop_footer_branch
                %1229 = sbr.rel target = $region99
              $region104: #{residual_block_forward.8} parent=96 // loop_exit
                _
            $region97: #{residual_block_forward.8} parent=88 // pred_fallthru
              _
          $region89: #{residual_block_forward.8} parent=84 // pred_fallthru
            _
          %1320 = vnop
        $region85: #{residual_block_forward.8} parent=76 // pred_fallthru
          _
        // Predicated region
        $region123: #{residual_block_forward.8} parent=76 // pred_check
          %p1321 = pneg %p193
        $region124: #{residual_block_forward.8} parent=76 // pred_check_branch
          %1323 = sbr.rel (%p1321) target = $region126
        $region125: #{residual_block_forward.8} parent=76 // pred_region
          %s1324 = smul.u32 %s23, 2
          %s1325 = sadd.s32 %s1324, %s24
        $region126: #{residual_block_forward.8} parent=76 // pred_fallthru
          _
        // Predicated region
        $region127: #{residual_block_forward.8} parent=76 // pred_check
          %p1326 = pneg %p223
        $region128: #{residual_block_forward.8} parent=76 // pred_check_branch
          %1328 = sbr.rel (%p1326) target = $region130
        $region129: #{residual_block_forward.8} parent=76 // pred_region
          %s1329 = smul.u32 %s23, 2
          %s1330 = sadd.s32 %s1329, %s24
        $region130: #{residual_block_forward.8} parent=76 // pred_fallthru
          _
      $region77: #{residual_block_forward.8} parent=5 // pred_fallthru
        _
      %p1331 = scmp.le.s32.totalorder 2, %s14
      // Predicated region
      $region131: #{residual_block_forward.8} parent=5 // pred_check
        %p1332 = pneg %p1331
      $region132: #{residual_block_forward.8} parent=5 // pred_check_branch
        %1334 = sbr.rel (%p1332) target = $region134
      $region133: #{residual_block_forward.8} parent=5 // pred_region
        %s1335 = ssub.s32 %s14, 2
        // Predicated region
        $region135: #{residual_block_forward.8} parent=133 // pred_check
          %p1336 = pneg %p169
        $region136: #{residual_block_forward.8} parent=133 // pred_check_branch
          %1338 = sbr.rel (%p1336) target = $region138
        $region137: #{residual_block_forward.8} parent=133 // pred_region
          %s1339 = sand.u32 %s154, 1
          %s1340 = sand.u32 %s154, 1
          %s1341 = smul.addr %s1340, 64
          %s1342 = scalar_lea.vmem [#allocation4], %s1341
        $region138: #{residual_block_forward.8} parent=133 // pred_fallthru
          _
        // Predicated region
        $region139: #{residual_block_forward.8} parent=133 // pred_check
          %p1343 = pneg %p199
        $region140: #{residual_block_forward.8} parent=133 // pred_check_branch
          %1345 = sbr.rel (%p1343) target = $region142
        $region141: #{residual_block_forward.8} parent=133 // pred_region
          %s1346 = smul.u32 %s25, 2
          %s1347 = sadd.s32 %s1346, %s26
          %p1348 = scmp.lt.s32.totalorder %s1347, 3
          %s1349 = scalar_select %p1348, %s1347, 3
          %s1350 = scalar_lea.vmem %s6, %s1349
        $region142: #{residual_block_forward.8} parent=133 // pred_fallthru
          _
        // Predicated region
        $region143: #{residual_block_forward.8} parent=133 // pred_check
          %p1351 = pneg %p229
        $region144: #{residual_block_forward.8} parent=133 // pred_check_branch
          %1353 = sbr.rel (%p1351) target = $region146
        $region145: #{residual_block_forward.8} parent=133 // pred_region
          %s1354 = smul.u32 %s25, 2
          %s1355 = sadd.s32 %s1354, %s26
          %p1356 = scmp.lt.s32.totalorder %s1355, 3
          %s1357 = scalar_select %p1356, %s1355, 3
          %s1358 = scalar_lea.vmem %s7, %s1357
        $region146: #{residual_block_forward.8} parent=133 // pred_fallthru
          _
      $region134: #{residual_block_forward.8} parent=5 // pred_fallthru
        _
    $region6: #{residual_block_forward.8} parent=1 // loop_footer
      %s18 = sadd.s32 1, %s14
    $region7: #{residual_block_forward.8} parent=1 // loop_footer_branch
      %13 = sbr.rel target = $region3
    $region8: #{residual_block_forward.8} parent=1 // loop_exit
      _

// kernel: residual_block_forward.7
$region0: #{residual_block_forward.7}
  #allocation0 [shape = 'u32[]', space=smem, size = 0x4, offset = 0x4, fixed_abs, tag = 'smem constant byte address 0x4 - core index']
  #allocation1 [shape = 'u32[144,128]{1,0:T(1,128)}', space=vmem, size = 0x12000, scoped, tag = 'internal scratch']
  #allocation2 [shape = 'bf16[2,10,10,8]{3,2,1,0:T(8,128)(2,1)}', space=vmem, size = 0x14000, scoped, tag = 'scratch operand']
  #allocation3 [shape = 'bf16[2,10,8,24]{3,2,1,0:T(8,128)(2,1)}', space=vmem, size = 0xa000, scoped, tag = 'scratch operand']
  %s0 = inlined_call_operand.vmem [shape: bf16[8,8,8,8], index: 0, kind: input, shape index: {}]
  %s1 = inlined_call_operand.vmem [shape: f32[1,8], index: 1, kind: input, shape index: {}]
  %s2 = inlined_call_operand.vmem [shape: f32[1,8], index: 2, kind: input, shape index: {}]
  %s3 = inlined_call_operand.vmem [shape: bf16[3,24,18], index: 3, kind: input, shape index: {}]
  %s4 = inlined_call_operand.vmem [shape: f32[1,18], index: 4, kind: input, shape index: {}]
  %s5 = inlined_call_operand.vmem [shape: bf16[8,64,18], index: 5, kind: output, shape index: {0}]
  %s6 = inlined_call_operand.vmem [shape: f32[4,1,18], index: 6, kind: output, shape index: {1}]
  %s7 = inlined_call_operand.vmem [shape: f32[4,1,18], index: 7, kind: output, shape index: {2}]
  %8 = xla_tuple %s5, %s6, %s7
  %s9 = sld [smem:[#allocation0]]
  $region69: #{residual_block_forward.7} parent=0
    _
  %s11 = ssub.s32 1, %s9
  %s12 = scalar_select 0, %s11, %s9
  loop: start=0, step=1, limit=6
  $region2: #{residual_block_forward.7} parent=0 // loop_pre_header
    _
  $region3: #{residual_block_forward.7} parent=0 // loop_header
    %s14 = sphi 0, %s18
    %p15 = scmp.ge.s32.totalorder %s14, 6
    %s24 = sphi 0, %s26
    %s27 = sphi 0, %s24
    %s28 = sphi 0, %s27
    %s44 = sphi 0, %s28
    %s48 = sphi 0, %s48
    %s50 = sphi 0, %s48
    %s51 = sphi 0, %s50
    %s65 = sphi 0, %s51
    %s69 = sphi 0, %s69
    %s71 = sphi 0, %s69
    %s72 = sphi 0, %s71
    %s86 = sphi 0, %s72
    %s90 = sphi 0, %s90
    %s92 = sphi 0, %s90
    %s93 = sphi 0, %s92
    %s107 = sphi 0, %s93
    %s111 = sphi 0, %s111
    %s113 = sphi 0, %s111
    %s114 = sphi 0, %s113
    %s128 = sphi 0, %s114
    %s134 = sphi 0, %s136
    %s137 = sphi 0, %s134
    %s138 = sphi 0, %s137
    %s154 = sphi 0, %s138
    %s160 = sphi 0, %s162
    %s163 = sphi 0, %s160
    %s164 = sphi 0, %s163
    %s180 = sphi 0, %s164
    %s186 = sphi 0, %s188
    %s189 = sphi 0, %s186
    %s190 = sphi 0, %s189
    %s206 = sphi 0, %s190
  $region4: #{residual_block_forward.7} parent=0 // loop_header_branch
    %17 = sbr.rel (%p15) target = $region8
  $region5: #{residual_block_forward.7} parent=0 // loop_body
    %s19 = ssub.s32 %s14, 1
    %s20 = ssub.s32 %s14, 2
    %s21 = sadd.s32 %s14, 1
    %s22 = ssub.s32 %s14, %s21
    %p23 = scmp.eq.s32.totalorder %s22, 0
    %s25 = sadd.s32 %s24, 1
    %s26 = scalar_select %p23, %s24, %s25
    %p29 = pneg %p23
    %p30 = scmp.eq.s32.totalorder %s14, 3
    %p31 = por %p29, %p30
    %p32 = scmp.ne.s32.totalorder %s24, %s27
    %p33 = scmp.eq.s32.totalorder %s14, 0
    %p34 = por %p32, %p33
    %p35 = scmp.ne.s32.totalorder %s24, %s27
    %p36 = scmp.eq.s32.totalorder %s19, 3
    %p37 = por %p35, %p36
    %p38 = scmp.ne.s32.totalorder %s27, %s28
    %p39 = scmp.eq.s32.totalorder %s19, 0
    %p40 = por %p38, %p39
    %p41 = scmp.ne.s32.totalorder %s27, %s28
    %p42 = scmp.eq.s32.totalorder %s20, 3
    %p43 = por %p41, %p42
    %p45 = scmp.ne.s32.totalorder %s28, %s44
    %p46 = scmp.eq.s32.totalorder %s20, 0
    %p47 = por %p45, %p46
    %s49 = sadd.s32 %s48, 1
    %p52 = scmp.eq.s32.totalorder %s14, 3
    %p53 = scmp.ne.s32.totalorder %s48, %s50
    %p54 = scmp.eq.s32.totalorder %s14, 0
    %p55 = por %p53, %p54
    %p56 = scmp.ne.s32.totalorder %s48, %s50
    %p57 = scmp.eq.s32.totalorder %s19, 3
    %p58 = por %p56, %p57
    %p59 = scmp.ne.s32.totalorder %s50, %s51
    %p60 = scmp.eq.s32.totalorder %s19, 0
    %p61 = por %p59, %p60
    %p62 = scmp.ne.s32.totalorder %s50, %s51
    %p63 = scmp.eq.s32.totalorder %s20, 3
    %p64 = por %p62, %p63
    %p66 = scmp.ne.s32.totalorder %s51, %s65
    %p67 = scmp.eq.s32.totalorder %s20, 0
    %p68 = por %p66, %p67
    %s70 = sadd.s32 %s69, 1
    %p73 = scmp.eq.s32.totalorder %s14, 3
    %p74 = scmp.ne.s32.totalorder %s69, %s71
    %p75 = scmp.eq.s32.totalorder %s14, 0
    %p76 = por %p74, %p75
    %p77 = scmp.ne.s32.totalorder %s69, %s71
    %p78 = scmp.eq.s32.totalorder %s19, 3
    %p79 = por %p77, %p78
    %p80 = scmp.ne.s32.totalorder %s71, %s72
    %p81 = scmp.eq.s32.totalorder %s19, 0
    %p82 = por %p80, %p81
    %p83 = scmp.ne.s32.totalorder %s71, %s72
    %p84 = scmp.eq.s32.totalorder %s20, 3
    %p85 = por %p83, %p84
    %p87 = scmp.ne.s32.totalorder %s72, %s86
    %p88 = scmp.eq.s32.totalorder %s20, 0
    %p89 = por %p87, %p88
    %s91 = sadd.s32 %s90, 1
    %p94 = scmp.eq.s32.totalorder %s14, 3
    %p95 = scmp.ne.s32.totalorder %s90, %s92
    %p96 = scmp.eq.s32.totalorder %s14, 0
    %p97 = por %p95, %p96
    %p98 = scmp.ne.s32.totalorder %s90, %s92
    %p99 = scmp.eq.s32.totalorder %s19, 3
    %p100 = por %p98, %p99
    %p101 = scmp.ne.s32.totalorder %s92, %s93
    %p102 = scmp.eq.s32.totalorder %s19, 0
    %p103 = por %p101, %p102
    %p104 = scmp.ne.s32.totalorder %s92, %s93
    %p105 = scmp.eq.s32.totalorder %s20, 3
    %p106 = por %p104, %p105
    %p108 = scmp.ne.s32.totalorder %s93, %s107
    %p109 = scmp.eq.s32.totalorder %s20, 0
    %p110 = por %p108, %p109
    %s112 = sadd.s32 %s111, 1
    %p115 = scmp.eq.s32.totalorder %s14, 3
    %p116 = scmp.ne.s32.totalorder %s111, %s113
    %p117 = scmp.eq.s32.totalorder %s14, 0
    %p118 = por %p116, %p117
    %p119 = scmp.ne.s32.totalorder %s111, %s113
    %p120 = scmp.eq.s32.totalorder %s19, 3
    %p121 = por %p119, %p120
    %p122 = scmp.ne.s32.totalorder %s113, %s114
    %p123 = scmp.eq.s32.totalorder %s19, 0
    %p124 = por %p122, %p123
    %p125 = scmp.ne.s32.totalorder %s113, %s114
    %p126 = scmp.eq.s32.totalorder %s20, 3
    %p127 = por %p125, %p126
    %p129 = scmp.ne.s32.totalorder %s114, %s128
    %p130 = scmp.eq.s32.totalorder %s20, 0
    %p131 = por %p129, %p130
    %s132 = ssub.s32 %s14, %s21
    %p133 = scmp.eq.s32.totalorder %s132, 0
    %s135 = sadd.s32 %s134, 1
    %s136 = scalar_select %p133, %s134, %s135
    %p139 = pneg %p133
    %p140 = scmp.eq.s32.totalorder %s14, 3
    %p141 = por %p139, %p140
    %p142 = scmp.ne.s32.totalorder %s134, %s137
    %p143 = scmp.eq.s32.totalorder %s14, 0
    %p144 = por %p142, %p143
    %p145 = scmp.ne.s32.totalorder %s134, %s137
    %p146 = scmp.eq.s32.totalorder %s19, 3
    %p147 = por %p145, %p146
    %p148 = scmp.ne.s32.totalorder %s137, %s138
    %p149 = scmp.eq.s32.totalorder %s19, 0
    %p150 = por %p148, %p149
    %p151 = scmp.ne.s32.totalorder %s137, %s138
    %p152 = scmp.eq.s32.totalorder %s20, 3
    %p153 = por %p151, %p152
    %p155 = scmp.ne.s32.totalorder %s138, %s154
    %p156 = scmp.eq.s32.totalorder %s20, 0
    %p157 = por %p155, %p156
    %s158 = ssub.s32 %s14, %s21
    %p159 = scmp.eq.s32.totalorder %s158, 0
    %s161 = sadd.s32 %s160, 1
    %s162 = scalar_select %p159, %s160, %s161
    %p165 = pneg %p159
    %p166 = scmp.eq.s32.totalorder %s14, 3
    %p167 = por %p165, %p166
    %p168 = scmp.ne.s32.totalorder %s160, %s163
    %p169 = scmp.eq.s32.totalorder %s14, 0
    %p170 = por %p168, %p169
    %p171 = scmp.ne.s32.totalorder %s160, %s163
    %p172 = scmp.eq.s32.totalorder %s19, 3
    %p173 = por %p171, %p172
    %p174 = scmp.ne.s32.totalorder %s163, %s164
    %p175 = scmp.eq.s32.totalorder %s19, 0
    %p176 = por %p174, %p175
    %p177 = scmp.ne.s32.totalorder %s163, %s164
    %p178 = scmp.eq.s32.totalorder %s20, 3
    %p179 = por %p177, %p178
    %p181 = scmp.ne.s32.totalorder %s164, %s180
    %p182 = scmp.eq.s32.totalorder %s20, 0
    %p183 = por %p181, %p182
    %s184 = ssub.s32 %s14, %s21
    %p185 = scmp.eq.s32.totalorder %s184, 0
    %s187 = sadd.s32 %s186, 1
    %s188 = scalar_select %p185, %s186, %s187
    %p191 = pneg %p185
    %p192 = scmp.eq.s32.totalorder %s14, 3
    %p193 = por %p191, %p192
    %p194 = scmp.ne.s32.totalorder %s186, %s189
    %p195 = scmp.eq.s32.totalorder %s14, 0
    %p196 = por %p194, %p195
    %p197 = scmp.ne.s32.totalorder %s186, %s189
    %p198 = scmp.eq.s32.totalorder %s19, 3
    %p199 = por %p197, %p198
    %p200 = scmp.ne.s32.totalorder %s189, %s190
    %p201 = scmp.eq.s32.totalorder %s19, 0
    %p202 = por %p200, %p201
    %p203 = scmp.ne.s32.totalorder %s189, %s190
    %p204 = scmp.eq.s32.totalorder %s20, 3
    %p205 = por %p203, %p204
    %p207 = scmp.ne.s32.totalorder %s190, %s206
    %p208 = scmp.eq.s32.totalorder %s20, 0
    %p209 = por %p207, %p208
    %p210 = scmp.le.s32.totalorder 1, %s14
    %p211 = scmp.lt.s32.totalorder %s14, 5
    %p212 = pnand %p210, %p211
    %p213 = pneg %p212
    // Predicated region
    $region9: #{residual_block_forward.7} parent=5 // pred_check
      _
    $region10: #{residual_block_forward.7} parent=5 // pred_check_branch
      %215 = sbr.rel (%p212) target = $region12
    $region11: #{residual_block_forward.7} parent=5 // pred_region
      %s216 = ssub.s32 %s14, 1
      // Predicated region
      $region13: #{residual_block_forward.7} parent=11 // pred_check
        %p217 = pneg %p61
      $region14: #{residual_block_forward.7} parent=11 // pred_check_branch
        %219 = sbr.rel (%p217) target = $region16
      $region15: #{residual_block_forward.7} parent=11 // pred_region
        _
      $region16: #{residual_block_forward.7} parent=11 // pred_fallthru
        _
      // Predicated region
      $region17: #{residual_block_forward.7} parent=11 // pred_check
        %p220 = pneg %p82
      $region18: #{residual_block_forward.7} parent=11 // pred_check_branch
        %222 = sbr.rel (%p220) target = $region20
      $region19: #{residual_block_forward.7} parent=11 // pred_region
        _
      $region20: #{residual_block_forward.7} parent=11 // pred_fallthru
        _
      // Predicated region
      $region21: #{residual_block_forward.7} parent=11 // pred_check
        %p223 = pneg %p103
      $region22: #{residual_block_forward.7} parent=11 // pred_check_branch
        %225 = sbr.rel (%p223) target = $region24
      $region23: #{residual_block_forward.7} parent=11 // pred_region
        _
      $region24: #{residual_block_forward.7} parent=11 // pred_fallthru
        _
      // Predicated region
      $region25: #{residual_block_forward.7} parent=11 // pred_check
        %p226 = pneg %p124
      $region26: #{residual_block_forward.7} parent=11 // pred_check_branch
        %228 = sbr.rel (%p226) target = $region28
      $region27: #{residual_block_forward.7} parent=11 // pred_region
        _
      $region28: #{residual_block_forward.7} parent=11 // pred_fallthru
        _
    $region12: #{residual_block_forward.7} parent=5 // pred_fallthru
      _
    %p229 = scmp.lt.s32.totalorder %s14, 4
    // Predicated region
    $region29: #{residual_block_forward.7} parent=5 // pred_check
      %p230 = pneg %p229
    $region30: #{residual_block_forward.7} parent=5 // pred_check_branch
      %232 = sbr.rel (%p230) target = $region32
    $region31: #{residual_block_forward.7} parent=5 // pred_region
      // Predicated region
      $region33: #{residual_block_forward.7} parent=31 // pred_check
        %p233 = pneg %p34
      $region34: #{residual_block_forward.7} parent=31 // pred_check_branch
        %235 = sbr.rel (%p233) target = $region36
      $region35: #{residual_block_forward.7} parent=31 // pred_region
        %s236 = smul.u32 2, %s14
        %p237 = scmp.lt.s32.totalorder %s236, 7
        %s238 = scalar_select %p237, %s236, 7
        %s239 = smul.addr %s238, 8
        %s240 = smul.addr %s239, 4
        %s241 = scalar_lea.vmem %s0, %s240
        %s242 = smul.u32 2, %s14
      $region36: #{residual_block_forward.7} parent=31 // pred_fallthru
        _
    $region32: #{residual_block_forward.7} parent=5 // pred_fallthru
      _
    %p243 = scmp.le.s32.totalorder 1, %s14
    %p244 = scmp.lt.s32.totalorder %s14, 5
    %p245 = pnand %p243, %p244
    %p246 = pneg %p245
    // Predicated region
    $region37: #{residual_block_forward.7} parent=5 // pred_check
      _
    $region38: #{residual_block_forward.7} parent=5 // pred_check_branch
      %248 = sbr.rel (%p245) target = $region40
    $region39: #{residual_block_forward.7} parent=5 // pred_region
      %s249 = ssub.s32 %s14, 1
      %s250 = smul.u32 2, %s19
      %p251 = scmp.lt.s32.totalorder %s250, 7
      %s252 = scalar_select %p251, %s250, 7
      %s253 = smul.addr %s252, 8
      %s254 = smul.addr %s253, 4
      %s255 = scalar_lea.vmem %s0, %s254
      %p256 = pneg %p40
      %p257 = pneg %p37
      %p258 = pneg %p61
      %p259 = pneg %p58
      %p260 = pneg %p82
      %p261 = pneg %p79
      %p262 = pneg %p103
      %p263 = pneg %p100
      %p264 = pneg %p124
      %p265 = pneg %p121
      %p266 = pneg %p150
      %p267 = pneg %p147
      %s268 = smul.u32 2, %s19
      %p269 = scmp.lt.s32.totalorder %s268, 7
      %s270 = scalar_select %p269, %s268, 7
      %s271 = smul.addr %s270, 8
      %s272 = smul.addr %s271, 4
      %s273 = scalar_lea.vmem %s5, %s272
      %p274 = pneg %p176
      %p275 = pneg %p173
      %p276 = scmp.lt.s32.totalorder %s19, 3
      %s277 = scalar_select %p276, %s19, 3
      %s278 = scalar_lea.vmem %s6, %s277
      %p279 = pneg %p202
      %p280 = pneg %p199
      %p281 = scmp.lt.s32.totalorder %s19, 3
      %s282 = scalar_select %p281, %s19, 3
      %s283 = scalar_lea.vmem %s7, %s282
      %s284 = smul.u32 2, %s19
      %p285 = scmp.lt.s32.totalorder %s284, 7
      %s286 = scalar_select %p285, %s284, 7
      %s287 = smul.addr %s286, 8
      %s288 = smul.addr %s287, 4
      %s289 = scalar_lea.vmem %s0, %s288
      %s290 = smul.u32 2, %s19
      %s291 = smul.u32 2, %s19
      %p292 = scmp.lt.s32.totalorder %s291, 7
      %s293 = scalar_select %p292, %s291, 7
      %s294 = smul.addr %s293, 8
      %s295 = smul.addr %s294, 4
      %s296 = scalar_lea.vmem %s5, %s295
      %s297 = smul.u32 2, %s19
      %p298 = scmp.lt.s32.totalorder %s19, 3
      %s299 = scalar_select %p298, %s19, 3
      %s300 = scalar_lea.vmem %s6, %s299
      %p301 = scmp.lt.s32.totalorder %s19, 3
      %s302 = scalar_select %p301, %s19, 3
      %s303 = scalar_lea.vmem %s7, %s302
      %v305 = vld [vmem:[%s289] sm:$0xf]
      %v306 = vld [vmem:[%s289 + $0x4] sm:$0xf]
      %v307 = vld [vmem:[%s289 + $0x8] sm:$0xf]
      %v308 = vld [vmem:[%s289 + $0xc] sm:$0xf]
      %v309 = vld [vmem:[%s289 + $0x10] sm:$0xf]
      %v310 = vld [vmem:[%s289 + $0x14] sm:$0xf]
      %v311 = vld [vmem:[%s289 + $0x18] sm:$0xf]
      %v312 = vld [vmem:[%s289 + $0x1c] sm:$0xf]
      %v313 = vld [vmem:[%s289 + $0x20] sm:$0xf]
      %v314 = vld [vmem:[%s289 + $0x24] sm:$0xf]
      %v315 = vld [vmem:[%s289 + $0x28] sm:$0xf]
      %v316 = vld [vmem:[%s289 + $0x2c] sm:$0xf]
      %v317 = vld [vmem:[%s289 + $0x30] sm:$0xf]
      %v318 = vld [vmem:[%s289 + $0x34] sm:$0xf]
      %v319 = vld [vmem:[%s289 + $0x38] sm:$0xf]
      %v320 = vld [vmem:[%s289 + $0x3c] sm:$0xf]
      %v321 = vunpack.c.l.bf16 %v305
      %v322 = vunpack.c.l.bf16 %v306
      %v323 = vunpack.c.l.bf16 %v307
      %v324 = vunpack.c.l.bf16 %v308
      %v325 = vunpack.c.l.bf16 %v309
      %v326 = vunpack.c.l.bf16 %v310
      %v327 = vunpack.c.l.bf16 %v311
      %v328 = vunpack.c.l.bf16 %v312
      %v329 = vunpack.c.l.bf16 %v313
      %v330 = vunpack.c.l.bf16 %v314
      %v331 = vunpack.c.l.bf16 %v315
      %v332 = vunpack.c.l.bf16 %v316
      %v333 = vunpack.c.l.bf16 %v317
      %v334 = vunpack.c.l.bf16 %v318
      %v335 = vunpack.c.l.bf16 %v319
      %v336 = vunpack.c.l.bf16 %v320
      %v337 = vld [vmem:[%s1] sm:$0x1]
      %v339 = vlaneseq
      %v340 = vshrl.u32 %v339, 7
      %v341 = vsub.s32 0, %v340
      %v342 = vrot.slane %v337, %v341
      %v344 = vmul.f32 %v321, %v342
      %v345 = vmul.f32 %v322, %v342
      %v346 = vmul.f32 %v323, %v342
      %v347 = vmul.f32 %v324, %v342
      %v348 = vmul.f32 %v325, %v342
      %v349 = vmul.f32 %v326, %v342
      %v350 = vmul.f32 %v327, %v342
      %v351 = vmul.f32 %v328, %v342
      %v352 = vmul.f32 %v329, %v342
      %v353 = vmul.f32 %v330, %v342
      %v354 = vmul.f32 %v331, %v342
      %v355 = vmul.f32 %v332, %v342
      %v356 = vmul.f32 %v333, %v342
      %v357 = vmul.f32 %v334, %v342
      %v358 = vmul.f32 %v335, %v342
      %v359 = vmul.f32 %v336, %v342
      %v360 = vld [vmem:[%s2] sm:$0x1]
      %v362 = vlaneseq
      %v363 = vshrl.u32 %v362, 7
      %v364 = vsub.s32 0, %v363
      %v365 = vrot.slane %v360, %v364
      %v367 = vadd.f32 %v344, %v365
      %v368 = vadd.f32 %v345, %v365
      %v369 = vadd.f32 %v346, %v365
      %v370 = vadd.f32 %v347, %v365
      %v371 = vadd.f32 %v348, %v365
      %v372 = vadd.f32 %v349, %v365
      %v373 = vadd.f32 %v350, %v365
      %v374 = vadd.f32 %v351, %v365
      %v375 = vadd.f32 %v352, %v365
      %v376 = vadd.f32 %v353, %v365
      %v377 = vadd.f32 %v354, %v365
      %v378 = vadd.f32 %v355, %v365
      %v379 = vadd.f32 %v356, %v365
      %v380 = vadd.f32 %v357, %v365
      %v381 = vadd.f32 %v358, %v365
      %v382 = vadd.f32 %v359, %v365
      %v383 = vpack.c.bf16 %v367, %v367
      %v384 = vpack.c.bf16 %v368, %v368
      %v385 = vpack.c.bf16 %v369, %v369
      %v386 = vpack.c.bf16 %v370, %v370
      %v387 = vpack.c.bf16 %v371, %v371
      %v388 = vpack.c.bf16 %v372, %v372
      %v389 = vpack.c.bf16 %v373, %v373
      %v390 = vpack.c.bf16 %v374, %v374
      %v391 = vpack.c.bf16 %v375, %v375
      %v392 = vpack.c.bf16 %v376, %v376
      %v393 = vpack.c.bf16 %v377, %v377
      %v394 = vpack.c.bf16 %v378, %v378
      %v395 = vpack.c.bf16 %v379, %v379
      %v396 = vpack.c.bf16 %v380, %v380
      %v397 = vpack.c.bf16 %v381, %v381
      %v398 = vpack.c.bf16 %v382, %v382
      %vm399 = vcmask 60416
      %400 = vst.msk [vmem:[#allocation2] sm:$0xf] %vm399, 0
      %vm401 = vcmask 57344
      %402 = vst.msk [vmem:[#allocation2 + $0x4] sm:$0x1] %vm401, 0
      %403 = vst.msk [vmem:[#allocation2 + $0x50] sm:$0xf] %vm399, 0
      %404 = vst.msk [vmem:[#allocation2 + $0x54] sm:$0x1] %vm401, 0
      %s405 = scalar_lea.vmem [#allocation2], 72
      %406 = vst.msk [vmem:[%s405] sm:$0xf] %vm399, 0
      %407 = vst.msk [vmem:[%s405 + $0x4] sm:$0x1] %vm401, 0
      %408 = vst.msk [vmem:[%s405 + $0x50] sm:$0xf] %vm399, 0
      %409 = vst.msk [vmem:[%s405 + $0x54] sm:$0x1] %vm401, 0
      %s410 = scalar_lea.vmem [#allocation2], 8
      %vm411 = vcmask 57344
      %vm412 = vsmask.f32 256
      %vm413 = vmand %vm411, %vm412
      %v414 = vld [vmem:[%s410] sm:$0x1]
      %v415 = vsel %vm413, 0, %v414
      %416 = vst [vmem:[%s410] sm:$0x1] %v415
      %v417 = vld [vmem:[%s410 + $0x8] sm:$0x1]
      %v418 = vsel %vm413, 0, %v417
      %419 = vst [vmem:[%s410 + $0x8] sm:$0x1] %v418
      %v420 = vld [vmem:[%s410 + $0x10] sm:$0x1]
      %v421 = vsel %vm413, 0, %v420
      %422 = vst [vmem:[%s410 + $0x10] sm:$0x1] %v421
      %v423 = vld [vmem:[%s410 + $0x18] sm:$0x1]
      %v424 = vsel %vm413, 0, %v423
      %425 = vst [vmem:[%s410 + $0x18] sm:$0x1] %v424
      %v426 = vld [vmem:[%s410 + $0x20] sm:$0x1]
      %v427 = vsel %vm413, 0, %v426
      %428 = vst [vmem:[%s410 + $0x20] sm:$0x1] %v427
      %v429 = vld [vmem:[%s410 + $0x28] sm:$0x1]
      %v430 = vsel %vm413, 0, %v429
      %431 = vst [vmem:[%s410 + $0x28] sm:$0x1] %v430
      %v432 = vld [vmem:[%s410 + $0x30] sm:$0x1]
      %v433 = vsel %vm413, 0, %v432
      %434 = vst [vmem:[%s410 + $0x30] sm:$0x1] %v433
      %v435 = vld [vmem:[%s410 + $0x38] sm:$0x1]
      %v436 = vsel %vm413, 0, %v435
      %437 = vst [vmem:[%s410 + $0x38] sm:$0x1] %v436
      %v438 = vld [vmem:[%s410 + $0x50] sm:$0x1]
      %v439 = vsel %vm413, 0, %v438
      %440 = vst [vmem:[%s410 + $0x50] sm:$0x1] %v439
      %v441 = vld [vmem:[%s410 + $0x58] sm:$0x1]
      %v442 = vsel %vm413, 0, %v441
      %443 = vst [vmem:[%s410 + $0x58] sm:$0x1] %v442
      %v444 = vld [vmem:[%s410 + $0x60] sm:$0x1]
      %v445 = vsel %vm413, 0, %v444
      %446 = vst [vmem:[%s410 + $0x60] sm:$0x1] %v445
      %v447 = vld [vmem:[%s410 + $0x68] sm:$0x1]
      %v448 = vsel %vm413, 0, %v447
      %449 = vst [vmem:[%s410 + $0x68] sm:$0x1] %v448
      %v450 = vld [vmem:[%s410 + $0x70] sm:$0x1]
      %v451 = vsel %vm413, 0, %v450
      %452 = vst [vmem:[%s410 + $0x70] sm:$0x1] %v451
      %v453 = vld [vmem:[%s410 + $0x78] sm:$0x1]
      %v454 = vsel %vm413, 0, %v453
      %455 = vst [vmem:[%s410 + $0x78] sm:$0x1] %v454
      %v456 = vld [vmem:[%s410 + $0x80] sm:$0x1]
      %v457 = vsel %vm413, 0, %v456
      %458 = vst [vmem:[%s410 + $0x80] sm:$0x1] %v457
      %v459 = vld [vmem:[%s410 + $0x88] sm:$0x1]
      %v460 = vsel %vm413, 0, %v459
      %461 = vst [vmem:[%s410 + $0x88] sm:$0x1] %v460
      %vm462 = vsmask.f32 7938
      %vm463 = vmand %vm411, %vm462
      %v464 = vld [vmem:[%s410 + $0x4] sm:$0x1]
      %v465 = vsel %vm463, 0, %v464
      %466 = vst [vmem:[%s410 + $0x4] sm:$0x1] %v465
      %v467 = vld [vmem:[%s410 + $0xc] sm:$0x1]
      %v468 = vsel %vm463, 0, %v467
      %469 = vst [vmem:[%s410 + $0xc] sm:$0x1] %v468
      %v470 = vld [vmem:[%s410 + $0x14] sm:$0x1]
      %v471 = vsel %vm463, 0, %v470
      %472 = vst [vmem:[%s410 + $0x14] sm:$0x1] %v471
      %v473 = vld [vmem:[%s410 + $0x1c] sm:$0x1]
      %v474 = vsel %vm463, 0, %v473
      %475 = vst [vmem:[%s410 + $0x1c] sm:$0x1] %v474
      %v476 = vld [vmem:[%s410 + $0x24] sm:$0x1]
      %v477 = vsel %vm463, 0, %v476
      %478 = vst [vmem:[%s410 + $0x24] sm:$0x1] %v477
      %v479 = vld [vmem:[%s410 + $0x2c] sm:$0x1]
      %v480 = vsel %vm463, 0, %v479
      %481 = vst [vmem:[%s410 + $0x2c] sm:$0x1] %v480
      %v482 = vld [vmem:[%s410 + $0x34] sm:$0x1]
      %v483 = vsel %vm463, 0, %v482
      %484 = vst [vmem:[%s410 + $0x34] sm:$0x1] %v483
      %v485 = vld [vmem:[%s410 + $0x3c] sm:$0x1]
      %v486 = vsel %vm463, 0, %v485
      %487 = vst [vmem:[%s410 + $0x3c] sm:$0x1] %v486
      %v488 = vld [vmem:[%s410 + $0x54] sm:$0x1]
      %v489 = vsel %vm463, 0, %v488
      %490 = vst [vmem:[%s410 + $0x54] sm:$0x1] %v489
      %v491 = vld [vmem:[%s410 + $0x5c] sm:$0x1]
      %v492 = vsel %vm463, 0, %v491
      %493 = vst [vmem:[%s410 + $0x5c] sm:$0x1] %v492
      %v494 = vld [vmem:[%s410 + $0x64] sm:$0x1]
      %v495 = vsel %vm463, 0, %v494
      %496 = vst [vmem:[%s410 + $0x64] sm:$0x1] %v495
      %v497 = vld [vmem:[%s410 + $0x6c] sm:$0x1]
      %v498 = vsel %vm463, 0, %v497
      %499 = vst [vmem:[%s410 + $0x6c] sm:$0x1] %v498
      %v500 = vld [vmem:[%s410 + $0x74] sm:$0x1]
      %v501 = vsel %vm463, 0, %v500
      %502 = vst [vmem:[%s410 + $0x74] sm:$0x1] %v501
      %v503 = vld [vmem:[%s410 + $0x7c] sm:$0x1]
      %v504 = vsel %vm463, 0, %v503
      %505 = vst [vmem:[%s410 + $0x7c] sm:$0x1] %v504
      %v506 = vld [vmem:[%s410 + $0x84] sm:$0x1]
      %v507 = vsel %vm463, 0, %v506
      %508 = vst [vmem:[%s410 + $0x84] sm:$0x1] %v507
      %v509 = vld [vmem:[%s410 + $0x8c] sm:$0x1]
      %v510 = vsel %vm463, 0, %v509
      %511 = vst [vmem:[%s410 + $0x8c] sm:$0x1] %v510
      %v528 = vunpack.c.l.b16 %v383
      %v529 = vunpack.c.l.b16 %v384
      %v530 = vunpack.c.l.b16 %v385
      %v531 = vunpack.c.l.b16 %v386
      %v532 = vunpack.c.l.b16 %v387
      %v533 = vunpack.c.l.b16 %v388
      %v534 = vunpack.c.l.b16 %v389
      %v535 = vunpack.c.l.b16 %v390
      %v536 = vunpack.c.l.b16 %v391
      %v537 = vunpack.c.l.b16 %v392
      %v538 = vunpack.c.l.b16 %v393
      %v539 = vunpack.c.l.b16 %v394
      %v540 = vunpack.c.l.b16 %v395
      %v541 = vunpack.c.l.b16 %v396
      %v542 = vunpack.c.l.b16 %v397
      %v543 = vunpack.c.l.b16 %v398
      %v544 = vpack.c.b16 %v528, %v528
      %v545 = vpack.c.b16 %v529, %v529
      %v546 = vpack.c.b16 %v530, %v530
      %v547 = vpack.c.b16 %v531, %v531
      %v548 = vpack.c.b16 %v532, %v532
      %v549 = vpack.c.b16 %v533, %v533
      %v550 = vpack.c.b16 %v534, %v534
      %v551 = vpack.c.b16 %v535, %v535
      %v552 = vpack.c.b16 %v536, %v536
      %v553 = vpack.c.b16 %v537, %v537
      %v554 = vpack.c.b16 %v538, %v538
      %v555 = vpack.c.b16 %v539, %v539
      %v556 = vpack.c.b16 %v540, %v540
      %v557 = vpack.c.b16 %v541, %v541
      %v558 = vpack.c.b16 %v542, %v542
      %v559 = vpack.c.b16 %v543, %v543
      %v561 = vshrl.u32 %v544, 16
      %v563 = vrot.slane %v561, 7
      %v564 = vshll.u32 %v544, 16
      %v566 = vor.u32 %v563, %v564
      %v567 = vrot.slane %v563, 4
      %v569 = vshrl.u32 %v545, 16
      %v571 = vrot.slane %v569, 7
      %v572 = vshll.u32 %v545, 16
      %v574 = vor.u32 %v571, %v572
      %v575 = vrot.slane %v571, 4
      %v577 = vshrl.u32 %v546, 16
      %v579 = vrot.slane %v577, 7
      %v580 = vshll.u32 %v546, 16
      %v582 = vor.u32 %v579, %v580
      %v583 = vrot.slane %v579, 4
      %v585 = vshrl.u32 %v547, 16
      %v587 = vrot.slane %v585, 7
      %v588 = vshll.u32 %v547, 16
      %v590 = vor.u32 %v587, %v588
      %v591 = vrot.slane %v587, 4
      %v593 = vshrl.u32 %v548, 16
      %v595 = vrot.slane %v593, 7
      %v596 = vshll.u32 %v548, 16
      %v598 = vor.u32 %v595, %v596
      %v599 = vrot.slane %v595, 4
      %v601 = vshrl.u32 %v549, 16
      %v603 = vrot.slane %v601, 7
      %v604 = vshll.u32 %v549, 16
      %v606 = vor.u32 %v603, %v604
      %v607 = vrot.slane %v603, 4
      %v609 = vshrl.u32 %v550, 16
      %v611 = vrot.slane %v609, 7
      %v612 = vshll.u32 %v550, 16
      %v614 = vor.u32 %v611, %v612
      %v615 = vrot.slane %v611, 4
      %v617 = vshrl.u32 %v551, 16
      %v619 = vrot.slane %v617, 7
      %v620 = vshll.u32 %v551, 16
      %v622 = vor.u32 %v619, %v620
      %v623 = vrot.slane %v619, 4
      %v625 = vshrl.u32 %v552, 16
      %v627 = vrot.slane %v625, 7
      %v628 = vshll.u32 %v552, 16
      %v630 = vor.u32 %v627, %v628
      %v631 = vrot.slane %v627, 4
      %v633 = vshrl.u32 %v553, 16
      %v635 = vrot.slane %v633, 7
      %v636 = vshll.u32 %v553, 16
      %v638 = vor.u32 %v635, %v636
      %v639 = vrot.slane %v635, 4
      %v641 = vshrl.u32 %v554, 16
      %v643 = vrot.slane %v641, 7
      %v644 = vshll.u32 %v554, 16
      %v646 = vor.u32 %v643, %v644
      %v647 = vrot.slane %v643, 4
      %v649 = vshrl.u32 %v555, 16
      %v651 = vrot.slane %v649, 7
      %v652 = vshll.u32 %v555, 16
      %v654 = vor.u32 %v651, %v652
      %v655 = vrot.slane %v651, 4
      %v657 = vshrl.u32 %v556, 16
      %v659 = vrot.slane %v657, 7
      %v660 = vshll.u32 %v556, 16
      %v662 = vor.u32 %v659, %v660
      %v663 = vrot.slane %v659, 4
      %v665 = vshrl.u32 %v557, 16
      %v667 = vrot.slane %v665, 7
      %v668 = vshll.u32 %v557, 16
      %v670 = vor.u32 %v667, %v668
      %v671 = vrot.slane %v667, 4
      %v673 = vshrl.u32 %v558, 16
      %v675 = vrot.slane %v673, 7
      %v676 = vshll.u32 %v558, 16
      %v678 = vor.u32 %v675, %v676
      %v679 = vrot.slane %v675, 4
      %v681 = vshrl.u32 %v559, 16
      %v683 = vrot.slane %v681, 7
      %v684 = vshll.u32 %v559, 16
      %v686 = vor.u32 %v683, %v684
      %v687 = vrot.slane %v683, 4
      %vm720 = vcmask 60416
      %vm721 = vmand %vm720, %vm462
      %v722 = vld [vmem:[%s410] sm:$0xf]
      %v723 = vsel %vm721, %v566, %v722
      %724 = vst [vmem:[%s410] sm:$0xf] %v723
      %v725 = vld [vmem:[%s410 + $0x4] sm:$0x1]
      %v726 = vsel %vm413, %v567, %v725
      %727 = vst [vmem:[%s410 + $0x4] sm:$0x1] %v726
      %v728 = vld [vmem:[%s410 + $0x8] sm:$0xf]
      %v729 = vsel %vm721, %v574, %v728
      %730 = vst [vmem:[%s410 + $0x8] sm:$0xf] %v729
      %v731 = vld [vmem:[%s410 + $0xc] sm:$0x1]
      %v732 = vsel %vm413, %v575, %v731
      %733 = vst [vmem:[%s410 + $0xc] sm:$0x1] %v732
      %v734 = vld [vmem:[%s410 + $0x10] sm:$0xf]
      %v735 = vsel %vm721, %v582, %v734
      %736 = vst [vmem:[%s410 + $0x10] sm:$0xf] %v735
      %v737 = vld [vmem:[%s410 + $0x14] sm:$0x1]
      %v738 = vsel %vm413, %v583, %v737
      %739 = vst [vmem:[%s410 + $0x14] sm:$0x1] %v738
      %v740 = vld [vmem:[%s410 + $0x18] sm:$0xf]
      %v741 = vsel %vm721, %v590, %v740
      %742 = vst [vmem:[%s410 + $0x18] sm:$0xf] %v741
      %v743 = vld [vmem:[%s410 + $0x1c] sm:$0x1]
      %v744 = vsel %vm413, %v591, %v743
      %745 = vst [vmem:[%s410 + $0x1c] sm:$0x1] %v744
      %v746 = vld [vmem:[%s410 + $0x20] sm:$0xf]
      %v747 = vsel %vm721, %v598, %v746
      %748 = vst [vmem:[%s410 + $0x20] sm:$0xf] %v747
      %v749 = vld [vmem:[%s410 + $0x24] sm:$0x1]
      %v750 = vsel %vm413, %v599, %v749
      %751 = vst [vmem:[%s410 + $0x24] sm:$0x1] %v750
      %v752 = vld [vmem:[%s410 + $0x28] sm:$0xf]
      %v753 = vsel %vm721, %v606, %v752
      %754 = vst [vmem:[%s410 + $0x28] sm:$0xf] %v753
      %v755 = vld [vmem:[%s410 + $0x2c] sm:$0x1]
      %v756 = vsel %vm413, %v607, %v755
      %757 = vst [vmem:[%s410 + $0x2c] sm:$0x1] %v756
      %v758 = vld [vmem:[%s410 + $0x30] sm:$0xf]
      %v759 = vsel %vm721, %v614, %v758
      %760 = vst [vmem:[%s410 + $0x30] sm:$0xf] %v759
      %v761 = vld [vmem:[%s410 + $0x34] sm:$0x1]
      %v762 = vsel %vm413, %v615, %v761
      %763 = vst [vmem:[%s410 + $0x34] sm:$0x1] %v762
      %v764 = vld [vmem:[%s410 + $0x38] sm:$0xf]
      %v765 = vsel %vm721, %v622, %v764
      %766 = vst [vmem:[%s410 + $0x38] sm:$0xf] %v765
      %v767 = vld [vmem:[%s410 + $0x3c] sm:$0x1]
      %v768 = vsel %vm413, %v623, %v767
      %769 = vst [vmem:[%s410 + $0x3c] sm:$0x1] %v768
      %v770 = vld [vmem:[%s410 + $0x50] sm:$0xf]
      %v771 = vsel %vm721, %v630, %v770
      %772 = vst [vmem:[%s410 + $0x50] sm:$0xf] %v771
      %v773 = vld [vmem:[%s410 + $0x54] sm:$0x1]
      %v774 = vsel %vm413, %v631, %v773
      %775 = vst [vmem:[%s410 + $0x54] sm:$0x1] %v774
      %v776 = vld [vmem:[%s410 + $0x58] sm:$0xf]
      %v777 = vsel %vm721, %v638, %v776
      %778 = vst [vmem:[%s410 + $0x58] sm:$0xf] %v777
      %v779 = vld [vmem:[%s410 + $0x5c] sm:$0x1]
      %v780 = vsel %vm413, %v639, %v779
      %781 = vst [vmem:[%s410 + $0x5c] sm:$0x1] %v780
      %v782 = vld [vmem:[%s410 + $0x60] sm:$0xf]
      %v783 = vsel %vm721, %v646, %v782
      %784 = vst [vmem:[%s410 + $0x60] sm:$0xf] %v783
      %v785 = vld [vmem:[%s410 + $0x64] sm:$0x1]
      %v786 = vsel %vm413, %v647, %v785
      %787 = vst [vmem:[%s410 + $0x64] sm:$0x1] %v786
      %v788 = vld [vmem:[%s410 + $0x68] sm:$0xf]
      %v789 = vsel %vm721, %v654, %v788
      %790 = vst [vmem:[%s410 + $0x68] sm:$0xf] %v789
      %v791 = vld [vmem:[%s410 + $0x6c] sm:$0x1]
      %v792 = vsel %vm413, %v655, %v791
      %793 = vst [vmem:[%s410 + $0x6c] sm:$0x1] %v792
      %v794 = vld [vmem:[%s410 + $0x70] sm:$0xf]
      %v795 = vsel %vm721, %v662, %v794
      %796 = vst [vmem:[%s410 + $0x70] sm:$0xf] %v795
      %v797 = vld [vmem:[%s410 + $0x74] sm:$0x1]
      %v798 = vsel %vm413, %v663, %v797
      %799 = vst [vmem:[%s410 + $0x74] sm:$0x1] %v798
      %v800 = vld [vmem:[%s410 + $0x78] sm:$0xf]
      %v801 = vsel %vm721, %v670, %v800
      %802 = vst [vmem:[%s410 + $0x78] sm:$0xf] %v801
      %v803 = vld [vmem:[%s410 + $0x7c] sm:$0x1]
      %v804 = vsel %vm413, %v671, %v803
      %805 = vst [vmem:[%s410 + $0x7c] sm:$0x1] %v804
      %v806 = vld [vmem:[%s410 + $0x80] sm:$0xf]
      %v807 = vsel %vm721, %v678, %v806
      %808 = vst [vmem:[%s410 + $0x80] sm:$0xf] %v807
      %v809 = vld [vmem:[%s410 + $0x84] sm:$0x1]
      %v810 = vsel %vm413, %v679, %v809
      %811 = vst [vmem:[%s410 + $0x84] sm:$0x1] %v810
      %v812 = vld [vmem:[%s410 + $0x88] sm:$0xf]
      %v813 = vsel %vm721, %v686, %v812
      %814 = vst [vmem:[%s410 + $0x88] sm:$0xf] %v813
      %v815 = vld [vmem:[%s410 + $0x8c] sm:$0x1]
      %v816 = vsel %vm413, %v687, %v815
      %817 = vst [vmem:[%s410 + $0x8c] sm:$0x1] %v816
      %v818 = vld [vmem:[#allocation2] sm:$0xf]
      %v819 = vld [vmem:[#allocation2 + $0x8] sm:$0xf]
      %v820 = vld [vmem:[#allocation2 + $0x10] sm:$0xf]
      %v821 = vld [vmem:[#allocation2 + $0x18] sm:$0xf]
      %v822 = vld [vmem:[#allocation2 + $0x20] sm:$0xf]
      %v823 = vld [vmem:[#allocation2 + $0x28] sm:$0xf]
      %v824 = vld [vmem:[#allocation2 + $0x30] sm:$0xf]
      %v825 = vld [vmem:[#allocation2 + $0x38] sm:$0xf]
      %v826 = vld [vmem:[#allocation2 + $0x40] sm:$0xf]
      %v827 = vld [vmem:[#allocation2 + $0x48] sm:$0xf]
      %v828 = vld [vmem:[#allocation2 + $0x50] sm:$0xf]
      %v829 = vld [vmem:[#allocation2 + $0x58] sm:$0xf]
      %v830 = vld [vmem:[#allocation2 + $0x60] sm:$0xf]
      %v831 = vld [vmem:[#allocation2 + $0x68] sm:$0xf]
      %v832 = vld [vmem:[#allocation2 + $0x70] sm:$0xf]
      %v833 = vld [vmem:[#allocation2 + $0x78] sm:$0xf]
      %v834 = vld [vmem:[#allocation2 + $0x80] sm:$0xf]
      %v835 = vld [vmem:[#allocation2 + $0x88] sm:$0xf]
      %v836 = vld [vmem:[#allocation2 + $0x90] sm:$0xf]
      %v837 = vld [vmem:[#allocation2 + $0x98] sm:$0xf]
      %838 = vst.msk [vmem:[#allocation3] sm:$0xf] %vm399, %v818
      %839 = vst.msk [vmem:[#allocation3 + $0x4] sm:$0xf] %vm399, %v819
      %840 = vst.msk [vmem:[#allocation3 + $0x8] sm:$0xf] %vm399, %v820
      %841 = vst.msk [vmem:[#allocation3 + $0xc] sm:$0xf] %vm399, %v821
      %842 = vst.msk [vmem:[#allocation3 + $0x10] sm:$0xf] %vm399, %v822
      %843 = vst.msk [vmem:[#allocation3 + $0x14] sm:$0xf] %vm399, %v823
      %844 = vst.msk [vmem:[#allocation3 + $0x18] sm:$0xf] %vm399, %v824
      %845 = vst.msk [vmem:[#allocation3 + $0x1c] sm:$0xf] %vm399, %v825
      %846 = vst.msk [vmem:[#allocation3 + $0x20] sm:$0xf] %vm399, %v826
      %847 = vst.msk [vmem:[#allocation3 + $0x24] sm:$0xf] %vm399, %v827
      %848 = vst.msk [vmem:[#allocation3 + $0x28] sm:$0xf] %vm399, %v828
      %849 = vst.msk [vmem:[#allocation3 + $0x2c] sm:$0xf] %vm399, %v829
      %850 = vst.msk [vmem:[#allocation3 + $0x30] sm:$0xf] %vm399, %v830
      %851 = vst.msk [vmem:[#allocation3 + $0x34] sm:$0xf] %vm399, %v831
      %852 = vst.msk [vmem:[#allocation3 + $0x38] sm:$0xf] %vm399, %v832
      %853 = vst.msk [vmem:[#allocation3 + $0x3c] sm:$0xf] %vm399, %v833
      %854 = vst.msk [vmem:[#allocation3 + $0x40] sm:$0xf] %vm399, %v834
      %855 = vst.msk [vmem:[#allocation3 + $0x44] sm:$0xf] %vm399, %v835
      %856 = vst.msk [vmem:[#allocation3 + $0x48] sm:$0xf] %vm399, %v836
      %857 = vst.msk [vmem:[#allocation3 + $0x4c] sm:$0xf] %vm399, %v837
      %v858 = vld [vmem:[#allocation2] sm:$0xf]
      %v859 = vld [vmem:[#allocation2 + $0x4] sm:$0x1]
      %v860 = vld [vmem:[#allocation2 + $0x8] sm:$0xf]
      %v861 = vld [vmem:[#allocation2 + $0xc] sm:$0x1]
      %v862 = vld [vmem:[#allocation2 + $0x10] sm:$0xf]
      %v863 = vld [vmem:[#allocation2 + $0x14] sm:$0x1]
      %v864 = vld [vmem:[#allocation2 + $0x18] sm:$0xf]
      %v865 = vld [vmem:[#allocation2 + $0x1c] sm:$0x1]
      %v866 = vld [vmem:[#allocation2 + $0x20] sm:$0xf]
      %v867 = vld [vmem:[#allocation2 + $0x24] sm:$0x1]
      %v868 = vld [vmem:[#allocation2 + $0x28] sm:$0xf]
      %v869 = vld [vmem:[#allocation2 + $0x2c] sm:$0x1]
      %v870 = vld [vmem:[#allocation2 + $0x30] sm:$0xf]
      %v871 = vld [vmem:[#allocation2 + $0x34] sm:$0x1]
      %v872 = vld [vmem:[#allocation2 + $0x38] sm:$0xf]
      %v873 = vld [vmem:[#allocation2 + $0x3c] sm:$0x1]
      %v874 = vld [vmem:[#allocation2 + $0x40] sm:$0xf]
      %v875 = vld [vmem:[#allocation2 + $0x44] sm:$0x1]
      %v876 = vld [vmem:[#allocation2 + $0x48] sm:$0xf]
      %v877 = vld [vmem:[#allocation2 + $0x4c] sm:$0x1]
      %v878 = vld [vmem:[#allocation2 + $0x50] sm:$0xf]
      %v879 = vld [vmem:[#allocation2 + $0x54] sm:$0x1]
      %v880 = vld [vmem:[#allocation2 + $0x58] sm:$0xf]
      %v881 = vld [vmem:[#allocation2 + $0x5c] sm:$0x1]
      %v882 = vld [vmem:[#allocation2 + $0x60] sm:$0xf]
      %v883 = vld [vmem:[#allocation2 + $0x64] sm:$0x1]
      %v884 = vld [vmem:[#allocation2 + $0x68] sm:$0xf]
      %v885 = vld [vmem:[#allocation2 + $0x6c] sm:$0x1]
      %v886 = vld [vmem:[#allocation2 + $0x70] sm:$0xf]
      %v887 = vld [vmem:[#allocation2 + $0x74] sm:$0x1]
      %v888 = vld [vmem:[#allocation2 + $0x78] sm:$0xf]
      %v889 = vld [vmem:[#allocation2 + $0x7c] sm:$0x1]
      %v890 = vld [vmem:[#allocation2 + $0x80] sm:$0xf]
      %v891 = vld [vmem:[#allocation2 + $0x84] sm:$0x1]
      %v892 = vld [vmem:[#allocation2 + $0x88] sm:$0xf]
      %v893 = vld [vmem:[#allocation2 + $0x8c] sm:$0x1]
      %v894 = vld [vmem:[#allocation2 + $0x90] sm:$0xf]
      %v895 = vld [vmem:[#allocation2 + $0x94] sm:$0x1]
      %v896 = vld [vmem:[#allocation2 + $0x98] sm:$0xf]
      %v897 = vld [vmem:[#allocation2 + $0x9c] sm:$0x1]
      %vm898 = vsmask.f32 3328
      %vm899 = vsmask.f32 7440
      %vm900 = vmor %vm898, %vm899
      %v902 = vshrl.u32 %v858, 16
      %v904 = vrot.slane %v902, 4
      %v905 = vshll.u32 %v858, 16
      %v907 = vrot.slane %v905, 5
      %v908 = vor.u32 %v904, %v907
      %v909 = vrot.slane %v908, 4
      %v911 = vshll.u32 %v859, 16
      %v913 = vrot.slane %v911, 5
      %v914 = vsel %vm900, %v909, %v913
      %v916 = vshrl.u32 %v860, 16
      %v918 = vrot.slane %v916, 4
      %v919 = vshll.u32 %v860, 16
      %v921 = vrot.slane %v919, 5
      %v922 = vor.u32 %v918, %v921
      %v923 = vrot.slane %v922, 4
      %v925 = vshll.u32 %v861, 16
      %v927 = vrot.slane %v925, 5
      %v928 = vsel %vm900, %v923, %v927
      %v930 = vshrl.u32 %v862, 16
      %v932 = vrot.slane %v930, 4
      %v933 = vshll.u32 %v862, 16
      %v935 = vrot.slane %v933, 5
      %v936 = vor.u32 %v932, %v935
      %v937 = vrot.slane %v936, 4
      %v939 = vshll.u32 %v863, 16
      %v941 = vrot.slane %v939, 5
      %v942 = vsel %vm900, %v937, %v941
      %v944 = vshrl.u32 %v864, 16
      %v946 = vrot.slane %v944, 4
      %v947 = vshll.u32 %v864, 16
      %v949 = vrot.slane %v947, 5
      %v950 = vor.u32 %v946, %v949
      %v951 = vrot.slane %v950, 4
      %v953 = vshll.u32 %v865, 16
      %v955 = vrot.slane %v953, 5
      %v956 = vsel %vm900, %v951, %v955
      %v958 = vshrl.u32 %v866, 16
      %v960 = vrot.slane %v958, 4
      %v961 = vshll.u32 %v866, 16
      %v963 = vrot.slane %v961, 5
      %v964 = vor.u32 %v960, %v963
      %v965 = vrot.slane %v964, 4
      %v967 = vshll.u32 %v867, 16
      %v969 = vrot.slane %v967, 5
      %v970 = vsel %vm900, %v965, %v969
      %v972 = vshrl.u32 %v868, 16
      %v974 = vrot.slane %v972, 4
      %v975 = vshll.u32 %v868, 16
      %v977 = vrot.slane %v975, 5
      %v978 = vor.u32 %v974, %v977
      %v979 = vrot.slane %v978, 4
      %v981 = vshll.u32 %v869, 16
      %v983 = vrot.slane %v981, 5
      %v984 = vsel %vm900, %v979, %v983
      %v986 = vshrl.u32 %v870, 16
      %v988 = vrot.slane %v986, 4
      %v989 = vshll.u32 %v870, 16
      %v991 = vrot.slane %v989, 5
      %v992 = vor.u32 %v988, %v991
      %v993 = vrot.slane %v992, 4
      %v995 = vshll.u32 %v871, 16
      %v997 = vrot.slane %v995, 5
      %v998 = vsel %vm900, %v993, %v997
      %v1000 = vshrl.u32 %v872, 16
      %v1002 = vrot.slane %v1000, 4
      %v1003 = vshll.u32 %v872, 16
      %v1005 = vrot.slane %v1003, 5
      %v1006 = vor.u32 %v1002, %v1005
      %v1007 = vrot.slane %v1006, 4
      %v1009 = vshll.u32 %v873, 16
      %v1011 = vrot.slane %v1009, 5
      %v1012 = vsel %vm900, %v1007, %v1011
      %v1014 = vshrl.u32 %v874, 16
      %v1016 = vrot.slane %v1014, 4
      %v1017 = vshll.u32 %v874, 16
      %v1019 = vrot.slane %v1017, 5
      %v1020 = vor.u32 %v1016, %v1019
      %v1021 = vrot.slane %v1020, 4
      %v1023 = vshll.u32 %v875, 16
      %v1025 = vrot.slane %v1023, 5
      %v1026 = vsel %vm900, %v1021, %v1025
      %v1028 = vshrl.u32 %v876, 16
      %v1030 = vrot.slane %v1028, 4
      %v1031 = vshll.u32 %v876, 16
      %v1033 = vrot.slane %v1031, 5
      %v1034 = vor.u32 %v1030, %v1033
      %v1035 = vrot.slane %v1034, 4
      %v1037 = vshll.u32 %v877, 16
      %v1039 = vrot.slane %v1037, 5
      %v1040 = vsel %vm900, %v1035, %v1039
      %v1042 = vshrl.u32 %v878, 16
      %v1044 = vrot.slane %v1042, 4
      %v1045 = vshll.u32 %v878, 16
      %v1047 = vrot.slane %v1045, 5
      %v1048 = vor.u32 %v1044, %v1047
      %v1049 = vrot.slane %v1048, 4
      %v1051 = vshll.u32 %v879, 16
      %v1053 = vrot.slane %v1051, 5
      %v1054 = vsel %vm900, %v1049, %v1053
      %v1056 = vshrl.u32 %v880, 16
      %v1058 = vrot.slane %v1056, 4
      %v1059 = vshll.u32 %v880, 16
      %v1061 = vrot.slane %v1059, 5
      %v1062 = vor.u32 %v1058, %v1061
      %v1063 = vrot.slane %v1062, 4
      %v1065 = vshll.u32 %v881, 16
      %v1067 = vrot.slane %v1065, 5
      %v1068 = vsel %vm900, %v1063, %v1067
      %v1070 = vshrl.u32 %v882, 16
      %v1072 = vrot.slane %v1070, 4
      %v1073 = vshll.u32 %v882, 16
      %v1075 = vrot.slane %v1073, 5
      %v1076 = vor.u32 %v1072, %v1075
      %v1077 = vrot.slane %v1076, 4
      %v1079 = vshll.u32 %v883, 16
      %v1081 = vrot.slane %v1079, 5
      %v1082 = vsel %vm900, %v1077, %v1081
      %v1084 = vshrl.u32 %v884, 16
      %v1086 = vrot.slane %v1084, 4
      %v1087 = vshll.u32 %v884, 16
      %v1089 = vrot.slane %v1087, 5
      %v1090 = vor.u32 %v1086, %v1089
      %v1091 = vrot.slane %v1090, 4
      %v1093 = vshll.u32 %v885, 16
      %v1095 = vrot.slane %v1093, 5
      %v1096 = vsel %vm900, %v1091, %v1095
      %v1098 = vshrl.u32 %v886, 16
      %v1100 = vrot.slane %v1098, 4
      %v1101 = vshll.u32 %v886, 16
      %v1103 = vrot.slane %v1101, 5
      %v1104 = vor.u32 %v1100, %v1103
      %v1105 = vrot.slane %v1104, 4
      %v1107 = vshll.u32 %v887, 16
      %v1109 = vrot.slane %v1107, 5
      %v1110 = vsel %vm900, %v1105, %v1109
      %v1112 = vshrl.u32 %v888, 16
      %v1114 = vrot.slane %v1112, 4
      %v1115 = vshll.u32 %v888, 16
      %v1117 = vrot.slane %v1115, 5
      %v1118 = vor.u32 %v1114, %v1117
      %v1119 = vrot.slane %v1118, 4
      %v1121 = vshll.u32 %v889, 16
      %v1123 = vrot.slane %v1121, 5
      %v1124 = vsel %vm900, %v1119, %v1123
      %v1126 = vshrl.u32 %v890, 16
      %v1128 = vrot.slane %v1126, 4
      %v1129 = vshll.u32 %v890, 16
      %v1131 = vrot.slane %v1129, 5
      %v1132 = vor.u32 %v1128, %v1131
      %v1133 = vrot.slane %v1132, 4
      %v1135 = vshll.u32 %v891, 16
      %v1137 = vrot.slane %v1135, 5
      %v1138 = vsel %vm900, %v1133, %v1137
      %v1140 = vshrl.u32 %v892, 16
      %v1142 = vrot.slane %v1140, 4
      %v1143 = vshll.u32 %v892, 16
      %v1145 = vrot.slane %v1143, 5
      %v1146 = vor.u32 %v1142, %v1145
      %v1147 = vrot.slane %v1146, 4
      %v1149 = vshll.u32 %v893, 16
      %v1151 = vrot.slane %v1149, 5
      %v1152 = vsel %vm900, %v1147, %v1151
      %v1154 = vshrl.u32 %v894, 16
      %v1156 = vrot.slane %v1154, 4
      %v1157 = vshll.u32 %v894, 16
      %v1159 = vrot.slane %v1157, 5
      %v1160 = vor.u32 %v1156, %v1159
      %v1161 = vrot.slane %v1160, 4
      %v1163 = vshll.u32 %v895, 16
      %v1165 = vrot.slane %v1163, 5
      %v1166 = vsel %vm900, %v1161, %v1165
      %v1168 = vshrl.u32 %v896, 16
      %v1170 = vrot.slane %v1168, 4
      %v1171 = vshll.u32 %v896, 16
      %v1173 = vrot.slane %v1171, 5
      %v1174 = vor.u32 %v1170, %v1173
      %v1175 = vrot.slane %v1174, 4
      %v1177 = vshll.u32 %v897, 16
      %v1179 = vrot.slane %v1177, 5
      %v1180 = vsel %vm900, %v1175, %v1179
      %1181 = vrot.lane.b32.xlu0 %v914, 8
      %v1182 = vpop.permute.xlu0 %1181
      %1183 = vrot.lane.b32.xlu0 %v928, 8
      %v1184 = vpop.permute.xlu0 %1183
      %1185 = vrot.lane.b32.xlu0 %v942, 8
      %v1186 = vpop.permute.xlu0 %1185
      %1187 = vrot.lane.b32.xlu0 %v956, 8
      %v1188 = vpop.permute.xlu0 %1187
      %1189 = vrot.lane.b32.xlu0 %v970, 8
      %v1190 = vpop.permute.xlu0 %1189
      %1191 = vrot.lane.b32.xlu0 %v984, 8
      %v1192 = vpop.permute.xlu0 %1191
      %1193 = vrot.lane.b32.xlu0 %v998, 8
      %v1194 = vpop.permute.xlu0 %1193
      %1195 = vrot.lane.b32.xlu0 %v1012, 8
      %v1196 = vpop.permute.xlu0 %1195
      %1197 = vrot.lane.b32.xlu0 %v1026, 8
      %v1198 = vpop.permute.xlu0 %1197
      %1199 = vrot.lane.b32.xlu0 %v1040, 8
      %v1200 = vpop.permute.xlu0 %1199
      %1201 = vrot.lane.b32.xlu0 %v1054, 8
      %v1202 = vpop.permute.xlu0 %1201
      %1203 = vrot.lane.b32.xlu0 %v1068, 8
      %v1204 = vpop.permute.xlu0 %1203
      %1205 = vrot.lane.b32.xlu0 %v1082, 8
      %v1206 = vpop.permute.xlu0 %1205
      %1207 = vrot.lane.b32.xlu0 %v1096, 8
      %v1208 = vpop.permute.xlu0 %1207
      %1209 = vrot.lane.b32.xlu0 %v1110, 8
      %v1210 = vpop.permute.xlu0 %1209
      %1211 = vrot.lane.b32.xlu0 %v1124, 8
      %v1212 = vpop.permute.xlu0 %1211
      %1213 = vrot.lane.b32.xlu0 %v1138, 8
      %v1214 = vpop.permute.xlu0 %1213
      %1215 = vrot.lane.b32.xlu0 %v1152, 8
      %v1216 = vpop.permute.xlu0 %1215
      %1217 = vrot.lane.b32.xlu0 %v1166, 8
      %v1218 = vpop.permute.xlu0 %1217
      %1219 = vrot.lane.b32.xlu0 %v1180, 8
      %v1220 = vpop.permute.xlu0 %1219
      %vm1241 = vcmask 126016
      %1242 = vst.msk [vmem:[#allocation3] sm:$0xf] %vm1241, %v1182
      %1243 = vst.msk [vmem:[#allocation3 + $0x4] sm:$0xf] %vm1241, %v1184
      %1244 = vst.msk [vmem:[#allocation3 + $0x8] sm:$0xf] %vm1241, %v1186
      %1245 = vst.msk [vmem:[#allocation3 + $0xc] sm:$0xf] %vm1241, %v1188
      %1246 = vst.msk [vmem:[#allocation3 + $0x10] sm:$0xf] %vm1241, %v1190
      %1247 = vst.msk [vmem:[#allocation3 + $0x14] sm:$0xf] %vm1241, %v1192
      %1248 = vst.msk [vmem:[#allocation3 + $0x18] sm:$0xf] %vm1241, %v1194
      %1249 = vst.msk [vmem:[#allocation3 + $0x1c] sm:$0xf] %vm1241, %v1196
      %1250 = vst.msk [vmem:[#allocation3 + $0x20] sm:$0xf] %vm1241, %v1198
      %1251 = vst.msk [vmem:[#allocation3 + $0x24] sm:$0xf] %vm1241, %v1200
      %1252 = vst.msk [vmem:[#allocation3 + $0x28] sm:$0xf] %vm1241, %v1202
      %1253 = vst.msk [vmem:[#allocation3 + $0x2c] sm:$0xf] %vm1241, %v1204
      %1254 = vst.msk [vmem:[#allocation3 + $0x30] sm:$0xf] %vm1241, %v1206
      %1255 = vst.msk [vmem:[#allocation3 + $0x34] sm:$0xf] %vm1241, %v1208
      %1256 = vst.msk [vmem:[#allocation3 + $0x38] sm:$0xf] %vm1241, %v1210
      %1257 = vst.msk [vmem:[#allocation3 + $0x3c] sm:$0xf] %vm1241, %v1212
      %1258 = vst.msk [vmem:[#allocation3 + $0x40] sm:$0xf] %vm1241, %v1214
      %1259 = vst.msk [vmem:[#allocation3 + $0x44] sm:$0xf] %vm1241, %v1216
      %1260 = vst.msk [vmem:[#allocation3 + $0x48] sm:$0xf] %vm1241, %v1218
      %1261 = vst.msk [vmem:[#allocation3 + $0x4c] sm:$0xf] %vm1241, %v1220
      %v1262 = vld [vmem:[#allocation2] sm:$0xe]
      %v1263 = vld [vmem:[#allocation2 + $0x4] sm:$0x1]
      %v1264 = vld [vmem:[#allocation2 + $0x8] sm:$0xe]
      %v1265 = vld [vmem:[#allocation2 + $0xc] sm:$0x1]
      %v1266 = vld [vmem:[#allocation2 + $0x10] sm:$0xe]
      %v1267 = vld [vmem:[#allocation2 + $0x14] sm:$0x1]
      %v1268 = vld [vmem:[#allocation2 + $0x18] sm:$0xe]
      %v1269 = vld [vmem:[#allocation2 + $0x1c] sm:$0x1]
      %v1270 = vld [vmem:[#allocation2 + $0x20] sm:$0xe]
      %v1271 = vld [vmem:[#allocation2 + $0x24] sm:$0x1]
      %v1272 = vld [vmem:[#allocation2 + $0x28] sm:$0xe]
      %v1273 = vld [vmem:[#allocation2 + $0x2c] sm:$0x1]
      %v1274 = vld [vmem:[#allocation2 + $0x30] sm:$0xe]
      %v1275 = vld [vmem:[#allocation2 + $0x34] sm:$0x1]
      %v1276 = vld [vmem:[#allocation2 + $0x38] sm:$0xe]
      %v1277 = vld [vmem:[#allocation2 + $0x3c] sm:$0x1]
      %v1278 = vld [vmem:[#allocation2 + $0x40] sm:$0xe]
      %v1279 = vld [vmem:[#allocation2 + $0x44] sm:$0x1]
      %v1280 = vld [vmem:[#allocation2 + $0x48] sm:$0xe]
      %v1281 = vld [vmem:[#allocation2 + $0x4c] sm:$0x1]
      %v1282 = vld [vmem:[#allocation2 + $0x50] sm:$0xe]
      %v1283 = vld [vmem:[#allocation2 + $0x54] sm:$0x1]
      %v1284 = vld [vmem:[#allocation2 + $0x58] sm:$0xe]
      %v1285 = vld [vmem:[#allocation2 + $0x5c] sm:$0x1]
      %v1286 = vld [vmem:[#allocation2 + $0x60] sm:$0xe]
      %v1287 = vld [vmem:[#allocation2 + $0x64] sm:$0x1]
      %v1288 = vld [vmem:[#allocation2 + $0x68] sm:$0xe]
      %v1289 = vld [vmem:[#allocation2 + $0x6c] sm:$0x1]
      %v1290 = vld [vmem:[#allocation2 + $0x70] sm:$0xe]
      %v1291 = vld [vmem:[#allocation2 + $0x74] sm:$0x1]
      %v1292 = vld [vmem:[#allocation2 + $0x78] sm:$0xe]
      %v1293 = vld [vmem:[#allocation2 + $0x7c] sm:$0x1]
      %v1294 = vld [vmem:[#allocation2 + $0x80] sm:$0xe]
      %v1295 = vld [vmem:[#allocation2 + $0x84] sm:$0x1]
      %v1296 = vld [vmem:[#allocation2 + $0x88] sm:$0xe]
      %v1297 = vld [vmem:[#allocation2 + $0x8c] sm:$0x1]
      %v1298 = vld [vmem:[#allocation2 + $0x90] sm:$0xe]
      %v1299 = vld [vmem:[#allocation2 + $0x94] sm:$0x1]
      %v1300 = vld [vmem:[#allocation2 + $0x98] sm:$0xe]
      %v1301 = vld [vmem:[#allocation2 + $0x9c] sm:$0x1]
      %vm1342 = vcmask 1042432
      %vm1343 = vcmask 1046532
      %vm1344 = vmor %vm1342, %vm1343
      %v1345 = vrot.slane %v1262, 5
      %v1346 = vrot.slane %v1345, 4
      %v1347 = vrot.slane %v1263, 5
      %v1348 = vsel %vm1344, %v1346, %v1347
      %v1349 = vrot.slane %v1264, 5
      %v1350 = vrot.slane %v1349, 4
      %v1351 = vrot.slane %v1265, 5
      %v1352 = vsel %vm1344, %v1350, %v1351
      %v1353 = vrot.slane %v1266, 5
      %v1354 = vrot.slane %v1353, 4
      %v1355 = vrot.slane %v1267, 5
      %v1356 = vsel %vm1344, %v1354, %v1355
      %v1357 = vrot.slane %v1268, 5
      %v1358 = vrot.slane %v1357, 4
      %v1359 = vrot.slane %v1269, 5
      %v1360 = vsel %vm1344, %v1358, %v1359
      %v1361 = vrot.slane %v1270, 5
      %v1362 = vrot.slane %v1361, 4
      %v1363 = vrot.slane %v1271, 5
      %v1364 = vsel %vm1344, %v1362, %v1363
      %v1365 = vrot.slane %v1272, 5
      %v1366 = vrot.slane %v1365, 4
      %v1367 = vrot.slane %v1273, 5
      %v1368 = vsel %vm1344, %v1366, %v1367
      %v1369 = vrot.slane %v1274, 5
      %v1370 = vrot.slane %v1369, 4
      %v1371 = vrot.slane %v1275, 5
      %v1372 = vsel %vm1344, %v1370, %v1371
      %v1373 = vrot.slane %v1276, 5
      %v1374 = vrot.slane %v1373, 4
      %v1375 = vrot.slane %v1277, 5
      %v1376 = vsel %vm1344, %v1374, %v1375
      %v1377 = vrot.slane %v1278, 5
      %v1378 = vrot.slane %v1377, 4
      %v1379 = vrot.slane %v1279, 5
      %v1380 = vsel %vm1344, %v1378, %v1379
      %v1381 = vrot.slane %v1280, 5
      %v1382 = vrot.slane %v1381, 4
      %v1383 = vrot.slane %v1281, 5
      %v1384 = vsel %vm1344, %v1382, %v1383
      %v1385 = vrot.slane %v1282, 5
      %v1386 = vrot.slane %v1385, 4
      %v1387 = vrot.slane %v1283, 5
      %v1388 = vsel %vm1344, %v1386, %v1387
      %v1389 = vrot.slane %v1284, 5
      %v1390 = vrot.slane %v1389, 4
      %v1391 = vrot.slane %v1285, 5
      %v1392 = vsel %vm1344, %v1390, %v1391
      %v1393 = vrot.slane %v1286, 5
      %v1394 = vrot.slane %v1393, 4
      %v1395 = vrot.slane %v1287, 5
      %v1396 = vsel %vm1344, %v1394, %v1395
      %v1397 = vrot.slane %v1288, 5
      %v1398 = vrot.slane %v1397, 4
      %v1399 = vrot.slane %v1289, 5
      %v1400 = vsel %vm1344, %v1398, %v1399
      %v1401 = vrot.slane %v1290, 5
      %v1402 = vrot.slane %v1401, 4
      %v1403 = vrot.slane %v1291, 5
      %v1404 = vsel %vm1344, %v1402, %v1403
      %v1405 = vrot.slane %v1292, 5
      %v1406 = vrot.slane %v1405, 4
      %v1407 = vrot.slane %v1293, 5
      %v1408 = vsel %vm1344, %v1406, %v1407
      %v1409 = vrot.slane %v1294, 5
      %v1410 = vrot.slane %v1409, 4
      %v1411 = vrot.slane %v1295, 5
      %v1412 = vsel %vm1344, %v1410, %v1411
      %v1413 = vrot.slane %v1296, 5
      %v1414 = vrot.slane %v1413, 4
      %v1415 = vrot.slane %v1297, 5
      %v1416 = vsel %vm1344, %v1414, %v1415
      %v1417 = vrot.slane %v1298, 5
      %v1418 = vrot.slane %v1417, 4
      %v1419 = vrot.slane %v1299, 5
      %v1420 = vsel %vm1344, %v1418, %v1419
      %v1421 = vrot.slane %v1300, 5
      %v1422 = vrot.slane %v1421, 4
      %v1423 = vrot.slane %v1301, 5
      %v1424 = vsel %vm1344, %v1422, %v1423
      %1425 = vrot.lane.b32.xlu0 %v1348, 16
      %v1426 = vpop.permute.xlu0 %1425
      %1427 = vrot.lane.b32.xlu0 %v1352, 16
      %v1428 = vpop.permute.xlu0 %1427
      %1429 = vrot.lane.b32.xlu0 %v1356, 16
      %v1430 = vpop.permute.xlu0 %1429
      %1431 = vrot.lane.b32.xlu0 %v1360, 16
      %v1432 = vpop.permute.xlu0 %1431
      %1433 = vrot.lane.b32.xlu0 %v1364, 16
      %v1434 = vpop.permute.xlu0 %1433
      %1435 = vrot.lane.b32.xlu0 %v1368, 16
      %v1436 = vpop.permute.xlu0 %1435
      %1437 = vrot.lane.b32.xlu0 %v1372, 16
      %v1438 = vpop.permute.xlu0 %1437
      %1439 = vrot.lane.b32.xlu0 %v1376, 16
      %v1440 = vpop.permute.xlu0 %1439
      %1441 = vrot.lane.b32.xlu0 %v1380, 16
      %v1442 = vpop.permute.xlu0 %1441
      %1443 = vrot.lane.b32.xlu0 %v1384, 16
      %v1444 = vpop.permute.xlu0 %1443
      %1445 = vrot.lane.b32.xlu0 %v1388, 16
      %v1446 = vpop.permute.xlu0 %1445
      %1447 = vrot.lane.b32.xlu0 %v1392, 16
      %v1448 = vpop.permute.xlu0 %1447
      %1449 = vrot.lane.b32.xlu0 %v1396, 16
      %v1450 = vpop.permute.xlu0 %1449
      %1451 = vrot.lane.b32.xlu0 %v1400, 16
      %v1452 = vpop.permute.xlu0 %1451
      %1453 = vrot.lane.b32.xlu0 %v1404, 16
      %v1454 = vpop.permute.xlu0 %1453
      %1455 = vrot.lane.b32.xlu0 %v1408, 16
      %v1456 = vpop.permute.xlu0 %1455
      %1457 = vrot.lane.b32.xlu0 %v1412, 16
      %v1458 = vpop.permute.xlu0 %1457
      %1459 = vrot.lane.b32.xlu0 %v1416, 16
      %v1460 = vpop.permute.xlu0 %1459
      %1461 = vrot.lane.b32.xlu0 %v1420, 16
      %v1462 = vpop.permute.xlu0 %1461
      %1463 = vrot.lane.b32.xlu0 %v1424, 16
      %v1464 = vpop.permute.xlu0 %1463
      %vm1485 = vcmask 191616
      %1486 = vst.msk [vmem:[#allocation3] sm:$0xf] %vm1485, %v1426
      %1487 = vst.msk [vmem:[#allocation3 + $0x4] sm:$0xf] %vm1485, %v1428
      %1488 = vst.msk [vmem:[#allocation3 + $0x8] sm:$0xf] %vm1485, %v1430
      %1489 = vst.msk [vmem:[#allocation3 + $0xc] sm:$0xf] %vm1485, %v1432
      %1490 = vst.msk [vmem:[#allocation3 + $0x10] sm:$0xf] %vm1485, %v1434
      %1491 = vst.msk [vmem:[#allocation3 + $0x14] sm:$0xf] %vm1485, %v1436
      %1492 = vst.msk [vmem:[#allocation3 + $0x18] sm:$0xf] %vm1485, %v1438
      %1493 = vst.msk [vmem:[#allocation3 + $0x1c] sm:$0xf] %vm1485, %v1440
      %1494 = vst.msk [vmem:[#allocation3 + $0x20] sm:$0xf] %vm1485, %v1442
      %1495 = vst.msk [vmem:[#allocation3 + $0x24] sm:$0xf] %vm1485, %v1444
      %1496 = vst.msk [vmem:[#allocation3 + $0x28] sm:$0xf] %vm1485, %v1446
      %1497 = vst.msk [vmem:[#allocation3 + $0x2c] sm:$0xf] %vm1485, %v1448
      %1498 = vst.msk [vmem:[#allocation3 + $0x30] sm:$0xf] %vm1485, %v1450
      %1499 = vst.msk [vmem:[#allocation3 + $0x34] sm:$0xf] %vm1485, %v1452
      %1500 = vst.msk [vmem:[#allocation3 + $0x38] sm:$0xf] %vm1485, %v1454
      %1501 = vst.msk [vmem:[#allocation3 + $0x3c] sm:$0xf] %vm1485, %v1456
      %1502 = vst.msk [vmem:[#allocation3 + $0x40] sm:$0xf] %vm1485, %v1458
      %1503 = vst.msk [vmem:[#allocation3 + $0x44] sm:$0xf] %vm1485, %v1460
      %1504 = vst.msk [vmem:[#allocation3 + $0x48] sm:$0xf] %vm1485, %v1462
      %1505 = vst.msk [vmem:[#allocation3 + $0x4c] sm:$0xf] %vm1485, %v1464
      %v1506 = vld [vmem:[#allocation3] sm:$0xf]
      %v1507 = vld [vmem:[#allocation3 + $0x4] sm:$0xf]
      %v1508 = vld [vmem:[#allocation3 + $0x8] sm:$0xf]
      %v1509 = vld [vmem:[#allocation3 + $0xc] sm:$0xf]
      %v1510 = vld [vmem:[#allocation3 + $0x10] sm:$0xf]
      %v1511 = vld [vmem:[#allocation3 + $0x14] sm:$0xf]
      %v1512 = vld [vmem:[#allocation3 + $0x18] sm:$0xf]
      %v1513 = vld [vmem:[#allocation3 + $0x1c] sm:$0xf]
      %v1514 = vld [vmem:[#allocation3 + $0x28] sm:$0xf]
      %v1515 = vld [vmem:[#allocation3 + $0x2c] sm:$0xf]
      %v1516 = vld [vmem:[#allocation3 + $0x30] sm:$0xf]
      %v1517 = vld [vmem:[#allocation3 + $0x34] sm:$0xf]
      %v1518 = vld [vmem:[#allocation3 + $0x38] sm:$0xf]
      %v1519 = vld [vmem:[#allocation3 + $0x3c] sm:$0xf]
      %v1520 = vld [vmem:[#allocation3 + $0x40] sm:$0xf]
      %v1521 = vld [vmem:[#allocation3 + $0x44] sm:$0xf]
      %v1522 = vld [vmem:[%s3] sm:$0xf]
      %v1523 = vld [vmem:[%s3 + $0x4] sm:$0xf]
      %v1524 = vld [vmem:[%s3 + $0x8] sm:$0xf]
      %s1525 = scalar_lea.vmem [#allocation3], 4
      %v1526 = vld [vmem:[%s1525] sm:$0xf]
      %v1527 = vld [vmem:[%s1525 + $0x4] sm:$0xf]
      %v1528 = vld [vmem:[%s1525 + $0x8] sm:$0xf]
      %v1529 = vld [vmem:[%s1525 + $0xc] sm:$0xf]
      %v1530 = vld [vmem:[%s1525 + $0x10] sm:$0xf]
      %v1531 = vld [vmem:[%s1525 + $0x14] sm:$0xf]
      %v1532 = vld [vmem:[%s1525 + $0x18] sm:$0xf]
      %v1533 = vld [vmem:[%s1525 + $0x1c] sm:$0xf]
      %v1534 = vld [vmem:[%s1525 + $0x28] sm:$0xf]
      %v1535 = vld [vmem:[%s1525 + $0x2c] sm:$0xf]
      %v1536 = vld [vmem:[%s1525 + $0x30] sm:$0xf]
      %v1537 = vld [vmem:[%s1525 + $0x34] sm:$0xf]
      %v1538 = vld [vmem:[%s1525 + $0x38] sm:$0xf]
      %v1539 = vld [vmem:[%s1525 + $0x3c] sm:$0xf]
      %v1540 = vld [vmem:[%s1525 + $0x40] sm:$0xf]
      %v1541 = vld [vmem:[%s1525 + $0x44] sm:$0xf]
      %s1542 = scalar_lea.vmem %s3, 12
      %v1543 = vld [vmem:[%s1542] sm:$0xf]
      %v1544 = vld [vmem:[%s1542 + $0x4] sm:$0xf]
      %v1545 = vld [vmem:[%s1542 + $0x8] sm:$0xf]
      %v1562 = vunpack.c.l.b16 %v1526
      %v1563 = vunpack.c.l.b16 %v1527
      %v1564 = vunpack.c.l.b16 %v1528
      %v1565 = vunpack.c.l.b16 %v1529
      %v1566 = vunpack.c.l.b16 %v1530
      %v1567 = vunpack.c.l.b16 %v1531
      %v1568 = vunpack.c.l.b16 %v1532
      %v1569 = vunpack.c.l.b16 %v1533
      %v1570 = vunpack.c.l.b16 %v1534
      %v1571 = vunpack.c.l.b16 %v1535
      %v1572 = vunpack.c.l.b16 %v1536
      %v1573 = vunpack.c.l.b16 %v1537
      %v1574 = vunpack.c.l.b16 %v1538
      %v1575 = vunpack.c.l.b16 %v1539
      %v1576 = vunpack.c.l.b16 %v1540
      %v1577 = vunpack.c.l.b16 %v1541
      %v1578 = vpack.c.b16 %v1563, %v1562
      %v1579 = vpack.c.b16 %v1565, %v1564
      %v1580 = vpack.c.b16 %v1567, %v1566
      %v1581 = vpack.c.b16 %v1569, %v1568
      %v1582 = vpack.c.b16 %v1571, %v1570
      %v1583 = vpack.c.b16 %v1573, %v1572
      %v1584 = vpack.c.b16 %v1575, %v1574
      %v1585 = vpack.c.b16 %v1577, %v1576
      %v1589 = vunpack.c.l.b16 %v1543
      %v1590 = vunpack.c.l.b16 %v1544
      %v1591 = vunpack.c.l.b16 %v1545
      %v1592 = vpack.c.b16 %v1590, %v1589
      %v1593 = vpack.c.b16 %v1591, %v1591
      %vm1595 = vcmask 195584
      %v1597 = vsel %vm1595, %v1578, 0
      %v1600 = vsel %vm1595, %v1579, 0
      %v1603 = vsel %vm1595, %v1580, 0
      %v1606 = vsel %vm1595, %v1581, 0
      %v1609 = vsel %vm1595, %v1582, 0
      %v1612 = vsel %vm1595, %v1583, 0
      %v1615 = vsel %vm1595, %v1584, 0
      %v1618 = vsel %vm1595, %v1585, 0
      %vm1620 = vcmask 1043456
      %v1622 = vsel %vm1620, %v1593, 0
      %1624 = vmatprep.subr.bf16.mxu0 0
      %1625 = vmatpush1.bf16.msra.mxu0 %v1592
      %1626 = vmatprep.subr.bf16.mxu0 0
      %1627 = vmatpush1.bf16.msra.mxu0 %v1622
      %1628 = vmatprep.subr.bf16.mxu0 0
      %1629 = vmatpush1.bf16.msra.mxu0 0
      %1630 = vmatprep.subr.bf16.mxu0 0
      %1631 = vmatpush1.bf16.msra.mxu0 0
      %1632 = vmatprep.subr.bf16.mxu0 0
      %1633 = vmatpush1.bf16.msra.mxu0 0
      %1634 = vmatprep.subr.bf16.mxu0 0
      %1635 = vmatpush1.bf16.msra.mxu0 0
      %1636 = vmatprep.subr.bf16.mxu0 0
      %1637 = vmatpush1.bf16.msra.mxu0 0
      %1638 = vmatprep.subr.bf16.mxu0 0
      %1639 = vmatpush1.bf16.msra.mxu0 0
      %1640 = vmatprep.subr.bf16.mxu0 0
      %1641 = vmatpush1.bf16.msra.mxu0 0
      %1642 = vmatprep.subr.bf16.mxu0 0
      %1643 = vmatpush1.bf16.msra.mxu0 0
      %1644 = vmatprep.subr.bf16.mxu0 0
      %1645 = vmatpush1.bf16.msra.mxu0 0
      %1646 = vmatprep.subr.bf16.mxu0 0
      %1647 = vmatpush1.bf16.msra.mxu0 0
      %1648 = vmatprep.subr.bf16.mxu0 0
      %1649 = vmatpush1.bf16.msra.mxu0 0
      %1650 = vmatprep.subr.bf16.mxu0 0
      %1651 = vmatpush1.bf16.msra.mxu0 0
      %1652 = vmatprep.subr.bf16.mxu0 0
      %1653 = vmatpush1.bf16.msra.mxu0 0
      %1654 = vmatprep.subr.bf16.mxu0 0
      %1655 = vmatpush1.bf16.msra.mxu0 0
      %1656 = vmatprep.mubr.bf16.mxu0 0
      %1657 = vmatmul.mubr.bf16.gmra.mrb[0].mxu0 %v1597
      %v1658 = vpop.f32.mrb[0].mxu0
      %v1659 = vadd.f32 0.0, %v1658
      %v1660 = vpop.f32.mrb[0].mxu0
      %v1661 = vpop.f32.mrb[0].mxu0
      %v1662 = vadd.f32 0.0, %v1661
      %v1663 = vpop.f32.mrb[0].mxu0
      %1664 = vmatprep.mubr.bf16.mxu0 0
      %1665 = vmatmul.mubr.bf16.gmra.mrb[0].mxu0 %v1600
      %v1666 = vpop.f32.mrb[0].mxu0
      %v1667 = vadd.f32 0.0, %v1666
      %v1668 = vpop.f32.mrb[0].mxu0
      %v1669 = vpop.f32.mrb[0].mxu0
      %v1670 = vadd.f32 0.0, %v1669
      %v1671 = vpop.f32.mrb[0].mxu0
      %1672 = vmatprep.mubr.bf16.mxu0 0
      %1673 = vmatmul.mubr.bf16.gmra.mrb[0].mxu0 %v1603
      %v1674 = vpop.f32.mrb[0].mxu0
      %v1675 = vadd.f32 0.0, %v1674
      %v1676 = vpop.f32.mrb[0].mxu0
      %v1677 = vpop.f32.mrb[0].mxu0
      %v1678 = vadd.f32 0.0, %v1677
      %v1679 = vpop.f32.mrb[0].mxu0
      %1680 = vmatprep.mubr.bf16.mxu0 0
      %1681 = vmatmul.mubr.bf16.gmra.mrb[0].mxu0 %v1606
      %v1682 = vpop.f32.mrb[0].mxu0
      %v1683 = vadd.f32 0.0, %v1682
      %v1684 = vpop.f32.mrb[0].mxu0
      %v1685 = vpop.f32.mrb[0].mxu0
      %v1686 = vadd.f32 0.0, %v1685
      %v1687 = vpop.f32.mrb[0].mxu0
      %1688 = vmatprep.mubr.bf16.mxu0 0
      %1689 = vmatmul.mubr.bf16.gmra.mrb[0].mxu0 %v1609
      %v1690 = vpop.f32.mrb[0].mxu0
      %v1691 = vadd.f32 0.0, %v1690
      %v1692 = vpop.f32.mrb[0].mxu0
      %v1693 = vpop.f32.mrb[0].mxu0
      %v1694 = vadd.f32 0.0, %v1693
      %v1695 = vpop.f32.mrb[0].mxu0
      %1696 = vmatprep.mubr.bf16.mxu0 0
      %1697 = vmatmul.mubr.bf16.gmra.mrb[0].mxu0 %v1612
      %v1698 = vpop.f32.mrb[0].mxu0
      %v1699 = vadd.f32 0.0, %v1698
      %v1700 = vpop.f32.mrb[0].mxu0
      %v1701 = vpop.f32.mrb[0].mxu0
      %v1702 = vadd.f32 0.0, %v1701
      %v1703 = vpop.f32.mrb[0].mxu0
      %1704 = vmatprep.mubr.bf16.mxu0 0
      %1705 = vmatmul.mubr.bf16.gmra.mrb[0].mxu0 %v1615
      %v1706 = vpop.f32.mrb[0].mxu0
      %v1707 = vadd.f32 0.0, %v1706
      %v1708 = vpop.f32.mrb[0].mxu0
      %v1709 = vpop.f32.mrb[0].mxu0
      %v1710 = vadd.f32 0.0, %v1709
      %v1711 = vpop.f32.mrb[0].mxu0
      %1712 = vmatprep.mubr.bf16.mxu0 0
      %1713 = vmatmul.mubr.bf16.gmra.mrb[0].mxu0 %v1618
      %v1714 = vpop.f32.mrb[0].mxu0
      %v1715 = vadd.f32 0.0, %v1714
      %v1716 = vpop.f32.mrb[0].mxu0
      %v1717 = vpop.f32.mrb[0].mxu0
      %v1718 = vadd.f32 0.0, %v1717
      %v1719 = vpop.f32.mrb[0].mxu0
      %1720 = vdwg.mxu0
      %v1737 = vunpack.c.l.b16 %v1506
      %v1738 = vunpack.c.l.b16 %v1507
      %v1739 = vunpack.c.l.b16 %v1508
      %v1740 = vunpack.c.l.b16 %v1509
      %v1741 = vunpack.c.l.b16 %v1510
      %v1742 = vunpack.c.l.b16 %v1511
      %v1743 = vunpack.c.l.b16 %v1512
      %v1744 = vunpack.c.l.b16 %v1513
      %v1745 = vunpack.c.l.b16 %v1514
      %v1746 = vunpack.c.l.b16 %v1515
      %v1747 = vunpack.c.l.b16 %v1516
      %v1748 = vunpack.c.l.b16 %v1517
      %v1749 = vunpack.c.l.b16 %v1518
      %v1750 = vunpack.c.l.b16 %v1519
      %v1751 = vunpack.c.l.b16 %v1520
      %v1752 = vunpack.c.l.b16 %v1521
      %v1753 = vpack.c.b16 %v1738, %v1737
      %v1754 = vpack.c.b16 %v1740, %v1739
      %v1755 = vpack.c.b16 %v1742, %v1741
      %v1756 = vpack.c.b16 %v1744, %v1743
      %v1757 = vpack.c.b16 %v1746, %v1745
      %v1758 = vpack.c.b16 %v1748, %v1747
      %v1759 = vpack.c.b16 %v1750, %v1749
      %v1760 = vpack.c.b16 %v1752, %v1751
      %v1764 = vunpack.c.l.b16 %v1522
      %v1765 = vunpack.c.l.b16 %v1523
      %v1766 = vunpack.c.l.b16 %v1524
      %v1767 = vpack.c.b16 %v1765, %v1764
      %v1768 = vpack.c.b16 %v1766, %v1766
      %v1771 = vsel %vm1595, %v1753, 0
      %v1774 = vsel %vm1595, %v1754, 0
      %v1777 = vsel %vm1595, %v1755, 0
      %v1780 = vsel %vm1595, %v1756, 0
      %v1783 = vsel %vm1595, %v1757, 0
      %v1786 = vsel %vm1595, %v1758, 0
      %v1789 = vsel %vm1595, %v1759, 0
      %v1792 = vsel %vm1595, %v1760, 0
      %v1795 = vsel %vm1620, %v1768, 0
      %1797 = vmatprep.subr.bf16.mxu0 0
      %1798 = vmatpush1.bf16.msra.mxu0 %v1767
      %1799 = vmatprep.subr.bf16.mxu0 0
      %1800 = vmatpush1.bf16.msra.mxu0 %v1795
      %1801 = vmatprep.subr.bf16.mxu0 0
      %1802 = vmatpush1.bf16.msra.mxu0 0
      %1803 = vmatprep.subr.bf16.mxu0 0
      %1804 = vmatpush1.bf16.msra.mxu0 0
      %1805 = vmatprep.subr.bf16.mxu0 0
      %1806 = vmatpush1.bf16.msra.mxu0 0
      %1807 = vmatprep.subr.bf16.mxu0 0
      %1808 = vmatpush1.bf16.msra.mxu0 0
      %1809 = vmatprep.subr.bf16.mxu0 0
      %1810 = vmatpush1.bf16.msra.mxu0 0
      %1811 = vmatprep.subr.bf16.mxu0 0
      %1812 = vmatpush1.bf16.msra.mxu0 0
      %1813 = vmatprep.subr.bf16.mxu0 0
      %1814 = vmatpush1.bf16.msra.mxu0 0
      %1815 = vmatprep.subr.bf16.mxu0 0
      %1816 = vmatpush1.bf16.msra.mxu0 0
      %1817 = vmatprep.subr.bf16.mxu0 0
      %1818 = vmatpush1.bf16.msra.mxu0 0
      %1819 = vmatprep.subr.bf16.mxu0 0
      %1820 = vmatpush1.bf16.msra.mxu0 0
      %1821 = vmatprep.subr.bf16.mxu0 0
      %1822 = vmatpush1.bf16.msra.mxu0 0
      %1823 = vmatprep.subr.bf16.mxu0 0
      %1824 = vmatpush1.bf16.msra.mxu0 0
      %1825 = vmatprep.subr.bf16.mxu0 0
      %1826 = vmatpush1.bf16.msra.mxu0 0
      %1827 = vmatprep.subr.bf16.mxu0 0
      %1828 = vmatpush1.bf16.msra.mxu0 0
      %1829 = vmatprep.mubr.bf16.mxu0 0
      %1830 = vmatmul.mubr.bf16.gmra.mrb[0].mxu0 %v1771
      %v1831 = vpop.f32.mrb[0].mxu0
      %v1832 = vadd.f32 %v1659, %v1831
      %v1833 = vpop.f32.mrb[0].mxu0
      %v1834 = vpop.f32.mrb[0].mxu0
      %v1835 = vadd.f32 %v1662, %v1834
      %v1836 = vpop.f32.mrb[0].mxu0
      %1837 = vmatprep.mubr.bf16.mxu0 0
      %1838 = vmatmul.mubr.bf16.gmra.mrb[0].mxu0 %v1774
      %v1839 = vpop.f32.mrb[0].mxu0
      %v1840 = vadd.f32 %v1667, %v1839
      %v1841 = vpop.f32.mrb[0].mxu0
      %v1842 = vpop.f32.mrb[0].mxu0
      %v1843 = vadd.f32 %v1670, %v1842
      %v1844 = vpop.f32.mrb[0].mxu0
      %1845 = vmatprep.mubr.bf16.mxu0 0
      %1846 = vmatmul.mubr.bf16.gmra.mrb[0].mxu0 %v1777
      %v1847 = vpop.f32.mrb[0].mxu0
      %v1848 = vadd.f32 %v1675, %v1847
      %v1849 = vpop.f32.mrb[0].mxu0
      %v1850 = vpop.f32.mrb[0].mxu0
      %v1851 = vadd.f32 %v1678, %v1850
      %v1852 = vpop.f32.mrb[0].mxu0
      %1853 = vmatprep.mubr.bf16.mxu0 0
      %1854 = vmatmul.mubr.bf16.gmra.mrb[0].mxu0 %v1780
      %v1855 = vpop.f32.mrb[0].mxu0
      %v1856 = vadd.f32 %v1683, %v1855
      %v1857 = vpop.f32.mrb[0].mxu0
      %v1858 = vpop.f32.mrb[0].mxu0
      %v1859 = vadd.f32 %v1686, %v1858
      %v1860 = vpop.f32.mrb[0].mxu0
      %1861 = vmatprep.mubr.bf16.mxu0 0
      %1862 = vmatmul.mubr.bf16.gmra.mrb[0].mxu0 %v1783
      %v1863 = vpop.f32.mrb[0].mxu0
      %v1864 = vadd.f32 %v1691, %v1863
      %v1865 = vpop.f32.mrb[0].mxu0
      %v1866 = vpop.f32.mrb[0].mxu0
      %v1867 = vadd.f32 %v1694, %v1866
      %v1868 = vpop.f32.mrb[0].mxu0
      %1869 = vmatprep.mubr.bf16.mxu0 0
      %1870 = vmatmul.mubr.bf16.gmra.mrb[0].mxu0 %v1786
      %v1871 = vpop.f32.mrb[0].mxu0
      %v1872 = vadd.f32 %v1699, %v1871
      %v1873 = vpop.f32.mrb[0].mxu0
      %v1874 = vpop.f32.mrb[0].mxu0
      %v1875 = vadd.f32 %v1702, %v1874
      %v1876 = vpop.f32.mrb[0].mxu0
      %1877 = vmatprep.mubr.bf16.mxu0 0
      %1878 = vmatmul.mubr.bf16.gmra.mrb[0].mxu0 %v1789
      %v1879 = vpop.f32.mrb[0].mxu0
      %v1880 = vadd.f32 %v1707, %v1879
      %v1881 = vpop.f32.mrb[0].mxu0
      %v1882 = vpop.f32.mrb[0].mxu0
      %v1883 = vadd.f32 %v1710, %v1882
      %v1884 = vpop.f32.mrb[0].mxu0
      %1885 = vmatprep.mubr.bf16.mxu0 0
      %1886 = vmatmul.mubr.bf16.gmra.mrb[0].mxu0 %v1792
      %v1887 = vpop.f32.mrb[0].mxu0
      %v1888 = vadd.f32 %v1715, %v1887
      %v1889 = vpop.f32.mrb[0].mxu0
      %v1890 = vpop.f32.mrb[0].mxu0
      %v1891 = vadd.f32 %v1718, %v1890
      %v1892 = vpop.f32.mrb[0].mxu0
      %1893 = vdwg.mxu0
      %s1894 = scalar_lea.vmem [#allocation3], 8
      %v1895 = vld [vmem:[%s1894] sm:$0xf]
      %v1896 = vld [vmem:[%s1894 + $0x4] sm:$0xf]
      %v1897 = vld [vmem:[%s1894 + $0x8] sm:$0xf]
      %v1898 = vld [vmem:[%s1894 + $0xc] sm:$0xf]
      %v1899 = vld [vmem:[%s1894 + $0x10] sm:$0xf]
      %v1900 = vld [vmem:[%s1894 + $0x14] sm:$0xf]
      %v1901 = vld [vmem:[%s1894 + $0x18] sm:$0xf]
      %v1902 = vld [vmem:[%s1894 + $0x1c] sm:$0xf]
      %v1903 = vld [vmem:[%s1894 + $0x28] sm:$0xf]
      %v1904 = vld [vmem:[%s1894 + $0x2c] sm:$0xf]
      %v1905 = vld [vmem:[%s1894 + $0x30] sm:$0xf]
      %v1906 = vld [vmem:[%s1894 + $0x34] sm:$0xf]
      %v1907 = vld [vmem:[%s1894 + $0x38] sm:$0xf]
      %v1908 = vld [vmem:[%s1894 + $0x3c] sm:$0xf]
      %v1909 = vld [vmem:[%s1894 + $0x40] sm:$0xf]
      %v1910 = vld [vmem:[%s1894 + $0x44] sm:$0xf]
      %s1911 = scalar_lea.vmem %s3, 24
      %v1912 = vld [vmem:[%s1911] sm:$0xf]
      %v1913 = vld [vmem:[%s1911 + $0x4] sm:$0xf]
      %v1914 = vld [vmem:[%s1911 + $0x8] sm:$0xf]
      %v1931 = vunpack.c.l.b16 %v1895
      %v1932 = vunpack.c.l.b16 %v1896
      %v1933 = vunpack.c.l.b16 %v1897
      %v1934 = vunpack.c.l.b16 %v1898
      %v1935 = vunpack.c.l.b16 %v1899
      %v1936 = vunpack.c.l.b16 %v1900
      %v1937 = vunpack.c.l.b16 %v1901
      %v1938 = vunpack.c.l.b16 %v1902
      %v1939 = vunpack.c.l.b16 %v1903
      %v1940 = vunpack.c.l.b16 %v1904
      %v1941 = vunpack.c.l.b16 %v1905
      %v1942 = vunpack.c.l.b16 %v1906
      %v1943 = vunpack.c.l.b16 %v1907
      %v1944 = vunpack.c.l.b16 %v1908
      %v1945 = vunpack.c.l.b16 %v1909
      %v1946 = vunpack.c.l.b16 %v1910
      %v1947 = vpack.c.b16 %v1932, %v1931
      %v1948 = vpack.c.b16 %v1934, %v1933
      %v1949 = vpack.c.b16 %v1936, %v1935
      %v1950 = vpack.c.b16 %v1938, %v1937
      %v1951 = vpack.c.b16 %v1940, %v1939
      %v1952 = vpack.c.b16 %v1942, %v1941
      %v1953 = vpack.c.b16 %v1944, %v1943
      %v1954 = vpack.c.b16 %v1946, %v1945
      %v1958 = vunpack.c.l.b16 %v1912
      %v1959 = vunpack.c.l.b16 %v1913
      %v1960 = vunpack.c.l.b16 %v1914
      %v1961 = vpack.c.b16 %v1959, %v1958
      %v1962 = vpack.c.b16 %v1960, %v1960
      %v1965 = vsel %vm1595, %v1947, 0
      %v1968 = vsel %vm1595, %v1948, 0
      %v1971 = vsel %vm1595, %v1949, 0
      %v1974 = vsel %vm1595, %v1950, 0
      %v1977 = vsel %vm1595, %v1951, 0
      %v1980 = vsel %vm1595, %v1952, 0
      %v1983 = vsel %vm1595, %v1953, 0
      %v1986 = vsel %vm1595, %v1954, 0
      %v1989 = vsel %vm1620, %v1962, 0
      %1991 = vmatprep.subr.bf16.mxu0 0
      %1992 = vmatpush1.bf16.msra.mxu0 %v1961
      %1993 = vmatprep.subr.bf16.mxu0 0
      %1994 = vmatpush1.bf16.msra.mxu0 %v1989
      %1995 = vmatprep.subr.bf16.mxu0 0
      %1996 = vmatpush1.bf16.msra.mxu0 0
      %1997 = vmatprep.subr.bf16.mxu0 0
      %1998 = vmatpush1.bf16.msra.mxu0 0
      %1999 = vmatprep.subr.bf16.mxu0 0
      %2000 = vmatpush1.bf16.msra.mxu0 0
      %2001 = vmatprep.subr.bf16.mxu0 0
      %2002 = vmatpush1.bf16.msra.mxu0 0
      %2003 = vmatprep.subr.bf16.mxu0 0
      %2004 = vmatpush1.bf16.msra.mxu0 0
      %2005 = vmatprep.subr.bf16.mxu0 0
      %2006 = vmatpush1.bf16.msra.mxu0 0
      %2007 = vmatprep.subr.bf16.mxu0 0
      %2008 = vmatpush1.bf16.msra.mxu0 0
      %2009 = vmatprep.subr.bf16.mxu0 0
      %2010 = vmatpush1.bf16.msra.mxu0 0
      %2011 = vmatprep.subr.bf16.mxu0 0
      %2012 = vmatpush1.bf16.msra.mxu0 0
      %2013 = vmatprep.subr.bf16.mxu0 0
      %2014 = vmatpush1.bf16.msra.mxu0 0
      %2015 = vmatprep.subr.bf16.mxu0 0
      %2016 = vmatpush1.bf16.msra.mxu0 0
      %2017 = vmatprep.subr.bf16.mxu0 0
      %2018 = vmatpush1.bf16.msra.mxu0 0
      %2019 = vmatprep.subr.bf16.mxu0 0
      %2020 = vmatpush1.bf16.msra.mxu0 0
      %2021 = vmatprep.subr.bf16.mxu0 0
      %2022 = vmatpush1.bf16.msra.mxu0 0
      %2023 = vmatprep.mubr.bf16.mxu0 0
      %2024 = vmatmul.mubr.bf16.gmra.mrb[0].mxu0 %v1965
      %v2025 = vpop.f32.mrb[0].mxu0
      %v2026 = vadd.f32 0.0, %v2025
      %v2027 = vpop.f32.mrb[0].mxu0
      %v2028 = vpop.f32.mrb[0].mxu0
      %v2029 = vadd.f32 0.0, %v2028
      %v2030 = vpop.f32.mrb[0].mxu0
      %2031 = vmatprep.mubr.bf16.mxu0 0
      %2032 = vmatmul.mubr.bf16.gmra.mrb[0].mxu0 %v1968
      %v2033 = vpop.f32.mrb[0].mxu0
      %v2034 = vadd.f32 0.0, %v2033
      %v2035 = vpop.f32.mrb[0].mxu0
      %v2036 = vpop.f32.mrb[0].mxu0
      %v2037 = vadd.f32 0.0, %v2036
      %v2038 = vpop.f32.mrb[0].mxu0
      %2039 = vmatprep.mubr.bf16.mxu0 0
      %2040 = vmatmul.mubr.bf16.gmra.mrb[0].mxu0 %v1971
      %v2041 = vpop.f32.mrb[0].mxu0
      %v2042 = vadd.f32 0.0, %v2041
      %v2043 = vpop.f32.mrb[0].mxu0
      %v2044 = vpop.f32.mrb[0].mxu0
      %v2045 = vadd.f32 0.0, %v2044
      %v2046 = vpop.f32.mrb[0].mxu0
      %2047 = vmatprep.mubr.bf16.mxu0 0
      %2048 = vmatmul.mubr.bf16.gmra.mrb[0].mxu0 %v1974
      %v2049 = vpop.f32.mrb[0].mxu0
      %v2050 = vadd.f32 0.0, %v2049
      %v2051 = vpop.f32.mrb[0].mxu0
      %v2052 = vpop.f32.mrb[0].mxu0
      %v2053 = vadd.f32 0.0, %v2052
      %v2054 = vpop.f32.mrb[0].mxu0
      %2055 = vmatprep.mubr.bf16.mxu0 0
      %2056 = vmatmul.mubr.bf16.gmra.mrb[0].mxu0 %v1977
      %v2057 = vpop.f32.mrb[0].mxu0
      %v2058 = vadd.f32 0.0, %v2057
      %v2059 = vpop.f32.mrb[0].mxu0
      %v2060 = vpop.f32.mrb[0].mxu0
      %v2061 = vadd.f32 0.0, %v2060
      %v2062 = vpop.f32.mrb[0].mxu0
      %2063 = vmatprep.mubr.bf16.mxu0 0
      %2064 = vmatmul.mubr.bf16.gmra.mrb[0].mxu0 %v1980
      %v2065 = vpop.f32.mrb[0].mxu0
      %v2066 = vadd.f32 0.0, %v2065
      %v2067 = vpop.f32.mrb[0].mxu0
      %v2068 = vpop.f32.mrb[0].mxu0
      %v2069 = vadd.f32 0.0, %v2068
      %v2070 = vpop.f32.mrb[0].mxu0
      %2071 = vmatprep.mubr.bf16.mxu0 0
      %2072 = vmatmul.mubr.bf16.gmra.mrb[0].mxu0 %v1983
      %v2073 = vpop.f32.mrb[0].mxu0
      %v2074 = vadd.f32 0.0, %v2073
      %v2075 = vpop.f32.mrb[0].mxu0
      %v2076 = vpop.f32.mrb[0].mxu0
      %v2077 = vadd.f32 0.0, %v2076
      %v2078 = vpop.f32.mrb[0].mxu0
      %2079 = vmatprep.mubr.bf16.mxu0 0
      %2080 = vmatmul.mubr.bf16.gmra.mrb[0].mxu0 %v1986
      %v2081 = vpop.f32.mrb[0].mxu0
      %v2082 = vadd.f32 0.0, %v2081
      %v2083 = vpop.f32.mrb[0].mxu0
      %v2084 = vpop.f32.mrb[0].mxu0
      %v2085 = vadd.f32 0.0, %v2084
      %v2086 = vpop.f32.mrb[0].mxu0
      %2087 = vdwg.mxu0
      %v2088 = vadd.f32 %v1832, %v2026
      %v2089 = vadd.f32 %v1835, %v2029
      %v2090 = vadd.f32 %v1840, %v2034
      %v2091 = vadd.f32 %v1843, %v2037
      %v2092 = vadd.f32 %v1848, %v2042
      %v2093 = vadd.f32 %v1851, %v2045
      %v2094 = vadd.f32 %v1856, %v2050
      %v2095 = vadd.f32 %v1859, %v2053
      %v2096 = vadd.f32 %v1864, %v2058
      %v2097 = vadd.f32 %v1867, %v2061
      %v2098 = vadd.f32 %v1872, %v2066
      %v2099 = vadd.f32 %v1875, %v2069
      %v2100 = vadd.f32 %v1880, %v2074
      %v2101 = vadd.f32 %v1883, %v2077
      %v2102 = vadd.f32 %v1888, %v2082
      %v2103 = vadd.f32 %v1891, %v2085
      %v2104 = vld [vmem:[%s4] sm:$0x1]
      %v2106 = vlaneseq
      %v2107 = vshrl.u32 %v2106, 7
      %v2108 = vsub.s32 0, %v2107
      %v2109 = vrot.slane %v2104, %v2108
      %v2111 = vadd.f32 %v2088, %v2109
      %v2112 = vadd.f32 %v2089, %v2109
      %v2113 = vadd.f32 %v2090, %v2109
      %v2114 = vadd.f32 %v2091, %v2109
      %v2115 = vadd.f32 %v2092, %v2109
      %v2116 = vadd.f32 %v2093, %v2109
      %v2117 = vadd.f32 %v2094, %v2109
      %v2118 = vadd.f32 %v2095, %v2109
      %v2119 = vadd.f32 %v2096, %v2109
      %v2120 = vadd.f32 %v2097, %v2109
      %v2121 = vadd.f32 %v2098, %v2109
      %v2122 = vadd.f32 %v2099, %v2109
      %v2123 = vadd.f32 %v2100, %v2109
      %v2124 = vadd.f32 %v2101, %v2109
      %v2125 = vadd.f32 %v2102, %v2109
      %v2126 = vadd.f32 %v2103, %v2109
      %v2127 = vpack.c.bf16 %v2112, %v2111
      %v2128 = vpack.c.bf16 %v2114, %v2113
      %v2129 = vpack.c.bf16 %v2116, %v2115
      %v2130 = vpack.c.bf16 %v2118, %v2117
      %v2131 = vpack.c.bf16 %v2120, %v2119
      %v2132 = vpack.c.bf16 %v2122, %v2121
      %v2133 = vpack.c.bf16 %v2124, %v2123
      %v2134 = vpack.c.bf16 %v2126, %v2125
      %v2143 = vunpack.c.l.b16 %v2127
      %v2144 = vunpack.c.h.b16 %v2127
      %v2145 = vunpack.c.l.b16 %v2128
      %v2146 = vunpack.c.h.b16 %v2128
      %v2147 = vunpack.c.l.b16 %v2129
      %v2148 = vunpack.c.h.b16 %v2129
      %v2149 = vunpack.c.l.b16 %v2130
      %v2150 = vunpack.c.h.b16 %v2130
      %v2151 = vunpack.c.l.b16 %v2131
      %v2152 = vunpack.c.h.b16 %v2131
      %v2153 = vunpack.c.l.b16 %v2132
      %v2154 = vunpack.c.h.b16 %v2132
      %v2155 = vunpack.c.l.b16 %v2133
      %v2156 = vunpack.c.h.b16 %v2133
      %v2157 = vunpack.c.l.b16 %v2134
      %v2158 = vunpack.c.h.b16 %v2134
      %v2159 = vpack.c.b16 %v2143, %v2143
      %v2160 = vpack.c.b16 %v2144, %v2144
      %v2161 = vpack.c.b16 %v2145, %v2145
      %v2162 = vpack.c.b16 %v2146, %v2146
      %v2163 = vpack.c.b16 %v2147, %v2147
      %v2164 = vpack.c.b16 %v2148, %v2148
      %v2165 = vpack.c.b16 %v2149, %v2149
      %v2166 = vpack.c.b16 %v2150, %v2150
      %v2167 = vpack.c.b16 %v2151, %v2151
      %v2168 = vpack.c.b16 %v2152, %v2152
      %v2169 = vpack.c.b16 %v2153, %v2153
      %v2170 = vpack.c.b16 %v2154, %v2154
      %v2171 = vpack.c.b16 %v2155, %v2155
      %v2172 = vpack.c.b16 %v2156, %v2156
      %v2173 = vpack.c.b16 %v2157, %v2157
      %v2174 = vpack.c.b16 %v2158, %v2158
      %vm2191 = vcmask 142336
      %2192 = vst.msk [vmem:[%s296] sm:$0xf] %vm2191, %v2159
      %2193 = vst.msk [vmem:[%s296 + $0x4] sm:$0xf] %vm2191, %v2160
      %2194 = vst.msk [vmem:[%s296 + $0x8] sm:$0xf] %vm2191, %v2161
      %2195 = vst.msk [vmem:[%s296 + $0xc] sm:$0xf] %vm2191, %v2162
      %2196 = vst.msk [vmem:[%s296 + $0x10] sm:$0xf] %vm2191, %v2163
      %2197 = vst.msk [vmem:[%s296 + $0x14] sm:$0xf] %vm2191, %v2164
      %2198 = vst.msk [vmem:[%s296 + $0x18] sm:$0xf] %vm2191, %v2165
      %2199 = vst.msk [vmem:[%s296 + $0x1c] sm:$0xf] %vm2191, %v2166
      %2200 = vst.msk [vmem:[%s296 + $0x20] sm:$0xf] %vm2191, %v2167
      %2201 = vst.msk [vmem:[%s296 + $0x24] sm:$0xf] %vm2191, %v2168
      %2202 = vst.msk [vmem:[%s296 + $0x28] sm:$0xf] %vm2191, %v2169
      %2203 = vst.msk [vmem:[%s296 + $0x2c] sm:$0xf] %vm2191, %v2170
      %2204 = vst.msk [vmem:[%s296 + $0x30] sm:$0xf] %vm2191, %v2171
      %2205 = vst.msk [vmem:[%s296 + $0x34] sm:$0xf] %vm2191, %v2172
      %2206 = vst.msk [vmem:[%s296 + $0x38] sm:$0xf] %vm2191, %v2173
      %2207 = vst.msk [vmem:[%s296 + $0x3c] sm:$0xf] %vm2191, %v2174
      %vm2208 = vcmask 146432
      %v2209 = vsel %vm2208, %v2111, 0.0
      %v2210 = vsel %vm2208, %v2112, 0.0
      %v2211 = vadd.f32 %v2209, %v2210
      %v2212 = vsel %vm2208, %v2113, 0.0
      %v2213 = vadd.f32 %v2211, %v2212
      %v2214 = vsel %vm2208, %v2114, 0.0
      %v2215 = vadd.f32 %v2213, %v2214
      %v2216 = vsel %vm2208, %v2115, 0.0
      %v2217 = vadd.f32 %v2215, %v2216
      %v2218 = vsel %vm2208, %v2116, 0.0
      %v2219 = vadd.f32 %v2217, %v2218
      %v2220 = vsel %vm2208, %v2117, 0.0
      %v2221 = vadd.f32 %v2219, %v2220
      %v2222 = vsel %vm2208, %v2118, 0.0
      %v2223 = vadd.f32 %v2221, %v2222
      %v2224 = vsel %vm2208, %v2119, 0.0
      %v2225 = vadd.f32 %v2223, %v2224
      %v2226 = vsel %vm2208, %v2120, 0.0
      %v2227 = vadd.f32 %v2225, %v2226
      %v2228 = vsel %vm2208, %v2121, 0.0
      %v2229 = vadd.f32 %v2227, %v2228
      %v2230 = vsel %vm2208, %v2122, 0.0
      %v2231 = vadd.f32 %v2229, %v2230
      %v2232 = vsel %vm2208, %v2123, 0.0
      %v2233 = vadd.f32 %v2231, %v2232
      %v2234 = vsel %vm2208, %v2124, 0.0
      %v2235 = vadd.f32 %v2233, %v2234
      %v2236 = vsel %vm2208, %v2125, 0.0
      %v2237 = vadd.f32 %v2235, %v2236
      %v2238 = vsel %vm2208, %v2126, 0.0
      %v2239 = vadd.f32 %v2237, %v2238
      %v2240 = vrot.slane %v2239, 4
      %v2241 = vadd.f32 %v2239, %v2240
      %v2242 = vrot.slane %v2241, 2
      %v2243 = vadd.f32 %v2241, %v2242
      %v2244 = vrot.slane %v2243, 1
      %v2245 = vadd.f32 %v2243, %v2244
      %vm2246 = vcmask 139264
      %2247 = vst.msk [vmem:[%s300] sm:$0x1] %vm2246, %v2245
      %v2248 = vmul.f32 %v2111, %v2111
      %v2249 = vmul.f32 %v2112, %v2112
      %v2250 = vmul.f32 %v2113, %v2113
      %v2251 = vmul.f32 %v2114, %v2114
      %v2252 = vmul.f32 %v2115, %v2115
      %v2253 = vmul.f32 %v2116, %v2116
      %v2254 = vmul.f32 %v2117, %v2117
      %v2255 = vmul.f32 %v2118, %v2118
      %v2256 = vmul.f32 %v2119, %v2119
      %v2257 = vmul.f32 %v2120, %v2120
      %v2258 = vmul.f32 %v2121, %v2121
      %v2259 = vmul.f32 %v2122, %v2122
      %v2260 = vmul.f32 %v2123, %v2123
      %v2261 = vmul.f32 %v2124, %v2124
      %v2262 = vmul.f32 %v2125, %v2125
      %v2263 = vmul.f32 %v2126, %v2126
      %v2264 = vsel %vm2208, %v2248, 0.0
      %v2265 = vsel %vm2208, %v2249, 0.0
      %v2266 = vadd.f32 %v2264, %v2265
      %v2267 = vsel %vm2208, %v2250, 0.0
      %v2268 = vadd.f32 %v2266, %v2267
      %v2269 = vsel %vm2208, %v2251, 0.0
      %v2270 = vadd.f32 %v2268, %v2269
      %v2271 = vsel %vm2208, %v2252, 0.0
      %v2272 = vadd.f32 %v2270, %v2271
      %v2273 = vsel %vm2208, %v2253, 0.0
      %v2274 = vadd.f32 %v2272, %v2273
      %v2275 = vsel %vm2208, %v2254, 0.0
      %v2276 = vadd.f32 %v2274, %v2275
      %v2277 = vsel %vm2208, %v2255, 0.0
      %v2278 = vadd.f32 %v2276, %v2277
      %v2279 = vsel %vm2208, %v2256, 0.0
      %v2280 = vadd.f32 %v2278, %v2279
      %v2281 = vsel %vm2208, %v2257, 0.0
      %v2282 = vadd.f32 %v2280, %v2281
      %v2283 = vsel %vm2208, %v2258, 0.0
      %v2284 = vadd.f32 %v2282, %v2283
      %v2285 = vsel %vm2208, %v2259, 0.0
      %v2286 = vadd.f32 %v2284, %v2285
      %v2287 = vsel %vm2208, %v2260, 0.0
      %v2288 = vadd.f32 %v2286, %v2287
      %v2289 = vsel %vm2208, %v2261, 0.0
      %v2290 = vadd.f32 %v2288, %v2289
      %v2291 = vsel %vm2208, %v2262, 0.0
      %v2292 = vadd.f32 %v2290, %v2291
      %v2293 = vsel %vm2208, %v2263, 0.0
      %v2294 = vadd.f32 %v2292, %v2293
      %v2295 = vrot.slane %v2294, 4
      %v2296 = vadd.f32 %v2294, %v2295
      %v2297 = vrot.slane %v2296, 2
      %v2298 = vadd.f32 %v2296, %v2297
      %v2299 = vrot.slane %v2298, 1
      %v2300 = vadd.f32 %v2298, %v2299
      %2301 = vst.msk [vmem:[%s303] sm:$0x1] %vm2246, %v2300
      %s2302 = smul.u32 2, %s19
      %p2303 = scmp.lt.s32.totalorder %s2302, 7
      %s2304 = scalar_select %p2303, %s2302, 7
      %s2305 = smul.addr %s2304, 8
      %s2306 = smul.addr %s2305, 4
      %s2307 = scalar_lea.vmem %s5, %s2306
      %p2308 = scmp.lt.s32.totalorder %s19, 3
      %s2309 = scalar_select %p2308, %s19, 3
      %s2310 = scalar_lea.vmem %s6, %s2309
      %p2311 = scmp.lt.s32.totalorder %s19, 3
      %s2312 = scalar_select %p2311, %s19, 3
      %s2313 = scalar_lea.vmem %s7, %s2312
      // Predicated region
      $region41: #{residual_block_forward.7} parent=39 // pred_check
        %p2314 = pneg %p147
      $region42: #{residual_block_forward.7} parent=39 // pred_check_branch
        %2316 = sbr.rel (%p2314) target = $region44
      $region43: #{residual_block_forward.7} parent=39 // pred_region
        %s2317 = smul.u32 2, %s19
      $region44: #{residual_block_forward.7} parent=39 // pred_fallthru
        _
      // Predicated region
      $region45: #{residual_block_forward.7} parent=39 // pred_check
        %p2318 = pneg %p173
      $region46: #{residual_block_forward.7} parent=39 // pred_check_branch
        %2320 = sbr.rel (%p2318) target = $region48
      $region47: #{residual_block_forward.7} parent=39 // pred_region
        _
      $region48: #{residual_block_forward.7} parent=39 // pred_fallthru
        _
      // Predicated region
      $region49: #{residual_block_forward.7} parent=39 // pred_check
        %p2321 = pneg %p199
      $region50: #{residual_block_forward.7} parent=39 // pred_check_branch
        %2323 = sbr.rel (%p2321) target = $region52
      $region51: #{residual_block_forward.7} parent=39 // pred_region
        _
      $region52: #{residual_block_forward.7} parent=39 // pred_fallthru
        _
    $region40: #{residual_block_forward.7} parent=5 // pred_fallthru
      _
    %p2324 = scmp.le.s32.totalorder 2, %s14
    // Predicated region
    $region53: #{residual_block_forward.7} parent=5 // pred_check
      %p2325 = pneg %p2324
    $region54: #{residual_block_forward.7} parent=5 // pred_check_branch
      %2327 = sbr.rel (%p2325) target = $region56
    $region55: #{residual_block_forward.7} parent=5 // pred_region
      %s2328 = ssub.s32 %s14, 2
      // Predicated region
      $region57: #{residual_block_forward.7} parent=55 // pred_check
        %p2329 = pneg %p153
      $region58: #{residual_block_forward.7} parent=55 // pred_check_branch
        %2331 = sbr.rel (%p2329) target = $region60
      $region59: #{residual_block_forward.7} parent=55 // pred_region
        %s2332 = smul.u32 2, %s20
        %p2333 = scmp.lt.s32.totalorder %s2332, 7
        %s2334 = scalar_select %p2333, %s2332, 7
        %s2335 = smul.addr %s2334, 8
        %s2336 = smul.addr %s2335, 4
        %s2337 = scalar_lea.vmem %s5, %s2336
      $region60: #{residual_block_forward.7} parent=55 // pred_fallthru
        _
      // Predicated region
      $region61: #{residual_block_forward.7} parent=55 // pred_check
        %p2338 = pneg %p179
      $region62: #{residual_block_forward.7} parent=55 // pred_check_branch
        %2340 = sbr.rel (%p2338) target = $region64
      $region63: #{residual_block_forward.7} parent=55 // pred_region
        %p2341 = scmp.lt.s32.totalorder %s20, 3
        %s2342 = scalar_select %p2341, %s20, 3
        %s2343 = scalar_lea.vmem %s6, %s2342
      $region64: #{residual_block_forward.7} parent=55 // pred_fallthru
        _
      // Predicated region
      $region65: #{residual_block_forward.7} parent=55 // pred_check
        %p2344 = pneg %p205
      $region66: #{residual_block_forward.7} parent=55 // pred_check_branch
        %2346 = sbr.rel (%p2344) target = $region68
      $region67: #{residual_block_forward.7} parent=55 // pred_region
        %p2347 = scmp.lt.s32.totalorder %s20, 3
        %s2348 = scalar_select %p2347, %s20, 3
        %s2349 = scalar_lea.vmem %s7, %s2348
      $region68: #{residual_block_forward.7} parent=55 // pred_fallthru
        _
    $region56: #{residual_block_forward.7} parent=5 // pred_fallthru
      _
  $region6: #{residual_block_forward.7} parent=0 // loop_footer
    %s18 = sadd.s32 1, %s14
  $region7: #{residual_block_forward.7} parent=0 // loop_footer_branch
    %13 = sbr.rel target = $region3
  $region8: #{residual_block_forward.7} parent=0 // loop_exit
    _

</llo_original>
